<compile_context>
chip_gen: v6e
topology: v6e:2x2x1
jax: 0.10.0
libtpu: 0.0.40
codegen_flags: <defaults>
</compile_context>

<pallas_src>
import jax
import jax.numpy as jnp
from jax.experimental import pallas as pl
from jax.experimental.pallas import tpu as pltpu

EPS = 1e-5  # nn.BatchNorm2d default eps

# Raise the default scoped-VMEM limit (16 MiB v5e / 32 MiB v6e,v7x) so large row tiles
# can actually double-buffer; block sizes below stay well under this budget.
_PARALLEL1 = pltpu.CompilerParams(
    dimension_semantics=("parallel",), vmem_limit_bytes=64 * 1024 * 1024)


# ------------------------------ small helpers ------------------------------

def _round_up(a, b):
    return (a + b - 1) // b * b


def _choose_tm(m, c):
    """Row tile: large, multiple of 8, >=2 grid steps when possible (megacore);
    capped channel-aware so the (tm, c) blocks stay within VMEM budgets."""
    if c <= 256:
        cap = 1024
    elif c <= 1024:
        cap = 512
    else:
        cap = 256   # TODO(synk): K-tile over cin instead of shrinking tm for very large cin
    if m >= 2 * cap:
        return cap
    half = _round_up((m + 1) // 2, 8)
    return max(8, min(cap, half))


def _pad_rows(x, m_pad):
    m = x.shape[0]
    if m_pad == m:
        return x
    return jnp.pad(x, ((0, m_pad - m), (0, 0)))


def _scale_shift(col_sum, col_sumsq, count, gamma, beta):
    """Train-mode BatchNorm (biased variance) folded into per-channel scale/shift."""
    mean = col_sum / count
    var = jnp.maximum(col_sumsq / count - mean * mean, 0.0)
    scale = gamma / jnp.sqrt(var + EPS)
    shift = beta - mean * scale
    return scale, shift


# ----------------------------- Pallas kernels -----------------------------

def _colsum_partial_kernel(x_ref, s_ref, ss_ref):
    # Per-channel partial sum / sum-of-squares for one row tile (BN1 batch statistics).
    x = x_ref[...]
    s_ref[0] = jnp.sum(x, axis=0, keepdims=True)
    ss_ref[0] = jnp.sum(x * x, axis=0, keepdims=True)


def _make_conv1_kernel(p1, with_sc):
    """BN1-affine + ReLU + single wide [conv1 | shortcut] 1x1 dot + BN2 partial-stat epilogue."""

    def kernel(*refs):
        if with_sc:
            x_ref, scale_ref, shift_ref, w_ref, o1_ref, osc_ref, s_ref, ss_ref = refs
        else:
            x_ref, scale_ref, shift_ref, w_ref, o1_ref, s_ref, ss_ref = refs
        a = jnp.maximum(x_ref[...] * scale_ref[...] + shift_ref[...], 0.0)
        ab = a.astype(jnp.bfloat16)                       # bf16 MXU operands, f32 accumulation
        y = jnp.dot(ab, w_ref[...], preferred_element_type=jnp.float32)
        y1 = y[:, :p1] if with_sc else y
        o1_ref[...] = y1.astype(jnp.bfloat16)             # bf16 intermediates -> half HBM traffic
        if with_sc:
            osc_ref[...] = y[:, p1:].astype(jnp.bfloat16)
        # BN2 partial stats in f32, computed before the bf16 cast
        s_ref[0] = jnp.sum(y1, axis=0, keepdims=True)
        ss_ref[0] = jnp.sum(y1 * y1, axis=0, keepdims=True)

    return kernel


def _make_conv2_kernel(h, w, ho, wo, c, cout, stride):
    """BN2-affine + ReLU + 3x3/pad=1/stride conv as one (ho*wo,9c)x(9c,cout) dot + BN3 stats."""

    def kernel(x_ref, scale_ref, shift_ref, w_ref, o_ref, s_ref, ss_ref, pad_ref, col_ref):
        a = jnp.maximum(x_ref[0].astype(jnp.float32) * scale_ref[...] + shift_ref[...], 0.0)
        ab = a.astype(jnp.bfloat16)
        # Zero only the halo ring each step; the interior is fully overwritten below.
        zrow = jnp.zeros((1, w + 2, c), jnp.bfloat16)
        zcol = jnp.zeros((h, 1, c), jnp.bfloat16)
        pad_ref[0:1, :, :] = zrow
        pad_ref[h + 1:h + 2, :, :] = zrow
        pad_ref[1:h + 1, 0:1, :] = zcol
        pad_ref[1:h + 1, w + 1:w + 2, :] = zcol
        pad_ref[1:h + 1, 1:w + 1, :] = ab
        # Gather the 9 shifted taps into one contiguous bf16 im2col scratch -> single K=9c dot.
        for kh in range(3):
            for kw in range(3):
                t = kh * 3 + kw
                if stride == 1:
                    patch = pad_ref[pl.ds(kh, ho), pl.ds(kw, wo), :]
                else:
                    patch = pad_ref[pl.ds(kh, ho, stride), pl.ds(kw, wo, stride), :]
                col_ref[:, :, t * c:(t + 1) * c] = patch
        acc = jnp.dot(col_ref[...].reshape(ho * wo, 9 * c), w_ref[...],
                      preferred_element_type=jnp.float32)
        o_ref[0] = acc.astype(jnp.bfloat16)
        s_ref[0] = jnp.sum(acc, axis=0, keepdims=True)
        ss_ref[0] = jnp.sum(acc * acc, axis=0, keepdims=True)

    return kernel


def _conv3_kernel(x_ref, scale_ref, shift_ref, w_ref, res_ref, o_ref):
    # BN3-affine + ReLU + 1x1 conv + residual add, fully fused (res dtype-agnostic: bf16 or f32).
    a = jnp.maximum(x_ref[...].astype(jnp.float32) * scale_ref[...] + shift_ref[...], 0.0)
    y = jnp.dot(a.astype(jnp.bfloat16), w_ref[...], preferred_element_type=jnp.float32)
    o_ref[...] = y + res_ref[...].astype(jnp.float32)


# --------------------------- pallas_call wrappers ---------------------------

def bn_batch_stats(x_pad, tm):
    """Tiled per-channel sum / sumsq over rows; tiny final reduction done in XLA."""
    m_pad, c = x_pad.shape
    nt = m_pad // tm
    s, ss = pl.pallas_call(
        _colsum_partial_kernel,
        out_shape=(jax.ShapeDtypeStruct((nt, 1, c), jnp.float32),
                   jax.ShapeDtypeStruct((nt, 1, c), jnp.float32)),
        grid=(nt,),
        in_specs=[pl.BlockSpec((tm, c), lambda i: (i, 0))],
        out_specs=(pl.BlockSpec((1, 1, c), lambda i: (i, 0, 0)),
                   pl.BlockSpec((1, 1, c), lambda i: (i, 0, 0))),
        compiler_params=_PARALLEL1,
    )(x_pad)
    return jnp.sum(s, axis=(0, 1)), jnp.sum(ss, axis=(0, 1))


def conv1_stage(x_pad, scale, shift, w_cat, p1, tm):
    m_pad, cin = x_pad.shape
    ncat = w_cat.shape[1]
    csc = ncat - p1
    with_sc = csc > 0
    nt = m_pad // tm
    kern = _make_conv1_kernel(p1, with_sc)

    in_specs = [pl.BlockSpec((tm, cin), lambda i: (i, 0)),
                pl.BlockSpec((1, cin), lambda i: (0, 0)),
                pl.BlockSpec((1, cin), lambda i: (0, 0)),
                pl.BlockSpec((cin, ncat), lambda i: (0, 0))]
    out_shape = [jax.ShapeDtypeStruct((m_pad, p1), jnp.bfloat16)]
    out_specs = [pl.BlockSpec((tm, p1), lambda i: (i, 0))]
    if with_sc:
        out_shape.append(jax.ShapeDtypeStruct((m_pad, csc), jnp.bfloat16))
        out_specs.append(pl.BlockSpec((tm, csc), lambda i: (i, 0)))
    stat_spec = pl.BlockSpec((1, 1, p1), lambda i: (i, 0, 0))
    out_shape += [jax.ShapeDtypeStruct((nt, 1, p1), jnp.float32)] * 2
    out_specs += [stat_spec, stat_spec]

    cost = pl.CostEstimate(
        flops=2 * m_pad * cin * ncat, transcendentals=0,
        bytes_accessed=m_pad * cin * 4 + cin * ncat * 2 + m_pad * ncat * 2 + 2 * nt * p1 * 4)

    res = pl.pallas_call(
        kern,
        out_shape=tuple(out_shape),
        grid=(nt,),
        in_specs=in_specs,
        out_specs=tuple(out_specs),
        compiler_params=_PARALLEL1,
        cost_estimate=cost,
    )(x_pad, scale, shift, w_cat)
    if with_sc:
        o1, osc, s, ss = res
    else:
        o1, s, ss = res
        osc = None
    return o1, osc, jnp.sum(s, axis=(0, 1)), jnp.sum(ss, axis=(0, 1))


def conv2_stage(out1_nhwc, scale, shift, w2_flat, stride):
    n, h, w, c = out1_nhwc.shape
    cout = w2_flat.shape[-1]
    ho = (h + 2 - 3) // stride + 1
    wo = (w + 2 - 3) // stride + 1
    kern = _make_conv2_kernel(h, w, ho, wo, c, cout, stride)
    cost = pl.CostEstimate(
        flops=2 * n * ho * wo * 9 * c * cout, transcendentals=0,
        bytes_accessed=n * h * w * c * 2 + 9 * c * cout * 2 + n * ho * wo * cout * 2)
    out, s, ss = pl.pallas_call(
        kern,
        out_shape=(jax.ShapeDtypeStruct((n, ho * wo, cout), jnp.bfloat16),
                   jax.ShapeDtypeStruct((n, 1, cout), jnp.float32),
                   jax.ShapeDtypeStruct((n, 1, cout), jnp.float32)),
        grid=(n,),
        in_specs=[pl.BlockSpec((1, h, w, c), lambda i: (i, 0, 0, 0)),
                  pl.BlockSpec((1, 1, c), lambda i: (0, 0, 0)),
                  pl.BlockSpec((1, 1, c), lambda i: (0, 0, 0)),
                  pl.BlockSpec((9 * c, cout), lambda i: (0, 0))],
        out_specs=(pl.BlockSpec((1, ho * wo, cout), lambda i: (i, 0, 0)),
                   pl.BlockSpec((1, 1, cout), lambda i: (i, 0, 0)),
                   pl.BlockSpec((1, 1, cout), lambda i: (i, 0, 0))),
        scratch_shapes=[pltpu.VMEM((h + 2, w + 2, c), jnp.bfloat16),
                        pltpu.VMEM((ho, wo, 9 * c), jnp.bfloat16)],
        compiler_params=_PARALLEL1,
        cost_estimate=cost,
    )(out1_nhwc, scale, shift, w2_flat)
    return (out.reshape(n * ho * wo, cout), ho, wo,
            jnp.sum(s, axis=(0, 1)), jnp.sum(ss, axis=(0, 1)))


def conv3_stage(x_pad, scale, shift, w, res_pad, tm):
    m_pad, cin = x_pad.shape
    cout = w.shape[1]
    res_bytes = res_pad.dtype.itemsize
    cost = pl.CostEstimate(
        flops=2 * m_pad * cin * cout, transcendentals=0,
        bytes_accessed=(m_pad * cin * 2 + cin * cout * 2
                        + m_pad * cout * res_bytes + m_pad * cout * 4))
    return pl.pallas_call(
        _conv3_kernel,
        out_shape=jax.ShapeDtypeStruct((m_pad, cout), jnp.float32),
        grid=(m_pad // tm,),
        in_specs=[pl.BlockSpec((tm, cin), lambda i: (i, 0)),
                  pl.BlockSpec((1, cin), lambda i: (0, 0)),
                  pl.BlockSpec((1, cin), lambda i: (0, 0)),
                  pl.BlockSpec((cin, cout), lambda i: (0, 0)),
                  pl.BlockSpec((tm, cout), lambda i: (i, 0))],
        out_specs=pl.BlockSpec((tm, cout), lambda i: (i, 0)),
        compiler_params=_PARALLEL1,
        cost_estimate=cost,
    )(x_pad, scale, shift, w, res_pad)


# ------------------------------- forward pass -------------------------------

def preact_bottleneck_forward(x_nchw, params, stride=1):
    n, cin, h, w = x_nchw.shape
    planes = params["conv1_w"].shape[0]
    cout = params["conv3_w"].shape[0]               # expansion * planes

    has_sc = "shortcut_w" in params
    if not has_sc:
        assert stride == 1, "identity shortcut requires stride == 1 (matches the PyTorch module)"

    x_nhwc = jnp.transpose(x_nchw, (0, 2, 3, 1)).astype(jnp.float32)
    m = n * h * w
    tm = _choose_tm(m, cin)
    m_pad = _round_up(m, tm)
    x_pad = _pad_rows(x_nhwc.reshape(m, cin), m_pad)

    # ---- bn1: tiled batch statistics (train-mode BN; zero-padded rows contribute 0) ----
    s1, ss1 = bn_batch_stats(x_pad, tm)
    scale1, shift1 = _scale_shift(s1, ss1, m, params["bn1_gamma"], params["bn1_beta"])
    scale1 = scale1.reshape(1, cin)
    shift1 = shift1.reshape(1, cin)

    w1 = params["conv1_w"].reshape(planes, cin).T.astype(jnp.bfloat16)
    if has_sc:
        wsc = params["shortcut_w"].reshape(cout, cin).T.astype(jnp.bfloat16)
        w_cat = jnp.concatenate([w1, wsc], axis=1)   # single wide MXU dot in the kernel
    else:
        w_cat = w1

    # ---- conv1 (1x1): bn1-affine + relu + [conv1 | shortcut] dot + bn2 partial stats ----
    out1_pad, sc_fused, s2, ss2 = conv1_stage(x_pad, scale1, shift1, w_cat, planes, tm)
    n_pad_rows = m_pad - m
    if n_pad_rows:
        # Analytic correction for zero-padded rows (they map to relu(shift1) @ w1) instead
        # of an in-kernel iota/where mask on every tile.
        a_pad = jnp.maximum(shift1, 0.0).astype(jnp.bfloat16)
        y_pad = jnp.dot(a_pad, w1, preferred_element_type=jnp.float32).reshape(planes)
        s2 = s2 - n_pad_rows * y_pad
        ss2 = ss2 - n_pad_rows * y_pad * y_pad
    scale2, shift2 = _scale_shift(s2, ss2, m, params["bn2_gamma"], params["bn2_beta"])

    # ---- conv2 (3x3, pad=1, stride): bn2-affine + relu + single-dot im2col + bn3 stats ----
    w2 = jnp.transpose(params["conv2_w"], (2, 3, 1, 0)).reshape(9 * planes, planes)
    w2 = w2.astype(jnp.bfloat16)
    out1_nhwc = out1_pad[:m].reshape(n, h, w, planes)
    out2_flat, ho, wo, s3, ss3 = conv2_stage(
        out1_nhwc, scale2.reshape(1, 1, planes), shift2.reshape(1, 1, planes), w2, stride)
    m2 = n * ho * wo
    scale3, shift3 = _scale_shift(s3, ss3, m2, params["bn3_gamma"], params["bn3_beta"])

    # ---- shortcut branch ----
    if not has_sc:
        shortcut_flat = x_nhwc.reshape(m, cin)       # identity shortcut uses raw x (f32, exact)
    else:
        sc_full = sc_fused[:m].reshape(n, h, w, cout)
        if stride != 1:
            # A 1x1 stride-s conv == stride-1 conv followed by spatial subsampling of the output.
            # TODO(synk): express the subsample via the conv3 residual BlockSpec index_map
            # instead of an XLA strided gather.
            sc_full = sc_full[:, ::stride, ::stride, :]
        shortcut_flat = sc_full.reshape(m2, cout)

    # ---- conv3 (1x1): bn3-affine + relu + conv + residual add ----
    tm2 = _choose_tm(m2, planes)
    m2_pad = _round_up(m2, tm2)
    w3 = params["conv3_w"].reshape(cout, planes).T.astype(jnp.bfloat16)
    out3 = conv3_stage(_pad_rows(out2_flat, m2_pad),
                       scale3.reshape(1, planes), shift3.reshape(1, planes),
                       w3, _pad_rows(shortcut_flat, m2_pad), tm2)

    out = out3[:m2].reshape(n, ho, wo, cout)
    return jnp.transpose(out, (0, 3, 1, 2))          # back to NCHW


# ---------------------------- params & reference ----------------------------

def init_params(key, in_planes, planes, stride=1, expansion=4):
    out_planes = expansion * planes
    ks = jax.random.split(key, 10)

    def conv_w(k, co, ci, kh, kw):
        fan_in = ci * kh * kw
        return jax.random.normal(k, (co, ci, kh, kw), jnp.float32) * jnp.sqrt(2.0 / fan_in)

    p = {
        "bn1_gamma": jax.random.uniform(ks[0], (in_planes,), jnp.float32, 0.5, 1.5),
        "bn1_beta": 0.1 * jax.random.normal(ks[1], (in_planes,), jnp.float32),
        "conv1_w": conv_w(ks[2], planes, in_planes, 1, 1),
        "bn2_gamma": jax.random.uniform(ks[3], (planes,), jnp.float32, 0.5, 1.5),
        "bn2_beta": 0.1 * jax.random.normal(ks[4], (planes,), jnp.float32),
        "conv2_w": conv_w(ks[5], planes, planes, 3, 3),
        "bn3_gamma": jax.random.uniform(ks[6], (planes,), jnp.float32, 0.5, 1.5),
        "bn3_beta": 0.1 * jax.random.normal(ks[7], (planes,), jnp.float32),
        "conv3_w": conv_w(ks[8], out_planes, planes, 1, 1),
    }
    if stride != 1 or in_planes != out_planes:
        p["shortcut_w"] = conv_w(ks[9], out_planes, in_planes, 1, 1)
    return p


def ref_forward(x, p, stride=1):
    """Pure-JAX reference (lax.conv, f32 HIGHEST), mirrors the PyTorch train-mode forward."""
    hi = jax.lax.Precision.HIGHEST

    def bn(z, gamma, beta):
        mean = jnp.mean(z, axis=(0, 2, 3), keepdims=True)
        var = jnp.var(z, axis=(0, 2, 3), keepdims=True)
        zn = (z - mean) / jnp.sqrt(var + EPS)
        return zn * gamma.reshape(1, -1, 1, 1) + beta.reshape(1, -1, 1, 1)

    def conv(z, w, s=1, pad=0):
        return jax.lax.conv_general_dilated(
            z, w, (s, s), [(pad, pad), (pad, pad)],
            dimension_numbers=("NCHW", "OIHW", "NCHW"), precision=hi)

    out = jax.nn.relu(bn(x, p["bn1_gamma"], p["bn1_beta"]))
    shortcut = conv(out, p["shortcut_w"], stride) if "shortcut_w" in p else x
    out = conv(out, p["conv1_w"])
    out = conv(jax.nn.relu(bn(out, p["bn2_gamma"], p["bn2_beta"])), p["conv2_w"], stride, 1)
    out = conv(jax.nn.relu(bn(out, p["bn3_gamma"], p["bn3_beta"])), p["conv3_w"])
    return out + shortcut


if __name__ == "__main__":
    key = jax.random.PRNGKey(0)
    k_x, k_p = jax.random.split(key)

    N, IN_PLANES, PLANES, H, W, STRIDE = 2, 4, 4, 16, 16, 1
    x = jax.random.normal(k_x, (N, IN_PLANES, H, W), jnp.float32)
    params = init_params(k_p, IN_PLANES, PLANES, STRIDE)

    fwd = jax.jit(lambda xx, pp: preact_bottleneck_forward(xx, pp, STRIDE))
    out = jax.block_until_ready(fwd(x, params))

    ref = ref_forward(x, params, STRIDE)
    assert out.shape == ref.shape == (N, 4 * PLANES, H, W), (out.shape, ref.shape)

    # bf16 MXU operands + bf16 inter-stage activations (f32 accumulation & stats)
    # -> compare at bf16-level tolerance.
    ref_mag = float(jnp.max(jnp.abs(ref)))
    err = float(jnp.max(jnp.abs(out - ref)))
    tol = 5e-2 * max(1.0, ref_mag)
    if err > tol:
        raise AssertionError(f"kernel vs reference mismatch: max abs err = {err} (tol={tol})")
    print("KERNEL_OK")
</pallas_src>

<mosaic_0001>
module attributes {stable_mosaic.version = 11 : i64} {
  func.func @_colsum_partial_kernel(%arg0: i32, %arg1: memref<256x4xf32, #tpu.memory_space<vmem>>, %arg2: memref<1x1x4xf32, #tpu.memory_space<vmem>>, %arg3: memref<1x1x4xf32, #tpu.memory_space<vmem>>) attributes {dimension_semantics = [#tpu.dimension_semantics<parallel>], iteration_bounds = array<i64: 2>, scalar_prefetch = 0 : i64, scratch_operands = 0 : i64, tpu.core_type = #tpu.core_type<tc>, window_params = [{transform_indices = @transform_0, window_bounds = array<i64: 256, 4>}, {transform_indices = @transform_1, window_bounds = array<i64: 1, 1, 4>}, {transform_indices = @transform_2, window_bounds = array<i64: 1, 1, 4>}]} {
    %c0 = arith.constant 0 : index
    %c0_0 = arith.constant 0 : index
    %0 = vector.load %arg1[%c0, %c0_0] : memref<256x4xf32, #tpu.memory_space<vmem>>, vector<256x4xf32>
    %cst = arith.constant dense<0.000000e+00> : vector<4xf32>
    %1 = vector.multi_reduction <add>, %0, %cst [0] : vector<256x4xf32> to vector<4xf32>
    %2 = vector.shape_cast %1 : vector<4xf32> to vector<1x4xf32>
    %c0_1 = arith.constant 0 : index
    %c0_2 = arith.constant 0 : index
    %c0_3 = arith.constant 0 : index
    %3 = vector.load %arg2[%c0_1, %c0_2, %c0_3] : memref<1x1x4xf32, #tpu.memory_space<vmem>>, vector<1x1x4xf32>
    %4 = vector.shape_cast %3 : vector<1x1x4xf32> to vector<1x4xf32>
    %5 = vector.shape_cast %2 : vector<1x4xf32> to vector<1x1x4xf32>
    tpu.vector_store %arg2[%c0_1, %c0_2, %c0_3], %5 {strides = array<i32>} : memref<1x1x4xf32, #tpu.memory_space<vmem>>, vector<1x1x4xf32>,
    %6 = arith.mulf %0, %0 : vector<256x4xf32>
    %cst_4 = arith.constant dense<0.000000e+00> : vector<4xf32>
    %7 = vector.multi_reduction <add>, %6, %cst_4 [0] : vector<256x4xf32> to vector<4xf32>
    %8 = vector.shape_cast %7 : vector<4xf32> to vector<1x4xf32>
    %c0_5 = arith.constant 0 : index
    %c0_6 = arith.constant 0 : index
    %c0_7 = arith.constant 0 : index
    %9 = vector.load %arg3[%c0_5, %c0_6, %c0_7] : memref<1x1x4xf32, #tpu.memory_space<vmem>>, vector<1x1x4xf32>
    %10 = vector.shape_cast %9 : vector<1x1x4xf32> to vector<1x4xf32>
    %11 = vector.shape_cast %8 : vector<1x4xf32> to vector<1x1x4xf32>
    tpu.vector_store %arg3[%c0_5, %c0_6, %c0_7], %11 {strides = array<i32>} : memref<1x1x4xf32, #tpu.memory_space<vmem>>, vector<1x1x4xf32>,
    return
  }
  func.func @transform_0(%arg0: i32) -> (i32, i32) {
    %c0_i32 = arith.constant 0 : i32
    %c0_i32_0 = arith.constant 0 : i32
    return %arg0, %c0_i32 : i32, i32
  }
  func.func @transform_1(%arg0: i32) -> (i32, i32, i32) {
    %c0_i32 = arith.constant 0 : i32
    %c0_i32_0 = arith.constant 0 : i32
    %c0_i32_1 = arith.constant 0 : i32
    return %arg0, %c0_i32, %c0_i32_0 : i32, i32, i32
  }
  func.func @transform_2(%arg0: i32) -> (i32, i32, i32) {
    %c0_i32 = arith.constant 0 : i32
    %c0_i32_0 = arith.constant 0 : i32
    %c0_i32_1 = arith.constant 0 : i32
    return %arg0, %c0_i32, %c0_i32_0 : i32, i32, i32
  }
}

module attributes {stable_mosaic.version = 11 : i64} {
  func.func @kernel(%arg0: i32, %arg1: memref<256x4xf32, #tpu.memory_space<vmem>>, %arg2: memref<1x4xf32, #tpu.memory_space<vmem>>, %arg3: memref<1x4xf32, #tpu.memory_space<vmem>>, %arg4: memref<4x20xbf16, #tpu.memory_space<vmem>>, %arg5: memref<256x4xbf16, #tpu.memory_space<vmem>>, %arg6: memref<256x16xbf16, #tpu.memory_space<vmem>>, %arg7: memref<1x1x4xf32, #tpu.memory_space<vmem>>, %arg8: memref<1x1x4xf32, #tpu.memory_space<vmem>>) attributes {dimension_semantics = [#tpu.dimension_semantics<parallel>], iteration_bounds = array<i64: 2>, scalar_prefetch = 0 : i64, scratch_operands = 0 : i64, tpu.core_type = #tpu.core_type<tc>, window_params = [{transform_indices = @transform_0, window_bounds = array<i64: 256, 4>}, {pipeline_mode = #tpu.pipeline_mode<synchronous>, transform_indices = @transform_1, window_bounds = array<i64: 1, 4>}, {pipeline_mode = #tpu.pipeline_mode<synchronous>, transform_indices = @transform_2, window_bounds = array<i64: 1, 4>}, {pipeline_mode = #tpu.pipeline_mode<synchronous>, transform_indices = @transform_3, window_bounds = array<i64: 4, 20>}, {transform_indices = @transform_4, window_bounds = array<i64: 256, 4>}, {transform_indices = @transform_5, window_bounds = array<i64: 256, 16>}, {transform_indices = @transform_6, window_bounds = array<i64: 1, 1, 4>}, {transform_indices = @transform_7, window_bounds = array<i64: 1, 1, 4>}]} {
    %c0 = arith.constant 0 : index
    %c0_0 = arith.constant 0 : index
    %0 = vector.load %arg1[%c0, %c0_0] : memref<256x4xf32, #tpu.memory_space<vmem>>, vector<256x4xf32>
    %c0_1 = arith.constant 0 : index
    %c0_2 = arith.constant 0 : index
    %1 = vector.load %arg2[%c0_1, %c0_2] : memref<1x4xf32, #tpu.memory_space<vmem>>, vector<1x4xf32>
    %2 = vector.broadcast %1 : vector<1x4xf32> to vector<256x4xf32>
    %3 = arith.mulf %0, %2 : vector<256x4xf32>
    %c0_3 = arith.constant 0 : index
    %c0_4 = arith.constant 0 : index
    %4 = vector.load %arg3[%c0_3, %c0_4] : memref<1x4xf32, #tpu.memory_space<vmem>>, vector<1x4xf32>
    %5 = vector.broadcast %4 : vector<1x4xf32> to vector<256x4xf32>
    %6 = arith.addf %3, %5 : vector<256x4xf32>
    %cst = arith.constant 0.000000e+00 : f32
    %7 = vector.broadcast %cst : f32 to vector<256x4xf32>
    %8 = arith.maximumf %6, %7 : vector<256x4xf32>
    %9 = arith.truncf %8 : vector<256x4xf32> to vector<256x4xbf16>
    %c0_5 = arith.constant 0 : index
    %c0_6 = arith.constant 0 : index
    %10 = vector.load %arg4[%c0_5, %c0_6] : memref<4x20xbf16, #tpu.memory_space<vmem>>, vector<4x20xbf16>
    %cst_7 = arith.constant dense<0.000000e+00> : vector<256x20xf32>
    %11 = tpu.matmul %9, %10, %cst_7 {dimension_numbers = #tpu.dot_dimension_numbers<[1], [0], [0], [1], [0, 0, 1, 1], [], []>} : vector<256x4xbf16>, vector<4x20xbf16>, vector<256x20xf32> -> vector<256x20xf32>
    %12 = vector.extract_strided_slice %11 {offsets = [0, 0], sizes = [256, 4], strides = [1, 1]} : vector<256x20xf32> to vector<256x4xf32>
    %13 = arith.truncf %12 : vector<256x4xf32> to vector<256x4xbf16>
    %c0_8 = arith.constant 0 : index
    %c0_9 = arith.constant 0 : index
    %14 = vector.load %arg5[%c0_8, %c0_9] : memref<256x4xbf16, #tpu.memory_space<vmem>>, vector<256x4xbf16>
    tpu.vector_store %arg5[%c0_8, %c0_9], %13 {strides = array<i32>} : memref<256x4xbf16, #tpu.memory_space<vmem>>, vector<256x4xbf16>,
    %15 = vector.extract_strided_slice %11 {offsets = [0, 4], sizes = [256, 16], strides = [1, 1]} : vector<256x20xf32> to vector<256x16xf32>
    %16 = arith.truncf %15 : vector<256x16xf32> to vector<256x16xbf16>
    %c0_10 = arith.constant 0 : index
    %c0_11 = arith.constant 0 : index
    %17 = vector.load %arg6[%c0_10, %c0_11] : memref<256x16xbf16, #tpu.memory_space<vmem>>, vector<256x16xbf16>
    tpu.vector_store %arg6[%c0_10, %c0_11], %16 {strides = array<i32>} : memref<256x16xbf16, #tpu.memory_space<vmem>>, vector<256x16xbf16>,
    %cst_12 = arith.constant dense<0.000000e+00> : vector<4xf32>
    %18 = vector.multi_reduction <add>, %12, %cst_12 [0] : vector<256x4xf32> to vector<4xf32>
    %19 = vector.shape_cast %18 : vector<4xf32> to vector<1x4xf32>
    %c0_13 = arith.constant 0 : index
    %c0_14 = arith.constant 0 : index
    %c0_15 = arith.constant 0 : index
    %20 = vector.load %arg7[%c0_13, %c0_14, %c0_15] : memref<1x1x4xf32, #tpu.memory_space<vmem>>, vector<1x1x4xf32>
    %21 = vector.shape_cast %20 : vector<1x1x4xf32> to vector<1x4xf32>
    %22 = vector.shape_cast %19 : vector<1x4xf32> to vector<1x1x4xf32>
    tpu.vector_store %arg7[%c0_13, %c0_14, %c0_15], %22 {strides = array<i32>} : memref<1x1x4xf32, #tpu.memory_space<vmem>>, vector<1x1x4xf32>,
    %23 = arith.mulf %12, %12 : vector<256x4xf32>
    %cst_16 = arith.constant dense<0.000000e+00> : vector<4xf32>
    %24 = vector.multi_reduction <add>, %23, %cst_16 [0] : vector<256x4xf32> to vector<4xf32>
    %25 = vector.shape_cast %24 : vector<4xf32> to vector<1x4xf32>
    %c0_17 = arith.constant 0 : index
    %c0_18 = arith.constant 0 : index
    %c0_19 = arith.constant 0 : index
    %26 = vector.load %arg8[%c0_17, %c0_18, %c0_19] : memref<1x1x4xf32, #tpu.memory_space<vmem>>, vector<1x1x4xf32>
    %27 = vector.shape_cast %26 : vector<1x1x4xf32> to vector<1x4xf32>
    %28 = vector.shape_cast %25 : vector<1x4xf32> to vector<1x1x4xf32>
    tpu.vector_store %arg8[%c0_17, %c0_18, %c0_19], %28 {strides = array<i32>} : memref<1x1x4xf32, #tpu.memory_space<vmem>>, vector<1x1x4xf32>,
    return
  }
  func.func @transform_0(%arg0: i32) -> (i32, i32) {
    %c0_i32 = arith.constant 0 : i32
    %c0_i32_0 = arith.constant 0 : i32
    return %arg0, %c0_i32 : i32, i32
  }
  func.func @transform_1(%arg0: i32) -> (i32, i32) {
    %c0_i32 = arith.constant 0 : i32
    %c0_i32_0 = arith.constant 0 : i32
    %c0_i32_1 = arith.constant 0 : i32
    return %c0_i32, %c0_i32_0 : i32, i32
  }
  func.func @transform_2(%arg0: i32) -> (i32, i32) {
    %c0_i32 = arith.constant 0 : i32
    %c0_i32_0 = arith.constant 0 : i32
    %c0_i32_1 = arith.constant 0 : i32
    return %c0_i32, %c0_i32_0 : i32, i32
  }
  func.func @transform_3(%arg0: i32) -> (i32, i32) {
    %c0_i32 = arith.constant 0 : i32
    %c0_i32_0 = arith.constant 0 : i32
    %c0_i32_1 = arith.constant 0 : i32
    return %c0_i32, %c0_i32_0 : i32, i32
  }
  func.func @transform_4(%arg0: i32) -> (i32, i32) {
    %c0_i32 = arith.constant 0 : i32
    %c0_i32_0 = arith.constant 0 : i32
    return %arg0, %c0_i32 : i32, i32
  }
  func.func @transform_5(%arg0: i32) -> (i32, i32) {
    %c0_i32 = arith.constant 0 : i32
    %c0_i32_0 = arith.constant 0 : i32
    return %arg0, %c0_i32 : i32, i32
  }
  func.func @transform_6(%arg0: i32) -> (i32, i32, i32) {
    %c0_i32 = arith.constant 0 : i32
    %c0_i32_0 = arith.constant 0 : i32
    %c0_i32_1 = arith.constant 0 : i32
    return %arg0, %c0_i32, %c0_i32_0 : i32, i32, i32
  }
  func.func @transform_7(%arg0: i32) -> (i32, i32, i32) {
    %c0_i32 = arith.constant 0 : i32
    %c0_i32_0 = arith.constant 0 : i32
    %c0_i32_1 = arith.constant 0 : i32
    return %arg0, %c0_i32, %c0_i32_0 : i32, i32, i32
  }
}

module attributes {stable_mosaic.version = 11 : i64} {
  func.func @_conv3_kernel(%arg0: i32, %arg1: memref<256x4xbf16, #tpu.memory_space<vmem>>, %arg2: memref<1x4xf32, #tpu.memory_space<vmem>>, %arg3: memref<1x4xf32, #tpu.memory_space<vmem>>, %arg4: memref<4x16xbf16, #tpu.memory_space<vmem>>, %arg5: memref<256x16xbf16, #tpu.memory_space<vmem>>, %arg6: memref<256x16xf32, #tpu.memory_space<vmem>>) attributes {dimension_semantics = [#tpu.dimension_semantics<parallel>], iteration_bounds = array<i64: 2>, scalar_prefetch = 0 : i64, scratch_operands = 0 : i64, tpu.core_type = #tpu.core_type<tc>, window_params = [{transform_indices = @transform_0, window_bounds = array<i64: 256, 4>}, {pipeline_mode = #tpu.pipeline_mode<synchronous>, transform_indices = @transform_1, window_bounds = array<i64: 1, 4>}, {pipeline_mode = #tpu.pipeline_mode<synchronous>, transform_indices = @transform_2, window_bounds = array<i64: 1, 4>}, {pipeline_mode = #tpu.pipeline_mode<synchronous>, transform_indices = @transform_3, window_bounds = array<i64: 4, 16>}, {transform_indices = @transform_4, window_bounds = array<i64: 256, 16>}, {transform_indices = @transform_5, window_bounds = array<i64: 256, 16>}]} {
    %c0 = arith.constant 0 : index
    %c0_0 = arith.constant 0 : index
    %0 = vector.load %arg1[%c0, %c0_0] : memref<256x4xbf16, #tpu.memory_space<vmem>>, vector<256x4xbf16>
    %1 = arith.extf %0 : vector<256x4xbf16> to vector<256x4xf32>
    %c0_1 = arith.constant 0 : index
    %c0_2 = arith.constant 0 : index
    %2 = vector.load %arg2[%c0_1, %c0_2] : memref<1x4xf32, #tpu.memory_space<vmem>>, vector<1x4xf32>
    %3 = vector.broadcast %2 : vector<1x4xf32> to vector<256x4xf32>
    %4 = arith.mulf %1, %3 : vector<256x4xf32>
    %c0_3 = arith.constant 0 : index
    %c0_4 = arith.constant 0 : index
    %5 = vector.load %arg3[%c0_3, %c0_4] : memref<1x4xf32, #tpu.memory_space<vmem>>, vector<1x4xf32>
    %6 = vector.broadcast %5 : vector<1x4xf32> to vector<256x4xf32>
    %7 = arith.addf %4, %6 : vector<256x4xf32>
    %cst = arith.constant 0.000000e+00 : f32
    %8 = vector.broadcast %cst : f32 to vector<256x4xf32>
    %9 = arith.maximumf %7, %8 : vector<256x4xf32>
    %10 = arith.truncf %9 : vector<256x4xf32> to vector<256x4xbf16>
    %c0_5 = arith.constant 0 : index
    %c0_6 = arith.constant 0 : index
    %11 = vector.load %arg4[%c0_5, %c0_6] : memref<4x16xbf16, #tpu.memory_space<vmem>>, vector<4x16xbf16>
    %cst_7 = arith.constant dense<0.000000e+00> : vector<256x16xf32>
    %12 = tpu.matmul %10, %11, %cst_7 {dimension_numbers = #tpu.dot_dimension_numbers<[1], [0], [0], [1], [0, 0, 1, 1], [], []>} : vector<256x4xbf16>, vector<4x16xbf16>, vector<256x16xf32> -> vector<256x16xf32>
    %c0_8 = arith.constant 0 : index
    %c0_9 = arith.constant 0 : index
    %13 = vector.load %arg5[%c0_8, %c0_9] : memref<256x16xbf16, #tpu.memory_space<vmem>>, vector<256x16xbf16>
    %14 = arith.extf %13 : vector<256x16xbf16> to vector<256x16xf32>
    %15 = arith.addf %12, %14 : vector<256x16xf32>
    %c0_10 = arith.constant 0 : index
    %c0_11 = arith.constant 0 : index
    %16 = vector.load %arg6[%c0_10, %c0_11] : memref<256x16xf32, #tpu.memory_space<vmem>>, vector<256x16xf32>
    tpu.vector_store %arg6[%c0_10, %c0_11], %15 {strides = array<i32>} : memref<256x16xf32, #tpu.memory_space<vmem>>, vector<256x16xf32>,
    return
  }
  func.func @transform_0(%arg0: i32) -> (i32, i32) {
    %c0_i32 = arith.constant 0 : i32
    %c0_i32_0 = arith.constant 0 : i32
    return %arg0, %c0_i32 : i32, i32
  }
  func.func @transform_1(%arg0: i32) -> (i32, i32) {
    %c0_i32 = arith.constant 0 : i32
    %c0_i32_0 = arith.constant 0 : i32
    %c0_i32_1 = arith.constant 0 : i32
    return %c0_i32, %c0_i32_0 : i32, i32
  }
  func.func @transform_2(%arg0: i32) -> (i32, i32) {
    %c0_i32 = arith.constant 0 : i32
    %c0_i32_0 = arith.constant 0 : i32
    %c0_i32_1 = arith.constant 0 : i32
    return %c0_i32, %c0_i32_0 : i32, i32
  }
  func.func @transform_3(%arg0: i32) -> (i32, i32) {
    %c0_i32 = arith.constant 0 : i32
    %c0_i32_0 = arith.constant 0 : i32
    %c0_i32_1 = arith.constant 0 : i32
    return %c0_i32, %c0_i32_0 : i32, i32
  }
  func.func @transform_4(%arg0: i32) -> (i32, i32) {
    %c0_i32 = arith.constant 0 : i32
    %c0_i32_0 = arith.constant 0 : i32
    return %arg0, %c0_i32 : i32, i32
  }
  func.func @transform_5(%arg0: i32) -> (i32, i32) {
    %c0_i32 = arith.constant 0 : i32
    %c0_i32_0 = arith.constant 0 : i32
    return %arg0, %c0_i32 : i32, i32
  }
}

module attributes {stable_mosaic.version = 11 : i64} {
  func.func @kernel(%arg0: i32, %arg1: memref<1x16x16x4xbf16, #tpu.memory_space<vmem>>, %arg2: memref<1x1x4xf32, #tpu.memory_space<vmem>>, %arg3: memref<1x1x4xf32, #tpu.memory_space<vmem>>, %arg4: memref<36x4xbf16, #tpu.memory_space<vmem>>, %arg5: memref<1x256x4xbf16, #tpu.memory_space<vmem>>, %arg6: memref<1x1x4xf32, #tpu.memory_space<vmem>>, %arg7: memref<1x1x4xf32, #tpu.memory_space<vmem>>, %arg8: memref<18x18x4xbf16, #tpu.memory_space<vmem>>, %arg9: memref<16x16x36xbf16, #tpu.memory_space<vmem>>) attributes {dimension_semantics = [#tpu.dimension_semantics<parallel>], iteration_bounds = array<i64: 2>, scalar_prefetch = 0 : i64, scratch_operands = 2 : i64, tpu.core_type = #tpu.core_type<tc>, window_params = [{transform_indices = @transform_0, window_bounds = array<i64: 1, 16, 16, 4>}, {pipeline_mode = #tpu.pipeline_mode<synchronous>, transform_indices = @transform_1, window_bounds = array<i64: 1, 1, 4>}, {pipeline_mode = #tpu.pipeline_mode<synchronous>, transform_indices = @transform_2, window_bounds = array<i64: 1, 1, 4>}, {pipeline_mode = #tpu.pipeline_mode<synchronous>, transform_indices = @transform_3, window_bounds = array<i64: 36, 4>}, {transform_indices = @transform_4, window_bounds = array<i64: 1, 256, 4>}, {transform_indices = @transform_5, window_bounds = array<i64: 1, 1, 4>}, {transform_indices = @transform_6, window_bounds = array<i64: 1, 1, 4>}]} {
    %c0 = arith.constant 0 : index
    %c0_0 = arith.constant 0 : index
    %c0_1 = arith.constant 0 : index
    %c0_2 = arith.constant 0 : index
    %0 = vector.load %arg1[%c0, %c0_0, %c0_1, %c0_2] : memref<1x16x16x4xbf16, #tpu.memory_space<vmem>>, vector<1x16x16x4xbf16>
    %1 = vector.shape_cast %0 : vector<1x16x16x4xbf16> to vector<16x16x4xbf16>
    %2 = arith.extf %1 : vector<16x16x4xbf16> to vector<16x16x4xf32>
    %c0_3 = arith.constant 0 : index
    %c0_4 = arith.constant 0 : index
    %c0_5 = arith.constant 0 : index
    %3 = vector.load %arg2[%c0_3, %c0_4, %c0_5] : memref<1x1x4xf32, #tpu.memory_space<vmem>>, vector<1x1x4xf32>
    %4 = vector.broadcast %3 : vector<1x1x4xf32> to vector<16x16x4xf32>
    %5 = arith.mulf %2, %4 : vector<16x16x4xf32>
    %c0_6 = arith.constant 0 : index
    %c0_7 = arith.constant 0 : index
    %c0_8 = arith.constant 0 : index
    %6 = vector.load %arg3[%c0_6, %c0_7, %c0_8] : memref<1x1x4xf32, #tpu.memory_space<vmem>>, vector<1x1x4xf32>
    %7 = vector.broadcast %6 : vector<1x1x4xf32> to vector<16x16x4xf32>
    %8 = arith.addf %5, %7 : vector<16x16x4xf32>
    %cst = arith.constant 0.000000e+00 : f32
    %9 = vector.broadcast %cst : f32 to vector<16x16x4xf32>
    %10 = arith.maximumf %8, %9 : vector<16x16x4xf32>
    %11 = arith.truncf %10 : vector<16x16x4xf32> to vector<16x16x4xbf16>
    %cst_9 = arith.constant 0.000000e+00 : bf16
    %12 = vector.broadcast %cst_9 : bf16 to vector<1x18x4xbf16>
    %cst_10 = arith.constant 0.000000e+00 : bf16
    %13 = vector.broadcast %cst_10 : bf16 to vector<16x1x4xbf16>
    %c0_11 = arith.constant 0 : index
    %c0_12 = arith.constant 0 : index
    %c0_13 = arith.constant 0 : index
    %14 = vector.load %arg8[%c0_11, %c0_12, %c0_13] : memref<18x18x4xbf16, #tpu.memory_space<vmem>>, vector<1x18x4xbf16>
    tpu.vector_store %arg8[%c0_11, %c0_12, %c0_13], %12 {strides = array<i32>} : memref<18x18x4xbf16, #tpu.memory_space<vmem>>, vector<1x18x4xbf16>,
    %c17 = arith.constant 17 : index
    %c0_14 = arith.constant 0 : index
    %c0_15 = arith.constant 0 : index
    %15 = vector.load %arg8[%c17, %c0_14, %c0_15] : memref<18x18x4xbf16, #tpu.memory_space<vmem>>, vector<1x18x4xbf16>
    tpu.vector_store %arg8[%c17, %c0_14, %c0_15], %12 {strides = array<i32>} : memref<18x18x4xbf16, #tpu.memory_space<vmem>>, vector<1x18x4xbf16>,
    %c1 = arith.constant 1 : index
    %c0_16 = arith.constant 0 : index
    %c0_17 = arith.constant 0 : index
    %16 = vector.load %arg8[%c1, %c0_16, %c0_17] : memref<18x18x4xbf16, #tpu.memory_space<vmem>>, vector<16x1x4xbf16>
    tpu.vector_store %arg8[%c1, %c0_16, %c0_17], %13 {strides = array<i32>} : memref<18x18x4xbf16, #tpu.memory_space<vmem>>, vector<16x1x4xbf16>,
    %c1_18 = arith.constant 1 : index
    %c17_19 = arith.constant 17 : index
    %c0_20 = arith.constant 0 : index
    %17 = vector.load %arg8[%c1_18, %c17_19, %c0_20] : memref<18x18x4xbf16, #tpu.memory_space<vmem>>, vector<16x1x4xbf16>
    tpu.vector_store %arg8[%c1_18, %c17_19, %c0_20], %13 {strides = array<i32>} : memref<18x18x4xbf16, #tpu.memory_space<vmem>>, vector<16x1x4xbf16>,
    %c1_21 = arith.constant 1 : index
    %c1_22 = arith.constant 1 : index
    %c0_23 = arith.constant 0 : index
    %18 = vector.load %arg8[%c1_21, %c1_22, %c0_23] : memref<18x18x4xbf16, #tpu.memory_space<vmem>>, vector<16x16x4xbf16>
    tpu.vector_store %arg8[%c1_21, %c1_22, %c0_23], %11 {strides = array<i32>} : memref<18x18x4xbf16, #tpu.memory_space<vmem>>, vector<16x16x4xbf16>,
    %c0_24 = arith.constant 0 : index
    %c0_25 = arith.constant 0 : index
    %c0_26 = arith.constant 0 : index
    %19 = vector.load %arg8[%c0_24, %c0_25, %c0_26] : memref<18x18x4xbf16, #tpu.memory_space<vmem>>, vector<16x16x4xbf16>
    %c0_27 = arith.constant 0 : index
    %c0_28 = arith.constant 0 : index
    %c0_29 = arith.constant 0 : index
    %20 = vector.load %arg9[%c0_27, %c0_28, %c0_29] : memref<16x16x36xbf16, #tpu.memory_space<vmem>>, vector<16x16x4xbf16>
    tpu.vector_store %arg9[%c0_27, %c0_28, %c0_29], %19 {strides = array<i32>} : memref<16x16x36xbf16, #tpu.memory_space<vmem>>, vector<16x16x4xbf16>,
    %c0_30 = arith.constant 0 : index
    %c1_31 = arith.constant 1 : index
    %c0_32 = arith.constant 0 : index
    %21 = vector.load %arg8[%c0_30, %c1_31, %c0_32] : memref<18x18x4xbf16, #tpu.memory_space<vmem>>, vector<16x16x4xbf16>
    %c0_33 = arith.constant 0 : index
    %c0_34 = arith.constant 0 : index
    %c4 = arith.constant 4 : index
    %22 = vector.load %arg9[%c0_33, %c0_34, %c4] : memref<16x16x36xbf16, #tpu.memory_space<vmem>>, vector<16x16x4xbf16>
    tpu.vector_store %arg9[%c0_33, %c0_34, %c4], %21 {strides = array<i32>} : memref<16x16x36xbf16, #tpu.memory_space<vmem>>, vector<16x16x4xbf16>,
    %c0_35 = arith.constant 0 : index
    %c2 = arith.constant 2 : index
    %c0_36 = arith.constant 0 : index
    %23 = vector.load %arg8[%c0_35, %c2, %c0_36] : memref<18x18x4xbf16, #tpu.memory_space<vmem>>, vector<16x16x4xbf16>
    %c0_37 = arith.constant 0 : index
    %c0_38 = arith.constant 0 : index
    %c8 = arith.constant 8 : index
    %24 = vector.load %arg9[%c0_37, %c0_38, %c8] : memref<16x16x36xbf16, #tpu.memory_space<vmem>>, vector<16x16x4xbf16>
    tpu.vector_store %arg9[%c0_37, %c0_38, %c8], %23 {strides = array<i32>} : memref<16x16x36xbf16, #tpu.memory_space<vmem>>, vector<16x16x4xbf16>,
    %c1_39 = arith.constant 1 : index
    %c0_40 = arith.constant 0 : index
    %c0_41 = arith.constant 0 : index
    %25 = vector.load %arg8[%c1_39, %c0_40, %c0_41] : memref<18x18x4xbf16, #tpu.memory_space<vmem>>, vector<16x16x4xbf16>
    %c0_42 = arith.constant 0 : index
    %c0_43 = arith.constant 0 : index
    %c12 = arith.constant 12 : index
    %26 = vector.load %arg9[%c0_42, %c0_43, %c12] : memref<16x16x36xbf16, #tpu.memory_space<vmem>>, vector<16x16x4xbf16>
    tpu.vector_store %arg9[%c0_42, %c0_43, %c12], %25 {strides = array<i32>} : memref<16x16x36xbf16, #tpu.memory_space<vmem>>, vector<16x16x4xbf16>,
    %c1_44 = arith.constant 1 : index
    %c1_45 = arith.constant 1 : index
    %c0_46 = arith.constant 0 : index
    %27 = vector.load %arg8[%c1_44, %c1_45, %c0_46] : memref<18x18x4xbf16, #tpu.memory_space<vmem>>, vector<16x16x4xbf16>
    %c0_47 = arith.constant 0 : index
    %c0_48 = arith.constant 0 : index
    %c16 = arith.constant 16 : index
    %28 = vector.load %arg9[%c0_47, %c0_48, %c16] : memref<16x16x36xbf16, #tpu.memory_space<vmem>>, vector<16x16x4xbf16>
    tpu.vector_store %arg9[%c0_47, %c0_48, %c16], %27 {strides = array<i32>} : memref<16x16x36xbf16, #tpu.memory_space<vmem>>, vector<16x16x4xbf16>,
    %c1_49 = arith.constant 1 : index
    %c2_50 = arith.constant 2 : index
    %c0_51 = arith.constant 0 : index
    %29 = vector.load %arg8[%c1_49, %c2_50, %c0_51] : memref<18x18x4xbf16, #tpu.memory_space<vmem>>, vector<16x16x4xbf16>
    %c0_52 = arith.constant 0 : index
    %c0_53 = arith.constant 0 : index
    %c20 = arith.constant 20 : index
    %30 = vector.load %arg9[%c0_52, %c0_53, %c20] : memref<16x16x36xbf16, #tpu.memory_space<vmem>>, vector<16x16x4xbf16>
    tpu.vector_store %arg9[%c0_52, %c0_53, %c20], %29 {strides = array<i32>} : memref<16x16x36xbf16, #tpu.memory_space<vmem>>, vector<16x16x4xbf16>,
    %c2_54 = arith.constant 2 : index
    %c0_55 = arith.constant 0 : index
    %c0_56 = arith.constant 0 : index
    %31 = vector.load %arg8[%c2_54, %c0_55, %c0_56] : memref<18x18x4xbf16, #tpu.memory_space<vmem>>, vector<16x16x4xbf16>
    %c0_57 = arith.constant 0 : index
    %c0_58 = arith.constant 0 : index
    %c24 = arith.constant 24 : index
    %32 = vector.load %arg9[%c0_57, %c0_58, %c24] : memref<16x16x36xbf16, #tpu.memory_space<vmem>>, vector<16x16x4xbf16>
    tpu.vector_store %arg9[%c0_57, %c0_58, %c24], %31 {strides = array<i32>} : memref<16x16x36xbf16, #tpu.memory_space<vmem>>, vector<16x16x4xbf16>,
    %c2_59 = arith.constant 2 : index
    %c1_60 = arith.constant 1 : index
    %c0_61 = arith.constant 0 : index
    %33 = vector.load %arg8[%c2_59, %c1_60, %c0_61] : memref<18x18x4xbf16, #tpu.memory_space<vmem>>, vector<16x16x4xbf16>
    %c0_62 = arith.constant 0 : index
    %c0_63 = arith.constant 0 : index
    %c28 = arith.constant 28 : index
    %34 = vector.load %arg9[%c0_62, %c0_63, %c28] : memref<16x16x36xbf16, #tpu.memory_space<vmem>>, vector<16x16x4xbf16>
    tpu.vector_store %arg9[%c0_62, %c0_63, %c28], %33 {strides = array<i32>} : memref<16x16x36xbf16, #tpu.memory_space<vmem>>, vector<16x16x4xbf16>,
    %c2_64 = arith.constant 2 : index
    %c2_65 = arith.constant 2 : index
    %c0_66 = arith.constant 0 : index
    %35 = vector.load %arg8[%c2_64, %c2_65, %c0_66] : memref<18x18x4xbf16, #tpu.memory_space<vmem>>, vector<16x16x4xbf16>
    %c0_67 = arith.constant 0 : index
    %c0_68 = arith.constant 0 : index
    %c32 = arith.constant 32 : index
    %36 = vector.load %arg9[%c0_67, %c0_68, %c32] : memref<16x16x36xbf16, #tpu.memory_space<vmem>>, vector<16x16x4xbf16>
    tpu.vector_store %arg9[%c0_67, %c0_68, %c32], %35 {strides = array<i32>} : memref<16x16x36xbf16, #tpu.memory_space<vmem>>, vector<16x16x4xbf16>,
    %c0_69 = arith.constant 0 : index
    %c0_70 = arith.constant 0 : index
    %c0_71 = arith.constant 0 : index
    %37 = vector.load %arg9[%c0_69, %c0_70, %c0_71] : memref<16x16x36xbf16, #tpu.memory_space<vmem>>, vector<16x16x36xbf16>
    %38 = vector.shape_cast %37 : vector<16x16x36xbf16> to vector<256x36xbf16>
    %c0_72 = arith.constant 0 : index
    %c0_73 = arith.constant 0 : index
    %39 = vector.load %arg4[%c0_72, %c0_73] : memref<36x4xbf16, #tpu.memory_space<vmem>>, vector<36x4xbf16>
    %cst_74 = arith.constant dense<0.000000e+00> : vector<256x4xf32>
    %40 = tpu.matmul %38, %39, %cst_74 {dimension_numbers = #tpu.dot_dimension_numbers<[1], [0], [0], [1], [0, 0, 1, 1], [], []>} : vector<256x36xbf16>, vector<36x4xbf16>, vector<256x4xf32> -> vector<256x4xf32>
    %41 = arith.truncf %40 : vector<256x4xf32> to vector<256x4xbf16>
    %c0_75 = arith.constant 0 : index
    %c0_76 = arith.constant 0 : index
    %c0_77 = arith.constant 0 : index
    %42 = vector.load %arg5[%c0_75, %c0_76, %c0_77] : memref<1x256x4xbf16, #tpu.memory_space<vmem>>, vector<1x256x4xbf16>
    %43 = vector.shape_cast %42 : vector<1x256x4xbf16> to vector<256x4xbf16>
    %44 = vector.shape_cast %41 : vector<256x4xbf16> to vector<1x256x4xbf16>
    tpu.vector_store %arg5[%c0_75, %c0_76, %c0_77], %44 {strides = array<i32>} : memref<1x256x4xbf16, #tpu.memory_space<vmem>>, vector<1x256x4xbf16>,
    %cst_78 = arith.constant dense<0.000000e+00> : vector<4xf32>
    %45 = vector.multi_reduction <add>, %40, %cst_78 [0] : vector<256x4xf32> to vector<4xf32>
    %46 = vector.shape_cast %45 : vector<4xf32> to vector<1x4xf32>
    %c0_79 = arith.constant 0 : index
    %c0_80 = arith.constant 0 : index
    %c0_81 = arith.constant 0 : index
    %47 = vector.load %arg6[%c0_79, %c0_80, %c0_81] : memref<1x1x4xf32, #tpu.memory_space<vmem>>, vector<1x1x4xf32>
    %48 = vector.shape_cast %47 : vector<1x1x4xf32> to vector<1x4xf32>
    %49 = vector.shape_cast %46 : vector<1x4xf32> to vector<1x1x4xf32>
    tpu.vector_store %arg6[%c0_79, %c0_80, %c0_81], %49 {strides = array<i32>} : memref<1x1x4xf32, #tpu.memory_space<vmem>>, vector<1x1x4xf32>,
    %50 = arith.mulf %40, %40 : vector<256x4xf32>
    %cst_82 = arith.constant dense<0.000000e+00> : vector<4xf32>
    %51 = vector.multi_reduction <add>, %50, %cst_82 [0] : vector<256x4xf32> to vector<4xf32>
    %52 = vector.shape_cast %51 : vector<4xf32> to vector<1x4xf32>
    %c0_83 = arith.constant 0 : index
    %c0_84 = arith.constant 0 : index
    %c0_85 = arith.constant 0 : index
    %53 = vector.load %arg7[%c0_83, %c0_84, %c0_85] : memref<1x1x4xf32, #tpu.memory_space<vmem>>, vector<1x1x4xf32>
    %54 = vector.shape_cast %53 : vector<1x1x4xf32> to vector<1x4xf32>
    %55 = vector.shape_cast %52 : vector<1x4xf32> to vector<1x1x4xf32>
    tpu.vector_store %arg7[%c0_83, %c0_84, %c0_85], %55 {strides = array<i32>} : memref<1x1x4xf32, #tpu.memory_space<vmem>>, vector<1x1x4xf32>,
    return
  }
  func.func @transform_0(%arg0: i32) -> (i32, i32, i32, i32) {
    %c0_i32 = arith.constant 0 : i32
    %c0_i32_0 = arith.constant 0 : i32
    %c0_i32_1 = arith.constant 0 : i32
    %c0_i32_2 = arith.constant 0 : i32
    return %arg0, %c0_i32, %c0_i32_0, %c0_i32_1 : i32, i32, i32, i32
  }
  func.func @transform_1(%arg0: i32) -> (i32, i32, i32) {
    %c0_i32 = arith.constant 0 : i32
    %c0_i32_0 = arith.constant 0 : i32
    %c0_i32_1 = arith.constant 0 : i32
    %c0_i32_2 = arith.constant 0 : i32
    return %c0_i32, %c0_i32_0, %c0_i32_1 : i32, i32, i32
  }
  func.func @transform_2(%arg0: i32) -> (i32, i32, i32) {
    %c0_i32 = arith.constant 0 : i32
    %c0_i32_0 = arith.constant 0 : i32
    %c0_i32_1 = arith.constant 0 : i32
    %c0_i32_2 = arith.constant 0 : i32
    return %c0_i32, %c0_i32_0, %c0_i32_1 : i32, i32, i32
  }
  func.func @transform_3(%arg0: i32) -> (i32, i32) {
    %c0_i32 = arith.constant 0 : i32
    %c0_i32_0 = arith.constant 0 : i32
    %c0_i32_1 = arith.constant 0 : i32
    return %c0_i32, %c0_i32_0 : i32, i32
  }
  func.func @transform_4(%arg0: i32) -> (i32, i32, i32) {
    %c0_i32 = arith.constant 0 : i32
    %c0_i32_0 = arith.constant 0 : i32
    %c0_i32_1 = arith.constant 0 : i32
    return %arg0, %c0_i32, %c0_i32_0 : i32, i32, i32
  }
  func.func @transform_5(%arg0: i32) -> (i32, i32, i32) {
    %c0_i32 = arith.constant 0 : i32
    %c0_i32_0 = arith.constant 0 : i32
    %c0_i32_1 = arith.constant 0 : i32
    return %arg0, %c0_i32, %c0_i32_0 : i32, i32, i32
  }
  func.func @transform_6(%arg0: i32) -> (i32, i32, i32) {
    %c0_i32 = arith.constant 0 : i32
    %c0_i32_0 = arith.constant 0 : i32
    %c0_i32_1 = arith.constant 0 : i32
    return %arg0, %c0_i32, %c0_i32_0 : i32, i32, i32
  }
}

</mosaic_0001>

<llo_original>
// kernel: _lambda_.4
$region0: #{_lambda_.4}
  #allocation0 [shape = 'u32[]', space=smem, size = 0x4, offset = 0x4, fixed_abs, tag = 'smem constant byte address 0x4 - core index']
  #allocation1 [shape = 'u32[144,128]{1,0:T(1,128)}', space=vmem, size = 0x12000, scoped, tag = 'internal scratch']
  %s0 = inlined_call_operand.vmem [shape: f32[512,4], index: 0, kind: input, shape index: {}]
  %s1 = inlined_call_operand.vmem [shape: f32[2,1,4], index: 1, kind: output, shape index: {0}]
  %s2 = inlined_call_operand.vmem [shape: f32[2,1,4], index: 2, kind: output, shape index: {1}]
  %3 = xla_tuple %s1, %s2
  %s4 = sld [smem:[#allocation0]]
  $region45: #{_lambda_.4} parent=0
    _
  %s6 = ssub.s32 1, %s4
  %s7 = scalar_select 0, %s6, %s4
  loop: start=0, step=1, limit=4
  $region2: #{_lambda_.4} parent=0 // loop_pre_header
    _
  $region3: #{_lambda_.4} parent=0 // loop_header
    %s9 = sphi 0, %s13
    %p10 = scmp.ge.s32.totalorder %s9, 4
    %s19 = sphi 0, %s21
    %s22 = sphi 0, %s19
    %s23 = sphi 0, %s22
    %s39 = sphi 0, %s23
    %s45 = sphi 0, %s47
    %s48 = sphi 0, %s45
    %s49 = sphi 0, %s48
    %s65 = sphi 0, %s49
    %s71 = sphi 0, %s73
    %s74 = sphi 0, %s71
    %s75 = sphi 0, %s74
    %s91 = sphi 0, %s75
  $region4: #{_lambda_.4} parent=0 // loop_header_branch
    %12 = sbr.rel (%p10) target = $region8
  $region5: #{_lambda_.4} parent=0 // loop_body
    %s14 = ssub.s32 %s9, 1
    %s15 = ssub.s32 %s9, 2
    %s16 = sadd.s32 %s9, 1
    %s17 = ssub.s32 %s9, %s16
    %p18 = scmp.eq.s32.totalorder %s17, 0
    %s20 = sadd.s32 %s19, 1
    %s21 = scalar_select %p18, %s19, %s20
    %p24 = pneg %p18
    %p25 = scmp.eq.s32.totalorder %s9, 1
    %p26 = por %p24, %p25
    %p27 = scmp.ne.s32.totalorder %s19, %s22
    %p28 = scmp.eq.s32.totalorder %s9, 0
    %p29 = por %p27, %p28
    %p30 = scmp.ne.s32.totalorder %s19, %s22
    %p31 = scmp.eq.s32.totalorder %s14, 1
    %p32 = por %p30, %p31
    %p33 = scmp.ne.s32.totalorder %s22, %s23
    %p34 = scmp.eq.s32.totalorder %s14, 0
    %p35 = por %p33, %p34
    %p36 = scmp.ne.s32.totalorder %s22, %s23
    %p37 = scmp.eq.s32.totalorder %s15, 1
    %p38 = por %p36, %p37
    %p40 = scmp.ne.s32.totalorder %s23, %s39
    %p41 = scmp.eq.s32.totalorder %s15, 0
    %p42 = por %p40, %p41
    %s43 = ssub.s32 %s9, %s16
    %p44 = scmp.eq.s32.totalorder %s43, 0
    %s46 = sadd.s32 %s45, 1
    %s47 = scalar_select %p44, %s45, %s46
    %p50 = pneg %p44
    %p51 = scmp.eq.s32.totalorder %s9, 1
    %p52 = por %p50, %p51
    %p53 = scmp.ne.s32.totalorder %s45, %s48
    %p54 = scmp.eq.s32.totalorder %s9, 0
    %p55 = por %p53, %p54
    %p56 = scmp.ne.s32.totalorder %s45, %s48
    %p57 = scmp.eq.s32.totalorder %s14, 1
    %p58 = por %p56, %p57
    %p59 = scmp.ne.s32.totalorder %s48, %s49
    %p60 = scmp.eq.s32.totalorder %s14, 0
    %p61 = por %p59, %p60
    %p62 = scmp.ne.s32.totalorder %s48, %s49
    %p63 = scmp.eq.s32.totalorder %s15, 1
    %p64 = por %p62, %p63
    %p66 = scmp.ne.s32.totalorder %s49, %s65
    %p67 = scmp.eq.s32.totalorder %s15, 0
    %p68 = por %p66, %p67
    %s69 = ssub.s32 %s9, %s16
    %p70 = scmp.eq.s32.totalorder %s69, 0
    %s72 = sadd.s32 %s71, 1
    %s73 = scalar_select %p70, %s71, %s72
    %p76 = pneg %p70
    %p77 = scmp.eq.s32.totalorder %s9, 1
    %p78 = por %p76, %p77
    %p79 = scmp.ne.s32.totalorder %s71, %s74
    %p80 = scmp.eq.s32.totalorder %s9, 0
    %p81 = por %p79, %p80
    %p82 = scmp.ne.s32.totalorder %s71, %s74
    %p83 = scmp.eq.s32.totalorder %s14, 1
    %p84 = por %p82, %p83
    %p85 = scmp.ne.s32.totalorder %s74, %s75
    %p86 = scmp.eq.s32.totalorder %s14, 0
    %p87 = por %p85, %p86
    %p88 = scmp.ne.s32.totalorder %s74, %s75
    %p89 = scmp.eq.s32.totalorder %s15, 1
    %p90 = por %p88, %p89
    %p92 = scmp.ne.s32.totalorder %s75, %s91
    %p93 = scmp.eq.s32.totalorder %s15, 0
    %p94 = por %p92, %p93
    %p95 = scmp.le.s32.totalorder 1, %s9
    %p96 = scmp.lt.s32.totalorder %s9, 3
    %p97 = pnand %p95, %p96
    %p98 = pneg %p97
    // Predicated region
    $region9: #{_lambda_.4} parent=5 // pred_check
      _
    $region10: #{_lambda_.4} parent=5 // pred_check_branch
      %100 = sbr.rel (%p97) target = $region12
    $region11: #{_lambda_.4} parent=5 // pred_region
      %s101 = ssub.s32 %s9, 1
    $region12: #{_lambda_.4} parent=5 // pred_fallthru
      _
    %p102 = scmp.lt.s32.totalorder %s9, 2
    // Predicated region
    $region13: #{_lambda_.4} parent=5 // pred_check
      %p103 = pneg %p102
    $region14: #{_lambda_.4} parent=5 // pred_check_branch
      %105 = sbr.rel (%p103) target = $region16
    $region15: #{_lambda_.4} parent=5 // pred_region
      // Predicated region
      $region17: #{_lambda_.4} parent=15 // pred_check
        %p106 = pneg %p29
      $region18: #{_lambda_.4} parent=15 // pred_check_branch
        %108 = sbr.rel (%p106) target = $region20
      $region19: #{_lambda_.4} parent=15 // pred_region
        %s109 = smul.u32 32, %s9
        %p110 = scmp.lt.s32.totalorder %s109, 63
        %s111 = scalar_select %p110, %s109, 63
        %s112 = smul.addr %s111, 8
        %s113 = scalar_lea.vmem %s0, %s112
        %s114 = smul.u32 32, %s9
      $region20: #{_lambda_.4} parent=15 // pred_fallthru
        _
    $region16: #{_lambda_.4} parent=5 // pred_fallthru
      _
    %p115 = scmp.le.s32.totalorder 1, %s9
    %p116 = scmp.lt.s32.totalorder %s9, 3
    %p117 = pnand %p115, %p116
    %p118 = pneg %p117
    // Predicated region
    $region21: #{_lambda_.4} parent=5 // pred_check
      _
    $region22: #{_lambda_.4} parent=5 // pred_check_branch
      %120 = sbr.rel (%p117) target = $region24
    $region23: #{_lambda_.4} parent=5 // pred_region
      %s121 = ssub.s32 %s9, 1
      %s122 = smul.u32 32, %s14
      %p123 = scmp.lt.s32.totalorder %s122, 63
      %s124 = scalar_select %p123, %s122, 63
      %s125 = smul.addr %s124, 8
      %s126 = scalar_lea.vmem %s0, %s125
      %p127 = pneg %p35
      %p128 = pneg %p32
      %p129 = pneg %p61
      %p130 = pneg %p58
      %p131 = scmp.lt.s32.totalorder %s14, 1
      %s132 = scalar_select %p131, %s14, 1
      %s133 = scalar_lea.vmem %s1, %s132
      %p134 = pneg %p87
      %p135 = pneg %p84
      %p136 = scmp.lt.s32.totalorder %s14, 1
      %s137 = scalar_select %p136, %s14, 1
      %s138 = scalar_lea.vmem %s2, %s137
      %s139 = smul.u32 32, %s14
      %p140 = scmp.lt.s32.totalorder %s139, 63
      %s141 = scalar_select %p140, %s139, 63
      %s142 = smul.addr %s141, 8
      %s143 = scalar_lea.vmem %s0, %s142
      %s144 = smul.u32 32, %s14
      %p145 = scmp.lt.s32.totalorder %s14, 1
      %s146 = scalar_select %p145, %s14, 1
      %s147 = scalar_lea.vmem %s1, %s146
      %p148 = scmp.lt.s32.totalorder %s14, 1
      %s149 = scalar_select %p148, %s14, 1
      %s150 = scalar_lea.vmem %s2, %s149
      %v151 = vld [vmem:[%s143] sm:$0xff]
      %v152 = vld [vmem:[%s143 + $0x8] sm:$0xff]
      %v153 = vld [vmem:[%s143 + $0x10] sm:$0xff]
      %v154 = vld [vmem:[%s143 + $0x18] sm:$0xff]
      %v155 = vld [vmem:[%s143 + $0x20] sm:$0xff]
      %v156 = vld [vmem:[%s143 + $0x28] sm:$0xff]
      %v157 = vld [vmem:[%s143 + $0x30] sm:$0xff]
      %v158 = vld [vmem:[%s143 + $0x38] sm:$0xff]
      %v159 = vld [vmem:[%s143 + $0x40] sm:$0xff]
      %v160 = vld [vmem:[%s143 + $0x48] sm:$0xff]
      %v161 = vld [vmem:[%s143 + $0x50] sm:$0xff]
      %v162 = vld [vmem:[%s143 + $0x58] sm:$0xff]
      %v163 = vld [vmem:[%s143 + $0x60] sm:$0xff]
      %v164 = vld [vmem:[%s143 + $0x68] sm:$0xff]
      %v165 = vld [vmem:[%s143 + $0x70] sm:$0xff]
      %v166 = vld [vmem:[%s143 + $0x78] sm:$0xff]
      %v167 = vld [vmem:[%s143 + $0x80] sm:$0xff]
      %v168 = vld [vmem:[%s143 + $0x88] sm:$0xff]
      %v169 = vld [vmem:[%s143 + $0x90] sm:$0xff]
      %v170 = vld [vmem:[%s143 + $0x98] sm:$0xff]
      %v171 = vld [vmem:[%s143 + $0xa0] sm:$0xff]
      %v172 = vld [vmem:[%s143 + $0xa8] sm:$0xff]
      %v173 = vld [vmem:[%s143 + $0xb0] sm:$0xff]
      %v174 = vld [vmem:[%s143 + $0xb8] sm:$0xff]
      %v175 = vld [vmem:[%s143 + $0xc0] sm:$0xff]
      %v176 = vld [vmem:[%s143 + $0xc8] sm:$0xff]
      %v177 = vld [vmem:[%s143 + $0xd0] sm:$0xff]
      %v178 = vld [vmem:[%s143 + $0xd8] sm:$0xff]
      %v179 = vld [vmem:[%s143 + $0xe0] sm:$0xff]
      %v180 = vld [vmem:[%s143 + $0xe8] sm:$0xff]
      %v181 = vld [vmem:[%s143 + $0xf0] sm:$0xff]
      %v182 = vld [vmem:[%s143 + $0xf8] sm:$0xff]
      %vm183 = vcmask 31744
      %v184 = vsel %vm183, %v151, 0.0
      %v185 = vsel %vm183, %v152, 0.0
      %v186 = vadd.f32 %v184, %v185
      %v187 = vsel %vm183, %v153, 0.0
      %v188 = vadd.f32 %v186, %v187
      %v189 = vsel %vm183, %v154, 0.0
      %v190 = vadd.f32 %v188, %v189
      %v191 = vsel %vm183, %v155, 0.0
      %v192 = vadd.f32 %v190, %v191
      %v193 = vsel %vm183, %v156, 0.0
      %v194 = vadd.f32 %v192, %v193
      %v195 = vsel %vm183, %v157, 0.0
      %v196 = vadd.f32 %v194, %v195
      %v197 = vsel %vm183, %v158, 0.0
      %v198 = vadd.f32 %v196, %v197
      %v199 = vsel %vm183, %v159, 0.0
      %v200 = vadd.f32 %v198, %v199
      %v201 = vsel %vm183, %v160, 0.0
      %v202 = vadd.f32 %v200, %v201
      %v203 = vsel %vm183, %v161, 0.0
      %v204 = vadd.f32 %v202, %v203
      %v205 = vsel %vm183, %v162, 0.0
      %v206 = vadd.f32 %v204, %v205
      %v207 = vsel %vm183, %v163, 0.0
      %v208 = vadd.f32 %v206, %v207
      %v209 = vsel %vm183, %v164, 0.0
      %v210 = vadd.f32 %v208, %v209
      %v211 = vsel %vm183, %v165, 0.0
      %v212 = vadd.f32 %v210, %v211
      %v213 = vsel %vm183, %v166, 0.0
      %v214 = vadd.f32 %v212, %v213
      %v215 = vsel %vm183, %v167, 0.0
      %v216 = vadd.f32 %v214, %v215
      %v217 = vsel %vm183, %v168, 0.0
      %v218 = vadd.f32 %v216, %v217
      %v219 = vsel %vm183, %v169, 0.0
      %v220 = vadd.f32 %v218, %v219
      %v221 = vsel %vm183, %v170, 0.0
      %v222 = vadd.f32 %v220, %v221
      %v223 = vsel %vm183, %v171, 0.0
      %v224 = vadd.f32 %v222, %v223
      %v225 = vsel %vm183, %v172, 0.0
      %v226 = vadd.f32 %v224, %v225
      %v227 = vsel %vm183, %v173, 0.0
      %v228 = vadd.f32 %v226, %v227
      %v229 = vsel %vm183, %v174, 0.0
      %v230 = vadd.f32 %v228, %v229
      %v231 = vsel %vm183, %v175, 0.0
      %v232 = vadd.f32 %v230, %v231
      %v233 = vsel %vm183, %v176, 0.0
      %v234 = vadd.f32 %v232, %v233
      %v235 = vsel %vm183, %v177, 0.0
      %v236 = vadd.f32 %v234, %v235
      %v237 = vsel %vm183, %v178, 0.0
      %v238 = vadd.f32 %v236, %v237
      %v239 = vsel %vm183, %v179, 0.0
      %v240 = vadd.f32 %v238, %v239
      %v241 = vsel %vm183, %v180, 0.0
      %v242 = vadd.f32 %v240, %v241
      %v243 = vsel %vm183, %v181, 0.0
      %v244 = vadd.f32 %v242, %v243
      %v245 = vsel %vm183, %v182, 0.0
      %v246 = vadd.f32 %v244, %v245
      %v247 = vrot.slane %v246, 4
      %v248 = vadd.f32 %v246, %v247
      %v249 = vrot.slane %v248, 2
      %v250 = vadd.f32 %v248, %v249
      %v251 = vrot.slane %v250, 1
      %v252 = vadd.f32 %v250, %v251
      %vm253 = vcmask 24576
      %254 = vst.msk [vmem:[%s147] sm:$0x1] %vm253, %v252
      %v255 = vmul.f32 %v151, %v151
      %v256 = vmul.f32 %v152, %v152
      %v257 = vmul.f32 %v153, %v153
      %v258 = vmul.f32 %v154, %v154
      %v259 = vmul.f32 %v155, %v155
      %v260 = vmul.f32 %v156, %v156
      %v261 = vmul.f32 %v157, %v157
      %v262 = vmul.f32 %v158, %v158
      %v263 = vmul.f32 %v159, %v159
      %v264 = vmul.f32 %v160, %v160
      %v265 = vmul.f32 %v161, %v161
      %v266 = vmul.f32 %v162, %v162
      %v267 = vmul.f32 %v163, %v163
      %v268 = vmul.f32 %v164, %v164
      %v269 = vmul.f32 %v165, %v165
      %v270 = vmul.f32 %v166, %v166
      %v271 = vmul.f32 %v167, %v167
      %v272 = vmul.f32 %v168, %v168
      %v273 = vmul.f32 %v169, %v169
      %v274 = vmul.f32 %v170, %v170
      %v275 = vmul.f32 %v171, %v171
      %v276 = vmul.f32 %v172, %v172
      %v277 = vmul.f32 %v173, %v173
      %v278 = vmul.f32 %v174, %v174
      %v279 = vmul.f32 %v175, %v175
      %v280 = vmul.f32 %v176, %v176
      %v281 = vmul.f32 %v177, %v177
      %v282 = vmul.f32 %v178, %v178
      %v283 = vmul.f32 %v179, %v179
      %v284 = vmul.f32 %v180, %v180
      %v285 = vmul.f32 %v181, %v181
      %v286 = vmul.f32 %v182, %v182
      %v287 = vsel %vm183, %v255, 0.0
      %v288 = vsel %vm183, %v256, 0.0
      %v289 = vadd.f32 %v287, %v288
      %v290 = vsel %vm183, %v257, 0.0
      %v291 = vadd.f32 %v289, %v290
      %v292 = vsel %vm183, %v258, 0.0
      %v293 = vadd.f32 %v291, %v292
      %v294 = vsel %vm183, %v259, 0.0
      %v295 = vadd.f32 %v293, %v294
      %v296 = vsel %vm183, %v260, 0.0
      %v297 = vadd.f32 %v295, %v296
      %v298 = vsel %vm183, %v261, 0.0
      %v299 = vadd.f32 %v297, %v298
      %v300 = vsel %vm183, %v262, 0.0
      %v301 = vadd.f32 %v299, %v300
      %v302 = vsel %vm183, %v263, 0.0
      %v303 = vadd.f32 %v301, %v302
      %v304 = vsel %vm183, %v264, 0.0
      %v305 = vadd.f32 %v303, %v304
      %v306 = vsel %vm183, %v265, 0.0
      %v307 = vadd.f32 %v305, %v306
      %v308 = vsel %vm183, %v266, 0.0
      %v309 = vadd.f32 %v307, %v308
      %v310 = vsel %vm183, %v267, 0.0
      %v311 = vadd.f32 %v309, %v310
      %v312 = vsel %vm183, %v268, 0.0
      %v313 = vadd.f32 %v311, %v312
      %v314 = vsel %vm183, %v269, 0.0
      %v315 = vadd.f32 %v313, %v314
      %v316 = vsel %vm183, %v270, 0.0
      %v317 = vadd.f32 %v315, %v316
      %v318 = vsel %vm183, %v271, 0.0
      %v319 = vadd.f32 %v317, %v318
      %v320 = vsel %vm183, %v272, 0.0
      %v321 = vadd.f32 %v319, %v320
      %v322 = vsel %vm183, %v273, 0.0
      %v323 = vadd.f32 %v321, %v322
      %v324 = vsel %vm183, %v274, 0.0
      %v325 = vadd.f32 %v323, %v324
      %v326 = vsel %vm183, %v275, 0.0
      %v327 = vadd.f32 %v325, %v326
      %v328 = vsel %vm183, %v276, 0.0
      %v329 = vadd.f32 %v327, %v328
      %v330 = vsel %vm183, %v277, 0.0
      %v331 = vadd.f32 %v329, %v330
      %v332 = vsel %vm183, %v278, 0.0
      %v333 = vadd.f32 %v331, %v332
      %v334 = vsel %vm183, %v279, 0.0
      %v335 = vadd.f32 %v333, %v334
      %v336 = vsel %vm183, %v280, 0.0
      %v337 = vadd.f32 %v335, %v336
      %v338 = vsel %vm183, %v281, 0.0
      %v339 = vadd.f32 %v337, %v338
      %v340 = vsel %vm183, %v282, 0.0
      %v341 = vadd.f32 %v339, %v340
      %v342 = vsel %vm183, %v283, 0.0
      %v343 = vadd.f32 %v341, %v342
      %v344 = vsel %vm183, %v284, 0.0
      %v345 = vadd.f32 %v343, %v344
      %v346 = vsel %vm183, %v285, 0.0
      %v347 = vadd.f32 %v345, %v346
      %v348 = vsel %vm183, %v286, 0.0
      %v349 = vadd.f32 %v347, %v348
      %v350 = vrot.slane %v349, 4
      %v351 = vadd.f32 %v349, %v350
      %v352 = vrot.slane %v351, 2
      %v353 = vadd.f32 %v351, %v352
      %v354 = vrot.slane %v353, 1
      %v355 = vadd.f32 %v353, %v354
      %356 = vst.msk [vmem:[%s150] sm:$0x1] %vm253, %v355
      %p357 = scmp.lt.s32.totalorder %s14, 1
      %s358 = scalar_select %p357, %s14, 1
      %s359 = scalar_lea.vmem %s1, %s358
      %p360 = scmp.lt.s32.totalorder %s14, 1
      %s361 = scalar_select %p360, %s14, 1
      %s362 = scalar_lea.vmem %s2, %s361
      // Predicated region
      $region25: #{_lambda_.4} parent=23 // pred_check
        %p363 = pneg %p58
      $region26: #{_lambda_.4} parent=23 // pred_check_branch
        %365 = sbr.rel (%p363) target = $region28
      $region27: #{_lambda_.4} parent=23 // pred_region
        _
      $region28: #{_lambda_.4} parent=23 // pred_fallthru
        _
      // Predicated region
      $region29: #{_lambda_.4} parent=23 // pred_check
        %p366 = pneg %p84
      $region30: #{_lambda_.4} parent=23 // pred_check_branch
        %368 = sbr.rel (%p366) target = $region32
      $region31: #{_lambda_.4} parent=23 // pred_region
        _
      $region32: #{_lambda_.4} parent=23 // pred_fallthru
        _
    $region24: #{_lambda_.4} parent=5 // pred_fallthru
      _
    %p369 = scmp.le.s32.totalorder 2, %s9
    // Predicated region
    $region33: #{_lambda_.4} parent=5 // pred_check
      %p370 = pneg %p369
    $region34: #{_lambda_.4} parent=5 // pred_check_branch
      %372 = sbr.rel (%p370) target = $region36
    $region35: #{_lambda_.4} parent=5 // pred_region
      %s373 = ssub.s32 %s9, 2
      // Predicated region
      $region37: #{_lambda_.4} parent=35 // pred_check
        %p374 = pneg %p64
      $region38: #{_lambda_.4} parent=35 // pred_check_branch
        %376 = sbr.rel (%p374) target = $region40
      $region39: #{_lambda_.4} parent=35 // pred_region
        %p377 = scmp.lt.s32.totalorder %s15, 1
        %s378 = scalar_select %p377, %s15, 1
        %s379 = scalar_lea.vmem %s1, %s378
      $region40: #{_lambda_.4} parent=35 // pred_fallthru
        _
      // Predicated region
      $region41: #{_lambda_.4} parent=35 // pred_check
        %p380 = pneg %p90
      $region42: #{_lambda_.4} parent=35 // pred_check_branch
        %382 = sbr.rel (%p380) target = $region44
      $region43: #{_lambda_.4} parent=35 // pred_region
        %p383 = scmp.lt.s32.totalorder %s15, 1
        %s384 = scalar_select %p383, %s15, 1
        %s385 = scalar_lea.vmem %s2, %s384
      $region44: #{_lambda_.4} parent=35 // pred_fallthru
        _
    $region36: #{_lambda_.4} parent=5 // pred_fallthru
      _
  $region6: #{_lambda_.4} parent=0 // loop_footer
    %s13 = sadd.s32 1, %s9
  $region7: #{_lambda_.4} parent=0 // loop_footer_branch
    %8 = sbr.rel target = $region3
  $region8: #{_lambda_.4} parent=0 // loop_exit
    _

// kernel: _lambda_.7
$region0: #{_lambda_.7}
  #allocation0 [shape = 'u32[]', space=smem, size = 0x4, offset = 0x4, fixed_abs, tag = 'smem constant byte address 0x4 - core index']
  #allocation1 [shape = 'u32[144,128]{1,0:T(1,128)}', space=vmem, size = 0x12000, scoped, tag = 'internal scratch']
  %s0 = inlined_call_operand.vmem [shape: bf16[512,4], index: 0, kind: input, shape index: {}]
  %s1 = inlined_call_operand.vmem [shape: f32[1,4], index: 1, kind: input, shape index: {}]
  %s2 = inlined_call_operand.vmem [shape: f32[1,4], index: 2, kind: input, shape index: {}]
  %s3 = inlined_call_operand.vmem [shape: bf16[4,16], index: 3, kind: input, shape index: {}]
  %s4 = inlined_call_operand.vmem [shape: bf16[512,16], index: 4, kind: input, shape index: {}]
  %s5 = inlined_call_operand.vmem [shape: f32[512,16], index: 5, kind: output, shape index: {}]
  %s6 = sld [smem:[#allocation0]]
  $region53: #{_lambda_.7} parent=0
    _
  %s8 = ssub.s32 1, %s6
  %s9 = scalar_select 0, %s8, %s6
  loop: start=0, step=1, limit=4
  $region2: #{_lambda_.7} parent=0 // loop_pre_header
    _
  $region3: #{_lambda_.7} parent=0 // loop_header
    %s11 = sphi 0, %s15
    %p12 = scmp.ge.s32.totalorder %s11, 4
    %s21 = sphi 0, %s23
    %s24 = sphi 0, %s21
    %s25 = sphi 0, %s24
    %s41 = sphi 0, %s25
    %s45 = sphi 0, %s45
    %s47 = sphi 0, %s45
    %s48 = sphi 0, %s47
    %s62 = sphi 0, %s48
    %s66 = sphi 0, %s66
    %s68 = sphi 0, %s66
    %s69 = sphi 0, %s68
    %s83 = sphi 0, %s69
    %s87 = sphi 0, %s87
    %s89 = sphi 0, %s87
    %s90 = sphi 0, %s89
    %s104 = sphi 0, %s90
    %s110 = sphi 0, %s112
    %s113 = sphi 0, %s110
    %s114 = sphi 0, %s113
    %s130 = sphi 0, %s114
    %s136 = sphi 0, %s138
    %s139 = sphi 0, %s136
    %s140 = sphi 0, %s139
    %s156 = sphi 0, %s140
  $region4: #{_lambda_.7} parent=0 // loop_header_branch
    %14 = sbr.rel (%p12) target = $region8
  $region5: #{_lambda_.7} parent=0 // loop_body
    %s16 = ssub.s32 %s11, 1
    %s17 = ssub.s32 %s11, 2
    %s18 = sadd.s32 %s11, 1
    %s19 = ssub.s32 %s11, %s18
    %p20 = scmp.eq.s32.totalorder %s19, 0
    %s22 = sadd.s32 %s21, 1
    %s23 = scalar_select %p20, %s21, %s22
    %p26 = pneg %p20
    %p27 = scmp.eq.s32.totalorder %s11, 1
    %p28 = por %p26, %p27
    %p29 = scmp.ne.s32.totalorder %s21, %s24
    %p30 = scmp.eq.s32.totalorder %s11, 0
    %p31 = por %p29, %p30
    %p32 = scmp.ne.s32.totalorder %s21, %s24
    %p33 = scmp.eq.s32.totalorder %s16, 1
    %p34 = por %p32, %p33
    %p35 = scmp.ne.s32.totalorder %s24, %s25
    %p36 = scmp.eq.s32.totalorder %s16, 0
    %p37 = por %p35, %p36
    %p38 = scmp.ne.s32.totalorder %s24, %s25
    %p39 = scmp.eq.s32.totalorder %s17, 1
    %p40 = por %p38, %p39
    %p42 = scmp.ne.s32.totalorder %s25, %s41
    %p43 = scmp.eq.s32.totalorder %s17, 0
    %p44 = por %p42, %p43
    %s46 = sadd.s32 %s45, 1
    %p49 = scmp.eq.s32.totalorder %s11, 1
    %p50 = scmp.ne.s32.totalorder %s45, %s47
    %p51 = scmp.eq.s32.totalorder %s11, 0
    %p52 = por %p50, %p51
    %p53 = scmp.ne.s32.totalorder %s45, %s47
    %p54 = scmp.eq.s32.totalorder %s16, 1
    %p55 = por %p53, %p54
    %p56 = scmp.ne.s32.totalorder %s47, %s48
    %p57 = scmp.eq.s32.totalorder %s16, 0
    %p58 = por %p56, %p57
    %p59 = scmp.ne.s32.totalorder %s47, %s48
    %p60 = scmp.eq.s32.totalorder %s17, 1
    %p61 = por %p59, %p60
    %p63 = scmp.ne.s32.totalorder %s48, %s62
    %p64 = scmp.eq.s32.totalorder %s17, 0
    %p65 = por %p63, %p64
    %s67 = sadd.s32 %s66, 1
    %p70 = scmp.eq.s32.totalorder %s11, 1
    %p71 = scmp.ne.s32.totalorder %s66, %s68
    %p72 = scmp.eq.s32.totalorder %s11, 0
    %p73 = por %p71, %p72
    %p74 = scmp.ne.s32.totalorder %s66, %s68
    %p75 = scmp.eq.s32.totalorder %s16, 1
    %p76 = por %p74, %p75
    %p77 = scmp.ne.s32.totalorder %s68, %s69
    %p78 = scmp.eq.s32.totalorder %s16, 0
    %p79 = por %p77, %p78
    %p80 = scmp.ne.s32.totalorder %s68, %s69
    %p81 = scmp.eq.s32.totalorder %s17, 1
    %p82 = por %p80, %p81
    %p84 = scmp.ne.s32.totalorder %s69, %s83
    %p85 = scmp.eq.s32.totalorder %s17, 0
    %p86 = por %p84, %p85
    %s88 = sadd.s32 %s87, 1
    %p91 = scmp.eq.s32.totalorder %s11, 1
    %p92 = scmp.ne.s32.totalorder %s87, %s89
    %p93 = scmp.eq.s32.totalorder %s11, 0
    %p94 = por %p92, %p93
    %p95 = scmp.ne.s32.totalorder %s87, %s89
    %p96 = scmp.eq.s32.totalorder %s16, 1
    %p97 = por %p95, %p96
    %p98 = scmp.ne.s32.totalorder %s89, %s90
    %p99 = scmp.eq.s32.totalorder %s16, 0
    %p100 = por %p98, %p99
    %p101 = scmp.ne.s32.totalorder %s89, %s90
    %p102 = scmp.eq.s32.totalorder %s17, 1
    %p103 = por %p101, %p102
    %p105 = scmp.ne.s32.totalorder %s90, %s104
    %p106 = scmp.eq.s32.totalorder %s17, 0
    %p107 = por %p105, %p106
    %s108 = ssub.s32 %s11, %s18
    %p109 = scmp.eq.s32.totalorder %s108, 0
    %s111 = sadd.s32 %s110, 1
    %s112 = scalar_select %p109, %s110, %s111
    %p115 = pneg %p109
    %p116 = scmp.eq.s32.totalorder %s11, 1
    %p117 = por %p115, %p116
    %p118 = scmp.ne.s32.totalorder %s110, %s113
    %p119 = scmp.eq.s32.totalorder %s11, 0
    %p120 = por %p118, %p119
    %p121 = scmp.ne.s32.totalorder %s110, %s113
    %p122 = scmp.eq.s32.totalorder %s16, 1
    %p123 = por %p121, %p122
    %p124 = scmp.ne.s32.totalorder %s113, %s114
    %p125 = scmp.eq.s32.totalorder %s16, 0
    %p126 = por %p124, %p125
    %p127 = scmp.ne.s32.totalorder %s113, %s114
    %p128 = scmp.eq.s32.totalorder %s17, 1
    %p129 = por %p127, %p128
    %p131 = scmp.ne.s32.totalorder %s114, %s130
    %p132 = scmp.eq.s32.totalorder %s17, 0
    %p133 = por %p131, %p132
    %s134 = ssub.s32 %s11, %s18
    %p135 = scmp.eq.s32.totalorder %s134, 0
    %s137 = sadd.s32 %s136, 1
    %s138 = scalar_select %p135, %s136, %s137
    %p141 = pneg %p135
    %p142 = scmp.eq.s32.totalorder %s11, 1
    %p143 = por %p141, %p142
    %p144 = scmp.ne.s32.totalorder %s136, %s139
    %p145 = scmp.eq.s32.totalorder %s11, 0
    %p146 = por %p144, %p145
    %p147 = scmp.ne.s32.totalorder %s136, %s139
    %p148 = scmp.eq.s32.totalorder %s16, 1
    %p149 = por %p147, %p148
    %p150 = scmp.ne.s32.totalorder %s139, %s140
    %p151 = scmp.eq.s32.totalorder %s16, 0
    %p152 = por %p150, %p151
    %p153 = scmp.ne.s32.totalorder %s139, %s140
    %p154 = scmp.eq.s32.totalorder %s17, 1
    %p155 = por %p153, %p154
    %p157 = scmp.ne.s32.totalorder %s140, %s156
    %p158 = scmp.eq.s32.totalorder %s17, 0
    %p159 = por %p157, %p158
    %p160 = scmp.le.s32.totalorder 1, %s11
    %p161 = scmp.lt.s32.totalorder %s11, 3
    %p162 = pnand %p160, %p161
    %p163 = pneg %p162
    // Predicated region
    $region9: #{_lambda_.7} parent=5 // pred_check
      _
    $region10: #{_lambda_.7} parent=5 // pred_check_branch
      %165 = sbr.rel (%p162) target = $region12
    $region11: #{_lambda_.7} parent=5 // pred_region
      %s166 = ssub.s32 %s11, 1
      // Predicated region
      $region13: #{_lambda_.7} parent=11 // pred_check
        %p167 = pneg %p58
      $region14: #{_lambda_.7} parent=11 // pred_check_branch
        %169 = sbr.rel (%p167) target = $region16
      $region15: #{_lambda_.7} parent=11 // pred_region
        _
      $region16: #{_lambda_.7} parent=11 // pred_fallthru
        _
      // Predicated region
      $region17: #{_lambda_.7} parent=11 // pred_check
        %p170 = pneg %p79
      $region18: #{_lambda_.7} parent=11 // pred_check_branch
        %172 = sbr.rel (%p170) target = $region20
      $region19: #{_lambda_.7} parent=11 // pred_region
        _
      $region20: #{_lambda_.7} parent=11 // pred_fallthru
        _
      // Predicated region
      $region21: #{_lambda_.7} parent=11 // pred_check
        %p173 = pneg %p100
      $region22: #{_lambda_.7} parent=11 // pred_check_branch
        %175 = sbr.rel (%p173) target = $region24
      $region23: #{_lambda_.7} parent=11 // pred_region
        _
      $region24: #{_lambda_.7} parent=11 // pred_fallthru
        _
    $region12: #{_lambda_.7} parent=5 // pred_fallthru
      _
    %p176 = scmp.lt.s32.totalorder %s11, 2
    // Predicated region
    $region25: #{_lambda_.7} parent=5 // pred_check
      %p177 = pneg %p176
    $region26: #{_lambda_.7} parent=5 // pred_check_branch
      %179 = sbr.rel (%p177) target = $region28
    $region27: #{_lambda_.7} parent=5 // pred_region
      // Predicated region
      $region29: #{_lambda_.7} parent=27 // pred_check
        %p180 = pneg %p31
      $region30: #{_lambda_.7} parent=27 // pred_check_branch
        %182 = sbr.rel (%p180) target = $region32
      $region31: #{_lambda_.7} parent=27 // pred_region
        %s183 = smul.u32 32, %s11
        %p184 = scmp.lt.s32.totalorder %s183, 63
        %s185 = scalar_select %p184, %s183, 63
        %s186 = smul.addr %s185, 4
        %s187 = scalar_lea.vmem %s0, %s186
        %s188 = smul.u32 32, %s11
      $region32: #{_lambda_.7} parent=27 // pred_fallthru
        _
      // Predicated region
      $region33: #{_lambda_.7} parent=27 // pred_check
        %p189 = pneg %p120
      $region34: #{_lambda_.7} parent=27 // pred_check_branch
        %191 = sbr.rel (%p189) target = $region36
      $region35: #{_lambda_.7} parent=27 // pred_region
        %s192 = smul.u32 32, %s11
        %p193 = scmp.lt.s32.totalorder %s192, 63
        %s194 = scalar_select %p193, %s192, 63
        %s195 = smul.addr %s194, 4
        %s196 = scalar_lea.vmem %s4, %s195
        %s197 = smul.u32 32, %s11
      $region36: #{_lambda_.7} parent=27 // pred_fallthru
        _
    $region28: #{_lambda_.7} parent=5 // pred_fallthru
      _
    %p198 = scmp.le.s32.totalorder 1, %s11
    %p199 = scmp.lt.s32.totalorder %s11, 3
    %p200 = pnand %p198, %p199
    %p201 = pneg %p200
    // Predicated region
    $region37: #{_lambda_.7} parent=5 // pred_check
      _
    $region38: #{_lambda_.7} parent=5 // pred_check_branch
      %203 = sbr.rel (%p200) target = $region40
    $region39: #{_lambda_.7} parent=5 // pred_region
      %s204 = ssub.s32 %s11, 1
      %s205 = smul.u32 32, %s16
      %p206 = scmp.lt.s32.totalorder %s205, 63
      %s207 = scalar_select %p206, %s205, 63
      %s208 = smul.addr %s207, 4
      %s209 = scalar_lea.vmem %s0, %s208
      %p210 = pneg %p37
      %p211 = pneg %p34
      %p212 = pneg %p58
      %p213 = pneg %p55
      %p214 = pneg %p79
      %p215 = pneg %p76
      %p216 = pneg %p100
      %p217 = pneg %p97
      %s218 = smul.u32 32, %s16
      %p219 = scmp.lt.s32.totalorder %s218, 63
      %s220 = scalar_select %p219, %s218, 63
      %s221 = smul.addr %s220, 4
      %s222 = scalar_lea.vmem %s4, %s221
      %p223 = pneg %p126
      %p224 = pneg %p123
      %p225 = pneg %p152
      %p226 = pneg %p149
      %s227 = smul.u32 32, %s16
      %p228 = scmp.lt.s32.totalorder %s227, 63
      %s229 = scalar_select %p228, %s227, 63
      %s230 = smul.addr %s229, 8
      %s231 = scalar_lea.vmem %s5, %s230
      %s232 = smul.u32 32, %s16
      %p233 = scmp.lt.s32.totalorder %s232, 63
      %s234 = scalar_select %p233, %s232, 63
      %s235 = smul.addr %s234, 4
      %s236 = scalar_lea.vmem %s0, %s235
      %s237 = smul.u32 32, %s16
      %s238 = smul.u32 32, %s16
      %p239 = scmp.lt.s32.totalorder %s238, 63
      %s240 = scalar_select %p239, %s238, 63
      %s241 = smul.addr %s240, 4
      %s242 = scalar_lea.vmem %s4, %s241
      %s243 = smul.u32 32, %s16
      %s244 = smul.u32 32, %s16
      %p245 = scmp.lt.s32.totalorder %s244, 63
      %s246 = scalar_select %p245, %s244, 63
      %s247 = smul.addr %s246, 8
      %s248 = scalar_lea.vmem %s5, %s247
      %s249 = smul.u32 32, %s16
      %v251 = vld [vmem:[%s236] sm:$0xf]
      %v252 = vld [vmem:[%s236 + $0x4] sm:$0xf]
      %v253 = vld [vmem:[%s236 + $0x8] sm:$0xf]
      %v254 = vld [vmem:[%s236 + $0xc] sm:$0xf]
      %v255 = vld [vmem:[%s236 + $0x10] sm:$0xf]
      %v256 = vld [vmem:[%s236 + $0x14] sm:$0xf]
      %v257 = vld [vmem:[%s236 + $0x18] sm:$0xf]
      %v258 = vld [vmem:[%s236 + $0x1c] sm:$0xf]
      %v259 = vld [vmem:[%s236 + $0x20] sm:$0xf]
      %v260 = vld [vmem:[%s236 + $0x24] sm:$0xf]
      %v261 = vld [vmem:[%s236 + $0x28] sm:$0xf]
      %v262 = vld [vmem:[%s236 + $0x2c] sm:$0xf]
      %v263 = vld [vmem:[%s236 + $0x30] sm:$0xf]
      %v264 = vld [vmem:[%s236 + $0x34] sm:$0xf]
      %v265 = vld [vmem:[%s236 + $0x38] sm:$0xf]
      %v266 = vld [vmem:[%s236 + $0x3c] sm:$0xf]
      %v267 = vld [vmem:[%s236 + $0x40] sm:$0xf]
      %v268 = vld [vmem:[%s236 + $0x44] sm:$0xf]
      %v269 = vld [vmem:[%s236 + $0x48] sm:$0xf]
      %v270 = vld [vmem:[%s236 + $0x4c] sm:$0xf]
      %v271 = vld [vmem:[%s236 + $0x50] sm:$0xf]
      %v272 = vld [vmem:[%s236 + $0x54] sm:$0xf]
      %v273 = vld [vmem:[%s236 + $0x58] sm:$0xf]
      %v274 = vld [vmem:[%s236 + $0x5c] sm:$0xf]
      %v275 = vld [vmem:[%s236 + $0x60] sm:$0xf]
      %v276 = vld [vmem:[%s236 + $0x64] sm:$0xf]
      %v277 = vld [vmem:[%s236 + $0x68] sm:$0xf]
      %v278 = vld [vmem:[%s236 + $0x6c] sm:$0xf]
      %v279 = vld [vmem:[%s236 + $0x70] sm:$0xf]
      %v280 = vld [vmem:[%s236 + $0x74] sm:$0xf]
      %v281 = vld [vmem:[%s236 + $0x78] sm:$0xf]
      %v282 = vld [vmem:[%s236 + $0x7c] sm:$0xf]
      %v283 = vunpack.c.l.bf16 %v251
      %v284 = vunpack.c.l.bf16 %v252
      %v285 = vunpack.c.l.bf16 %v253
      %v286 = vunpack.c.l.bf16 %v254
      %v287 = vunpack.c.l.bf16 %v255
      %v288 = vunpack.c.l.bf16 %v256
      %v289 = vunpack.c.l.bf16 %v257
      %v290 = vunpack.c.l.bf16 %v258
      %v291 = vunpack.c.l.bf16 %v259
      %v292 = vunpack.c.l.bf16 %v260
      %v293 = vunpack.c.l.bf16 %v261
      %v294 = vunpack.c.l.bf16 %v262
      %v295 = vunpack.c.l.bf16 %v263
      %v296 = vunpack.c.l.bf16 %v264
      %v297 = vunpack.c.l.bf16 %v265
      %v298 = vunpack.c.l.bf16 %v266
      %v299 = vunpack.c.l.bf16 %v267
      %v300 = vunpack.c.l.bf16 %v268
      %v301 = vunpack.c.l.bf16 %v269
      %v302 = vunpack.c.l.bf16 %v270
      %v303 = vunpack.c.l.bf16 %v271
      %v304 = vunpack.c.l.bf16 %v272
      %v305 = vunpack.c.l.bf16 %v273
      %v306 = vunpack.c.l.bf16 %v274
      %v307 = vunpack.c.l.bf16 %v275
      %v308 = vunpack.c.l.bf16 %v276
      %v309 = vunpack.c.l.bf16 %v277
      %v310 = vunpack.c.l.bf16 %v278
      %v311 = vunpack.c.l.bf16 %v279
      %v312 = vunpack.c.l.bf16 %v280
      %v313 = vunpack.c.l.bf16 %v281
      %v314 = vunpack.c.l.bf16 %v282
      %v315 = vld [vmem:[%s1] sm:$0x1]
      %v317 = vlaneseq
      %v318 = vshrl.u32 %v317, 7
      %v319 = vsub.s32 0, %v318
      %v320 = vrot.slane %v315, %v319
      %v322 = vmul.f32 %v283, %v320
      %v323 = vmul.f32 %v284, %v320
      %v324 = vmul.f32 %v285, %v320
      %v325 = vmul.f32 %v286, %v320
      %v326 = vmul.f32 %v287, %v320
      %v327 = vmul.f32 %v288, %v320
      %v328 = vmul.f32 %v289, %v320
      %v329 = vmul.f32 %v290, %v320
      %v330 = vmul.f32 %v291, %v320
      %v331 = vmul.f32 %v292, %v320
      %v332 = vmul.f32 %v293, %v320
      %v333 = vmul.f32 %v294, %v320
      %v334 = vmul.f32 %v295, %v320
      %v335 = vmul.f32 %v296, %v320
      %v336 = vmul.f32 %v297, %v320
      %v337 = vmul.f32 %v298, %v320
      %v338 = vmul.f32 %v299, %v320
      %v339 = vmul.f32 %v300, %v320
      %v340 = vmul.f32 %v301, %v320
      %v341 = vmul.f32 %v302, %v320
      %v342 = vmul.f32 %v303, %v320
      %v343 = vmul.f32 %v304, %v320
      %v344 = vmul.f32 %v305, %v320
      %v345 = vmul.f32 %v306, %v320
      %v346 = vmul.f32 %v307, %v320
      %v347 = vmul.f32 %v308, %v320
      %v348 = vmul.f32 %v309, %v320
      %v349 = vmul.f32 %v310, %v320
      %v350 = vmul.f32 %v311, %v320
      %v351 = vmul.f32 %v312, %v320
      %v352 = vmul.f32 %v313, %v320
      %v353 = vmul.f32 %v314, %v320
      %v354 = vld [vmem:[%s2] sm:$0x1]
      %v356 = vlaneseq
      %v357 = vshrl.u32 %v356, 7
      %v358 = vsub.s32 0, %v357
      %v359 = vrot.slane %v354, %v358
      %v361 = vadd.f32 %v322, %v359
      %v362 = vadd.f32 %v323, %v359
      %v363 = vadd.f32 %v324, %v359
      %v364 = vadd.f32 %v325, %v359
      %v365 = vadd.f32 %v326, %v359
      %v366 = vadd.f32 %v327, %v359
      %v367 = vadd.f32 %v328, %v359
      %v368 = vadd.f32 %v329, %v359
      %v369 = vadd.f32 %v330, %v359
      %v370 = vadd.f32 %v331, %v359
      %v371 = vadd.f32 %v332, %v359
      %v372 = vadd.f32 %v333, %v359
      %v373 = vadd.f32 %v334, %v359
      %v374 = vadd.f32 %v335, %v359
      %v375 = vadd.f32 %v336, %v359
      %v376 = vadd.f32 %v337, %v359
      %v377 = vadd.f32 %v338, %v359
      %v378 = vadd.f32 %v339, %v359
      %v379 = vadd.f32 %v340, %v359
      %v380 = vadd.f32 %v341, %v359
      %v381 = vadd.f32 %v342, %v359
      %v382 = vadd.f32 %v343, %v359
      %v383 = vadd.f32 %v344, %v359
      %v384 = vadd.f32 %v345, %v359
      %v385 = vadd.f32 %v346, %v359
      %v386 = vadd.f32 %v347, %v359
      %v387 = vadd.f32 %v348, %v359
      %v388 = vadd.f32 %v349, %v359
      %v389 = vadd.f32 %v350, %v359
      %v390 = vadd.f32 %v351, %v359
      %v391 = vadd.f32 %v352, %v359
      %v392 = vadd.f32 %v353, %v359
      %v393 = vmax.f32 %v361, 0.0
      %v394 = vmax.f32 %v362, 0.0
      %v395 = vmax.f32 %v363, 0.0
      %v396 = vmax.f32 %v364, 0.0
      %v397 = vmax.f32 %v365, 0.0
      %v398 = vmax.f32 %v366, 0.0
      %v399 = vmax.f32 %v367, 0.0
      %v400 = vmax.f32 %v368, 0.0
      %v401 = vmax.f32 %v369, 0.0
      %v402 = vmax.f32 %v370, 0.0
      %v403 = vmax.f32 %v371, 0.0
      %v404 = vmax.f32 %v372, 0.0
      %v405 = vmax.f32 %v373, 0.0
      %v406 = vmax.f32 %v374, 0.0
      %v407 = vmax.f32 %v375, 0.0
      %v408 = vmax.f32 %v376, 0.0
      %v409 = vmax.f32 %v377, 0.0
      %v410 = vmax.f32 %v378, 0.0
      %v411 = vmax.f32 %v379, 0.0
      %v412 = vmax.f32 %v380, 0.0
      %v413 = vmax.f32 %v381, 0.0
      %v414 = vmax.f32 %v382, 0.0
      %v415 = vmax.f32 %v383, 0.0
      %v416 = vmax.f32 %v384, 0.0
      %v417 = vmax.f32 %v385, 0.0
      %v418 = vmax.f32 %v386, 0.0
      %v419 = vmax.f32 %v387, 0.0
      %v420 = vmax.f32 %v388, 0.0
      %v421 = vmax.f32 %v389, 0.0
      %v422 = vmax.f32 %v390, 0.0
      %v423 = vmax.f32 %v391, 0.0
      %v424 = vmax.f32 %v392, 0.0
      %v425 = vpack.c.bf16 %v394, %v393
      %v426 = vpack.c.bf16 %v396, %v395
      %v427 = vpack.c.bf16 %v398, %v397
      %v428 = vpack.c.bf16 %v400, %v399
      %v429 = vpack.c.bf16 %v402, %v401
      %v430 = vpack.c.bf16 %v404, %v403
      %v431 = vpack.c.bf16 %v406, %v405
      %v432 = vpack.c.bf16 %v408, %v407
      %v433 = vpack.c.bf16 %v410, %v409
      %v434 = vpack.c.bf16 %v412, %v411
      %v435 = vpack.c.bf16 %v414, %v413
      %v436 = vpack.c.bf16 %v416, %v415
      %v437 = vpack.c.bf16 %v418, %v417
      %v438 = vpack.c.bf16 %v420, %v419
      %v439 = vpack.c.bf16 %v422, %v421
      %v440 = vpack.c.bf16 %v424, %v423
      %v441 = vld [vmem:[%s3] sm:$0x3]
      %v442 = vld [vmem:[%s242] sm:$0xf]
      %v443 = vld [vmem:[%s242 + $0x4] sm:$0xf]
      %v444 = vld [vmem:[%s242 + $0x8] sm:$0xf]
      %v445 = vld [vmem:[%s242 + $0xc] sm:$0xf]
      %v446 = vld [vmem:[%s242 + $0x10] sm:$0xf]
      %v447 = vld [vmem:[%s242 + $0x14] sm:$0xf]
      %v448 = vld [vmem:[%s242 + $0x18] sm:$0xf]
      %v449 = vld [vmem:[%s242 + $0x1c] sm:$0xf]
      %v450 = vld [vmem:[%s242 + $0x20] sm:$0xf]
      %v451 = vld [vmem:[%s242 + $0x24] sm:$0xf]
      %v452 = vld [vmem:[%s242 + $0x28] sm:$0xf]
      %v453 = vld [vmem:[%s242 + $0x2c] sm:$0xf]
      %v454 = vld [vmem:[%s242 + $0x30] sm:$0xf]
      %v455 = vld [vmem:[%s242 + $0x34] sm:$0xf]
      %v456 = vld [vmem:[%s242 + $0x38] sm:$0xf]
      %v457 = vld [vmem:[%s242 + $0x3c] sm:$0xf]
      %v458 = vld [vmem:[%s242 + $0x40] sm:$0xf]
      %v459 = vld [vmem:[%s242 + $0x44] sm:$0xf]
      %v460 = vld [vmem:[%s242 + $0x48] sm:$0xf]
      %v461 = vld [vmem:[%s242 + $0x4c] sm:$0xf]
      %v462 = vld [vmem:[%s242 + $0x50] sm:$0xf]
      %v463 = vld [vmem:[%s242 + $0x54] sm:$0xf]
      %v464 = vld [vmem:[%s242 + $0x58] sm:$0xf]
      %v465 = vld [vmem:[%s242 + $0x5c] sm:$0xf]
      %v466 = vld [vmem:[%s242 + $0x60] sm:$0xf]
      %v467 = vld [vmem:[%s242 + $0x64] sm:$0xf]
      %v468 = vld [vmem:[%s242 + $0x68] sm:$0xf]
      %v469 = vld [vmem:[%s242 + $0x6c] sm:$0xf]
      %v470 = vld [vmem:[%s242 + $0x70] sm:$0xf]
      %v471 = vld [vmem:[%s242 + $0x74] sm:$0xf]
      %v472 = vld [vmem:[%s242 + $0x78] sm:$0xf]
      %v473 = vld [vmem:[%s242 + $0x7c] sm:$0xf]
      %v474 = vunpack.c.l.bf16 %v442
      %v475 = vunpack.c.l.bf16 %v443
      %v476 = vunpack.c.l.bf16 %v444
      %v477 = vunpack.c.l.bf16 %v445
      %v478 = vunpack.c.l.bf16 %v446
      %v479 = vunpack.c.l.bf16 %v447
      %v480 = vunpack.c.l.bf16 %v448
      %v481 = vunpack.c.l.bf16 %v449
      %v482 = vunpack.c.l.bf16 %v450
      %v483 = vunpack.c.l.bf16 %v451
      %v484 = vunpack.c.l.bf16 %v452
      %v485 = vunpack.c.l.bf16 %v453
      %v486 = vunpack.c.l.bf16 %v454
      %v487 = vunpack.c.l.bf16 %v455
      %v488 = vunpack.c.l.bf16 %v456
      %v489 = vunpack.c.l.bf16 %v457
      %v490 = vunpack.c.l.bf16 %v458
      %v491 = vunpack.c.l.bf16 %v459
      %v492 = vunpack.c.l.bf16 %v460
      %v493 = vunpack.c.l.bf16 %v461
      %v494 = vunpack.c.l.bf16 %v462
      %v495 = vunpack.c.l.bf16 %v463
      %v496 = vunpack.c.l.bf16 %v464
      %v497 = vunpack.c.l.bf16 %v465
      %v498 = vunpack.c.l.bf16 %v466
      %v499 = vunpack.c.l.bf16 %v467
      %v500 = vunpack.c.l.bf16 %v468
      %v501 = vunpack.c.l.bf16 %v469
      %v502 = vunpack.c.l.bf16 %v470
      %v503 = vunpack.c.l.bf16 %v471
      %v504 = vunpack.c.l.bf16 %v472
      %v505 = vunpack.c.l.bf16 %v473
      %vm506 = vcmask 31744
      %v508 = vsel %vm506, %v425, 0
      %v511 = vsel %vm506, %v426, 0
      %v514 = vsel %vm506, %v427, 0
      %v517 = vsel %vm506, %v428, 0
      %v520 = vsel %vm506, %v429, 0
      %v523 = vsel %vm506, %v430, 0
      %v526 = vsel %vm506, %v431, 0
      %v529 = vsel %vm506, %v432, 0
      %v532 = vsel %vm506, %v433, 0
      %v535 = vsel %vm506, %v434, 0
      %v538 = vsel %vm506, %v435, 0
      %v541 = vsel %vm506, %v436, 0
      %v544 = vsel %vm506, %v437, 0
      %v547 = vsel %vm506, %v438, 0
      %v550 = vsel %vm506, %v439, 0
      %v553 = vsel %vm506, %v440, 0
      %vm555 = vcmask 1041408
      %v557 = vsel %vm555, %v441, 0
      %559 = vmatprep.subr.bf16.mxu0 0
      %560 = vmatpush1.bf16.msra.mxu0 0
      %561 = vmatprep.subr.bf16.mxu0 0
      %562 = vmatpush1.bf16.msra.mxu0 0
      %563 = vmatprep.subr.bf16.mxu0 0
      %564 = vmatpush1.bf16.msra.mxu0 0
      %565 = vmatprep.subr.bf16.mxu0 0
      %566 = vmatpush1.bf16.msra.mxu0 0
      %567 = vmatprep.subr.bf16.mxu0 0
      %568 = vmatpush1.bf16.msra.mxu0 0
      %569 = vmatprep.subr.bf16.mxu0 0
      %570 = vmatpush1.bf16.msra.mxu0 0
      %571 = vmatprep.subr.bf16.mxu0 0
      %572 = vmatpush1.bf16.msra.mxu0 0
      %573 = vmatprep.subr.bf16.mxu0 0
      %574 = vmatpush1.bf16.msra.mxu0 %v557
      %575 = vmatprep.subr.bf16.mxu0 0
      %576 = vmatpush2.bf16.msra.mxu0 0
      %577 = vmatprep.subr.bf16.mxu0 0
      %578 = vmatpush2.bf16.msra.mxu0 0
      %579 = vmatprep.subr.bf16.mxu0 0
      %580 = vmatpush2.bf16.msra.mxu0 0
      %581 = vmatprep.subr.bf16.mxu0 0
      %582 = vmatpush2.bf16.msra.mxu0 0
      %583 = vmatprep.subr.bf16.mxu0 0
      %584 = vmatpush2.bf16.msra.mxu0 0
      %585 = vmatprep.subr.bf16.mxu0 0
      %586 = vmatpush2.bf16.msra.mxu0 0
      %587 = vmatprep.subr.bf16.mxu0 0
      %588 = vmatpush2.bf16.msra.mxu0 0
      %589 = vmatprep.subr.bf16.mxu0 0
      %590 = vmatpush2.bf16.msra.mxu0 0
      %591 = vmatprep.mubr.bf16.mxu0 0
      %592 = vmatmul.mubr.bf16.gmra.mxu0 %v508
      %v593 = vpop.f32.mrf.mxu0
      %v594 = vadd.f32 %v474, %v593
      %v595 = vpop.f32.mrf.mxu0
      %v596 = vpop.f32.mrf.mxu0
      %v597 = vadd.f32 %v475, %v596
      %v598 = vpop.f32.mrf.mxu0
      %599 = vmatprep.mubr.bf16.mxu0 0
      %600 = vmatmul.mubr.bf16.gmra.mxu0 %v511
      %v601 = vpop.f32.mrf.mxu0
      %v602 = vadd.f32 %v476, %v601
      %v603 = vpop.f32.mrf.mxu0
      %v604 = vpop.f32.mrf.mxu0
      %v605 = vadd.f32 %v477, %v604
      %v606 = vpop.f32.mrf.mxu0
      %607 = vmatprep.mubr.bf16.mxu0 0
      %608 = vmatmul.mubr.bf16.gmra.mxu0 %v514
      %v609 = vpop.f32.mrf.mxu0
      %v610 = vadd.f32 %v478, %v609
      %v611 = vpop.f32.mrf.mxu0
      %v612 = vpop.f32.mrf.mxu0
      %v613 = vadd.f32 %v479, %v612
      %v614 = vpop.f32.mrf.mxu0
      %615 = vmatprep.mubr.bf16.mxu0 0
      %616 = vmatmul.mubr.bf16.gmra.mxu0 %v517
      %v617 = vpop.f32.mrf.mxu0
      %v618 = vadd.f32 %v480, %v617
      %v619 = vpop.f32.mrf.mxu0
      %v620 = vpop.f32.mrf.mxu0
      %v621 = vadd.f32 %v481, %v620
      %v622 = vpop.f32.mrf.mxu0
      %623 = vmatprep.mubr.bf16.mxu0 0
      %624 = vmatmul.mubr.bf16.gmra.mxu0 %v520
      %v625 = vpop.f32.mrf.mxu0
      %v626 = vadd.f32 %v482, %v625
      %v627 = vpop.f32.mrf.mxu0
      %v628 = vpop.f32.mrf.mxu0
      %v629 = vadd.f32 %v483, %v628
      %v630 = vpop.f32.mrf.mxu0
      %631 = vmatprep.mubr.bf16.mxu0 0
      %632 = vmatmul.mubr.bf16.gmra.mxu0 %v523
      %v633 = vpop.f32.mrf.mxu0
      %v634 = vadd.f32 %v484, %v633
      %v635 = vpop.f32.mrf.mxu0
      %v636 = vpop.f32.mrf.mxu0
      %v637 = vadd.f32 %v485, %v636
      %v638 = vpop.f32.mrf.mxu0
      %639 = vmatprep.mubr.bf16.mxu0 0
      %640 = vmatmul.mubr.bf16.gmra.mxu0 %v526
      %v641 = vpop.f32.mrf.mxu0
      %v642 = vadd.f32 %v486, %v641
      %v643 = vpop.f32.mrf.mxu0
      %v644 = vpop.f32.mrf.mxu0
      %v645 = vadd.f32 %v487, %v644
      %v646 = vpop.f32.mrf.mxu0
      %647 = vmatprep.mubr.bf16.mxu0 0
      %648 = vmatmul.mubr.bf16.gmra.mxu0 %v529
      %v649 = vpop.f32.mrf.mxu0
      %v650 = vadd.f32 %v488, %v649
      %v651 = vpop.f32.mrf.mxu0
      %v652 = vpop.f32.mrf.mxu0
      %v653 = vadd.f32 %v489, %v652
      %v654 = vpop.f32.mrf.mxu0
      %655 = vmatprep.mubr.bf16.mxu0 0
      %656 = vmatmul.mubr.bf16.gmra.mxu0 %v532
      %v657 = vpop.f32.mrf.mxu0
      %v658 = vadd.f32 %v490, %v657
      %v659 = vpop.f32.mrf.mxu0
      %v660 = vpop.f32.mrf.mxu0
      %v661 = vadd.f32 %v491, %v660
      %v662 = vpop.f32.mrf.mxu0
      %663 = vmatprep.mubr.bf16.mxu0 0
      %664 = vmatmul.mubr.bf16.gmra.mxu0 %v535
      %v665 = vpop.f32.mrf.mxu0
      %v666 = vadd.f32 %v492, %v665
      %v667 = vpop.f32.mrf.mxu0
      %v668 = vpop.f32.mrf.mxu0
      %v669 = vadd.f32 %v493, %v668
      %v670 = vpop.f32.mrf.mxu0
      %671 = vmatprep.mubr.bf16.mxu0 0
      %672 = vmatmul.mubr.bf16.gmra.mxu0 %v538
      %v673 = vpop.f32.mrf.mxu0
      %v674 = vadd.f32 %v494, %v673
      %v675 = vpop.f32.mrf.mxu0
      %v676 = vpop.f32.mrf.mxu0
      %v677 = vadd.f32 %v495, %v676
      %v678 = vpop.f32.mrf.mxu0
      %679 = vmatprep.mubr.bf16.mxu0 0
      %680 = vmatmul.mubr.bf16.gmra.mxu0 %v541
      %v681 = vpop.f32.mrf.mxu0
      %v682 = vadd.f32 %v496, %v681
      %v683 = vpop.f32.mrf.mxu0
      %v684 = vpop.f32.mrf.mxu0
      %v685 = vadd.f32 %v497, %v684
      %v686 = vpop.f32.mrf.mxu0
      %687 = vmatprep.mubr.bf16.mxu0 0
      %688 = vmatmul.mubr.bf16.gmra.mxu0 %v544
      %v689 = vpop.f32.mrf.mxu0
      %v690 = vadd.f32 %v498, %v689
      %v691 = vpop.f32.mrf.mxu0
      %v692 = vpop.f32.mrf.mxu0
      %v693 = vadd.f32 %v499, %v692
      %v694 = vpop.f32.mrf.mxu0
      %695 = vmatprep.mubr.bf16.mxu0 0
      %696 = vmatmul.mubr.bf16.gmra.mxu0 %v547
      %v697 = vpop.f32.mrf.mxu0
      %v698 = vadd.f32 %v500, %v697
      %v699 = vpop.f32.mrf.mxu0
      %v700 = vpop.f32.mrf.mxu0
      %v701 = vadd.f32 %v501, %v700
      %v702 = vpop.f32.mrf.mxu0
      %703 = vmatprep.mubr.bf16.mxu0 0
      %704 = vmatmul.mubr.bf16.gmra.mxu0 %v550
      %v705 = vpop.f32.mrf.mxu0
      %v706 = vadd.f32 %v502, %v705
      %v707 = vpop.f32.mrf.mxu0
      %v708 = vpop.f32.mrf.mxu0
      %v709 = vadd.f32 %v503, %v708
      %v710 = vpop.f32.mrf.mxu0
      %711 = vmatprep.mubr.bf16.mxu0 0
      %712 = vmatmul.mubr.bf16.gmra.mxu0 %v553
      %v713 = vpop.f32.mrf.mxu0
      %v714 = vadd.f32 %v504, %v713
      %v715 = vpop.f32.mrf.mxu0
      %v716 = vpop.f32.mrf.mxu0
      %v717 = vadd.f32 %v505, %v716
      %v718 = vpop.f32.mrf.mxu0
      %719 = vdwg.mxu0
      %vm720 = vcmask 130048
      %721 = vst.msk [vmem:[%s248] sm:$0xff] %vm720, %v594
      %722 = vst.msk [vmem:[%s248 + $0x8] sm:$0xff] %vm720, %v597
      %723 = vst.msk [vmem:[%s248 + $0x10] sm:$0xff] %vm720, %v602
      %724 = vst.msk [vmem:[%s248 + $0x18] sm:$0xff] %vm720, %v605
      %725 = vst.msk [vmem:[%s248 + $0x20] sm:$0xff] %vm720, %v610
      %726 = vst.msk [vmem:[%s248 + $0x28] sm:$0xff] %vm720, %v613
      %727 = vst.msk [vmem:[%s248 + $0x30] sm:$0xff] %vm720, %v618
      %728 = vst.msk [vmem:[%s248 + $0x38] sm:$0xff] %vm720, %v621
      %729 = vst.msk [vmem:[%s248 + $0x40] sm:$0xff] %vm720, %v626
      %730 = vst.msk [vmem:[%s248 + $0x48] sm:$0xff] %vm720, %v629
      %731 = vst.msk [vmem:[%s248 + $0x50] sm:$0xff] %vm720, %v634
      %732 = vst.msk [vmem:[%s248 + $0x58] sm:$0xff] %vm720, %v637
      %733 = vst.msk [vmem:[%s248 + $0x60] sm:$0xff] %vm720, %v642
      %734 = vst.msk [vmem:[%s248 + $0x68] sm:$0xff] %vm720, %v645
      %735 = vst.msk [vmem:[%s248 + $0x70] sm:$0xff] %vm720, %v650
      %736 = vst.msk [vmem:[%s248 + $0x78] sm:$0xff] %vm720, %v653
      %737 = vst.msk [vmem:[%s248 + $0x80] sm:$0xff] %vm720, %v658
      %738 = vst.msk [vmem:[%s248 + $0x88] sm:$0xff] %vm720, %v661
      %739 = vst.msk [vmem:[%s248 + $0x90] sm:$0xff] %vm720, %v666
      %740 = vst.msk [vmem:[%s248 + $0x98] sm:$0xff] %vm720, %v669
      %741 = vst.msk [vmem:[%s248 + $0xa0] sm:$0xff] %vm720, %v674
      %742 = vst.msk [vmem:[%s248 + $0xa8] sm:$0xff] %vm720, %v677
      %743 = vst.msk [vmem:[%s248 + $0xb0] sm:$0xff] %vm720, %v682
      %744 = vst.msk [vmem:[%s248 + $0xb8] sm:$0xff] %vm720, %v685
      %745 = vst.msk [vmem:[%s248 + $0xc0] sm:$0xff] %vm720, %v690
      %746 = vst.msk [vmem:[%s248 + $0xc8] sm:$0xff] %vm720, %v693
      %747 = vst.msk [vmem:[%s248 + $0xd0] sm:$0xff] %vm720, %v698
      %748 = vst.msk [vmem:[%s248 + $0xd8] sm:$0xff] %vm720, %v701
      %749 = vst.msk [vmem:[%s248 + $0xe0] sm:$0xff] %vm720, %v706
      %750 = vst.msk [vmem:[%s248 + $0xe8] sm:$0xff] %vm720, %v709
      %751 = vst.msk [vmem:[%s248 + $0xf0] sm:$0xff] %vm720, %v714
      %752 = vst.msk [vmem:[%s248 + $0xf8] sm:$0xff] %vm720, %v717
      %s753 = smul.u32 32, %s16
      %p754 = scmp.lt.s32.totalorder %s753, 63
      %s755 = scalar_select %p754, %s753, 63
      %s756 = smul.addr %s755, 8
      %s757 = scalar_lea.vmem %s5, %s756
      // Predicated region
      $region41: #{_lambda_.7} parent=39 // pred_check
        %p758 = pneg %p149
      $region42: #{_lambda_.7} parent=39 // pred_check_branch
        %760 = sbr.rel (%p758) target = $region44
      $region43: #{_lambda_.7} parent=39 // pred_region
        %s761 = smul.u32 32, %s16
      $region44: #{_lambda_.7} parent=39 // pred_fallthru
        _
    $region40: #{_lambda_.7} parent=5 // pred_fallthru
      _
    %p762 = scmp.le.s32.totalorder 2, %s11
    // Predicated region
    $region45: #{_lambda_.7} parent=5 // pred_check
      %p763 = pneg %p762
    $region46: #{_lambda_.7} parent=5 // pred_check_branch
      %765 = sbr.rel (%p763) target = $region48
    $region47: #{_lambda_.7} parent=5 // pred_region
      %s766 = ssub.s32 %s11, 2
      // Predicated region
      $region49: #{_lambda_.7} parent=47 // pred_check
        %p767 = pneg %p155
      $region50: #{_lambda_.7} parent=47 // pred_check_branch
        %769 = sbr.rel (%p767) target = $region52
      $region51: #{_lambda_.7} parent=47 // pred_region
        %s770 = smul.u32 32, %s17
        %p771 = scmp.lt.s32.totalorder %s770, 63
        %s772 = scalar_select %p771, %s770, 63
        %s773 = smul.addr %s772, 8
        %s774 = scalar_lea.vmem %s5, %s773
      $region52: #{_lambda_.7} parent=47 // pred_fallthru
        _
    $region48: #{_lambda_.7} parent=5 // pred_fallthru
      _
  $region6: #{_lambda_.7} parent=0 // loop_footer
    %s15 = sadd.s32 1, %s11
  $region7: #{_lambda_.7} parent=0 // loop_footer_branch
    %10 = sbr.rel target = $region3
  $region8: #{_lambda_.7} parent=0 // loop_exit
    _

// kernel: _lambda_.5
$region0: #{_lambda_.5}
  #allocation0 [shape = 'u32[]', space=smem, size = 0x4, offset = 0x4, fixed_abs, tag = 'smem constant byte address 0x4 - core index']
  #allocation1 [shape = 'u32[144,128]{1,0:T(1,128)}', space=vmem, size = 0x12000, scoped, tag = 'internal scratch']
  %s0 = inlined_call_operand.vmem [shape: f32[512,4], index: 0, kind: input, shape index: {}]
  %s1 = inlined_call_operand.vmem [shape: f32[1,4], index: 1, kind: input, shape index: {}]
  %s2 = inlined_call_operand.vmem [shape: f32[1,4], index: 2, kind: input, shape index: {}]
  %s3 = inlined_call_operand.vmem [shape: bf16[4,20], index: 3, kind: input, shape index: {}]
  %s4 = inlined_call_operand.vmem [shape: bf16[512,4], index: 4, kind: output, shape index: {0}]
  %s5 = inlined_call_operand.vmem [shape: bf16[512,16], index: 5, kind: output, shape index: {1}]
  %s6 = inlined_call_operand.vmem [shape: f32[2,1,4], index: 6, kind: output, shape index: {2}]
  %s7 = inlined_call_operand.vmem [shape: f32[2,1,4], index: 7, kind: output, shape index: {3}]
  %8 = xla_tuple %s4, %s5, %s6, %s7
  %s9 = sld [smem:[#allocation0]]
  $region73: #{_lambda_.5} parent=0
    _
  %s11 = ssub.s32 1, %s9
  %s12 = scalar_select 0, %s11, %s9
  loop: start=0, step=1, limit=4
  $region2: #{_lambda_.5} parent=0 // loop_pre_header
    _
  $region3: #{_lambda_.5} parent=0 // loop_header
    %s14 = sphi 0, %s18
    %p15 = scmp.ge.s32.totalorder %s14, 4
    %s24 = sphi 0, %s26
    %s27 = sphi 0, %s24
    %s28 = sphi 0, %s27
    %s44 = sphi 0, %s28
    %s48 = sphi 0, %s48
    %s50 = sphi 0, %s48
    %s51 = sphi 0, %s50
    %s65 = sphi 0, %s51
    %s69 = sphi 0, %s69
    %s71 = sphi 0, %s69
    %s72 = sphi 0, %s71
    %s86 = sphi 0, %s72
    %s90 = sphi 0, %s90
    %s92 = sphi 0, %s90
    %s93 = sphi 0, %s92
    %s107 = sphi 0, %s93
    %s113 = sphi 0, %s115
    %s116 = sphi 0, %s113
    %s117 = sphi 0, %s116
    %s133 = sphi 0, %s117
    %s139 = sphi 0, %s141
    %s142 = sphi 0, %s139
    %s143 = sphi 0, %s142
    %s159 = sphi 0, %s143
    %s165 = sphi 0, %s167
    %s168 = sphi 0, %s165
    %s169 = sphi 0, %s168
    %s185 = sphi 0, %s169
    %s191 = sphi 0, %s193
    %s194 = sphi 0, %s191
    %s195 = sphi 0, %s194
    %s211 = sphi 0, %s195
  $region4: #{_lambda_.5} parent=0 // loop_header_branch
    %17 = sbr.rel (%p15) target = $region8
  $region5: #{_lambda_.5} parent=0 // loop_body
    %s19 = ssub.s32 %s14, 1
    %s20 = ssub.s32 %s14, 2
    %s21 = sadd.s32 %s14, 1
    %s22 = ssub.s32 %s14, %s21
    %p23 = scmp.eq.s32.totalorder %s22, 0
    %s25 = sadd.s32 %s24, 1
    %s26 = scalar_select %p23, %s24, %s25
    %p29 = pneg %p23
    %p30 = scmp.eq.s32.totalorder %s14, 1
    %p31 = por %p29, %p30
    %p32 = scmp.ne.s32.totalorder %s24, %s27
    %p33 = scmp.eq.s32.totalorder %s14, 0
    %p34 = por %p32, %p33
    %p35 = scmp.ne.s32.totalorder %s24, %s27
    %p36 = scmp.eq.s32.totalorder %s19, 1
    %p37 = por %p35, %p36
    %p38 = scmp.ne.s32.totalorder %s27, %s28
    %p39 = scmp.eq.s32.totalorder %s19, 0
    %p40 = por %p38, %p39
    %p41 = scmp.ne.s32.totalorder %s27, %s28
    %p42 = scmp.eq.s32.totalorder %s20, 1
    %p43 = por %p41, %p42
    %p45 = scmp.ne.s32.totalorder %s28, %s44
    %p46 = scmp.eq.s32.totalorder %s20, 0
    %p47 = por %p45, %p46
    %s49 = sadd.s32 %s48, 1
    %p52 = scmp.eq.s32.totalorder %s14, 1
    %p53 = scmp.ne.s32.totalorder %s48, %s50
    %p54 = scmp.eq.s32.totalorder %s14, 0
    %p55 = por %p53, %p54
    %p56 = scmp.ne.s32.totalorder %s48, %s50
    %p57 = scmp.eq.s32.totalorder %s19, 1
    %p58 = por %p56, %p57
    %p59 = scmp.ne.s32.totalorder %s50, %s51
    %p60 = scmp.eq.s32.totalorder %s19, 0
    %p61 = por %p59, %p60
    %p62 = scmp.ne.s32.totalorder %s50, %s51
    %p63 = scmp.eq.s32.totalorder %s20, 1
    %p64 = por %p62, %p63
    %p66 = scmp.ne.s32.totalorder %s51, %s65
    %p67 = scmp.eq.s32.totalorder %s20, 0
    %p68 = por %p66, %p67
    %s70 = sadd.s32 %s69, 1
    %p73 = scmp.eq.s32.totalorder %s14, 1
    %p74 = scmp.ne.s32.totalorder %s69, %s71
    %p75 = scmp.eq.s32.totalorder %s14, 0
    %p76 = por %p74, %p75
    %p77 = scmp.ne.s32.totalorder %s69, %s71
    %p78 = scmp.eq.s32.totalorder %s19, 1
    %p79 = por %p77, %p78
    %p80 = scmp.ne.s32.totalorder %s71, %s72
    %p81 = scmp.eq.s32.totalorder %s19, 0
    %p82 = por %p80, %p81
    %p83 = scmp.ne.s32.totalorder %s71, %s72
    %p84 = scmp.eq.s32.totalorder %s20, 1
    %p85 = por %p83, %p84
    %p87 = scmp.ne.s32.totalorder %s72, %s86
    %p88 = scmp.eq.s32.totalorder %s20, 0
    %p89 = por %p87, %p88
    %s91 = sadd.s32 %s90, 1
    %p94 = scmp.eq.s32.totalorder %s14, 1
    %p95 = scmp.ne.s32.totalorder %s90, %s92
    %p96 = scmp.eq.s32.totalorder %s14, 0
    %p97 = por %p95, %p96
    %p98 = scmp.ne.s32.totalorder %s90, %s92
    %p99 = scmp.eq.s32.totalorder %s19, 1
    %p100 = por %p98, %p99
    %p101 = scmp.ne.s32.totalorder %s92, %s93
    %p102 = scmp.eq.s32.totalorder %s19, 0
    %p103 = por %p101, %p102
    %p104 = scmp.ne.s32.totalorder %s92, %s93
    %p105 = scmp.eq.s32.totalorder %s20, 1
    %p106 = por %p104, %p105
    %p108 = scmp.ne.s32.totalorder %s93, %s107
    %p109 = scmp.eq.s32.totalorder %s20, 0
    %p110 = por %p108, %p109
    %s111 = ssub.s32 %s14, %s21
    %p112 = scmp.eq.s32.totalorder %s111, 0
    %s114 = sadd.s32 %s113, 1
    %s115 = scalar_select %p112, %s113, %s114
    %p118 = pneg %p112
    %p119 = scmp.eq.s32.totalorder %s14, 1
    %p120 = por %p118, %p119
    %p121 = scmp.ne.s32.totalorder %s113, %s116
    %p122 = scmp.eq.s32.totalorder %s14, 0
    %p123 = por %p121, %p122
    %p124 = scmp.ne.s32.totalorder %s113, %s116
    %p125 = scmp.eq.s32.totalorder %s19, 1
    %p126 = por %p124, %p125
    %p127 = scmp.ne.s32.totalorder %s116, %s117
    %p128 = scmp.eq.s32.totalorder %s19, 0
    %p129 = por %p127, %p128
    %p130 = scmp.ne.s32.totalorder %s116, %s117
    %p131 = scmp.eq.s32.totalorder %s20, 1
    %p132 = por %p130, %p131
    %p134 = scmp.ne.s32.totalorder %s117, %s133
    %p135 = scmp.eq.s32.totalorder %s20, 0
    %p136 = por %p134, %p135
    %s137 = ssub.s32 %s14, %s21
    %p138 = scmp.eq.s32.totalorder %s137, 0
    %s140 = sadd.s32 %s139, 1
    %s141 = scalar_select %p138, %s139, %s140
    %p144 = pneg %p138
    %p145 = scmp.eq.s32.totalorder %s14, 1
    %p146 = por %p144, %p145
    %p147 = scmp.ne.s32.totalorder %s139, %s142
    %p148 = scmp.eq.s32.totalorder %s14, 0
    %p149 = por %p147, %p148
    %p150 = scmp.ne.s32.totalorder %s139, %s142
    %p151 = scmp.eq.s32.totalorder %s19, 1
    %p152 = por %p150, %p151
    %p153 = scmp.ne.s32.totalorder %s142, %s143
    %p154 = scmp.eq.s32.totalorder %s19, 0
    %p155 = por %p153, %p154
    %p156 = scmp.ne.s32.totalorder %s142, %s143
    %p157 = scmp.eq.s32.totalorder %s20, 1
    %p158 = por %p156, %p157
    %p160 = scmp.ne.s32.totalorder %s143, %s159
    %p161 = scmp.eq.s32.totalorder %s20, 0
    %p162 = por %p160, %p161
    %s163 = ssub.s32 %s14, %s21
    %p164 = scmp.eq.s32.totalorder %s163, 0
    %s166 = sadd.s32 %s165, 1
    %s167 = scalar_select %p164, %s165, %s166
    %p170 = pneg %p164
    %p171 = scmp.eq.s32.totalorder %s14, 1
    %p172 = por %p170, %p171
    %p173 = scmp.ne.s32.totalorder %s165, %s168
    %p174 = scmp.eq.s32.totalorder %s14, 0
    %p175 = por %p173, %p174
    %p176 = scmp.ne.s32.totalorder %s165, %s168
    %p177 = scmp.eq.s32.totalorder %s19, 1
    %p178 = por %p176, %p177
    %p179 = scmp.ne.s32.totalorder %s168, %s169
    %p180 = scmp.eq.s32.totalorder %s19, 0
    %p181 = por %p179, %p180
    %p182 = scmp.ne.s32.totalorder %s168, %s169
    %p183 = scmp.eq.s32.totalorder %s20, 1
    %p184 = por %p182, %p183
    %p186 = scmp.ne.s32.totalorder %s169, %s185
    %p187 = scmp.eq.s32.totalorder %s20, 0
    %p188 = por %p186, %p187
    %s189 = ssub.s32 %s14, %s21
    %p190 = scmp.eq.s32.totalorder %s189, 0
    %s192 = sadd.s32 %s191, 1
    %s193 = scalar_select %p190, %s191, %s192
    %p196 = pneg %p190
    %p197 = scmp.eq.s32.totalorder %s14, 1
    %p198 = por %p196, %p197
    %p199 = scmp.ne.s32.totalorder %s191, %s194
    %p200 = scmp.eq.s32.totalorder %s14, 0
    %p201 = por %p199, %p200
    %p202 = scmp.ne.s32.totalorder %s191, %s194
    %p203 = scmp.eq.s32.totalorder %s19, 1
    %p204 = por %p202, %p203
    %p205 = scmp.ne.s32.totalorder %s194, %s195
    %p206 = scmp.eq.s32.totalorder %s19, 0
    %p207 = por %p205, %p206
    %p208 = scmp.ne.s32.totalorder %s194, %s195
    %p209 = scmp.eq.s32.totalorder %s20, 1
    %p210 = por %p208, %p209
    %p212 = scmp.ne.s32.totalorder %s195, %s211
    %p213 = scmp.eq.s32.totalorder %s20, 0
    %p214 = por %p212, %p213
    %p215 = scmp.le.s32.totalorder 1, %s14
    %p216 = scmp.lt.s32.totalorder %s14, 3
    %p217 = pnand %p215, %p216
    %p218 = pneg %p217
    // Predicated region
    $region9: #{_lambda_.5} parent=5 // pred_check
      _
    $region10: #{_lambda_.5} parent=5 // pred_check_branch
      %220 = sbr.rel (%p217) target = $region12
    $region11: #{_lambda_.5} parent=5 // pred_region
      %s221 = ssub.s32 %s14, 1
      // Predicated region
      $region13: #{_lambda_.5} parent=11 // pred_check
        %p222 = pneg %p61
      $region14: #{_lambda_.5} parent=11 // pred_check_branch
        %224 = sbr.rel (%p222) target = $region16
      $region15: #{_lambda_.5} parent=11 // pred_region
        _
      $region16: #{_lambda_.5} parent=11 // pred_fallthru
        _
      // Predicated region
      $region17: #{_lambda_.5} parent=11 // pred_check
        %p225 = pneg %p82
      $region18: #{_lambda_.5} parent=11 // pred_check_branch
        %227 = sbr.rel (%p225) target = $region20
      $region19: #{_lambda_.5} parent=11 // pred_region
        _
      $region20: #{_lambda_.5} parent=11 // pred_fallthru
        _
      // Predicated region
      $region21: #{_lambda_.5} parent=11 // pred_check
        %p228 = pneg %p103
      $region22: #{_lambda_.5} parent=11 // pred_check_branch
        %230 = sbr.rel (%p228) target = $region24
      $region23: #{_lambda_.5} parent=11 // pred_region
        _
      $region24: #{_lambda_.5} parent=11 // pred_fallthru
        _
    $region12: #{_lambda_.5} parent=5 // pred_fallthru
      _
    %p231 = scmp.lt.s32.totalorder %s14, 2
    // Predicated region
    $region25: #{_lambda_.5} parent=5 // pred_check
      %p232 = pneg %p231
    $region26: #{_lambda_.5} parent=5 // pred_check_branch
      %234 = sbr.rel (%p232) target = $region28
    $region27: #{_lambda_.5} parent=5 // pred_region
      // Predicated region
      $region29: #{_lambda_.5} parent=27 // pred_check
        %p235 = pneg %p34
      $region30: #{_lambda_.5} parent=27 // pred_check_branch
        %237 = sbr.rel (%p235) target = $region32
      $region31: #{_lambda_.5} parent=27 // pred_region
        %s238 = smul.u32 32, %s14
        %p239 = scmp.lt.s32.totalorder %s238, 63
        %s240 = scalar_select %p239, %s238, 63
        %s241 = smul.addr %s240, 8
        %s242 = scalar_lea.vmem %s0, %s241
        %s243 = smul.u32 32, %s14
      $region32: #{_lambda_.5} parent=27 // pred_fallthru
        _
    $region28: #{_lambda_.5} parent=5 // pred_fallthru
      _
    %p244 = scmp.le.s32.totalorder 1, %s14
    %p245 = scmp.lt.s32.totalorder %s14, 3
    %p246 = pnand %p244, %p245
    %p247 = pneg %p246
    // Predicated region
    $region33: #{_lambda_.5} parent=5 // pred_check
      _
    $region34: #{_lambda_.5} parent=5 // pred_check_branch
      %249 = sbr.rel (%p246) target = $region36
    $region35: #{_lambda_.5} parent=5 // pred_region
      %s250 = ssub.s32 %s14, 1
      %s251 = smul.u32 32, %s19
      %p252 = scmp.lt.s32.totalorder %s251, 63
      %s253 = scalar_select %p252, %s251, 63
      %s254 = smul.addr %s253, 8
      %s255 = scalar_lea.vmem %s0, %s254
      %p256 = pneg %p40
      %p257 = pneg %p37
      %p258 = pneg %p61
      %p259 = pneg %p58
      %p260 = pneg %p82
      %p261 = pneg %p79
      %p262 = pneg %p103
      %p263 = pneg %p100
      %p264 = pneg %p129
      %p265 = pneg %p126
      %s266 = smul.u32 32, %s19
      %p267 = scmp.lt.s32.totalorder %s266, 63
      %s268 = scalar_select %p267, %s266, 63
      %s269 = smul.addr %s268, 4
      %s270 = scalar_lea.vmem %s4, %s269
      %p271 = pneg %p155
      %p272 = pneg %p152
      %s273 = smul.u32 32, %s19
      %p274 = scmp.lt.s32.totalorder %s273, 63
      %s275 = scalar_select %p274, %s273, 63
      %s276 = smul.addr %s275, 4
      %s277 = scalar_lea.vmem %s5, %s276
      %p278 = pneg %p181
      %p279 = pneg %p178
      %p280 = scmp.lt.s32.totalorder %s19, 1
      %s281 = scalar_select %p280, %s19, 1
      %s282 = scalar_lea.vmem %s6, %s281
      %p283 = pneg %p207
      %p284 = pneg %p204
      %p285 = scmp.lt.s32.totalorder %s19, 1
      %s286 = scalar_select %p285, %s19, 1
      %s287 = scalar_lea.vmem %s7, %s286
      %s288 = smul.u32 32, %s19
      %p289 = scmp.lt.s32.totalorder %s288, 63
      %s290 = scalar_select %p289, %s288, 63
      %s291 = smul.addr %s290, 8
      %s292 = scalar_lea.vmem %s0, %s291
      %s293 = smul.u32 32, %s19
      %s294 = smul.u32 32, %s19
      %p295 = scmp.lt.s32.totalorder %s294, 63
      %s296 = scalar_select %p295, %s294, 63
      %s297 = smul.addr %s296, 4
      %s298 = scalar_lea.vmem %s4, %s297
      %s299 = smul.u32 32, %s19
      %s300 = smul.u32 32, %s19
      %p301 = scmp.lt.s32.totalorder %s300, 63
      %s302 = scalar_select %p301, %s300, 63
      %s303 = smul.addr %s302, 4
      %s304 = scalar_lea.vmem %s5, %s303
      %s305 = smul.u32 32, %s19
      %p306 = scmp.lt.s32.totalorder %s19, 1
      %s307 = scalar_select %p306, %s19, 1
      %s308 = scalar_lea.vmem %s6, %s307
      %p309 = scmp.lt.s32.totalorder %s19, 1
      %s310 = scalar_select %p309, %s19, 1
      %s311 = scalar_lea.vmem %s7, %s310
      %v313 = vld [vmem:[%s292] sm:$0xff]
      %v314 = vld [vmem:[%s292 + $0x8] sm:$0xff]
      %v315 = vld [vmem:[%s292 + $0x10] sm:$0xff]
      %v316 = vld [vmem:[%s292 + $0x18] sm:$0xff]
      %v317 = vld [vmem:[%s292 + $0x20] sm:$0xff]
      %v318 = vld [vmem:[%s292 + $0x28] sm:$0xff]
      %v319 = vld [vmem:[%s292 + $0x30] sm:$0xff]
      %v320 = vld [vmem:[%s292 + $0x38] sm:$0xff]
      %v321 = vld [vmem:[%s292 + $0x40] sm:$0xff]
      %v322 = vld [vmem:[%s292 + $0x48] sm:$0xff]
      %v323 = vld [vmem:[%s292 + $0x50] sm:$0xff]
      %v324 = vld [vmem:[%s292 + $0x58] sm:$0xff]
      %v325 = vld [vmem:[%s292 + $0x60] sm:$0xff]
      %v326 = vld [vmem:[%s292 + $0x68] sm:$0xff]
      %v327 = vld [vmem:[%s292 + $0x70] sm:$0xff]
      %v328 = vld [vmem:[%s292 + $0x78] sm:$0xff]
      %v329 = vld [vmem:[%s292 + $0x80] sm:$0xff]
      %v330 = vld [vmem:[%s292 + $0x88] sm:$0xff]
      %v331 = vld [vmem:[%s292 + $0x90] sm:$0xff]
      %v332 = vld [vmem:[%s292 + $0x98] sm:$0xff]
      %v333 = vld [vmem:[%s292 + $0xa0] sm:$0xff]
      %v334 = vld [vmem:[%s292 + $0xa8] sm:$0xff]
      %v335 = vld [vmem:[%s292 + $0xb0] sm:$0xff]
      %v336 = vld [vmem:[%s292 + $0xb8] sm:$0xff]
      %v337 = vld [vmem:[%s292 + $0xc0] sm:$0xff]
      %v338 = vld [vmem:[%s292 + $0xc8] sm:$0xff]
      %v339 = vld [vmem:[%s292 + $0xd0] sm:$0xff]
      %v340 = vld [vmem:[%s292 + $0xd8] sm:$0xff]
      %v341 = vld [vmem:[%s292 + $0xe0] sm:$0xff]
      %v342 = vld [vmem:[%s292 + $0xe8] sm:$0xff]
      %v343 = vld [vmem:[%s292 + $0xf0] sm:$0xff]
      %v344 = vld [vmem:[%s292 + $0xf8] sm:$0xff]
      %v345 = vld [vmem:[%s1] sm:$0x1]
      %v347 = vlaneseq
      %v348 = vshrl.u32 %v347, 7
      %v349 = vsub.s32 0, %v348
      %v350 = vrot.slane %v345, %v349
      %v352 = vmul.f32 %v313, %v350
      %v353 = vmul.f32 %v314, %v350
      %v354 = vmul.f32 %v315, %v350
      %v355 = vmul.f32 %v316, %v350
      %v356 = vmul.f32 %v317, %v350
      %v357 = vmul.f32 %v318, %v350
      %v358 = vmul.f32 %v319, %v350
      %v359 = vmul.f32 %v320, %v350
      %v360 = vmul.f32 %v321, %v350
      %v361 = vmul.f32 %v322, %v350
      %v362 = vmul.f32 %v323, %v350
      %v363 = vmul.f32 %v324, %v350
      %v364 = vmul.f32 %v325, %v350
      %v365 = vmul.f32 %v326, %v350
      %v366 = vmul.f32 %v327, %v350
      %v367 = vmul.f32 %v328, %v350
      %v368 = vmul.f32 %v329, %v350
      %v369 = vmul.f32 %v330, %v350
      %v370 = vmul.f32 %v331, %v350
      %v371 = vmul.f32 %v332, %v350
      %v372 = vmul.f32 %v333, %v350
      %v373 = vmul.f32 %v334, %v350
      %v374 = vmul.f32 %v335, %v350
      %v375 = vmul.f32 %v336, %v350
      %v376 = vmul.f32 %v337, %v350
      %v377 = vmul.f32 %v338, %v350
      %v378 = vmul.f32 %v339, %v350
      %v379 = vmul.f32 %v340, %v350
      %v380 = vmul.f32 %v341, %v350
      %v381 = vmul.f32 %v342, %v350
      %v382 = vmul.f32 %v343, %v350
      %v383 = vmul.f32 %v344, %v350
      %v384 = vld [vmem:[%s2] sm:$0x1]
      %v386 = vlaneseq
      %v387 = vshrl.u32 %v386, 7
      %v388 = vsub.s32 0, %v387
      %v389 = vrot.slane %v384, %v388
      %v391 = vadd.f32 %v352, %v389
      %v392 = vadd.f32 %v353, %v389
      %v393 = vadd.f32 %v354, %v389
      %v394 = vadd.f32 %v355, %v389
      %v395 = vadd.f32 %v356, %v389
      %v396 = vadd.f32 %v357, %v389
      %v397 = vadd.f32 %v358, %v389
      %v398 = vadd.f32 %v359, %v389
      %v399 = vadd.f32 %v360, %v389
      %v400 = vadd.f32 %v361, %v389
      %v401 = vadd.f32 %v362, %v389
      %v402 = vadd.f32 %v363, %v389
      %v403 = vadd.f32 %v364, %v389
      %v404 = vadd.f32 %v365, %v389
      %v405 = vadd.f32 %v366, %v389
      %v406 = vadd.f32 %v367, %v389
      %v407 = vadd.f32 %v368, %v389
      %v408 = vadd.f32 %v369, %v389
      %v409 = vadd.f32 %v370, %v389
      %v410 = vadd.f32 %v371, %v389
      %v411 = vadd.f32 %v372, %v389
      %v412 = vadd.f32 %v373, %v389
      %v413 = vadd.f32 %v374, %v389
      %v414 = vadd.f32 %v375, %v389
      %v415 = vadd.f32 %v376, %v389
      %v416 = vadd.f32 %v377, %v389
      %v417 = vadd.f32 %v378, %v389
      %v418 = vadd.f32 %v379, %v389
      %v419 = vadd.f32 %v380, %v389
      %v420 = vadd.f32 %v381, %v389
      %v421 = vadd.f32 %v382, %v389
      %v422 = vadd.f32 %v383, %v389
      %v423 = vmax.f32 %v391, 0.0
      %v424 = vmax.f32 %v392, 0.0
      %v425 = vmax.f32 %v393, 0.0
      %v426 = vmax.f32 %v394, 0.0
      %v427 = vmax.f32 %v395, 0.0
      %v428 = vmax.f32 %v396, 0.0
      %v429 = vmax.f32 %v397, 0.0
      %v430 = vmax.f32 %v398, 0.0
      %v431 = vmax.f32 %v399, 0.0
      %v432 = vmax.f32 %v400, 0.0
      %v433 = vmax.f32 %v401, 0.0
      %v434 = vmax.f32 %v402, 0.0
      %v435 = vmax.f32 %v403, 0.0
      %v436 = vmax.f32 %v404, 0.0
      %v437 = vmax.f32 %v405, 0.0
      %v438 = vmax.f32 %v406, 0.0
      %v439 = vmax.f32 %v407, 0.0
      %v440 = vmax.f32 %v408, 0.0
      %v441 = vmax.f32 %v409, 0.0
      %v442 = vmax.f32 %v410, 0.0
      %v443 = vmax.f32 %v411, 0.0
      %v444 = vmax.f32 %v412, 0.0
      %v445 = vmax.f32 %v413, 0.0
      %v446 = vmax.f32 %v414, 0.0
      %v447 = vmax.f32 %v415, 0.0
      %v448 = vmax.f32 %v416, 0.0
      %v449 = vmax.f32 %v417, 0.0
      %v450 = vmax.f32 %v418, 0.0
      %v451 = vmax.f32 %v419, 0.0
      %v452 = vmax.f32 %v420, 0.0
      %v453 = vmax.f32 %v421, 0.0
      %v454 = vmax.f32 %v422, 0.0
      %v455 = vpack.c.bf16 %v424, %v423
      %v456 = vpack.c.bf16 %v426, %v425
      %v457 = vpack.c.bf16 %v428, %v427
      %v458 = vpack.c.bf16 %v430, %v429
      %v459 = vpack.c.bf16 %v432, %v431
      %v460 = vpack.c.bf16 %v434, %v433
      %v461 = vpack.c.bf16 %v436, %v435
      %v462 = vpack.c.bf16 %v438, %v437
      %v463 = vpack.c.bf16 %v440, %v439
      %v464 = vpack.c.bf16 %v442, %v441
      %v465 = vpack.c.bf16 %v444, %v443
      %v466 = vpack.c.bf16 %v446, %v445
      %v467 = vpack.c.bf16 %v448, %v447
      %v468 = vpack.c.bf16 %v450, %v449
      %v469 = vpack.c.bf16 %v452, %v451
      %v470 = vpack.c.bf16 %v454, %v453
      %v471 = vld [vmem:[%s3] sm:$0x3]
      %vm472 = vcmask 31744
      %v474 = vsel %vm472, %v455, 0
      %v477 = vsel %vm472, %v456, 0
      %v480 = vsel %vm472, %v457, 0
      %v483 = vsel %vm472, %v458, 0
      %v486 = vsel %vm472, %v459, 0
      %v489 = vsel %vm472, %v460, 0
      %v492 = vsel %vm472, %v461, 0
      %v495 = vsel %vm472, %v462, 0
      %v498 = vsel %vm472, %v463, 0
      %v501 = vsel %vm472, %v464, 0
      %v504 = vsel %vm472, %v465, 0
      %v507 = vsel %vm472, %v466, 0
      %v510 = vsel %vm472, %v467, 0
      %v513 = vsel %vm472, %v468, 0
      %v516 = vsel %vm472, %v469, 0
      %v519 = vsel %vm472, %v470, 0
      %vm521 = vcmask 1041408
      %v523 = vsel %vm521, %v471, 0
      %525 = vmatprep.subr.bf16.mxu0 0
      %526 = vmatpush1.bf16.msra.mxu0 0
      %527 = vmatprep.subr.bf16.mxu0 0
      %528 = vmatpush1.bf16.msra.mxu0 0
      %529 = vmatprep.subr.bf16.mxu0 0
      %530 = vmatpush1.bf16.msra.mxu0 0
      %531 = vmatprep.subr.bf16.mxu0 0
      %532 = vmatpush1.bf16.msra.mxu0 0
      %533 = vmatprep.subr.bf16.mxu0 0
      %534 = vmatpush1.bf16.msra.mxu0 0
      %535 = vmatprep.subr.bf16.mxu0 0
      %536 = vmatpush1.bf16.msra.mxu0 0
      %537 = vmatprep.subr.bf16.mxu0 0
      %538 = vmatpush1.bf16.msra.mxu0 0
      %539 = vmatprep.subr.bf16.mxu0 0
      %540 = vmatpush1.bf16.msra.mxu0 %v523
      %541 = vmatprep.subr.bf16.mxu0 0
      %542 = vmatpush2.bf16.msra.mxu0 0
      %543 = vmatprep.subr.bf16.mxu0 0
      %544 = vmatpush2.bf16.msra.mxu0 0
      %545 = vmatprep.subr.bf16.mxu0 0
      %546 = vmatpush2.bf16.msra.mxu0 0
      %547 = vmatprep.subr.bf16.mxu0 0
      %548 = vmatpush2.bf16.msra.mxu0 0
      %549 = vmatprep.subr.bf16.mxu0 0
      %550 = vmatpush2.bf16.msra.mxu0 0
      %551 = vmatprep.subr.bf16.mxu0 0
      %552 = vmatpush2.bf16.msra.mxu0 0
      %553 = vmatprep.subr.bf16.mxu0 0
      %554 = vmatpush2.bf16.msra.mxu0 0
      %555 = vmatprep.subr.bf16.mxu0 0
      %556 = vmatpush2.bf16.msra.mxu0 0
      %557 = vmatprep.mubr.bf16.mxu0 0
      %558 = vmatmul.mubr.bf16.gmra.mxu0 %v474
      %v559 = vpop.f32.mrf.mxu0
      %v560 = vadd.f32 0.0, %v559
      %v561 = vpop.f32.mrf.mxu0
      %v562 = vpop.f32.mrf.mxu0
      %v563 = vadd.f32 0.0, %v562
      %v564 = vpop.f32.mrf.mxu0
      %565 = vmatprep.mubr.bf16.mxu0 0
      %566 = vmatmul.mubr.bf16.gmra.mxu0 %v477
      %v567 = vpop.f32.mrf.mxu0
      %v568 = vadd.f32 0.0, %v567
      %v569 = vpop.f32.mrf.mxu0
      %v570 = vpop.f32.mrf.mxu0
      %v571 = vadd.f32 0.0, %v570
      %v572 = vpop.f32.mrf.mxu0
      %573 = vmatprep.mubr.bf16.mxu0 0
      %574 = vmatmul.mubr.bf16.gmra.mxu0 %v480
      %v575 = vpop.f32.mrf.mxu0
      %v576 = vadd.f32 0.0, %v575
      %v577 = vpop.f32.mrf.mxu0
      %v578 = vpop.f32.mrf.mxu0
      %v579 = vadd.f32 0.0, %v578
      %v580 = vpop.f32.mrf.mxu0
      %581 = vmatprep.mubr.bf16.mxu0 0
      %582 = vmatmul.mubr.bf16.gmra.mxu0 %v483
      %v583 = vpop.f32.mrf.mxu0
      %v584 = vadd.f32 0.0, %v583
      %v585 = vpop.f32.mrf.mxu0
      %v586 = vpop.f32.mrf.mxu0
      %v587 = vadd.f32 0.0, %v586
      %v588 = vpop.f32.mrf.mxu0
      %589 = vmatprep.mubr.bf16.mxu0 0
      %590 = vmatmul.mubr.bf16.gmra.mxu0 %v486
      %v591 = vpop.f32.mrf.mxu0
      %v592 = vadd.f32 0.0, %v591
      %v593 = vpop.f32.mrf.mxu0
      %v594 = vpop.f32.mrf.mxu0
      %v595 = vadd.f32 0.0, %v594
      %v596 = vpop.f32.mrf.mxu0
      %597 = vmatprep.mubr.bf16.mxu0 0
      %598 = vmatmul.mubr.bf16.gmra.mxu0 %v489
      %v599 = vpop.f32.mrf.mxu0
      %v600 = vadd.f32 0.0, %v599
      %v601 = vpop.f32.mrf.mxu0
      %v602 = vpop.f32.mrf.mxu0
      %v603 = vadd.f32 0.0, %v602
      %v604 = vpop.f32.mrf.mxu0
      %605 = vmatprep.mubr.bf16.mxu0 0
      %606 = vmatmul.mubr.bf16.gmra.mxu0 %v492
      %v607 = vpop.f32.mrf.mxu0
      %v608 = vadd.f32 0.0, %v607
      %v609 = vpop.f32.mrf.mxu0
      %v610 = vpop.f32.mrf.mxu0
      %v611 = vadd.f32 0.0, %v610
      %v612 = vpop.f32.mrf.mxu0
      %613 = vmatprep.mubr.bf16.mxu0 0
      %614 = vmatmul.mubr.bf16.gmra.mxu0 %v495
      %v615 = vpop.f32.mrf.mxu0
      %v616 = vadd.f32 0.0, %v615
      %v617 = vpop.f32.mrf.mxu0
      %v618 = vpop.f32.mrf.mxu0
      %v619 = vadd.f32 0.0, %v618
      %v620 = vpop.f32.mrf.mxu0
      %621 = vmatprep.mubr.bf16.mxu0 0
      %622 = vmatmul.mubr.bf16.gmra.mxu0 %v498
      %v623 = vpop.f32.mrf.mxu0
      %v624 = vadd.f32 0.0, %v623
      %v625 = vpop.f32.mrf.mxu0
      %v626 = vpop.f32.mrf.mxu0
      %v627 = vadd.f32 0.0, %v626
      %v628 = vpop.f32.mrf.mxu0
      %629 = vmatprep.mubr.bf16.mxu0 0
      %630 = vmatmul.mubr.bf16.gmra.mxu0 %v501
      %v631 = vpop.f32.mrf.mxu0
      %v632 = vadd.f32 0.0, %v631
      %v633 = vpop.f32.mrf.mxu0
      %v634 = vpop.f32.mrf.mxu0
      %v635 = vadd.f32 0.0, %v634
      %v636 = vpop.f32.mrf.mxu0
      %637 = vmatprep.mubr.bf16.mxu0 0
      %638 = vmatmul.mubr.bf16.gmra.mxu0 %v504
      %v639 = vpop.f32.mrf.mxu0
      %v640 = vadd.f32 0.0, %v639
      %v641 = vpop.f32.mrf.mxu0
      %v642 = vpop.f32.mrf.mxu0
      %v643 = vadd.f32 0.0, %v642
      %v644 = vpop.f32.mrf.mxu0
      %645 = vmatprep.mubr.bf16.mxu0 0
      %646 = vmatmul.mubr.bf16.gmra.mxu0 %v507
      %v647 = vpop.f32.mrf.mxu0
      %v648 = vadd.f32 0.0, %v647
      %v649 = vpop.f32.mrf.mxu0
      %v650 = vpop.f32.mrf.mxu0
      %v651 = vadd.f32 0.0, %v650
      %v652 = vpop.f32.mrf.mxu0
      %653 = vmatprep.mubr.bf16.mxu0 0
      %654 = vmatmul.mubr.bf16.gmra.mxu0 %v510
      %v655 = vpop.f32.mrf.mxu0
      %v656 = vadd.f32 0.0, %v655
      %v657 = vpop.f32.mrf.mxu0
      %v658 = vpop.f32.mrf.mxu0
      %v659 = vadd.f32 0.0, %v658
      %v660 = vpop.f32.mrf.mxu0
      %661 = vmatprep.mubr.bf16.mxu0 0
      %662 = vmatmul.mubr.bf16.gmra.mxu0 %v513
      %v663 = vpop.f32.mrf.mxu0
      %v664 = vadd.f32 0.0, %v663
      %v665 = vpop.f32.mrf.mxu0
      %v666 = vpop.f32.mrf.mxu0
      %v667 = vadd.f32 0.0, %v666
      %v668 = vpop.f32.mrf.mxu0
      %669 = vmatprep.mubr.bf16.mxu0 0
      %670 = vmatmul.mubr.bf16.gmra.mxu0 %v516
      %v671 = vpop.f32.mrf.mxu0
      %v672 = vadd.f32 0.0, %v671
      %v673 = vpop.f32.mrf.mxu0
      %v674 = vpop.f32.mrf.mxu0
      %v675 = vadd.f32 0.0, %v674
      %v676 = vpop.f32.mrf.mxu0
      %677 = vmatprep.mubr.bf16.mxu0 0
      %678 = vmatmul.mubr.bf16.gmra.mxu0 %v519
      %v679 = vpop.f32.mrf.mxu0
      %v680 = vadd.f32 0.0, %v679
      %v681 = vpop.f32.mrf.mxu0
      %v682 = vpop.f32.mrf.mxu0
      %v683 = vadd.f32 0.0, %v682
      %v684 = vpop.f32.mrf.mxu0
      %685 = vdwg.mxu0
      %v686 = vpack.c.bf16 %v563, %v560
      %v687 = vpack.c.bf16 %v571, %v568
      %v688 = vpack.c.bf16 %v579, %v576
      %v689 = vpack.c.bf16 %v587, %v584
      %v690 = vpack.c.bf16 %v595, %v592
      %v691 = vpack.c.bf16 %v603, %v600
      %v692 = vpack.c.bf16 %v611, %v608
      %v693 = vpack.c.bf16 %v619, %v616
      %v694 = vpack.c.bf16 %v627, %v624
      %v695 = vpack.c.bf16 %v635, %v632
      %v696 = vpack.c.bf16 %v643, %v640
      %v697 = vpack.c.bf16 %v651, %v648
      %v698 = vpack.c.bf16 %v659, %v656
      %v699 = vpack.c.bf16 %v667, %v664
      %v700 = vpack.c.bf16 %v675, %v672
      %v701 = vpack.c.bf16 %v683, %v680
      %v718 = vunpack.c.l.b16 %v686
      %v719 = vunpack.c.h.b16 %v686
      %v720 = vunpack.c.l.b16 %v687
      %v721 = vunpack.c.h.b16 %v687
      %v722 = vunpack.c.l.b16 %v688
      %v723 = vunpack.c.h.b16 %v688
      %v724 = vunpack.c.l.b16 %v689
      %v725 = vunpack.c.h.b16 %v689
      %v726 = vunpack.c.l.b16 %v690
      %v727 = vunpack.c.h.b16 %v690
      %v728 = vunpack.c.l.b16 %v691
      %v729 = vunpack.c.h.b16 %v691
      %v730 = vunpack.c.l.b16 %v692
      %v731 = vunpack.c.h.b16 %v692
      %v732 = vunpack.c.l.b16 %v693
      %v733 = vunpack.c.h.b16 %v693
      %v734 = vunpack.c.l.b16 %v694
      %v735 = vunpack.c.h.b16 %v694
      %v736 = vunpack.c.l.b16 %v695
      %v737 = vunpack.c.h.b16 %v695
      %v738 = vunpack.c.l.b16 %v696
      %v739 = vunpack.c.h.b16 %v696
      %v740 = vunpack.c.l.b16 %v697
      %v741 = vunpack.c.h.b16 %v697
      %v742 = vunpack.c.l.b16 %v698
      %v743 = vunpack.c.h.b16 %v698
      %v744 = vunpack.c.l.b16 %v699
      %v745 = vunpack.c.h.b16 %v699
      %v746 = vunpack.c.l.b16 %v700
      %v747 = vunpack.c.h.b16 %v700
      %v748 = vunpack.c.l.b16 %v701
      %v749 = vunpack.c.h.b16 %v701
      %v750 = vpack.c.b16 %v718, %v718
      %v751 = vpack.c.b16 %v719, %v719
      %v752 = vpack.c.b16 %v720, %v720
      %v753 = vpack.c.b16 %v721, %v721
      %v754 = vpack.c.b16 %v722, %v722
      %v755 = vpack.c.b16 %v723, %v723
      %v756 = vpack.c.b16 %v724, %v724
      %v757 = vpack.c.b16 %v725, %v725
      %v758 = vpack.c.b16 %v726, %v726
      %v759 = vpack.c.b16 %v727, %v727
      %v760 = vpack.c.b16 %v728, %v728
      %v761 = vpack.c.b16 %v729, %v729
      %v762 = vpack.c.b16 %v730, %v730
      %v763 = vpack.c.b16 %v731, %v731
      %v764 = vpack.c.b16 %v732, %v732
      %v765 = vpack.c.b16 %v733, %v733
      %v766 = vpack.c.b16 %v734, %v734
      %v767 = vpack.c.b16 %v735, %v735
      %v768 = vpack.c.b16 %v736, %v736
      %v769 = vpack.c.b16 %v737, %v737
      %v770 = vpack.c.b16 %v738, %v738
      %v771 = vpack.c.b16 %v739, %v739
      %v772 = vpack.c.b16 %v740, %v740
      %v773 = vpack.c.b16 %v741, %v741
      %v774 = vpack.c.b16 %v742, %v742
      %v775 = vpack.c.b16 %v743, %v743
      %v776 = vpack.c.b16 %v744, %v744
      %v777 = vpack.c.b16 %v745, %v745
      %v778 = vpack.c.b16 %v746, %v746
      %v779 = vpack.c.b16 %v747, %v747
      %v780 = vpack.c.b16 %v748, %v748
      %v781 = vpack.c.b16 %v749, %v749
      %vm814 = vcmask 27648
      %815 = vst.msk [vmem:[%s298] sm:$0xf] %vm814, %v750
      %816 = vst.msk [vmem:[%s298 + $0x4] sm:$0xf] %vm814, %v751
      %817 = vst.msk [vmem:[%s298 + $0x8] sm:$0xf] %vm814, %v752
      %818 = vst.msk [vmem:[%s298 + $0xc] sm:$0xf] %vm814, %v753
      %819 = vst.msk [vmem:[%s298 + $0x10] sm:$0xf] %vm814, %v754
      %820 = vst.msk [vmem:[%s298 + $0x14] sm:$0xf] %vm814, %v755
      %821 = vst.msk [vmem:[%s298 + $0x18] sm:$0xf] %vm814, %v756
      %822 = vst.msk [vmem:[%s298 + $0x1c] sm:$0xf] %vm814, %v757
      %823 = vst.msk [vmem:[%s298 + $0x20] sm:$0xf] %vm814, %v758
      %824 = vst.msk [vmem:[%s298 + $0x24] sm:$0xf] %vm814, %v759
      %825 = vst.msk [vmem:[%s298 + $0x28] sm:$0xf] %vm814, %v760
      %826 = vst.msk [vmem:[%s298 + $0x2c] sm:$0xf] %vm814, %v761
      %827 = vst.msk [vmem:[%s298 + $0x30] sm:$0xf] %vm814, %v762
      %828 = vst.msk [vmem:[%s298 + $0x34] sm:$0xf] %vm814, %v763
      %829 = vst.msk [vmem:[%s298 + $0x38] sm:$0xf] %vm814, %v764
      %830 = vst.msk [vmem:[%s298 + $0x3c] sm:$0xf] %vm814, %v765
      %831 = vst.msk [vmem:[%s298 + $0x40] sm:$0xf] %vm814, %v766
      %832 = vst.msk [vmem:[%s298 + $0x44] sm:$0xf] %vm814, %v767
      %833 = vst.msk [vmem:[%s298 + $0x48] sm:$0xf] %vm814, %v768
      %834 = vst.msk [vmem:[%s298 + $0x4c] sm:$0xf] %vm814, %v769
      %835 = vst.msk [vmem:[%s298 + $0x50] sm:$0xf] %vm814, %v770
      %836 = vst.msk [vmem:[%s298 + $0x54] sm:$0xf] %vm814, %v771
      %837 = vst.msk [vmem:[%s298 + $0x58] sm:$0xf] %vm814, %v772
      %838 = vst.msk [vmem:[%s298 + $0x5c] sm:$0xf] %vm814, %v773
      %839 = vst.msk [vmem:[%s298 + $0x60] sm:$0xf] %vm814, %v774
      %840 = vst.msk [vmem:[%s298 + $0x64] sm:$0xf] %vm814, %v775
      %841 = vst.msk [vmem:[%s298 + $0x68] sm:$0xf] %vm814, %v776
      %842 = vst.msk [vmem:[%s298 + $0x6c] sm:$0xf] %vm814, %v777
      %843 = vst.msk [vmem:[%s298 + $0x70] sm:$0xf] %vm814, %v778
      %844 = vst.msk [vmem:[%s298 + $0x74] sm:$0xf] %vm814, %v779
      %845 = vst.msk [vmem:[%s298 + $0x78] sm:$0xf] %vm814, %v780
      %846 = vst.msk [vmem:[%s298 + $0x7c] sm:$0xf] %vm814, %v781
      %847 = vrot.lane.b32.xlu0 %v750, 124
      %v848 = vpop.permute.xlu0 %847
      %849 = vrot.lane.b32.xlu0 %v751, 124
      %v850 = vpop.permute.xlu0 %849
      %851 = vrot.lane.b32.xlu0 %v752, 124
      %v852 = vpop.permute.xlu0 %851
      %853 = vrot.lane.b32.xlu0 %v753, 124
      %v854 = vpop.permute.xlu0 %853
      %855 = vrot.lane.b32.xlu0 %v754, 124
      %v856 = vpop.permute.xlu0 %855
      %857 = vrot.lane.b32.xlu0 %v755, 124
      %v858 = vpop.permute.xlu0 %857
      %859 = vrot.lane.b32.xlu0 %v756, 124
      %v860 = vpop.permute.xlu0 %859
      %861 = vrot.lane.b32.xlu0 %v757, 124
      %v862 = vpop.permute.xlu0 %861
      %863 = vrot.lane.b32.xlu0 %v758, 124
      %v864 = vpop.permute.xlu0 %863
      %865 = vrot.lane.b32.xlu0 %v759, 124
      %v866 = vpop.permute.xlu0 %865
      %867 = vrot.lane.b32.xlu0 %v760, 124
      %v868 = vpop.permute.xlu0 %867
      %869 = vrot.lane.b32.xlu0 %v761, 124
      %v870 = vpop.permute.xlu0 %869
      %871 = vrot.lane.b32.xlu0 %v762, 124
      %v872 = vpop.permute.xlu0 %871
      %873 = vrot.lane.b32.xlu0 %v763, 124
      %v874 = vpop.permute.xlu0 %873
      %875 = vrot.lane.b32.xlu0 %v764, 124
      %v876 = vpop.permute.xlu0 %875
      %877 = vrot.lane.b32.xlu0 %v765, 124
      %v878 = vpop.permute.xlu0 %877
      %879 = vrot.lane.b32.xlu0 %v766, 124
      %v880 = vpop.permute.xlu0 %879
      %881 = vrot.lane.b32.xlu0 %v767, 124
      %v882 = vpop.permute.xlu0 %881
      %883 = vrot.lane.b32.xlu0 %v768, 124
      %v884 = vpop.permute.xlu0 %883
      %885 = vrot.lane.b32.xlu0 %v769, 124
      %v886 = vpop.permute.xlu0 %885
      %887 = vrot.lane.b32.xlu0 %v770, 124
      %v888 = vpop.permute.xlu0 %887
      %889 = vrot.lane.b32.xlu0 %v771, 124
      %v890 = vpop.permute.xlu0 %889
      %891 = vrot.lane.b32.xlu0 %v772, 124
      %v892 = vpop.permute.xlu0 %891
      %893 = vrot.lane.b32.xlu0 %v773, 124
      %v894 = vpop.permute.xlu0 %893
      %895 = vrot.lane.b32.xlu0 %v774, 124
      %v896 = vpop.permute.xlu0 %895
      %897 = vrot.lane.b32.xlu0 %v775, 124
      %v898 = vpop.permute.xlu0 %897
      %899 = vrot.lane.b32.xlu0 %v776, 124
      %v900 = vpop.permute.xlu0 %899
      %901 = vrot.lane.b32.xlu0 %v777, 124
      %v902 = vpop.permute.xlu0 %901
      %903 = vrot.lane.b32.xlu0 %v778, 124
      %v904 = vpop.permute.xlu0 %903
      %905 = vrot.lane.b32.xlu0 %v779, 124
      %v906 = vpop.permute.xlu0 %905
      %907 = vrot.lane.b32.xlu0 %v780, 124
      %v908 = vpop.permute.xlu0 %907
      %909 = vrot.lane.b32.xlu0 %v781, 124
      %v910 = vpop.permute.xlu0 %909
      %vm943 = vcmask 125952
      %944 = vst.msk [vmem:[%s304] sm:$0xf] %vm943, %v848
      %945 = vst.msk [vmem:[%s304 + $0x4] sm:$0xf] %vm943, %v850
      %946 = vst.msk [vmem:[%s304 + $0x8] sm:$0xf] %vm943, %v852
      %947 = vst.msk [vmem:[%s304 + $0xc] sm:$0xf] %vm943, %v854
      %948 = vst.msk [vmem:[%s304 + $0x10] sm:$0xf] %vm943, %v856
      %949 = vst.msk [vmem:[%s304 + $0x14] sm:$0xf] %vm943, %v858
      %950 = vst.msk [vmem:[%s304 + $0x18] sm:$0xf] %vm943, %v860
      %951 = vst.msk [vmem:[%s304 + $0x1c] sm:$0xf] %vm943, %v862
      %952 = vst.msk [vmem:[%s304 + $0x20] sm:$0xf] %vm943, %v864
      %953 = vst.msk [vmem:[%s304 + $0x24] sm:$0xf] %vm943, %v866
      %954 = vst.msk [vmem:[%s304 + $0x28] sm:$0xf] %vm943, %v868
      %955 = vst.msk [vmem:[%s304 + $0x2c] sm:$0xf] %vm943, %v870
      %956 = vst.msk [vmem:[%s304 + $0x30] sm:$0xf] %vm943, %v872
      %957 = vst.msk [vmem:[%s304 + $0x34] sm:$0xf] %vm943, %v874
      %958 = vst.msk [vmem:[%s304 + $0x38] sm:$0xf] %vm943, %v876
      %959 = vst.msk [vmem:[%s304 + $0x3c] sm:$0xf] %vm943, %v878
      %960 = vst.msk [vmem:[%s304 + $0x40] sm:$0xf] %vm943, %v880
      %961 = vst.msk [vmem:[%s304 + $0x44] sm:$0xf] %vm943, %v882
      %962 = vst.msk [vmem:[%s304 + $0x48] sm:$0xf] %vm943, %v884
      %963 = vst.msk [vmem:[%s304 + $0x4c] sm:$0xf] %vm943, %v886
      %964 = vst.msk [vmem:[%s304 + $0x50] sm:$0xf] %vm943, %v888
      %965 = vst.msk [vmem:[%s304 + $0x54] sm:$0xf] %vm943, %v890
      %966 = vst.msk [vmem:[%s304 + $0x58] sm:$0xf] %vm943, %v892
      %967 = vst.msk [vmem:[%s304 + $0x5c] sm:$0xf] %vm943, %v894
      %968 = vst.msk [vmem:[%s304 + $0x60] sm:$0xf] %vm943, %v896
      %969 = vst.msk [vmem:[%s304 + $0x64] sm:$0xf] %vm943, %v898
      %970 = vst.msk [vmem:[%s304 + $0x68] sm:$0xf] %vm943, %v900
      %971 = vst.msk [vmem:[%s304 + $0x6c] sm:$0xf] %vm943, %v902
      %972 = vst.msk [vmem:[%s304 + $0x70] sm:$0xf] %vm943, %v904
      %973 = vst.msk [vmem:[%s304 + $0x74] sm:$0xf] %vm943, %v906
      %974 = vst.msk [vmem:[%s304 + $0x78] sm:$0xf] %vm943, %v908
      %975 = vst.msk [vmem:[%s304 + $0x7c] sm:$0xf] %vm943, %v910
      %v976 = vsel %vm472, %v560, 0.0
      %v977 = vsel %vm472, %v563, 0.0
      %v978 = vadd.f32 %v976, %v977
      %v979 = vsel %vm472, %v568, 0.0
      %v980 = vadd.f32 %v978, %v979
      %v981 = vsel %vm472, %v571, 0.0
      %v982 = vadd.f32 %v980, %v981
      %v983 = vsel %vm472, %v576, 0.0
      %v984 = vadd.f32 %v982, %v983
      %v985 = vsel %vm472, %v579, 0.0
      %v986 = vadd.f32 %v984, %v985
      %v987 = vsel %vm472, %v584, 0.0
      %v988 = vadd.f32 %v986, %v987
      %v989 = vsel %vm472, %v587, 0.0
      %v990 = vadd.f32 %v988, %v989
      %v991 = vsel %vm472, %v592, 0.0
      %v992 = vadd.f32 %v990, %v991
      %v993 = vsel %vm472, %v595, 0.0
      %v994 = vadd.f32 %v992, %v993
      %v995 = vsel %vm472, %v600, 0.0
      %v996 = vadd.f32 %v994, %v995
      %v997 = vsel %vm472, %v603, 0.0
      %v998 = vadd.f32 %v996, %v997
      %v999 = vsel %vm472, %v608, 0.0
      %v1000 = vadd.f32 %v998, %v999
      %v1001 = vsel %vm472, %v611, 0.0
      %v1002 = vadd.f32 %v1000, %v1001
      %v1003 = vsel %vm472, %v616, 0.0
      %v1004 = vadd.f32 %v1002, %v1003
      %v1005 = vsel %vm472, %v619, 0.0
      %v1006 = vadd.f32 %v1004, %v1005
      %v1007 = vsel %vm472, %v624, 0.0
      %v1008 = vadd.f32 %v1006, %v1007
      %v1009 = vsel %vm472, %v627, 0.0
      %v1010 = vadd.f32 %v1008, %v1009
      %v1011 = vsel %vm472, %v632, 0.0
      %v1012 = vadd.f32 %v1010, %v1011
      %v1013 = vsel %vm472, %v635, 0.0
      %v1014 = vadd.f32 %v1012, %v1013
      %v1015 = vsel %vm472, %v640, 0.0
      %v1016 = vadd.f32 %v1014, %v1015
      %v1017 = vsel %vm472, %v643, 0.0
      %v1018 = vadd.f32 %v1016, %v1017
      %v1019 = vsel %vm472, %v648, 0.0
      %v1020 = vadd.f32 %v1018, %v1019
      %v1021 = vsel %vm472, %v651, 0.0
      %v1022 = vadd.f32 %v1020, %v1021
      %v1023 = vsel %vm472, %v656, 0.0
      %v1024 = vadd.f32 %v1022, %v1023
      %v1025 = vsel %vm472, %v659, 0.0
      %v1026 = vadd.f32 %v1024, %v1025
      %v1027 = vsel %vm472, %v664, 0.0
      %v1028 = vadd.f32 %v1026, %v1027
      %v1029 = vsel %vm472, %v667, 0.0
      %v1030 = vadd.f32 %v1028, %v1029
      %v1031 = vsel %vm472, %v672, 0.0
      %v1032 = vadd.f32 %v1030, %v1031
      %v1033 = vsel %vm472, %v675, 0.0
      %v1034 = vadd.f32 %v1032, %v1033
      %v1035 = vsel %vm472, %v680, 0.0
      %v1036 = vadd.f32 %v1034, %v1035
      %v1037 = vsel %vm472, %v683, 0.0
      %v1038 = vadd.f32 %v1036, %v1037
      %v1039 = vrot.slane %v1038, 4
      %v1040 = vadd.f32 %v1038, %v1039
      %v1041 = vrot.slane %v1040, 2
      %v1042 = vadd.f32 %v1040, %v1041
      %v1043 = vrot.slane %v1042, 1
      %v1044 = vadd.f32 %v1042, %v1043
      %vm1045 = vcmask 24576
      %1046 = vst.msk [vmem:[%s308] sm:$0x1] %vm1045, %v1044
      %v1047 = vmul.f32 %v560, %v560
      %v1048 = vmul.f32 %v563, %v563
      %v1049 = vmul.f32 %v568, %v568
      %v1050 = vmul.f32 %v571, %v571
      %v1051 = vmul.f32 %v576, %v576
      %v1052 = vmul.f32 %v579, %v579
      %v1053 = vmul.f32 %v584, %v584
      %v1054 = vmul.f32 %v587, %v587
      %v1055 = vmul.f32 %v592, %v592
      %v1056 = vmul.f32 %v595, %v595
      %v1057 = vmul.f32 %v600, %v600
      %v1058 = vmul.f32 %v603, %v603
      %v1059 = vmul.f32 %v608, %v608
      %v1060 = vmul.f32 %v611, %v611
      %v1061 = vmul.f32 %v616, %v616
      %v1062 = vmul.f32 %v619, %v619
      %v1063 = vmul.f32 %v624, %v624
      %v1064 = vmul.f32 %v627, %v627
      %v1065 = vmul.f32 %v632, %v632
      %v1066 = vmul.f32 %v635, %v635
      %v1067 = vmul.f32 %v640, %v640
      %v1068 = vmul.f32 %v643, %v643
      %v1069 = vmul.f32 %v648, %v648
      %v1070 = vmul.f32 %v651, %v651
      %v1071 = vmul.f32 %v656, %v656
      %v1072 = vmul.f32 %v659, %v659
      %v1073 = vmul.f32 %v664, %v664
      %v1074 = vmul.f32 %v667, %v667
      %v1075 = vmul.f32 %v672, %v672
      %v1076 = vmul.f32 %v675, %v675
      %v1077 = vmul.f32 %v680, %v680
      %v1078 = vmul.f32 %v683, %v683
      %v1079 = vsel %vm472, %v1047, 0.0
      %v1080 = vsel %vm472, %v1048, 0.0
      %v1081 = vadd.f32 %v1079, %v1080
      %v1082 = vsel %vm472, %v1049, 0.0
      %v1083 = vadd.f32 %v1081, %v1082
      %v1084 = vsel %vm472, %v1050, 0.0
      %v1085 = vadd.f32 %v1083, %v1084
      %v1086 = vsel %vm472, %v1051, 0.0
      %v1087 = vadd.f32 %v1085, %v1086
      %v1088 = vsel %vm472, %v1052, 0.0
      %v1089 = vadd.f32 %v1087, %v1088
      %v1090 = vsel %vm472, %v1053, 0.0
      %v1091 = vadd.f32 %v1089, %v1090
      %v1092 = vsel %vm472, %v1054, 0.0
      %v1093 = vadd.f32 %v1091, %v1092
      %v1094 = vsel %vm472, %v1055, 0.0
      %v1095 = vadd.f32 %v1093, %v1094
      %v1096 = vsel %vm472, %v1056, 0.0
      %v1097 = vadd.f32 %v1095, %v1096
      %v1098 = vsel %vm472, %v1057, 0.0
      %v1099 = vadd.f32 %v1097, %v1098
      %v1100 = vsel %vm472, %v1058, 0.0
      %v1101 = vadd.f32 %v1099, %v1100
      %v1102 = vsel %vm472, %v1059, 0.0
      %v1103 = vadd.f32 %v1101, %v1102
      %v1104 = vsel %vm472, %v1060, 0.0
      %v1105 = vadd.f32 %v1103, %v1104
      %v1106 = vsel %vm472, %v1061, 0.0
      %v1107 = vadd.f32 %v1105, %v1106
      %v1108 = vsel %vm472, %v1062, 0.0
      %v1109 = vadd.f32 %v1107, %v1108
      %v1110 = vsel %vm472, %v1063, 0.0
      %v1111 = vadd.f32 %v1109, %v1110
      %v1112 = vsel %vm472, %v1064, 0.0
      %v1113 = vadd.f32 %v1111, %v1112
      %v1114 = vsel %vm472, %v1065, 0.0
      %v1115 = vadd.f32 %v1113, %v1114
      %v1116 = vsel %vm472, %v1066, 0.0
      %v1117 = vadd.f32 %v1115, %v1116
      %v1118 = vsel %vm472, %v1067, 0.0
      %v1119 = vadd.f32 %v1117, %v1118
      %v1120 = vsel %vm472, %v1068, 0.0
      %v1121 = vadd.f32 %v1119, %v1120
      %v1122 = vsel %vm472, %v1069, 0.0
      %v1123 = vadd.f32 %v1121, %v1122
      %v1124 = vsel %vm472, %v1070, 0.0
      %v1125 = vadd.f32 %v1123, %v1124
      %v1126 = vsel %vm472, %v1071, 0.0
      %v1127 = vadd.f32 %v1125, %v1126
      %v1128 = vsel %vm472, %v1072, 0.0
      %v1129 = vadd.f32 %v1127, %v1128
      %v1130 = vsel %vm472, %v1073, 0.0
      %v1131 = vadd.f32 %v1129, %v1130
      %v1132 = vsel %vm472, %v1074, 0.0
      %v1133 = vadd.f32 %v1131, %v1132
      %v1134 = vsel %vm472, %v1075, 0.0
      %v1135 = vadd.f32 %v1133, %v1134
      %v1136 = vsel %vm472, %v1076, 0.0
      %v1137 = vadd.f32 %v1135, %v1136
      %v1138 = vsel %vm472, %v1077, 0.0
      %v1139 = vadd.f32 %v1137, %v1138
      %v1140 = vsel %vm472, %v1078, 0.0
      %v1141 = vadd.f32 %v1139, %v1140
      %v1142 = vrot.slane %v1141, 4
      %v1143 = vadd.f32 %v1141, %v1142
      %v1144 = vrot.slane %v1143, 2
      %v1145 = vadd.f32 %v1143, %v1144
      %v1146 = vrot.slane %v1145, 1
      %v1147 = vadd.f32 %v1145, %v1146
      %1148 = vst.msk [vmem:[%s311] sm:$0x1] %vm1045, %v1147
      %s1149 = smul.u32 32, %s19
      %p1150 = scmp.lt.s32.totalorder %s1149, 63
      %s1151 = scalar_select %p1150, %s1149, 63
      %s1152 = smul.addr %s1151, 4
      %s1153 = scalar_lea.vmem %s4, %s1152
      %s1154 = smul.u32 32, %s19
      %p1155 = scmp.lt.s32.totalorder %s1154, 63
      %s1156 = scalar_select %p1155, %s1154, 63
      %s1157 = smul.addr %s1156, 4
      %s1158 = scalar_lea.vmem %s5, %s1157
      %p1159 = scmp.lt.s32.totalorder %s19, 1
      %s1160 = scalar_select %p1159, %s19, 1
      %s1161 = scalar_lea.vmem %s6, %s1160
      %p1162 = scmp.lt.s32.totalorder %s19, 1
      %s1163 = scalar_select %p1162, %s19, 1
      %s1164 = scalar_lea.vmem %s7, %s1163
      // Predicated region
      $region37: #{_lambda_.5} parent=35 // pred_check
        %p1165 = pneg %p126
      $region38: #{_lambda_.5} parent=35 // pred_check_branch
        %1167 = sbr.rel (%p1165) target = $region40
      $region39: #{_lambda_.5} parent=35 // pred_region
        %s1168 = smul.u32 32, %s19
      $region40: #{_lambda_.5} parent=35 // pred_fallthru
        _
      // Predicated region
      $region41: #{_lambda_.5} parent=35 // pred_check
        %p1169 = pneg %p152
      $region42: #{_lambda_.5} parent=35 // pred_check_branch
        %1171 = sbr.rel (%p1169) target = $region44
      $region43: #{_lambda_.5} parent=35 // pred_region
        %s1172 = smul.u32 32, %s19
      $region44: #{_lambda_.5} parent=35 // pred_fallthru
        _
      // Predicated region
      $region45: #{_lambda_.5} parent=35 // pred_check
        %p1173 = pneg %p178
      $region46: #{_lambda_.5} parent=35 // pred_check_branch
        %1175 = sbr.rel (%p1173) target = $region48
      $region47: #{_lambda_.5} parent=35 // pred_region
        _
      $region48: #{_lambda_.5} parent=35 // pred_fallthru
        _
      // Predicated region
      $region49: #{_lambda_.5} parent=35 // pred_check
        %p1176 = pneg %p204
      $region50: #{_lambda_.5} parent=35 // pred_check_branch
        %1178 = sbr.rel (%p1176) target = $region52
      $region51: #{_lambda_.5} parent=35 // pred_region
        _
      $region52: #{_lambda_.5} parent=35 // pred_fallthru
        _
    $region36: #{_lambda_.5} parent=5 // pred_fallthru
      _
    %p1179 = scmp.le.s32.totalorder 2, %s14
    // Predicated region
    $region53: #{_lambda_.5} parent=5 // pred_check
      %p1180 = pneg %p1179
    $region54: #{_lambda_.5} parent=5 // pred_check_branch
      %1182 = sbr.rel (%p1180) target = $region56
    $region55: #{_lambda_.5} parent=5 // pred_region
      %s1183 = ssub.s32 %s14, 2
      // Predicated region
      $region57: #{_lambda_.5} parent=55 // pred_check
        %p1184 = pneg %p132
      $region58: #{_lambda_.5} parent=55 // pred_check_branch
        %1186 = sbr.rel (%p1184) target = $region60
      $region59: #{_lambda_.5} parent=55 // pred_region
        %s1187 = smul.u32 32, %s20
        %p1188 = scmp.lt.s32.totalorder %s1187, 63
        %s1189 = scalar_select %p1188, %s1187, 63
        %s1190 = smul.addr %s1189, 4
        %s1191 = scalar_lea.vmem %s4, %s1190
      $region60: #{_lambda_.5} parent=55 // pred_fallthru
        _
      // Predicated region
      $region61: #{_lambda_.5} parent=55 // pred_check
        %p1192 = pneg %p158
      $region62: #{_lambda_.5} parent=55 // pred_check_branch
        %1194 = sbr.rel (%p1192) target = $region64
      $region63: #{_lambda_.5} parent=55 // pred_region
        %s1195 = smul.u32 32, %s20
        %p1196 = scmp.lt.s32.totalorder %s1195, 63
        %s1197 = scalar_select %p1196, %s1195, 63
        %s1198 = smul.addr %s1197, 4
        %s1199 = scalar_lea.vmem %s5, %s1198
      $region64: #{_lambda_.5} parent=55 // pred_fallthru
        _
      // Predicated region
      $region65: #{_lambda_.5} parent=55 // pred_check
        %p1200 = pneg %p184
      $region66: #{_lambda_.5} parent=55 // pred_check_branch
        %1202 = sbr.rel (%p1200) target = $region68
      $region67: #{_lambda_.5} parent=55 // pred_region
        %p1203 = scmp.lt.s32.totalorder %s20, 1
        %s1204 = scalar_select %p1203, %s20, 1
        %s1205 = scalar_lea.vmem %s6, %s1204
      $region68: #{_lambda_.5} parent=55 // pred_fallthru
        _
      // Predicated region
      $region69: #{_lambda_.5} parent=55 // pred_check
        %p1206 = pneg %p210
      $region70: #{_lambda_.5} parent=55 // pred_check_branch
        %1208 = sbr.rel (%p1206) target = $region72
      $region71: #{_lambda_.5} parent=55 // pred_region
        %p1209 = scmp.lt.s32.totalorder %s20, 1
        %s1210 = scalar_select %p1209, %s20, 1
        %s1211 = scalar_lea.vmem %s7, %s1210
      $region72: #{_lambda_.5} parent=55 // pred_fallthru
        _
    $region56: #{_lambda_.5} parent=5 // pred_fallthru
      _
  $region6: #{_lambda_.5} parent=0 // loop_footer
    %s18 = sadd.s32 1, %s14
  $region7: #{_lambda_.5} parent=0 // loop_footer_branch
    %13 = sbr.rel target = $region3
  $region8: #{_lambda_.5} parent=0 // loop_exit
    _

// kernel: _lambda_.6
$region0: #{_lambda_.6}
  #allocation0 [shape = 'u32[]', space=smem, size = 0x4, offset = 0x4, fixed_abs, tag = 'smem constant byte address 0x4 - core index']
  #allocation1 [shape = 'u32[144,128]{1,0:T(1,128)}', space=vmem, size = 0x12000, scoped, tag = 'internal scratch']
  #allocation2 [shape = 'bf16[18,18,4]{2,1,0:T(8,128)(2,1)}', space=vmem, size = 0x1b000, scoped, tag = 'scratch operand']
  #allocation3 [shape = 'bf16[16,16,36]{2,1,0:T(8,128)(2,1)}', space=vmem, size = 0x10000, scoped, tag = 'scratch operand']
  %s0 = inlined_call_operand.vmem [shape: bf16[2,16,16,4], index: 0, kind: input, shape index: {}]
  %s1 = inlined_call_operand.vmem [shape: f32[1,1,4], index: 1, kind: input, shape index: {}]
  %s2 = inlined_call_operand.vmem [shape: f32[1,1,4], index: 2, kind: input, shape index: {}]
  %s3 = inlined_call_operand.vmem [shape: bf16[36,4], index: 3, kind: input, shape index: {}]
  %s4 = inlined_call_operand.vmem [shape: bf16[2,256,4], index: 4, kind: output, shape index: {0}]
  %s5 = inlined_call_operand.vmem [shape: f32[2,1,4], index: 5, kind: output, shape index: {1}]
  %s6 = inlined_call_operand.vmem [shape: f32[2,1,4], index: 6, kind: output, shape index: {2}]
  %7 = xla_tuple %s4, %s5, %s6
  %s8 = sld [smem:[#allocation0]]
  $region65: #{_lambda_.6} parent=0
    _
  %s10 = ssub.s32 1, %s8
  %s11 = scalar_select 0, %s10, %s8
  loop: start=0, step=1, limit=4
  $region2: #{_lambda_.6} parent=0 // loop_pre_header
    _
  $region3: #{_lambda_.6} parent=0 // loop_header
    %s13 = sphi 0, %s17
    %p14 = scmp.ge.s32.totalorder %s13, 4
    %s23 = sphi 0, %s25
    %s26 = sphi 0, %s23
    %s27 = sphi 0, %s26
    %s43 = sphi 0, %s27
    %s47 = sphi 0, %s47
    %s49 = sphi 0, %s47
    %s50 = sphi 0, %s49
    %s64 = sphi 0, %s50
    %s68 = sphi 0, %s68
    %s70 = sphi 0, %s68
    %s71 = sphi 0, %s70
    %s85 = sphi 0, %s71
    %s89 = sphi 0, %s89
    %s91 = sphi 0, %s89
    %s92 = sphi 0, %s91
    %s106 = sphi 0, %s92
    %s112 = sphi 0, %s114
    %s115 = sphi 0, %s112
    %s116 = sphi 0, %s115
    %s132 = sphi 0, %s116
    %s138 = sphi 0, %s140
    %s141 = sphi 0, %s138
    %s142 = sphi 0, %s141
    %s158 = sphi 0, %s142
    %s164 = sphi 0, %s166
    %s167 = sphi 0, %s164
    %s168 = sphi 0, %s167
    %s184 = sphi 0, %s168
  $region4: #{_lambda_.6} parent=0 // loop_header_branch
    %16 = sbr.rel (%p14) target = $region8
  $region5: #{_lambda_.6} parent=0 // loop_body
    %s18 = ssub.s32 %s13, 1
    %s19 = ssub.s32 %s13, 2
    %s20 = sadd.s32 %s13, 1
    %s21 = ssub.s32 %s13, %s20
    %p22 = scmp.eq.s32.totalorder %s21, 0
    %s24 = sadd.s32 %s23, 1
    %s25 = scalar_select %p22, %s23, %s24
    %p28 = pneg %p22
    %p29 = scmp.eq.s32.totalorder %s13, 1
    %p30 = por %p28, %p29
    %p31 = scmp.ne.s32.totalorder %s23, %s26
    %p32 = scmp.eq.s32.totalorder %s13, 0
    %p33 = por %p31, %p32
    %p34 = scmp.ne.s32.totalorder %s23, %s26
    %p35 = scmp.eq.s32.totalorder %s18, 1
    %p36 = por %p34, %p35
    %p37 = scmp.ne.s32.totalorder %s26, %s27
    %p38 = scmp.eq.s32.totalorder %s18, 0
    %p39 = por %p37, %p38
    %p40 = scmp.ne.s32.totalorder %s26, %s27
    %p41 = scmp.eq.s32.totalorder %s19, 1
    %p42 = por %p40, %p41
    %p44 = scmp.ne.s32.totalorder %s27, %s43
    %p45 = scmp.eq.s32.totalorder %s19, 0
    %p46 = por %p44, %p45
    %s48 = sadd.s32 %s47, 1
    %p51 = scmp.eq.s32.totalorder %s13, 1
    %p52 = scmp.ne.s32.totalorder %s47, %s49
    %p53 = scmp.eq.s32.totalorder %s13, 0
    %p54 = por %p52, %p53
    %p55 = scmp.ne.s32.totalorder %s47, %s49
    %p56 = scmp.eq.s32.totalorder %s18, 1
    %p57 = por %p55, %p56
    %p58 = scmp.ne.s32.totalorder %s49, %s50
    %p59 = scmp.eq.s32.totalorder %s18, 0
    %p60 = por %p58, %p59
    %p61 = scmp.ne.s32.totalorder %s49, %s50
    %p62 = scmp.eq.s32.totalorder %s19, 1
    %p63 = por %p61, %p62
    %p65 = scmp.ne.s32.totalorder %s50, %s64
    %p66 = scmp.eq.s32.totalorder %s19, 0
    %p67 = por %p65, %p66
    %s69 = sadd.s32 %s68, 1
    %p72 = scmp.eq.s32.totalorder %s13, 1
    %p73 = scmp.ne.s32.totalorder %s68, %s70
    %p74 = scmp.eq.s32.totalorder %s13, 0
    %p75 = por %p73, %p74
    %p76 = scmp.ne.s32.totalorder %s68, %s70
    %p77 = scmp.eq.s32.totalorder %s18, 1
    %p78 = por %p76, %p77
    %p79 = scmp.ne.s32.totalorder %s70, %s71
    %p80 = scmp.eq.s32.totalorder %s18, 0
    %p81 = por %p79, %p80
    %p82 = scmp.ne.s32.totalorder %s70, %s71
    %p83 = scmp.eq.s32.totalorder %s19, 1
    %p84 = por %p82, %p83
    %p86 = scmp.ne.s32.totalorder %s71, %s85
    %p87 = scmp.eq.s32.totalorder %s19, 0
    %p88 = por %p86, %p87
    %s90 = sadd.s32 %s89, 1
    %p93 = scmp.eq.s32.totalorder %s13, 1
    %p94 = scmp.ne.s32.totalorder %s89, %s91
    %p95 = scmp.eq.s32.totalorder %s13, 0
    %p96 = por %p94, %p95
    %p97 = scmp.ne.s32.totalorder %s89, %s91
    %p98 = scmp.eq.s32.totalorder %s18, 1
    %p99 = por %p97, %p98
    %p100 = scmp.ne.s32.totalorder %s91, %s92
    %p101 = scmp.eq.s32.totalorder %s18, 0
    %p102 = por %p100, %p101
    %p103 = scmp.ne.s32.totalorder %s91, %s92
    %p104 = scmp.eq.s32.totalorder %s19, 1
    %p105 = por %p103, %p104
    %p107 = scmp.ne.s32.totalorder %s92, %s106
    %p108 = scmp.eq.s32.totalorder %s19, 0
    %p109 = por %p107, %p108
    %s110 = ssub.s32 %s13, %s20
    %p111 = scmp.eq.s32.totalorder %s110, 0
    %s113 = sadd.s32 %s112, 1
    %s114 = scalar_select %p111, %s112, %s113
    %p117 = pneg %p111
    %p118 = scmp.eq.s32.totalorder %s13, 1
    %p119 = por %p117, %p118
    %p120 = scmp.ne.s32.totalorder %s112, %s115
    %p121 = scmp.eq.s32.totalorder %s13, 0
    %p122 = por %p120, %p121
    %p123 = scmp.ne.s32.totalorder %s112, %s115
    %p124 = scmp.eq.s32.totalorder %s18, 1
    %p125 = por %p123, %p124
    %p126 = scmp.ne.s32.totalorder %s115, %s116
    %p127 = scmp.eq.s32.totalorder %s18, 0
    %p128 = por %p126, %p127
    %p129 = scmp.ne.s32.totalorder %s115, %s116
    %p130 = scmp.eq.s32.totalorder %s19, 1
    %p131 = por %p129, %p130
    %p133 = scmp.ne.s32.totalorder %s116, %s132
    %p134 = scmp.eq.s32.totalorder %s19, 0
    %p135 = por %p133, %p134
    %s136 = ssub.s32 %s13, %s20
    %p137 = scmp.eq.s32.totalorder %s136, 0
    %s139 = sadd.s32 %s138, 1
    %s140 = scalar_select %p137, %s138, %s139
    %p143 = pneg %p137
    %p144 = scmp.eq.s32.totalorder %s13, 1
    %p145 = por %p143, %p144
    %p146 = scmp.ne.s32.totalorder %s138, %s141
    %p147 = scmp.eq.s32.totalorder %s13, 0
    %p148 = por %p146, %p147
    %p149 = scmp.ne.s32.totalorder %s138, %s141
    %p150 = scmp.eq.s32.totalorder %s18, 1
    %p151 = por %p149, %p150
    %p152 = scmp.ne.s32.totalorder %s141, %s142
    %p153 = scmp.eq.s32.totalorder %s18, 0
    %p154 = por %p152, %p153
    %p155 = scmp.ne.s32.totalorder %s141, %s142
    %p156 = scmp.eq.s32.totalorder %s19, 1
    %p157 = por %p155, %p156
    %p159 = scmp.ne.s32.totalorder %s142, %s158
    %p160 = scmp.eq.s32.totalorder %s19, 0
    %p161 = por %p159, %p160
    %s162 = ssub.s32 %s13, %s20
    %p163 = scmp.eq.s32.totalorder %s162, 0
    %s165 = sadd.s32 %s164, 1
    %s166 = scalar_select %p163, %s164, %s165
    %p169 = pneg %p163
    %p170 = scmp.eq.s32.totalorder %s13, 1
    %p171 = por %p169, %p170
    %p172 = scmp.ne.s32.totalorder %s164, %s167
    %p173 = scmp.eq.s32.totalorder %s13, 0
    %p174 = por %p172, %p173
    %p175 = scmp.ne.s32.totalorder %s164, %s167
    %p176 = scmp.eq.s32.totalorder %s18, 1
    %p177 = por %p175, %p176
    %p178 = scmp.ne.s32.totalorder %s167, %s168
    %p179 = scmp.eq.s32.totalorder %s18, 0
    %p180 = por %p178, %p179
    %p181 = scmp.ne.s32.totalorder %s167, %s168
    %p182 = scmp.eq.s32.totalorder %s19, 1
    %p183 = por %p181, %p182
    %p185 = scmp.ne.s32.totalorder %s168, %s184
    %p186 = scmp.eq.s32.totalorder %s19, 0
    %p187 = por %p185, %p186
    %p188 = scmp.le.s32.totalorder 1, %s13
    %p189 = scmp.lt.s32.totalorder %s13, 3
    %p190 = pnand %p188, %p189
    %p191 = pneg %p190
    // Predicated region
    $region9: #{_lambda_.6} parent=5 // pred_check
      _
    $region10: #{_lambda_.6} parent=5 // pred_check_branch
      %193 = sbr.rel (%p190) target = $region12
    $region11: #{_lambda_.6} parent=5 // pred_region
      %s194 = ssub.s32 %s13, 1
      // Predicated region
      $region13: #{_lambda_.6} parent=11 // pred_check
        %p195 = pneg %p60
      $region14: #{_lambda_.6} parent=11 // pred_check_branch
        %197 = sbr.rel (%p195) target = $region16
      $region15: #{_lambda_.6} parent=11 // pred_region
        _
      $region16: #{_lambda_.6} parent=11 // pred_fallthru
        _
      // Predicated region
      $region17: #{_lambda_.6} parent=11 // pred_check
        %p198 = pneg %p81
      $region18: #{_lambda_.6} parent=11 // pred_check_branch
        %200 = sbr.rel (%p198) target = $region20
      $region19: #{_lambda_.6} parent=11 // pred_region
        _
      $region20: #{_lambda_.6} parent=11 // pred_fallthru
        _
      // Predicated region
      $region21: #{_lambda_.6} parent=11 // pred_check
        %p201 = pneg %p102
      $region22: #{_lambda_.6} parent=11 // pred_check_branch
        %203 = sbr.rel (%p201) target = $region24
      $region23: #{_lambda_.6} parent=11 // pred_region
        _
      $region24: #{_lambda_.6} parent=11 // pred_fallthru
        _
    $region12: #{_lambda_.6} parent=5 // pred_fallthru
      _
    %p204 = scmp.lt.s32.totalorder %s13, 2
    // Predicated region
    $region25: #{_lambda_.6} parent=5 // pred_check
      %p205 = pneg %p204
    $region26: #{_lambda_.6} parent=5 // pred_check_branch
      %207 = sbr.rel (%p205) target = $region28
    $region27: #{_lambda_.6} parent=5 // pred_region
      // Predicated region
      $region29: #{_lambda_.6} parent=27 // pred_check
        %p208 = pneg %p33
      $region30: #{_lambda_.6} parent=27 // pred_check_branch
        %210 = sbr.rel (%p208) target = $region32
      $region31: #{_lambda_.6} parent=27 // pred_region
        %p211 = scmp.lt.s32.totalorder %s13, 1
        %s212 = scalar_select %p211, %s13, 1
        %s213 = smul.addr %s212, 32
        %s214 = smul.addr %s213, 4
        %s215 = scalar_lea.vmem %s0, %s214
      $region32: #{_lambda_.6} parent=27 // pred_fallthru
        _
    $region28: #{_lambda_.6} parent=5 // pred_fallthru
      _
    %p216 = scmp.le.s32.totalorder 1, %s13
    %p217 = scmp.lt.s32.totalorder %s13, 3
    %p218 = pnand %p216, %p217
    %p219 = pneg %p218
    // Predicated region
    $region33: #{_lambda_.6} parent=5 // pred_check
      _
    $region34: #{_lambda_.6} parent=5 // pred_check_branch
      %221 = sbr.rel (%p218) target = $region36
    $region35: #{_lambda_.6} parent=5 // pred_region
      %s222 = ssub.s32 %s13, 1
      %p223 = scmp.lt.s32.totalorder %s18, 1
      %s224 = scalar_select %p223, %s18, 1
      %s225 = smul.addr %s224, 32
      %s226 = smul.addr %s225, 4
      %s227 = scalar_lea.vmem %s0, %s226
      %p228 = pneg %p39
      %p229 = pneg %p36
      %p230 = pneg %p60
      %p231 = pneg %p57
      %p232 = pneg %p81
      %p233 = pneg %p78
      %p234 = pneg %p102
      %p235 = pneg %p99
      %p236 = pneg %p128
      %p237 = pneg %p125
      %p238 = scmp.lt.s32.totalorder %s18, 1
      %s239 = scalar_select %p238, %s18, 1
      %s240 = smul.addr %s239, 32
      %s241 = smul.addr %s240, 4
      %s242 = scalar_lea.vmem %s4, %s241
      %p243 = pneg %p154
      %p244 = pneg %p151
      %p245 = scmp.lt.s32.totalorder %s18, 1
      %s246 = scalar_select %p245, %s18, 1
      %s247 = scalar_lea.vmem %s5, %s246
      %p248 = pneg %p180
      %p249 = pneg %p177
      %p250 = scmp.lt.s32.totalorder %s18, 1
      %s251 = scalar_select %p250, %s18, 1
      %s252 = scalar_lea.vmem %s6, %s251
      %p253 = scmp.lt.s32.totalorder %s18, 1
      %s254 = scalar_select %p253, %s18, 1
      %s255 = smul.addr %s254, 32
      %s256 = smul.addr %s255, 4
      %s257 = scalar_lea.vmem %s0, %s256
      %p258 = scmp.lt.s32.totalorder %s18, 1
      %s259 = scalar_select %p258, %s18, 1
      %s260 = smul.addr %s259, 32
      %s261 = smul.addr %s260, 4
      %s262 = scalar_lea.vmem %s4, %s261
      %p263 = scmp.lt.s32.totalorder %s18, 1
      %s264 = scalar_select %p263, %s18, 1
      %s265 = scalar_lea.vmem %s5, %s264
      %p266 = scmp.lt.s32.totalorder %s18, 1
      %s267 = scalar_select %p266, %s18, 1
      %s268 = scalar_lea.vmem %s6, %s267
      %v270 = vld [vmem:[%s257] sm:$0xf]
      %v271 = vld [vmem:[%s257 + $0x4] sm:$0xf]
      %v272 = vld [vmem:[%s257 + $0x8] sm:$0xf]
      %v273 = vld [vmem:[%s257 + $0xc] sm:$0xf]
      %v274 = vld [vmem:[%s257 + $0x10] sm:$0xf]
      %v275 = vld [vmem:[%s257 + $0x14] sm:$0xf]
      %v276 = vld [vmem:[%s257 + $0x18] sm:$0xf]
      %v277 = vld [vmem:[%s257 + $0x1c] sm:$0xf]
      %v278 = vld [vmem:[%s257 + $0x20] sm:$0xf]
      %v279 = vld [vmem:[%s257 + $0x24] sm:$0xf]
      %v280 = vld [vmem:[%s257 + $0x28] sm:$0xf]
      %v281 = vld [vmem:[%s257 + $0x2c] sm:$0xf]
      %v282 = vld [vmem:[%s257 + $0x30] sm:$0xf]
      %v283 = vld [vmem:[%s257 + $0x34] sm:$0xf]
      %v284 = vld [vmem:[%s257 + $0x38] sm:$0xf]
      %v285 = vld [vmem:[%s257 + $0x3c] sm:$0xf]
      %v286 = vld [vmem:[%s257 + $0x40] sm:$0xf]
      %v287 = vld [vmem:[%s257 + $0x44] sm:$0xf]
      %v288 = vld [vmem:[%s257 + $0x48] sm:$0xf]
      %v289 = vld [vmem:[%s257 + $0x4c] sm:$0xf]
      %v290 = vld [vmem:[%s257 + $0x50] sm:$0xf]
      %v291 = vld [vmem:[%s257 + $0x54] sm:$0xf]
      %v292 = vld [vmem:[%s257 + $0x58] sm:$0xf]
      %v293 = vld [vmem:[%s257 + $0x5c] sm:$0xf]
      %v294 = vld [vmem:[%s257 + $0x60] sm:$0xf]
      %v295 = vld [vmem:[%s257 + $0x64] sm:$0xf]
      %v296 = vld [vmem:[%s257 + $0x68] sm:$0xf]
      %v297 = vld [vmem:[%s257 + $0x6c] sm:$0xf]
      %v298 = vld [vmem:[%s257 + $0x70] sm:$0xf]
      %v299 = vld [vmem:[%s257 + $0x74] sm:$0xf]
      %v300 = vld [vmem:[%s257 + $0x78] sm:$0xf]
      %v301 = vld [vmem:[%s257 + $0x7c] sm:$0xf]
      %v302 = vunpack.c.l.bf16 %v270
      %v303 = vunpack.c.l.bf16 %v271
      %v304 = vunpack.c.l.bf16 %v272
      %v305 = vunpack.c.l.bf16 %v273
      %v306 = vunpack.c.l.bf16 %v274
      %v307 = vunpack.c.l.bf16 %v275
      %v308 = vunpack.c.l.bf16 %v276
      %v309 = vunpack.c.l.bf16 %v277
      %v310 = vunpack.c.l.bf16 %v278
      %v311 = vunpack.c.l.bf16 %v279
      %v312 = vunpack.c.l.bf16 %v280
      %v313 = vunpack.c.l.bf16 %v281
      %v314 = vunpack.c.l.bf16 %v282
      %v315 = vunpack.c.l.bf16 %v283
      %v316 = vunpack.c.l.bf16 %v284
      %v317 = vunpack.c.l.bf16 %v285
      %v318 = vunpack.c.l.bf16 %v286
      %v319 = vunpack.c.l.bf16 %v287
      %v320 = vunpack.c.l.bf16 %v288
      %v321 = vunpack.c.l.bf16 %v289
      %v322 = vunpack.c.l.bf16 %v290
      %v323 = vunpack.c.l.bf16 %v291
      %v324 = vunpack.c.l.bf16 %v292
      %v325 = vunpack.c.l.bf16 %v293
      %v326 = vunpack.c.l.bf16 %v294
      %v327 = vunpack.c.l.bf16 %v295
      %v328 = vunpack.c.l.bf16 %v296
      %v329 = vunpack.c.l.bf16 %v297
      %v330 = vunpack.c.l.bf16 %v298
      %v331 = vunpack.c.l.bf16 %v299
      %v332 = vunpack.c.l.bf16 %v300
      %v333 = vunpack.c.l.bf16 %v301
      %v334 = vld [vmem:[%s1] sm:$0x1]
      %v336 = vlaneseq
      %v337 = vshrl.u32 %v336, 7
      %v338 = vsub.s32 0, %v337
      %v339 = vrot.slane %v334, %v338
      %v341 = vmul.f32 %v302, %v339
      %v342 = vmul.f32 %v303, %v339
      %v343 = vmul.f32 %v304, %v339
      %v344 = vmul.f32 %v305, %v339
      %v345 = vmul.f32 %v306, %v339
      %v346 = vmul.f32 %v307, %v339
      %v347 = vmul.f32 %v308, %v339
      %v348 = vmul.f32 %v309, %v339
      %v349 = vmul.f32 %v310, %v339
      %v350 = vmul.f32 %v311, %v339
      %v351 = vmul.f32 %v312, %v339
      %v352 = vmul.f32 %v313, %v339
      %v353 = vmul.f32 %v314, %v339
      %v354 = vmul.f32 %v315, %v339
      %v355 = vmul.f32 %v316, %v339
      %v356 = vmul.f32 %v317, %v339
      %v357 = vmul.f32 %v318, %v339
      %v358 = vmul.f32 %v319, %v339
      %v359 = vmul.f32 %v320, %v339
      %v360 = vmul.f32 %v321, %v339
      %v361 = vmul.f32 %v322, %v339
      %v362 = vmul.f32 %v323, %v339
      %v363 = vmul.f32 %v324, %v339
      %v364 = vmul.f32 %v325, %v339
      %v365 = vmul.f32 %v326, %v339
      %v366 = vmul.f32 %v327, %v339
      %v367 = vmul.f32 %v328, %v339
      %v368 = vmul.f32 %v329, %v339
      %v369 = vmul.f32 %v330, %v339
      %v370 = vmul.f32 %v331, %v339
      %v371 = vmul.f32 %v332, %v339
      %v372 = vmul.f32 %v333, %v339
      %v373 = vld [vmem:[%s2] sm:$0x1]
      %v375 = vlaneseq
      %v376 = vshrl.u32 %v375, 7
      %v377 = vsub.s32 0, %v376
      %v378 = vrot.slane %v373, %v377
      %v380 = vadd.f32 %v341, %v378
      %v381 = vadd.f32 %v342, %v378
      %v382 = vadd.f32 %v343, %v378
      %v383 = vadd.f32 %v344, %v378
      %v384 = vadd.f32 %v345, %v378
      %v385 = vadd.f32 %v346, %v378
      %v386 = vadd.f32 %v347, %v378
      %v387 = vadd.f32 %v348, %v378
      %v388 = vadd.f32 %v349, %v378
      %v389 = vadd.f32 %v350, %v378
      %v390 = vadd.f32 %v351, %v378
      %v391 = vadd.f32 %v352, %v378
      %v392 = vadd.f32 %v353, %v378
      %v393 = vadd.f32 %v354, %v378
      %v394 = vadd.f32 %v355, %v378
      %v395 = vadd.f32 %v356, %v378
      %v396 = vadd.f32 %v357, %v378
      %v397 = vadd.f32 %v358, %v378
      %v398 = vadd.f32 %v359, %v378
      %v399 = vadd.f32 %v360, %v378
      %v400 = vadd.f32 %v361, %v378
      %v401 = vadd.f32 %v362, %v378
      %v402 = vadd.f32 %v363, %v378
      %v403 = vadd.f32 %v364, %v378
      %v404 = vadd.f32 %v365, %v378
      %v405 = vadd.f32 %v366, %v378
      %v406 = vadd.f32 %v367, %v378
      %v407 = vadd.f32 %v368, %v378
      %v408 = vadd.f32 %v369, %v378
      %v409 = vadd.f32 %v370, %v378
      %v410 = vadd.f32 %v371, %v378
      %v411 = vadd.f32 %v372, %v378
      %v412 = vmax.f32 %v380, 0.0
      %v413 = vmax.f32 %v381, 0.0
      %v414 = vmax.f32 %v382, 0.0
      %v415 = vmax.f32 %v383, 0.0
      %v416 = vmax.f32 %v384, 0.0
      %v417 = vmax.f32 %v385, 0.0
      %v418 = vmax.f32 %v386, 0.0
      %v419 = vmax.f32 %v387, 0.0
      %v420 = vmax.f32 %v388, 0.0
      %v421 = vmax.f32 %v389, 0.0
      %v422 = vmax.f32 %v390, 0.0
      %v423 = vmax.f32 %v391, 0.0
      %v424 = vmax.f32 %v392, 0.0
      %v425 = vmax.f32 %v393, 0.0
      %v426 = vmax.f32 %v394, 0.0
      %v427 = vmax.f32 %v395, 0.0
      %v428 = vmax.f32 %v396, 0.0
      %v429 = vmax.f32 %v397, 0.0
      %v430 = vmax.f32 %v398, 0.0
      %v431 = vmax.f32 %v399, 0.0
      %v432 = vmax.f32 %v400, 0.0
      %v433 = vmax.f32 %v401, 0.0
      %v434 = vmax.f32 %v402, 0.0
      %v435 = vmax.f32 %v403, 0.0
      %v436 = vmax.f32 %v404, 0.0
      %v437 = vmax.f32 %v405, 0.0
      %v438 = vmax.f32 %v406, 0.0
      %v439 = vmax.f32 %v407, 0.0
      %v440 = vmax.f32 %v408, 0.0
      %v441 = vmax.f32 %v409, 0.0
      %v442 = vmax.f32 %v410, 0.0
      %v443 = vmax.f32 %v411, 0.0
      %v444 = vpack.c.bf16 %v413, %v412
      %v445 = vpack.c.bf16 %v415, %v414
      %v446 = vpack.c.bf16 %v417, %v416
      %v447 = vpack.c.bf16 %v419, %v418
      %v448 = vpack.c.bf16 %v421, %v420
      %v449 = vpack.c.bf16 %v423, %v422
      %v450 = vpack.c.bf16 %v425, %v424
      %v451 = vpack.c.bf16 %v427, %v426
      %v452 = vpack.c.bf16 %v429, %v428
      %v453 = vpack.c.bf16 %v431, %v430
      %v454 = vpack.c.bf16 %v433, %v432
      %v455 = vpack.c.bf16 %v435, %v434
      %v456 = vpack.c.bf16 %v437, %v436
      %v457 = vpack.c.bf16 %v439, %v438
      %v458 = vpack.c.bf16 %v441, %v440
      %v459 = vpack.c.bf16 %v443, %v442
      %vm460 = vcmask 27648
      %461 = vst.msk [vmem:[#allocation2] sm:$0xf] %vm460, 0
      %462 = vst.msk [vmem:[#allocation2 + $0x4] sm:$0xf] %vm460, 0
      %vm463 = vcmask 24576
      %464 = vst.msk [vmem:[#allocation2 + $0x8] sm:$0x1] %vm463, 0
      %s465 = scalar_lea.vmem [#allocation2], 204
      %466 = vst.msk [vmem:[%s465] sm:$0xf] %vm460, 0
      %467 = vst.msk [vmem:[%s465 + $0x4] sm:$0xf] %vm460, 0
      %468 = vst.msk [vmem:[%s465 + $0x8] sm:$0x1] %vm463, 0
      %s469 = scalar_lea.vmem [#allocation2], 12
      %vm470 = vcmask 24576
      %vm471 = vsmask.f32 256
      %vm472 = vmand %vm470, %vm471
      %v473 = vld [vmem:[%s469] sm:$0x1]
      %v474 = vsel %vm472, 0, %v473
      %475 = vst [vmem:[%s469] sm:$0x1] %v474
      %v476 = vld [vmem:[%s469 + $0xc] sm:$0x1]
      %v477 = vsel %vm472, 0, %v476
      %478 = vst [vmem:[%s469 + $0xc] sm:$0x1] %v477
      %v479 = vld [vmem:[%s469 + $0x18] sm:$0x1]
      %v480 = vsel %vm472, 0, %v479
      %481 = vst [vmem:[%s469 + $0x18] sm:$0x1] %v480
      %v482 = vld [vmem:[%s469 + $0x24] sm:$0x1]
      %v483 = vsel %vm472, 0, %v482
      %484 = vst [vmem:[%s469 + $0x24] sm:$0x1] %v483
      %v485 = vld [vmem:[%s469 + $0x30] sm:$0x1]
      %v486 = vsel %vm472, 0, %v485
      %487 = vst [vmem:[%s469 + $0x30] sm:$0x1] %v486
      %v488 = vld [vmem:[%s469 + $0x3c] sm:$0x1]
      %v489 = vsel %vm472, 0, %v488
      %490 = vst [vmem:[%s469 + $0x3c] sm:$0x1] %v489
      %v491 = vld [vmem:[%s469 + $0x48] sm:$0x1]
      %v492 = vsel %vm472, 0, %v491
      %493 = vst [vmem:[%s469 + $0x48] sm:$0x1] %v492
      %v494 = vld [vmem:[%s469 + $0x54] sm:$0x1]
      %v495 = vsel %vm472, 0, %v494
      %496 = vst [vmem:[%s469 + $0x54] sm:$0x1] %v495
      %v497 = vld [vmem:[%s469 + $0x60] sm:$0x1]
      %v498 = vsel %vm472, 0, %v497
      %499 = vst [vmem:[%s469 + $0x60] sm:$0x1] %v498
      %v500 = vld [vmem:[%s469 + $0x6c] sm:$0x1]
      %v501 = vsel %vm472, 0, %v500
      %502 = vst [vmem:[%s469 + $0x6c] sm:$0x1] %v501
      %v503 = vld [vmem:[%s469 + $0x78] sm:$0x1]
      %v504 = vsel %vm472, 0, %v503
      %505 = vst [vmem:[%s469 + $0x78] sm:$0x1] %v504
      %v506 = vld [vmem:[%s469 + $0x84] sm:$0x1]
      %v507 = vsel %vm472, 0, %v506
      %508 = vst [vmem:[%s469 + $0x84] sm:$0x1] %v507
      %v509 = vld [vmem:[%s469 + $0x90] sm:$0x1]
      %v510 = vsel %vm472, 0, %v509
      %511 = vst [vmem:[%s469 + $0x90] sm:$0x1] %v510
      %v512 = vld [vmem:[%s469 + $0x9c] sm:$0x1]
      %v513 = vsel %vm472, 0, %v512
      %514 = vst [vmem:[%s469 + $0x9c] sm:$0x1] %v513
      %v515 = vld [vmem:[%s469 + $0xa8] sm:$0x1]
      %v516 = vsel %vm472, 0, %v515
      %517 = vst [vmem:[%s469 + $0xa8] sm:$0x1] %v516
      %v518 = vld [vmem:[%s469 + $0xb4] sm:$0x1]
      %v519 = vsel %vm472, 0, %v518
      %520 = vst [vmem:[%s469 + $0xb4] sm:$0x1] %v519
      %vm521 = vsmask.f32 7938
      %vm522 = vmand %vm470, %vm521
      %v523 = vld [vmem:[%s469 + $0x8] sm:$0x1]
      %v524 = vsel %vm522, 0, %v523
      %525 = vst [vmem:[%s469 + $0x8] sm:$0x1] %v524
      %v526 = vld [vmem:[%s469 + $0x14] sm:$0x1]
      %v527 = vsel %vm522, 0, %v526
      %528 = vst [vmem:[%s469 + $0x14] sm:$0x1] %v527
      %v529 = vld [vmem:[%s469 + $0x20] sm:$0x1]
      %v530 = vsel %vm522, 0, %v529
      %531 = vst [vmem:[%s469 + $0x20] sm:$0x1] %v530
      %v532 = vld [vmem:[%s469 + $0x2c] sm:$0x1]
      %v533 = vsel %vm522, 0, %v532
      %534 = vst [vmem:[%s469 + $0x2c] sm:$0x1] %v533
      %v535 = vld [vmem:[%s469 + $0x38] sm:$0x1]
      %v536 = vsel %vm522, 0, %v535
      %537 = vst [vmem:[%s469 + $0x38] sm:$0x1] %v536
      %v538 = vld [vmem:[%s469 + $0x44] sm:$0x1]
      %v539 = vsel %vm522, 0, %v538
      %540 = vst [vmem:[%s469 + $0x44] sm:$0x1] %v539
      %v541 = vld [vmem:[%s469 + $0x50] sm:$0x1]
      %v542 = vsel %vm522, 0, %v541
      %543 = vst [vmem:[%s469 + $0x50] sm:$0x1] %v542
      %v544 = vld [vmem:[%s469 + $0x5c] sm:$0x1]
      %v545 = vsel %vm522, 0, %v544
      %546 = vst [vmem:[%s469 + $0x5c] sm:$0x1] %v545
      %v547 = vld [vmem:[%s469 + $0x68] sm:$0x1]
      %v548 = vsel %vm522, 0, %v547
      %549 = vst [vmem:[%s469 + $0x68] sm:$0x1] %v548
      %v550 = vld [vmem:[%s469 + $0x74] sm:$0x1]
      %v551 = vsel %vm522, 0, %v550
      %552 = vst [vmem:[%s469 + $0x74] sm:$0x1] %v551
      %v553 = vld [vmem:[%s469 + $0x80] sm:$0x1]
      %v554 = vsel %vm522, 0, %v553
      %555 = vst [vmem:[%s469 + $0x80] sm:$0x1] %v554
      %v556 = vld [vmem:[%s469 + $0x8c] sm:$0x1]
      %v557 = vsel %vm522, 0, %v556
      %558 = vst [vmem:[%s469 + $0x8c] sm:$0x1] %v557
      %v559 = vld [vmem:[%s469 + $0x98] sm:$0x1]
      %v560 = vsel %vm522, 0, %v559
      %561 = vst [vmem:[%s469 + $0x98] sm:$0x1] %v560
      %v562 = vld [vmem:[%s469 + $0xa4] sm:$0x1]
      %v563 = vsel %vm522, 0, %v562
      %564 = vst [vmem:[%s469 + $0xa4] sm:$0x1] %v563
      %v565 = vld [vmem:[%s469 + $0xb0] sm:$0x1]
      %v566 = vsel %vm522, 0, %v565
      %567 = vst [vmem:[%s469 + $0xb0] sm:$0x1] %v566
      %v568 = vld [vmem:[%s469 + $0xbc] sm:$0x1]
      %v569 = vsel %vm522, 0, %v568
      %570 = vst [vmem:[%s469 + $0xbc] sm:$0x1] %v569
      %v587 = vunpack.c.l.b16 %v444
      %v588 = vunpack.c.h.b16 %v444
      %v589 = vunpack.c.l.b16 %v445
      %v590 = vunpack.c.h.b16 %v445
      %v591 = vunpack.c.l.b16 %v446
      %v592 = vunpack.c.h.b16 %v446
      %v593 = vunpack.c.l.b16 %v447
      %v594 = vunpack.c.h.b16 %v447
      %v595 = vunpack.c.l.b16 %v448
      %v596 = vunpack.c.h.b16 %v448
      %v597 = vunpack.c.l.b16 %v449
      %v598 = vunpack.c.h.b16 %v449
      %v599 = vunpack.c.l.b16 %v450
      %v600 = vunpack.c.h.b16 %v450
      %v601 = vunpack.c.l.b16 %v451
      %v602 = vunpack.c.h.b16 %v451
      %v603 = vunpack.c.l.b16 %v452
      %v604 = vunpack.c.h.b16 %v452
      %v605 = vunpack.c.l.b16 %v453
      %v606 = vunpack.c.h.b16 %v453
      %v607 = vunpack.c.l.b16 %v454
      %v608 = vunpack.c.h.b16 %v454
      %v609 = vunpack.c.l.b16 %v455
      %v610 = vunpack.c.h.b16 %v455
      %v611 = vunpack.c.l.b16 %v456
      %v612 = vunpack.c.h.b16 %v456
      %v613 = vunpack.c.l.b16 %v457
      %v614 = vunpack.c.h.b16 %v457
      %v615 = vunpack.c.l.b16 %v458
      %v616 = vunpack.c.h.b16 %v458
      %v617 = vunpack.c.l.b16 %v459
      %v618 = vunpack.c.h.b16 %v459
      %v619 = vpack.c.b16 %v587, %v587
      %v620 = vpack.c.b16 %v588, %v588
      %v621 = vpack.c.b16 %v589, %v589
      %v622 = vpack.c.b16 %v590, %v590
      %v623 = vpack.c.b16 %v591, %v591
      %v624 = vpack.c.b16 %v592, %v592
      %v625 = vpack.c.b16 %v593, %v593
      %v626 = vpack.c.b16 %v594, %v594
      %v627 = vpack.c.b16 %v595, %v595
      %v628 = vpack.c.b16 %v596, %v596
      %v629 = vpack.c.b16 %v597, %v597
      %v630 = vpack.c.b16 %v598, %v598
      %v631 = vpack.c.b16 %v599, %v599
      %v632 = vpack.c.b16 %v600, %v600
      %v633 = vpack.c.b16 %v601, %v601
      %v634 = vpack.c.b16 %v602, %v602
      %v635 = vpack.c.b16 %v603, %v603
      %v636 = vpack.c.b16 %v604, %v604
      %v637 = vpack.c.b16 %v605, %v605
      %v638 = vpack.c.b16 %v606, %v606
      %v639 = vpack.c.b16 %v607, %v607
      %v640 = vpack.c.b16 %v608, %v608
      %v641 = vpack.c.b16 %v609, %v609
      %v642 = vpack.c.b16 %v610, %v610
      %v643 = vpack.c.b16 %v611, %v611
      %v644 = vpack.c.b16 %v612, %v612
      %v645 = vpack.c.b16 %v613, %v613
      %v646 = vpack.c.b16 %v614, %v614
      %v647 = vpack.c.b16 %v615, %v615
      %v648 = vpack.c.b16 %v616, %v616
      %v649 = vpack.c.b16 %v617, %v617
      %v650 = vpack.c.b16 %v618, %v618
      %vm651 = vsmask.f32 4368
      %vm652 = vmor %vm471, %vm651
      %v654 = vshrl.u32 %v619, 16
      %v656 = vrot.slane %v654, 7
      %v657 = vshll.u32 %v619, 16
      %v659 = vor.u32 %v656, %v657
      %v660 = vrot.slane %v656, 4
      %v662 = vshrl.u32 %v620, 16
      %v664 = vrot.slane %v662, 7
      %v665 = vshll.u32 %v620, 16
      %v667 = vor.u32 %v664, %v665
      %v668 = vsel %vm652, %v660, %v667
      %v669 = vrot.slane %v664, 4
      %v671 = vshrl.u32 %v621, 16
      %v673 = vrot.slane %v671, 7
      %v674 = vshll.u32 %v621, 16
      %v676 = vor.u32 %v673, %v674
      %v677 = vrot.slane %v673, 4
      %v679 = vshrl.u32 %v622, 16
      %v681 = vrot.slane %v679, 7
      %v682 = vshll.u32 %v622, 16
      %v684 = vor.u32 %v681, %v682
      %v685 = vsel %vm652, %v677, %v684
      %v686 = vrot.slane %v681, 4
      %v688 = vshrl.u32 %v623, 16
      %v690 = vrot.slane %v688, 7
      %v691 = vshll.u32 %v623, 16
      %v693 = vor.u32 %v690, %v691
      %v694 = vrot.slane %v690, 4
      %v696 = vshrl.u32 %v624, 16
      %v698 = vrot.slane %v696, 7
      %v699 = vshll.u32 %v624, 16
      %v701 = vor.u32 %v698, %v699
      %v702 = vsel %vm652, %v694, %v701
      %v703 = vrot.slane %v698, 4
      %v705 = vshrl.u32 %v625, 16
      %v707 = vrot.slane %v705, 7
      %v708 = vshll.u32 %v625, 16
      %v710 = vor.u32 %v707, %v708
      %v711 = vrot.slane %v707, 4
      %v713 = vshrl.u32 %v626, 16
      %v715 = vrot.slane %v713, 7
      %v716 = vshll.u32 %v626, 16
      %v718 = vor.u32 %v715, %v716
      %v719 = vsel %vm652, %v711, %v718
      %v720 = vrot.slane %v715, 4
      %v722 = vshrl.u32 %v627, 16
      %v724 = vrot.slane %v722, 7
      %v725 = vshll.u32 %v627, 16
      %v727 = vor.u32 %v724, %v725
      %v728 = vrot.slane %v724, 4
      %v730 = vshrl.u32 %v628, 16
      %v732 = vrot.slane %v730, 7
      %v733 = vshll.u32 %v628, 16
      %v735 = vor.u32 %v732, %v733
      %v736 = vsel %vm652, %v728, %v735
      %v737 = vrot.slane %v732, 4
      %v739 = vshrl.u32 %v629, 16
      %v741 = vrot.slane %v739, 7
      %v742 = vshll.u32 %v629, 16
      %v744 = vor.u32 %v741, %v742
      %v745 = vrot.slane %v741, 4
      %v747 = vshrl.u32 %v630, 16
      %v749 = vrot.slane %v747, 7
      %v750 = vshll.u32 %v630, 16
      %v752 = vor.u32 %v749, %v750
      %v753 = vsel %vm652, %v745, %v752
      %v754 = vrot.slane %v749, 4
      %v756 = vshrl.u32 %v631, 16
      %v758 = vrot.slane %v756, 7
      %v759 = vshll.u32 %v631, 16
      %v761 = vor.u32 %v758, %v759
      %v762 = vrot.slane %v758, 4
      %v764 = vshrl.u32 %v632, 16
      %v766 = vrot.slane %v764, 7
      %v767 = vshll.u32 %v632, 16
      %v769 = vor.u32 %v766, %v767
      %v770 = vsel %vm652, %v762, %v769
      %v771 = vrot.slane %v766, 4
      %v773 = vshrl.u32 %v633, 16
      %v775 = vrot.slane %v773, 7
      %v776 = vshll.u32 %v633, 16
      %v778 = vor.u32 %v775, %v776
      %v779 = vrot.slane %v775, 4
      %v781 = vshrl.u32 %v634, 16
      %v783 = vrot.slane %v781, 7
      %v784 = vshll.u32 %v634, 16
      %v786 = vor.u32 %v783, %v784
      %v787 = vsel %vm652, %v779, %v786
      %v788 = vrot.slane %v783, 4
      %v790 = vshrl.u32 %v635, 16
      %v792 = vrot.slane %v790, 7
      %v793 = vshll.u32 %v635, 16
      %v795 = vor.u32 %v792, %v793
      %v796 = vrot.slane %v792, 4
      %v798 = vshrl.u32 %v636, 16
      %v800 = vrot.slane %v798, 7
      %v801 = vshll.u32 %v636, 16
      %v803 = vor.u32 %v800, %v801
      %v804 = vsel %vm652, %v796, %v803
      %v805 = vrot.slane %v800, 4
      %v807 = vshrl.u32 %v637, 16
      %v809 = vrot.slane %v807, 7
      %v810 = vshll.u32 %v637, 16
      %v812 = vor.u32 %v809, %v810
      %v813 = vrot.slane %v809, 4
      %v815 = vshrl.u32 %v638, 16
      %v817 = vrot.slane %v815, 7
      %v818 = vshll.u32 %v638, 16
      %v820 = vor.u32 %v817, %v818
      %v821 = vsel %vm652, %v813, %v820
      %v822 = vrot.slane %v817, 4
      %v824 = vshrl.u32 %v639, 16
      %v826 = vrot.slane %v824, 7
      %v827 = vshll.u32 %v639, 16
      %v829 = vor.u32 %v826, %v827
      %v830 = vrot.slane %v826, 4
      %v832 = vshrl.u32 %v640, 16
      %v834 = vrot.slane %v832, 7
      %v835 = vshll.u32 %v640, 16
      %v837 = vor.u32 %v834, %v835
      %v838 = vsel %vm652, %v830, %v837
      %v839 = vrot.slane %v834, 4
      %v841 = vshrl.u32 %v641, 16
      %v843 = vrot.slane %v841, 7
      %v844 = vshll.u32 %v641, 16
      %v846 = vor.u32 %v843, %v844
      %v847 = vrot.slane %v843, 4
      %v849 = vshrl.u32 %v642, 16
      %v851 = vrot.slane %v849, 7
      %v852 = vshll.u32 %v642, 16
      %v854 = vor.u32 %v851, %v852
      %v855 = vsel %vm652, %v847, %v854
      %v856 = vrot.slane %v851, 4
      %v858 = vshrl.u32 %v643, 16
      %v860 = vrot.slane %v858, 7
      %v861 = vshll.u32 %v643, 16
      %v863 = vor.u32 %v860, %v861
      %v864 = vrot.slane %v860, 4
      %v866 = vshrl.u32 %v644, 16
      %v868 = vrot.slane %v866, 7
      %v869 = vshll.u32 %v644, 16
      %v871 = vor.u32 %v868, %v869
      %v872 = vsel %vm652, %v864, %v871
      %v873 = vrot.slane %v868, 4
      %v875 = vshrl.u32 %v645, 16
      %v877 = vrot.slane %v875, 7
      %v878 = vshll.u32 %v645, 16
      %v880 = vor.u32 %v877, %v878
      %v881 = vrot.slane %v877, 4
      %v883 = vshrl.u32 %v646, 16
      %v885 = vrot.slane %v883, 7
      %v886 = vshll.u32 %v646, 16
      %v888 = vor.u32 %v885, %v886
      %v889 = vsel %vm652, %v881, %v888
      %v890 = vrot.slane %v885, 4
      %v892 = vshrl.u32 %v647, 16
      %v894 = vrot.slane %v892, 7
      %v895 = vshll.u32 %v647, 16
      %v897 = vor.u32 %v894, %v895
      %v898 = vrot.slane %v894, 4
      %v900 = vshrl.u32 %v648, 16
      %v902 = vrot.slane %v900, 7
      %v903 = vshll.u32 %v648, 16
      %v905 = vor.u32 %v902, %v903
      %v906 = vsel %vm652, %v898, %v905
      %v907 = vrot.slane %v902, 4
      %v909 = vshrl.u32 %v649, 16
      %v911 = vrot.slane %v909, 7
      %v912 = vshll.u32 %v649, 16
      %v914 = vor.u32 %v911, %v912
      %v915 = vrot.slane %v911, 4
      %v917 = vshrl.u32 %v650, 16
      %v919 = vrot.slane %v917, 7
      %v920 = vshll.u32 %v650, 16
      %v922 = vor.u32 %v919, %v920
      %v923 = vsel %vm652, %v915, %v922
      %v924 = vrot.slane %v919, 4
      %vm973 = vcmask 27648
      %vm974 = vmand %vm973, %vm521
      %v975 = vld [vmem:[%s469] sm:$0xf]
      %v976 = vsel %vm974, %v659, %v975
      %977 = vst [vmem:[%s469] sm:$0xf] %v976
      %978 = vst.msk [vmem:[%s469 + $0x4] sm:$0xf] %vm460, %v668
      %v979 = vld [vmem:[%s469 + $0x8] sm:$0x1]
      %v980 = vsel %vm472, %v669, %v979
      %981 = vst [vmem:[%s469 + $0x8] sm:$0x1] %v980
      %v982 = vld [vmem:[%s469 + $0xc] sm:$0xf]
      %v983 = vsel %vm974, %v676, %v982
      %984 = vst [vmem:[%s469 + $0xc] sm:$0xf] %v983
      %985 = vst.msk [vmem:[%s469 + $0x10] sm:$0xf] %vm460, %v685
      %v986 = vld [vmem:[%s469 + $0x14] sm:$0x1]
      %v987 = vsel %vm472, %v686, %v986
      %988 = vst [vmem:[%s469 + $0x14] sm:$0x1] %v987
      %v989 = vld [vmem:[%s469 + $0x18] sm:$0xf]
      %v990 = vsel %vm974, %v693, %v989
      %991 = vst [vmem:[%s469 + $0x18] sm:$0xf] %v990
      %992 = vst.msk [vmem:[%s469 + $0x1c] sm:$0xf] %vm460, %v702
      %v993 = vld [vmem:[%s469 + $0x20] sm:$0x1]
      %v994 = vsel %vm472, %v703, %v993
      %995 = vst [vmem:[%s469 + $0x20] sm:$0x1] %v994
      %v996 = vld [vmem:[%s469 + $0x24] sm:$0xf]
      %v997 = vsel %vm974, %v710, %v996
      %998 = vst [vmem:[%s469 + $0x24] sm:$0xf] %v997
      %999 = vst.msk [vmem:[%s469 + $0x28] sm:$0xf] %vm460, %v719
      %v1000 = vld [vmem:[%s469 + $0x2c] sm:$0x1]
      %v1001 = vsel %vm472, %v720, %v1000
      %1002 = vst [vmem:[%s469 + $0x2c] sm:$0x1] %v1001
      %v1003 = vld [vmem:[%s469 + $0x30] sm:$0xf]
      %v1004 = vsel %vm974, %v727, %v1003
      %1005 = vst [vmem:[%s469 + $0x30] sm:$0xf] %v1004
      %1006 = vst.msk [vmem:[%s469 + $0x34] sm:$0xf] %vm460, %v736
      %v1007 = vld [vmem:[%s469 + $0x38] sm:$0x1]
      %v1008 = vsel %vm472, %v737, %v1007
      %1009 = vst [vmem:[%s469 + $0x38] sm:$0x1] %v1008
      %v1010 = vld [vmem:[%s469 + $0x3c] sm:$0xf]
      %v1011 = vsel %vm974, %v744, %v1010
      %1012 = vst [vmem:[%s469 + $0x3c] sm:$0xf] %v1011
      %1013 = vst.msk [vmem:[%s469 + $0x40] sm:$0xf] %vm460, %v753
      %v1014 = vld [vmem:[%s469 + $0x44] sm:$0x1]
      %v1015 = vsel %vm472, %v754, %v1014
      %1016 = vst [vmem:[%s469 + $0x44] sm:$0x1] %v1015
      %v1017 = vld [vmem:[%s469 + $0x48] sm:$0xf]
      %v1018 = vsel %vm974, %v761, %v1017
      %1019 = vst [vmem:[%s469 + $0x48] sm:$0xf] %v1018
      %1020 = vst.msk [vmem:[%s469 + $0x4c] sm:$0xf] %vm460, %v770
      %v1021 = vld [vmem:[%s469 + $0x50] sm:$0x1]
      %v1022 = vsel %vm472, %v771, %v1021
      %1023 = vst [vmem:[%s469 + $0x50] sm:$0x1] %v1022
      %v1024 = vld [vmem:[%s469 + $0x54] sm:$0xf]
      %v1025 = vsel %vm974, %v778, %v1024
      %1026 = vst [vmem:[%s469 + $0x54] sm:$0xf] %v1025
      %1027 = vst.msk [vmem:[%s469 + $0x58] sm:$0xf] %vm460, %v787
      %v1028 = vld [vmem:[%s469 + $0x5c] sm:$0x1]
      %v1029 = vsel %vm472, %v788, %v1028
      %1030 = vst [vmem:[%s469 + $0x5c] sm:$0x1] %v1029
      %v1031 = vld [vmem:[%s469 + $0x60] sm:$0xf]
      %v1032 = vsel %vm974, %v795, %v1031
      %1033 = vst [vmem:[%s469 + $0x60] sm:$0xf] %v1032
      %1034 = vst.msk [vmem:[%s469 + $0x64] sm:$0xf] %vm460, %v804
      %v1035 = vld [vmem:[%s469 + $0x68] sm:$0x1]
      %v1036 = vsel %vm472, %v805, %v1035
      %1037 = vst [vmem:[%s469 + $0x68] sm:$0x1] %v1036
      %v1038 = vld [vmem:[%s469 + $0x6c] sm:$0xf]
      %v1039 = vsel %vm974, %v812, %v1038
      %1040 = vst [vmem:[%s469 + $0x6c] sm:$0xf] %v1039
      %1041 = vst.msk [vmem:[%s469 + $0x70] sm:$0xf] %vm460, %v821
      %v1042 = vld [vmem:[%s469 + $0x74] sm:$0x1]
      %v1043 = vsel %vm472, %v822, %v1042
      %1044 = vst [vmem:[%s469 + $0x74] sm:$0x1] %v1043
      %v1045 = vld [vmem:[%s469 + $0x78] sm:$0xf]
      %v1046 = vsel %vm974, %v829, %v1045
      %1047 = vst [vmem:[%s469 + $0x78] sm:$0xf] %v1046
      %1048 = vst.msk [vmem:[%s469 + $0x7c] sm:$0xf] %vm460, %v838
      %v1049 = vld [vmem:[%s469 + $0x80] sm:$0x1]
      %v1050 = vsel %vm472, %v839, %v1049
      %1051 = vst [vmem:[%s469 + $0x80] sm:$0x1] %v1050
      %v1052 = vld [vmem:[%s469 + $0x84] sm:$0xf]
      %v1053 = vsel %vm974, %v846, %v1052
      %1054 = vst [vmem:[%s469 + $0x84] sm:$0xf] %v1053
      %1055 = vst.msk [vmem:[%s469 + $0x88] sm:$0xf] %vm460, %v855
      %v1056 = vld [vmem:[%s469 + $0x8c] sm:$0x1]
      %v1057 = vsel %vm472, %v856, %v1056
      %1058 = vst [vmem:[%s469 + $0x8c] sm:$0x1] %v1057
      %v1059 = vld [vmem:[%s469 + $0x90] sm:$0xf]
      %v1060 = vsel %vm974, %v863, %v1059
      %1061 = vst [vmem:[%s469 + $0x90] sm:$0xf] %v1060
      %1062 = vst.msk [vmem:[%s469 + $0x94] sm:$0xf] %vm460, %v872
      %v1063 = vld [vmem:[%s469 + $0x98] sm:$0x1]
      %v1064 = vsel %vm472, %v873, %v1063
      %1065 = vst [vmem:[%s469 + $0x98] sm:$0x1] %v1064
      %v1066 = vld [vmem:[%s469 + $0x9c] sm:$0xf]
      %v1067 = vsel %vm974, %v880, %v1066
      %1068 = vst [vmem:[%s469 + $0x9c] sm:$0xf] %v1067
      %1069 = vst.msk [vmem:[%s469 + $0xa0] sm:$0xf] %vm460, %v889
      %v1070 = vld [vmem:[%s469 + $0xa4] sm:$0x1]
      %v1071 = vsel %vm472, %v890, %v1070
      %1072 = vst [vmem:[%s469 + $0xa4] sm:$0x1] %v1071
      %v1073 = vld [vmem:[%s469 + $0xa8] sm:$0xf]
      %v1074 = vsel %vm974, %v897, %v1073
      %1075 = vst [vmem:[%s469 + $0xa8] sm:$0xf] %v1074
      %1076 = vst.msk [vmem:[%s469 + $0xac] sm:$0xf] %vm460, %v906
      %v1077 = vld [vmem:[%s469 + $0xb0] sm:$0x1]
      %v1078 = vsel %vm472, %v907, %v1077
      %1079 = vst [vmem:[%s469 + $0xb0] sm:$0x1] %v1078
      %v1080 = vld [vmem:[%s469 + $0xb4] sm:$0xf]
      %v1081 = vsel %vm974, %v914, %v1080
      %1082 = vst [vmem:[%s469 + $0xb4] sm:$0xf] %v1081
      %1083 = vst.msk [vmem:[%s469 + $0xb8] sm:$0xf] %vm460, %v923
      %v1084 = vld [vmem:[%s469 + $0xbc] sm:$0x1]
      %v1085 = vsel %vm472, %v924, %v1084
      %1086 = vst [vmem:[%s469 + $0xbc] sm:$0x1] %v1085
      %v1087 = vld [vmem:[#allocation2] sm:$0xf]
      %v1088 = vld [vmem:[#allocation2 + $0x4] sm:$0xf]
      %v1089 = vld [vmem:[#allocation2 + $0xc] sm:$0xf]
      %v1090 = vld [vmem:[#allocation2 + $0x10] sm:$0xf]
      %v1091 = vld [vmem:[#allocation2 + $0x18] sm:$0xf]
      %v1092 = vld [vmem:[#allocation2 + $0x1c] sm:$0xf]
      %v1093 = vld [vmem:[#allocation2 + $0x24] sm:$0xf]
      %v1094 = vld [vmem:[#allocation2 + $0x28] sm:$0xf]
      %v1095 = vld [vmem:[#allocation2 + $0x30] sm:$0xf]
      %v1096 = vld [vmem:[#allocation2 + $0x34] sm:$0xf]
      %v1097 = vld [vmem:[#allocation2 + $0x3c] sm:$0xf]
      %v1098 = vld [vmem:[#allocation2 + $0x40] sm:$0xf]
      %v1099 = vld [vmem:[#allocation2 + $0x48] sm:$0xf]
      %v1100 = vld [vmem:[#allocation2 + $0x4c] sm:$0xf]
      %v1101 = vld [vmem:[#allocation2 + $0x54] sm:$0xf]
      %v1102 = vld [vmem:[#allocation2 + $0x58] sm:$0xf]
      %v1103 = vld [vmem:[#allocation2 + $0x60] sm:$0xf]
      %v1104 = vld [vmem:[#allocation2 + $0x64] sm:$0xf]
      %v1105 = vld [vmem:[#allocation2 + $0x6c] sm:$0xf]
      %v1106 = vld [vmem:[#allocation2 + $0x70] sm:$0xf]
      %v1107 = vld [vmem:[#allocation2 + $0x78] sm:$0xf]
      %v1108 = vld [vmem:[#allocation2 + $0x7c] sm:$0xf]
      %v1109 = vld [vmem:[#allocation2 + $0x84] sm:$0xf]
      %v1110 = vld [vmem:[#allocation2 + $0x88] sm:$0xf]
      %v1111 = vld [vmem:[#allocation2 + $0x90] sm:$0xf]
      %v1112 = vld [vmem:[#allocation2 + $0x94] sm:$0xf]
      %v1113 = vld [vmem:[#allocation2 + $0x9c] sm:$0xf]
      %v1114 = vld [vmem:[#allocation2 + $0xa0] sm:$0xf]
      %v1115 = vld [vmem:[#allocation2 + $0xa8] sm:$0xf]
      %v1116 = vld [vmem:[#allocation2 + $0xac] sm:$0xf]
      %v1117 = vld [vmem:[#allocation2 + $0xb4] sm:$0xf]
      %v1118 = vld [vmem:[#allocation2 + $0xb8] sm:$0xf]
      %1119 = vst.msk [vmem:[#allocation3] sm:$0xf] %vm460, %v1087
      %1120 = vst.msk [vmem:[#allocation3 + $0x4] sm:$0xf] %vm460, %v1088
      %1121 = vst.msk [vmem:[#allocation3 + $0x8] sm:$0xf] %vm460, %v1089
      %1122 = vst.msk [vmem:[#allocation3 + $0xc] sm:$0xf] %vm460, %v1090
      %1123 = vst.msk [vmem:[#allocation3 + $0x10] sm:$0xf] %vm460, %v1091
      %1124 = vst.msk [vmem:[#allocation3 + $0x14] sm:$0xf] %vm460, %v1092
      %1125 = vst.msk [vmem:[#allocation3 + $0x18] sm:$0xf] %vm460, %v1093
      %1126 = vst.msk [vmem:[#allocation3 + $0x1c] sm:$0xf] %vm460, %v1094
      %1127 = vst.msk [vmem:[#allocation3 + $0x20] sm:$0xf] %vm460, %v1095
      %1128 = vst.msk [vmem:[#allocation3 + $0x24] sm:$0xf] %vm460, %v1096
      %1129 = vst.msk [vmem:[#allocation3 + $0x28] sm:$0xf] %vm460, %v1097
      %1130 = vst.msk [vmem:[#allocation3 + $0x2c] sm:$0xf] %vm460, %v1098
      %1131 = vst.msk [vmem:[#allocation3 + $0x30] sm:$0xf] %vm460, %v1099
      %1132 = vst.msk [vmem:[#allocation3 + $0x34] sm:$0xf] %vm460, %v1100
      %1133 = vst.msk [vmem:[#allocation3 + $0x38] sm:$0xf] %vm460, %v1101
      %1134 = vst.msk [vmem:[#allocation3 + $0x3c] sm:$0xf] %vm460, %v1102
      %1135 = vst.msk [vmem:[#allocation3 + $0x40] sm:$0xf] %vm460, %v1103
      %1136 = vst.msk [vmem:[#allocation3 + $0x44] sm:$0xf] %vm460, %v1104
      %1137 = vst.msk [vmem:[#allocation3 + $0x48] sm:$0xf] %vm460, %v1105
      %1138 = vst.msk [vmem:[#allocation3 + $0x4c] sm:$0xf] %vm460, %v1106
      %1139 = vst.msk [vmem:[#allocation3 + $0x50] sm:$0xf] %vm460, %v1107
      %1140 = vst.msk [vmem:[#allocation3 + $0x54] sm:$0xf] %vm460, %v1108
      %1141 = vst.msk [vmem:[#allocation3 + $0x58] sm:$0xf] %vm460, %v1109
      %1142 = vst.msk [vmem:[#allocation3 + $0x5c] sm:$0xf] %vm460, %v1110
      %1143 = vst.msk [vmem:[#allocation3 + $0x60] sm:$0xf] %vm460, %v1111
      %1144 = vst.msk [vmem:[#allocation3 + $0x64] sm:$0xf] %vm460, %v1112
      %1145 = vst.msk [vmem:[#allocation3 + $0x68] sm:$0xf] %vm460, %v1113
      %1146 = vst.msk [vmem:[#allocation3 + $0x6c] sm:$0xf] %vm460, %v1114
      %1147 = vst.msk [vmem:[#allocation3 + $0x70] sm:$0xf] %vm460, %v1115
      %1148 = vst.msk [vmem:[#allocation3 + $0x74] sm:$0xf] %vm460, %v1116
      %1149 = vst.msk [vmem:[#allocation3 + $0x78] sm:$0xf] %vm460, %v1117
      %1150 = vst.msk [vmem:[#allocation3 + $0x7c] sm:$0xf] %vm460, %v1118
      %v1151 = vld [vmem:[#allocation2] sm:$0xf]
      %v1152 = vld [vmem:[#allocation2 + $0x4] sm:$0xf]
      %v1153 = vld [vmem:[#allocation2 + $0x8] sm:$0x1]
      %v1154 = vld [vmem:[#allocation2 + $0xc] sm:$0xf]
      %v1155 = vld [vmem:[#allocation2 + $0x10] sm:$0xf]
      %v1156 = vld [vmem:[#allocation2 + $0x14] sm:$0x1]
      %v1157 = vld [vmem:[#allocation2 + $0x18] sm:$0xf]
      %v1158 = vld [vmem:[#allocation2 + $0x1c] sm:$0xf]
      %v1159 = vld [vmem:[#allocation2 + $0x20] sm:$0x1]
      %v1160 = vld [vmem:[#allocation2 + $0x24] sm:$0xf]
      %v1161 = vld [vmem:[#allocation2 + $0x28] sm:$0xf]
      %v1162 = vld [vmem:[#allocation2 + $0x2c] sm:$0x1]
      %v1163 = vld [vmem:[#allocation2 + $0x30] sm:$0xf]
      %v1164 = vld [vmem:[#allocation2 + $0x34] sm:$0xf]
      %v1165 = vld [vmem:[#allocation2 + $0x38] sm:$0x1]
      %v1166 = vld [vmem:[#allocation2 + $0x3c] sm:$0xf]
      %v1167 = vld [vmem:[#allocation2 + $0x40] sm:$0xf]
      %v1168 = vld [vmem:[#allocation2 + $0x44] sm:$0x1]
      %v1169 = vld [vmem:[#allocation2 + $0x48] sm:$0xf]
      %v1170 = vld [vmem:[#allocation2 + $0x4c] sm:$0xf]
      %v1171 = vld [vmem:[#allocation2 + $0x50] sm:$0x1]
      %v1172 = vld [vmem:[#allocation2 + $0x54] sm:$0xf]
      %v1173 = vld [vmem:[#allocation2 + $0x58] sm:$0xf]
      %v1174 = vld [vmem:[#allocation2 + $0x5c] sm:$0x1]
      %v1175 = vld [vmem:[#allocation2 + $0x60] sm:$0xf]
      %v1176 = vld [vmem:[#allocation2 + $0x64] sm:$0xf]
      %v1177 = vld [vmem:[#allocation2 + $0x68] sm:$0x1]
      %v1178 = vld [vmem:[#allocation2 + $0x6c] sm:$0xf]
      %v1179 = vld [vmem:[#allocation2 + $0x70] sm:$0xf]
      %v1180 = vld [vmem:[#allocation2 + $0x74] sm:$0x1]
      %v1181 = vld [vmem:[#allocation2 + $0x78] sm:$0xf]
      %v1182 = vld [vmem:[#allocation2 + $0x7c] sm:$0xf]
      %v1183 = vld [vmem:[#allocation2 + $0x80] sm:$0x1]
      %v1184 = vld [vmem:[#allocation2 + $0x84] sm:$0xf]
      %v1185 = vld [vmem:[#allocation2 + $0x88] sm:$0xf]
      %v1186 = vld [vmem:[#allocation2 + $0x8c] sm:$0x1]
      %v1187 = vld [vmem:[#allocation2 + $0x90] sm:$0xf]
      %v1188 = vld [vmem:[#allocation2 + $0x94] sm:$0xf]
      %v1189 = vld [vmem:[#allocation2 + $0x98] sm:$0x1]
      %v1190 = vld [vmem:[#allocation2 + $0x9c] sm:$0xf]
      %v1191 = vld [vmem:[#allocation2 + $0xa0] sm:$0xf]
      %v1192 = vld [vmem:[#allocation2 + $0xa4] sm:$0x1]
      %v1193 = vld [vmem:[#allocation2 + $0xa8] sm:$0xf]
      %v1194 = vld [vmem:[#allocation2 + $0xac] sm:$0xf]
      %v1195 = vld [vmem:[#allocation2 + $0xb0] sm:$0x1]
      %v1196 = vld [vmem:[#allocation2 + $0xb4] sm:$0xf]
      %v1197 = vld [vmem:[#allocation2 + $0xb8] sm:$0xf]
      %v1198 = vld [vmem:[#allocation2 + $0xbc] sm:$0x1]
      %vm1199 = vsmask.f32 3328
      %vm1200 = vsmask.f32 7440
      %vm1201 = vmor %vm1199, %vm1200
      %v1203 = vshrl.u32 %v1151, 16
      %v1205 = vrot.slane %v1203, 4
      %v1206 = vshll.u32 %v1151, 16
      %v1208 = vrot.slane %v1206, 5
      %v1209 = vor.u32 %v1205, %v1208
      %v1210 = vrot.slane %v1209, 4
      %v1212 = vshll.u32 %v1152, 16
      %v1214 = vrot.slane %v1212, 5
      %v1215 = vsel %vm1201, %v1210, %v1214
      %v1216 = vshrl.u32 %v1152, 16
      %v1218 = vrot.slane %v1216, 4
      %v1219 = vor.u32 %v1218, %v1214
      %v1220 = vrot.slane %v1219, 4
      %v1222 = vshll.u32 %v1153, 16
      %v1224 = vrot.slane %v1222, 5
      %v1225 = vsel %vm1201, %v1220, %v1224
      %v1227 = vshrl.u32 %v1154, 16
      %v1229 = vrot.slane %v1227, 4
      %v1230 = vshll.u32 %v1154, 16
      %v1232 = vrot.slane %v1230, 5
      %v1233 = vor.u32 %v1229, %v1232
      %v1234 = vrot.slane %v1233, 4
      %v1236 = vshll.u32 %v1155, 16
      %v1238 = vrot.slane %v1236, 5
      %v1239 = vsel %vm1201, %v1234, %v1238
      %v1240 = vshrl.u32 %v1155, 16
      %v1242 = vrot.slane %v1240, 4
      %v1243 = vor.u32 %v1242, %v1238
      %v1244 = vrot.slane %v1243, 4
      %v1246 = vshll.u32 %v1156, 16
      %v1248 = vrot.slane %v1246, 5
      %v1249 = vsel %vm1201, %v1244, %v1248
      %v1251 = vshrl.u32 %v1157, 16
      %v1253 = vrot.slane %v1251, 4
      %v1254 = vshll.u32 %v1157, 16
      %v1256 = vrot.slane %v1254, 5
      %v1257 = vor.u32 %v1253, %v1256
      %v1258 = vrot.slane %v1257, 4
      %v1260 = vshll.u32 %v1158, 16
      %v1262 = vrot.slane %v1260, 5
      %v1263 = vsel %vm1201, %v1258, %v1262
      %v1264 = vshrl.u32 %v1158, 16
      %v1266 = vrot.slane %v1264, 4
      %v1267 = vor.u32 %v1266, %v1262
      %v1268 = vrot.slane %v1267, 4
      %v1270 = vshll.u32 %v1159, 16
      %v1272 = vrot.slane %v1270, 5
      %v1273 = vsel %vm1201, %v1268, %v1272
      %v1275 = vshrl.u32 %v1160, 16
      %v1277 = vrot.slane %v1275, 4
      %v1278 = vshll.u32 %v1160, 16
      %v1280 = vrot.slane %v1278, 5
      %v1281 = vor.u32 %v1277, %v1280
      %v1282 = vrot.slane %v1281, 4
      %v1284 = vshll.u32 %v1161, 16
      %v1286 = vrot.slane %v1284, 5
      %v1287 = vsel %vm1201, %v1282, %v1286
      %v1288 = vshrl.u32 %v1161, 16
      %v1290 = vrot.slane %v1288, 4
      %v1291 = vor.u32 %v1290, %v1286
      %v1292 = vrot.slane %v1291, 4
      %v1294 = vshll.u32 %v1162, 16
      %v1296 = vrot.slane %v1294, 5
      %v1297 = vsel %vm1201, %v1292, %v1296
      %v1299 = vshrl.u32 %v1163, 16
      %v1301 = vrot.slane %v1299, 4
      %v1302 = vshll.u32 %v1163, 16
      %v1304 = vrot.slane %v1302, 5
      %v1305 = vor.u32 %v1301, %v1304
      %v1306 = vrot.slane %v1305, 4
      %v1308 = vshll.u32 %v1164, 16
      %v1310 = vrot.slane %v1308, 5
      %v1311 = vsel %vm1201, %v1306, %v1310
      %v1312 = vshrl.u32 %v1164, 16
      %v1314 = vrot.slane %v1312, 4
      %v1315 = vor.u32 %v1314, %v1310
      %v1316 = vrot.slane %v1315, 4
      %v1318 = vshll.u32 %v1165, 16
      %v1320 = vrot.slane %v1318, 5
      %v1321 = vsel %vm1201, %v1316, %v1320
      %v1323 = vshrl.u32 %v1166, 16
      %v1325 = vrot.slane %v1323, 4
      %v1326 = vshll.u32 %v1166, 16
      %v1328 = vrot.slane %v1326, 5
      %v1329 = vor.u32 %v1325, %v1328
      %v1330 = vrot.slane %v1329, 4
      %v1332 = vshll.u32 %v1167, 16
      %v1334 = vrot.slane %v1332, 5
      %v1335 = vsel %vm1201, %v1330, %v1334
      %v1336 = vshrl.u32 %v1167, 16
      %v1338 = vrot.slane %v1336, 4
      %v1339 = vor.u32 %v1338, %v1334
      %v1340 = vrot.slane %v1339, 4
      %v1342 = vshll.u32 %v1168, 16
      %v1344 = vrot.slane %v1342, 5
      %v1345 = vsel %vm1201, %v1340, %v1344
      %v1347 = vshrl.u32 %v1169, 16
      %v1349 = vrot.slane %v1347, 4
      %v1350 = vshll.u32 %v1169, 16
      %v1352 = vrot.slane %v1350, 5
      %v1353 = vor.u32 %v1349, %v1352
      %v1354 = vrot.slane %v1353, 4
      %v1356 = vshll.u32 %v1170, 16
      %v1358 = vrot.slane %v1356, 5
      %v1359 = vsel %vm1201, %v1354, %v1358
      %v1360 = vshrl.u32 %v1170, 16
      %v1362 = vrot.slane %v1360, 4
      %v1363 = vor.u32 %v1362, %v1358
      %v1364 = vrot.slane %v1363, 4
      %v1366 = vshll.u32 %v1171, 16
      %v1368 = vrot.slane %v1366, 5
      %v1369 = vsel %vm1201, %v1364, %v1368
      %v1371 = vshrl.u32 %v1172, 16
      %v1373 = vrot.slane %v1371, 4
      %v1374 = vshll.u32 %v1172, 16
      %v1376 = vrot.slane %v1374, 5
      %v1377 = vor.u32 %v1373, %v1376
      %v1378 = vrot.slane %v1377, 4
      %v1380 = vshll.u32 %v1173, 16
      %v1382 = vrot.slane %v1380, 5
      %v1383 = vsel %vm1201, %v1378, %v1382
      %v1384 = vshrl.u32 %v1173, 16
      %v1386 = vrot.slane %v1384, 4
      %v1387 = vor.u32 %v1386, %v1382
      %v1388 = vrot.slane %v1387, 4
      %v1390 = vshll.u32 %v1174, 16
      %v1392 = vrot.slane %v1390, 5
      %v1393 = vsel %vm1201, %v1388, %v1392
      %v1395 = vshrl.u32 %v1175, 16
      %v1397 = vrot.slane %v1395, 4
      %v1398 = vshll.u32 %v1175, 16
      %v1400 = vrot.slane %v1398, 5
      %v1401 = vor.u32 %v1397, %v1400
      %v1402 = vrot.slane %v1401, 4
      %v1404 = vshll.u32 %v1176, 16
      %v1406 = vrot.slane %v1404, 5
      %v1407 = vsel %vm1201, %v1402, %v1406
      %v1408 = vshrl.u32 %v1176, 16
      %v1410 = vrot.slane %v1408, 4
      %v1411 = vor.u32 %v1410, %v1406
      %v1412 = vrot.slane %v1411, 4
      %v1414 = vshll.u32 %v1177, 16
      %v1416 = vrot.slane %v1414, 5
      %v1417 = vsel %vm1201, %v1412, %v1416
      %v1419 = vshrl.u32 %v1178, 16
      %v1421 = vrot.slane %v1419, 4
      %v1422 = vshll.u32 %v1178, 16
      %v1424 = vrot.slane %v1422, 5
      %v1425 = vor.u32 %v1421, %v1424
      %v1426 = vrot.slane %v1425, 4
      %v1428 = vshll.u32 %v1179, 16
      %v1430 = vrot.slane %v1428, 5
      %v1431 = vsel %vm1201, %v1426, %v1430
      %v1432 = vshrl.u32 %v1179, 16
      %v1434 = vrot.slane %v1432, 4
      %v1435 = vor.u32 %v1434, %v1430
      %v1436 = vrot.slane %v1435, 4
      %v1438 = vshll.u32 %v1180, 16
      %v1440 = vrot.slane %v1438, 5
      %v1441 = vsel %vm1201, %v1436, %v1440
      %v1443 = vshrl.u32 %v1181, 16
      %v1445 = vrot.slane %v1443, 4
      %v1446 = vshll.u32 %v1181, 16
      %v1448 = vrot.slane %v1446, 5
      %v1449 = vor.u32 %v1445, %v1448
      %v1450 = vrot.slane %v1449, 4
      %v1452 = vshll.u32 %v1182, 16
      %v1454 = vrot.slane %v1452, 5
      %v1455 = vsel %vm1201, %v1450, %v1454
      %v1456 = vshrl.u32 %v1182, 16
      %v1458 = vrot.slane %v1456, 4
      %v1459 = vor.u32 %v1458, %v1454
      %v1460 = vrot.slane %v1459, 4
      %v1462 = vshll.u32 %v1183, 16
      %v1464 = vrot.slane %v1462, 5
      %v1465 = vsel %vm1201, %v1460, %v1464
      %v1467 = vshrl.u32 %v1184, 16
      %v1469 = vrot.slane %v1467, 4
      %v1470 = vshll.u32 %v1184, 16
      %v1472 = vrot.slane %v1470, 5
      %v1473 = vor.u32 %v1469, %v1472
      %v1474 = vrot.slane %v1473, 4
      %v1476 = vshll.u32 %v1185, 16
      %v1478 = vrot.slane %v1476, 5
      %v1479 = vsel %vm1201, %v1474, %v1478
      %v1480 = vshrl.u32 %v1185, 16
      %v1482 = vrot.slane %v1480, 4
      %v1483 = vor.u32 %v1482, %v1478
      %v1484 = vrot.slane %v1483, 4
      %v1486 = vshll.u32 %v1186, 16
      %v1488 = vrot.slane %v1486, 5
      %v1489 = vsel %vm1201, %v1484, %v1488
      %v1491 = vshrl.u32 %v1187, 16
      %v1493 = vrot.slane %v1491, 4
      %v1494 = vshll.u32 %v1187, 16
      %v1496 = vrot.slane %v1494, 5
      %v1497 = vor.u32 %v1493, %v1496
      %v1498 = vrot.slane %v1497, 4
      %v1500 = vshll.u32 %v1188, 16
      %v1502 = vrot.slane %v1500, 5
      %v1503 = vsel %vm1201, %v1498, %v1502
      %v1504 = vshrl.u32 %v1188, 16
      %v1506 = vrot.slane %v1504, 4
      %v1507 = vor.u32 %v1506, %v1502
      %v1508 = vrot.slane %v1507, 4
      %v1510 = vshll.u32 %v1189, 16
      %v1512 = vrot.slane %v1510, 5
      %v1513 = vsel %vm1201, %v1508, %v1512
      %v1515 = vshrl.u32 %v1190, 16
      %v1517 = vrot.slane %v1515, 4
      %v1518 = vshll.u32 %v1190, 16
      %v1520 = vrot.slane %v1518, 5
      %v1521 = vor.u32 %v1517, %v1520
      %v1522 = vrot.slane %v1521, 4
      %v1524 = vshll.u32 %v1191, 16
      %v1526 = vrot.slane %v1524, 5
      %v1527 = vsel %vm1201, %v1522, %v1526
      %v1528 = vshrl.u32 %v1191, 16
      %v1530 = vrot.slane %v1528, 4
      %v1531 = vor.u32 %v1530, %v1526
      %v1532 = vrot.slane %v1531, 4
      %v1534 = vshll.u32 %v1192, 16
      %v1536 = vrot.slane %v1534, 5
      %v1537 = vsel %vm1201, %v1532, %v1536
      %v1539 = vshrl.u32 %v1193, 16
      %v1541 = vrot.slane %v1539, 4
      %v1542 = vshll.u32 %v1193, 16
      %v1544 = vrot.slane %v1542, 5
      %v1545 = vor.u32 %v1541, %v1544
      %v1546 = vrot.slane %v1545, 4
      %v1548 = vshll.u32 %v1194, 16
      %v1550 = vrot.slane %v1548, 5
      %v1551 = vsel %vm1201, %v1546, %v1550
      %v1552 = vshrl.u32 %v1194, 16
      %v1554 = vrot.slane %v1552, 4
      %v1555 = vor.u32 %v1554, %v1550
      %v1556 = vrot.slane %v1555, 4
      %v1558 = vshll.u32 %v1195, 16
      %v1560 = vrot.slane %v1558, 5
      %v1561 = vsel %vm1201, %v1556, %v1560
      %v1563 = vshrl.u32 %v1196, 16
      %v1565 = vrot.slane %v1563, 4
      %v1566 = vshll.u32 %v1196, 16
      %v1568 = vrot.slane %v1566, 5
      %v1569 = vor.u32 %v1565, %v1568
      %v1570 = vrot.slane %v1569, 4
      %v1572 = vshll.u32 %v1197, 16
      %v1574 = vrot.slane %v1572, 5
      %v1575 = vsel %vm1201, %v1570, %v1574
      %v1576 = vshrl.u32 %v1197, 16
      %v1578 = vrot.slane %v1576, 4
      %v1579 = vor.u32 %v1578, %v1574
      %v1580 = vrot.slane %v1579, 4
      %v1582 = vshll.u32 %v1198, 16
      %v1584 = vrot.slane %v1582, 5
      %v1585 = vsel %vm1201, %v1580, %v1584
      %1586 = vrot.lane.b32.xlu0 %v1215, 4
      %v1587 = vpop.permute.xlu0 %1586
      %1588 = vrot.lane.b32.xlu0 %v1225, 4
      %v1589 = vpop.permute.xlu0 %1588
      %1590 = vrot.lane.b32.xlu0 %v1239, 4
      %v1591 = vpop.permute.xlu0 %1590
      %1592 = vrot.lane.b32.xlu0 %v1249, 4
      %v1593 = vpop.permute.xlu0 %1592
      %1594 = vrot.lane.b32.xlu0 %v1263, 4
      %v1595 = vpop.permute.xlu0 %1594
      %1596 = vrot.lane.b32.xlu0 %v1273, 4
      %v1597 = vpop.permute.xlu0 %1596
      %1598 = vrot.lane.b32.xlu0 %v1287, 4
      %v1599 = vpop.permute.xlu0 %1598
      %1600 = vrot.lane.b32.xlu0 %v1297, 4
      %v1601 = vpop.permute.xlu0 %1600
      %1602 = vrot.lane.b32.xlu0 %v1311, 4
      %v1603 = vpop.permute.xlu0 %1602
      %1604 = vrot.lane.b32.xlu0 %v1321, 4
      %v1605 = vpop.permute.xlu0 %1604
      %1606 = vrot.lane.b32.xlu0 %v1335, 4
      %v1607 = vpop.permute.xlu0 %1606
      %1608 = vrot.lane.b32.xlu0 %v1345, 4
      %v1609 = vpop.permute.xlu0 %1608
      %1610 = vrot.lane.b32.xlu0 %v1359, 4
      %v1611 = vpop.permute.xlu0 %1610
      %1612 = vrot.lane.b32.xlu0 %v1369, 4
      %v1613 = vpop.permute.xlu0 %1612
      %1614 = vrot.lane.b32.xlu0 %v1383, 4
      %v1615 = vpop.permute.xlu0 %1614
      %1616 = vrot.lane.b32.xlu0 %v1393, 4
      %v1617 = vpop.permute.xlu0 %1616
      %1618 = vrot.lane.b32.xlu0 %v1407, 4
      %v1619 = vpop.permute.xlu0 %1618
      %1620 = vrot.lane.b32.xlu0 %v1417, 4
      %v1621 = vpop.permute.xlu0 %1620
      %1622 = vrot.lane.b32.xlu0 %v1431, 4
      %v1623 = vpop.permute.xlu0 %1622
      %1624 = vrot.lane.b32.xlu0 %v1441, 4
      %v1625 = vpop.permute.xlu0 %1624
      %1626 = vrot.lane.b32.xlu0 %v1455, 4
      %v1627 = vpop.permute.xlu0 %1626
      %1628 = vrot.lane.b32.xlu0 %v1465, 4
      %v1629 = vpop.permute.xlu0 %1628
      %1630 = vrot.lane.b32.xlu0 %v1479, 4
      %v1631 = vpop.permute.xlu0 %1630
      %1632 = vrot.lane.b32.xlu0 %v1489, 4
      %v1633 = vpop.permute.xlu0 %1632
      %1634 = vrot.lane.b32.xlu0 %v1503, 4
      %v1635 = vpop.permute.xlu0 %1634
      %1636 = vrot.lane.b32.xlu0 %v1513, 4
      %v1637 = vpop.permute.xlu0 %1636
      %1638 = vrot.lane.b32.xlu0 %v1527, 4
      %v1639 = vpop.permute.xlu0 %1638
      %1640 = vrot.lane.b32.xlu0 %v1537, 4
      %v1641 = vpop.permute.xlu0 %1640
      %1642 = vrot.lane.b32.xlu0 %v1551, 4
      %v1643 = vpop.permute.xlu0 %1642
      %1644 = vrot.lane.b32.xlu0 %v1561, 4
      %v1645 = vpop.permute.xlu0 %1644
      %1646 = vrot.lane.b32.xlu0 %v1575, 4
      %v1647 = vpop.permute.xlu0 %1646
      %1648 = vrot.lane.b32.xlu0 %v1585, 4
      %v1649 = vpop.permute.xlu0 %1648
      %vm1682 = vcmask 60448
      %1683 = vst.msk [vmem:[#allocation3] sm:$0xf] %vm1682, %v1587
      %1684 = vst.msk [vmem:[#allocation3 + $0x4] sm:$0xf] %vm1682, %v1589
      %1685 = vst.msk [vmem:[#allocation3 + $0x8] sm:$0xf] %vm1682, %v1591
      %1686 = vst.msk [vmem:[#allocation3 + $0xc] sm:$0xf] %vm1682, %v1593
      %1687 = vst.msk [vmem:[#allocation3 + $0x10] sm:$0xf] %vm1682, %v1595
      %1688 = vst.msk [vmem:[#allocation3 + $0x14] sm:$0xf] %vm1682, %v1597
      %1689 = vst.msk [vmem:[#allocation3 + $0x18] sm:$0xf] %vm1682, %v1599
      %1690 = vst.msk [vmem:[#allocation3 + $0x1c] sm:$0xf] %vm1682, %v1601
      %1691 = vst.msk [vmem:[#allocation3 + $0x20] sm:$0xf] %vm1682, %v1603
      %1692 = vst.msk [vmem:[#allocation3 + $0x24] sm:$0xf] %vm1682, %v1605
      %1693 = vst.msk [vmem:[#allocation3 + $0x28] sm:$0xf] %vm1682, %v1607
      %1694 = vst.msk [vmem:[#allocation3 + $0x2c] sm:$0xf] %vm1682, %v1609
      %1695 = vst.msk [vmem:[#allocation3 + $0x30] sm:$0xf] %vm1682, %v1611
      %1696 = vst.msk [vmem:[#allocation3 + $0x34] sm:$0xf] %vm1682, %v1613
      %1697 = vst.msk [vmem:[#allocation3 + $0x38] sm:$0xf] %vm1682, %v1615
      %1698 = vst.msk [vmem:[#allocation3 + $0x3c] sm:$0xf] %vm1682, %v1617
      %1699 = vst.msk [vmem:[#allocation3 + $0x40] sm:$0xf] %vm1682, %v1619
      %1700 = vst.msk [vmem:[#allocation3 + $0x44] sm:$0xf] %vm1682, %v1621
      %1701 = vst.msk [vmem:[#allocation3 + $0x48] sm:$0xf] %vm1682, %v1623
      %1702 = vst.msk [vmem:[#allocation3 + $0x4c] sm:$0xf] %vm1682, %v1625
      %1703 = vst.msk [vmem:[#allocation3 + $0x50] sm:$0xf] %vm1682, %v1627
      %1704 = vst.msk [vmem:[#allocation3 + $0x54] sm:$0xf] %vm1682, %v1629
      %1705 = vst.msk [vmem:[#allocation3 + $0x58] sm:$0xf] %vm1682, %v1631
      %1706 = vst.msk [vmem:[#allocation3 + $0x5c] sm:$0xf] %vm1682, %v1633
      %1707 = vst.msk [vmem:[#allocation3 + $0x60] sm:$0xf] %vm1682, %v1635
      %1708 = vst.msk [vmem:[#allocation3 + $0x64] sm:$0xf] %vm1682, %v1637
      %1709 = vst.msk [vmem:[#allocation3 + $0x68] sm:$0xf] %vm1682, %v1639
      %1710 = vst.msk [vmem:[#allocation3 + $0x6c] sm:$0xf] %vm1682, %v1641
      %1711 = vst.msk [vmem:[#allocation3 + $0x70] sm:$0xf] %vm1682, %v1643
      %1712 = vst.msk [vmem:[#allocation3 + $0x74] sm:$0xf] %vm1682, %v1645
      %1713 = vst.msk [vmem:[#allocation3 + $0x78] sm:$0xf] %vm1682, %v1647
      %1714 = vst.msk [vmem:[#allocation3 + $0x7c] sm:$0xf] %vm1682, %v1649
      %v1715 = vld [vmem:[#allocation2] sm:$0xe]
      %v1716 = vld [vmem:[#allocation2 + $0x4] sm:$0xf]
      %v1717 = vld [vmem:[#allocation2 + $0x8] sm:$0x1]
      %v1718 = vld [vmem:[#allocation2 + $0xc] sm:$0xe]
      %v1719 = vld [vmem:[#allocation2 + $0x10] sm:$0xf]
      %v1720 = vld [vmem:[#allocation2 + $0x14] sm:$0x1]
      %v1721 = vld [vmem:[#allocation2 + $0x18] sm:$0xe]
      %v1722 = vld [vmem:[#allocation2 + $0x1c] sm:$0xf]
      %v1723 = vld [vmem:[#allocation2 + $0x20] sm:$0x1]
      %v1724 = vld [vmem:[#allocation2 + $0x24] sm:$0xe]
      %v1725 = vld [vmem:[#allocation2 + $0x28] sm:$0xf]
      %v1726 = vld [vmem:[#allocation2 + $0x2c] sm:$0x1]
      %v1727 = vld [vmem:[#allocation2 + $0x30] sm:$0xe]
      %v1728 = vld [vmem:[#allocation2 + $0x34] sm:$0xf]
      %v1729 = vld [vmem:[#allocation2 + $0x38] sm:$0x1]
      %v1730 = vld [vmem:[#allocation2 + $0x3c] sm:$0xe]
      %v1731 = vld [vmem:[#allocation2 + $0x40] sm:$0xf]
      %v1732 = vld [vmem:[#allocation2 + $0x44] sm:$0x1]
      %v1733 = vld [vmem:[#allocation2 + $0x48] sm:$0xe]
      %v1734 = vld [vmem:[#allocation2 + $0x4c] sm:$0xf]
      %v1735 = vld [vmem:[#allocation2 + $0x50] sm:$0x1]
      %v1736 = vld [vmem:[#allocation2 + $0x54] sm:$0xe]
      %v1737 = vld [vmem:[#allocation2 + $0x58] sm:$0xf]
      %v1738 = vld [vmem:[#allocation2 + $0x5c] sm:$0x1]
      %v1739 = vld [vmem:[#allocation2 + $0x60] sm:$0xe]
      %v1740 = vld [vmem:[#allocation2 + $0x64] sm:$0xf]
      %v1741 = vld [vmem:[#allocation2 + $0x68] sm:$0x1]
      %v1742 = vld [vmem:[#allocation2 + $0x6c] sm:$0xe]
      %v1743 = vld [vmem:[#allocation2 + $0x70] sm:$0xf]
      %v1744 = vld [vmem:[#allocation2 + $0x74] sm:$0x1]
      %v1745 = vld [vmem:[#allocation2 + $0x78] sm:$0xe]
      %v1746 = vld [vmem:[#allocation2 + $0x7c] sm:$0xf]
      %v1747 = vld [vmem:[#allocation2 + $0x80] sm:$0x1]
      %v1748 = vld [vmem:[#allocation2 + $0x84] sm:$0xe]
      %v1749 = vld [vmem:[#allocation2 + $0x88] sm:$0xf]
      %v1750 = vld [vmem:[#allocation2 + $0x8c] sm:$0x1]
      %v1751 = vld [vmem:[#allocation2 + $0x90] sm:$0xe]
      %v1752 = vld [vmem:[#allocation2 + $0x94] sm:$0xf]
      %v1753 = vld [vmem:[#allocation2 + $0x98] sm:$0x1]
      %v1754 = vld [vmem:[#allocation2 + $0x9c] sm:$0xe]
      %v1755 = vld [vmem:[#allocation2 + $0xa0] sm:$0xf]
      %v1756 = vld [vmem:[#allocation2 + $0xa4] sm:$0x1]
      %v1757 = vld [vmem:[#allocation2 + $0xa8] sm:$0xe]
      %v1758 = vld [vmem:[#allocation2 + $0xac] sm:$0xf]
      %v1759 = vld [vmem:[#allocation2 + $0xb0] sm:$0x1]
      %v1760 = vld [vmem:[#allocation2 + $0xb4] sm:$0xe]
      %v1761 = vld [vmem:[#allocation2 + $0xb8] sm:$0xf]
      %v1762 = vld [vmem:[#allocation2 + $0xbc] sm:$0x1]
      %vm1811 = vcmask 1042432
      %vm1812 = vcmask 1046532
      %vm1813 = vmor %vm1811, %vm1812
      %v1814 = vrot.slane %v1715, 5
      %v1815 = vrot.slane %v1814, 4
      %v1816 = vrot.slane %v1716, 5
      %v1817 = vsel %vm1813, %v1815, %v1816
      %v1818 = vrot.slane %v1816, 4
      %v1819 = vrot.slane %v1717, 5
      %v1820 = vsel %vm1813, %v1818, %v1819
      %v1821 = vrot.slane %v1718, 5
      %v1822 = vrot.slane %v1821, 4
      %v1823 = vrot.slane %v1719, 5
      %v1824 = vsel %vm1813, %v1822, %v1823
      %v1825 = vrot.slane %v1823, 4
      %v1826 = vrot.slane %v1720, 5
      %v1827 = vsel %vm1813, %v1825, %v1826
      %v1828 = vrot.slane %v1721, 5
      %v1829 = vrot.slane %v1828, 4
      %v1830 = vrot.slane %v1722, 5
      %v1831 = vsel %vm1813, %v1829, %v1830
      %v1832 = vrot.slane %v1830, 4
      %v1833 = vrot.slane %v1723, 5
      %v1834 = vsel %vm1813, %v1832, %v1833
      %v1835 = vrot.slane %v1724, 5
      %v1836 = vrot.slane %v1835, 4
      %v1837 = vrot.slane %v1725, 5
      %v1838 = vsel %vm1813, %v1836, %v1837
      %v1839 = vrot.slane %v1837, 4
      %v1840 = vrot.slane %v1726, 5
      %v1841 = vsel %vm1813, %v1839, %v1840
      %v1842 = vrot.slane %v1727, 5
      %v1843 = vrot.slane %v1842, 4
      %v1844 = vrot.slane %v1728, 5
      %v1845 = vsel %vm1813, %v1843, %v1844
      %v1846 = vrot.slane %v1844, 4
      %v1847 = vrot.slane %v1729, 5
      %v1848 = vsel %vm1813, %v1846, %v1847
      %v1849 = vrot.slane %v1730, 5
      %v1850 = vrot.slane %v1849, 4
      %v1851 = vrot.slane %v1731, 5
      %v1852 = vsel %vm1813, %v1850, %v1851
      %v1853 = vrot.slane %v1851, 4
      %v1854 = vrot.slane %v1732, 5
      %v1855 = vsel %vm1813, %v1853, %v1854
      %v1856 = vrot.slane %v1733, 5
      %v1857 = vrot.slane %v1856, 4
      %v1858 = vrot.slane %v1734, 5
      %v1859 = vsel %vm1813, %v1857, %v1858
      %v1860 = vrot.slane %v1858, 4
      %v1861 = vrot.slane %v1735, 5
      %v1862 = vsel %vm1813, %v1860, %v1861
      %v1863 = vrot.slane %v1736, 5
      %v1864 = vrot.slane %v1863, 4
      %v1865 = vrot.slane %v1737, 5
      %v1866 = vsel %vm1813, %v1864, %v1865
      %v1867 = vrot.slane %v1865, 4
      %v1868 = vrot.slane %v1738, 5
      %v1869 = vsel %vm1813, %v1867, %v1868
      %v1870 = vrot.slane %v1739, 5
      %v1871 = vrot.slane %v1870, 4
      %v1872 = vrot.slane %v1740, 5
      %v1873 = vsel %vm1813, %v1871, %v1872
      %v1874 = vrot.slane %v1872, 4
      %v1875 = vrot.slane %v1741, 5
      %v1876 = vsel %vm1813, %v1874, %v1875
      %v1877 = vrot.slane %v1742, 5
      %v1878 = vrot.slane %v1877, 4
      %v1879 = vrot.slane %v1743, 5
      %v1880 = vsel %vm1813, %v1878, %v1879
      %v1881 = vrot.slane %v1879, 4
      %v1882 = vrot.slane %v1744, 5
      %v1883 = vsel %vm1813, %v1881, %v1882
      %v1884 = vrot.slane %v1745, 5
      %v1885 = vrot.slane %v1884, 4
      %v1886 = vrot.slane %v1746, 5
      %v1887 = vsel %vm1813, %v1885, %v1886
      %v1888 = vrot.slane %v1886, 4
      %v1889 = vrot.slane %v1747, 5
      %v1890 = vsel %vm1813, %v1888, %v1889
      %v1891 = vrot.slane %v1748, 5
      %v1892 = vrot.slane %v1891, 4
      %v1893 = vrot.slane %v1749, 5
      %v1894 = vsel %vm1813, %v1892, %v1893
      %v1895 = vrot.slane %v1893, 4
      %v1896 = vrot.slane %v1750, 5
      %v1897 = vsel %vm1813, %v1895, %v1896
      %v1898 = vrot.slane %v1751, 5
      %v1899 = vrot.slane %v1898, 4
      %v1900 = vrot.slane %v1752, 5
      %v1901 = vsel %vm1813, %v1899, %v1900
      %v1902 = vrot.slane %v1900, 4
      %v1903 = vrot.slane %v1753, 5
      %v1904 = vsel %vm1813, %v1902, %v1903
      %v1905 = vrot.slane %v1754, 5
      %v1906 = vrot.slane %v1905, 4
      %v1907 = vrot.slane %v1755, 5
      %v1908 = vsel %vm1813, %v1906, %v1907
      %v1909 = vrot.slane %v1907, 4
      %v1910 = vrot.slane %v1756, 5
      %v1911 = vsel %vm1813, %v1909, %v1910
      %v1912 = vrot.slane %v1757, 5
      %v1913 = vrot.slane %v1912, 4
      %v1914 = vrot.slane %v1758, 5
      %v1915 = vsel %vm1813, %v1913, %v1914
      %v1916 = vrot.slane %v1914, 4
      %v1917 = vrot.slane %v1759, 5
      %v1918 = vsel %vm1813, %v1916, %v1917
      %v1919 = vrot.slane %v1760, 5
      %v1920 = vrot.slane %v1919, 4
      %v1921 = vrot.slane %v1761, 5
      %v1922 = vsel %vm1813, %v1920, %v1921
      %v1923 = vrot.slane %v1921, 4
      %v1924 = vrot.slane %v1762, 5
      %v1925 = vsel %vm1813, %v1923, %v1924
      %1926 = vrot.lane.b32.xlu0 %v1817, 8
      %v1927 = vpop.permute.xlu0 %1926
      %1928 = vrot.lane.b32.xlu0 %v1820, 8
      %v1929 = vpop.permute.xlu0 %1928
      %1930 = vrot.lane.b32.xlu0 %v1824, 8
      %v1931 = vpop.permute.xlu0 %1930
      %1932 = vrot.lane.b32.xlu0 %v1827, 8
      %v1933 = vpop.permute.xlu0 %1932
      %1934 = vrot.lane.b32.xlu0 %v1831, 8
      %v1935 = vpop.permute.xlu0 %1934
      %1936 = vrot.lane.b32.xlu0 %v1834, 8
      %v1937 = vpop.permute.xlu0 %1936
      %1938 = vrot.lane.b32.xlu0 %v1838, 8
      %v1939 = vpop.permute.xlu0 %1938
      %1940 = vrot.lane.b32.xlu0 %v1841, 8
      %v1941 = vpop.permute.xlu0 %1940
      %1942 = vrot.lane.b32.xlu0 %v1845, 8
      %v1943 = vpop.permute.xlu0 %1942
      %1944 = vrot.lane.b32.xlu0 %v1848, 8
      %v1945 = vpop.permute.xlu0 %1944
      %1946 = vrot.lane.b32.xlu0 %v1852, 8
      %v1947 = vpop.permute.xlu0 %1946
      %1948 = vrot.lane.b32.xlu0 %v1855, 8
      %v1949 = vpop.permute.xlu0 %1948
      %1950 = vrot.lane.b32.xlu0 %v1859, 8
      %v1951 = vpop.permute.xlu0 %1950
      %1952 = vrot.lane.b32.xlu0 %v1862, 8
      %v1953 = vpop.permute.xlu0 %1952
      %1954 = vrot.lane.b32.xlu0 %v1866, 8
      %v1955 = vpop.permute.xlu0 %1954
      %1956 = vrot.lane.b32.xlu0 %v1869, 8
      %v1957 = vpop.permute.xlu0 %1956
      %1958 = vrot.lane.b32.xlu0 %v1873, 8
      %v1959 = vpop.permute.xlu0 %1958
      %1960 = vrot.lane.b32.xlu0 %v1876, 8
      %v1961 = vpop.permute.xlu0 %1960
      %1962 = vrot.lane.b32.xlu0 %v1880, 8
      %v1963 = vpop.permute.xlu0 %1962
      %1964 = vrot.lane.b32.xlu0 %v1883, 8
      %v1965 = vpop.permute.xlu0 %1964
      %1966 = vrot.lane.b32.xlu0 %v1887, 8
      %v1967 = vpop.permute.xlu0 %1966
      %1968 = vrot.lane.b32.xlu0 %v1890, 8
      %v1969 = vpop.permute.xlu0 %1968
      %1970 = vrot.lane.b32.xlu0 %v1894, 8
      %v1971 = vpop.permute.xlu0 %1970
      %1972 = vrot.lane.b32.xlu0 %v1897, 8
      %v1973 = vpop.permute.xlu0 %1972
      %1974 = vrot.lane.b32.xlu0 %v1901, 8
      %v1975 = vpop.permute.xlu0 %1974
      %1976 = vrot.lane.b32.xlu0 %v1904, 8
      %v1977 = vpop.permute.xlu0 %1976
      %1978 = vrot.lane.b32.xlu0 %v1908, 8
      %v1979 = vpop.permute.xlu0 %1978
      %1980 = vrot.lane.b32.xlu0 %v1911, 8
      %v1981 = vpop.permute.xlu0 %1980
      %1982 = vrot.lane.b32.xlu0 %v1915, 8
      %v1983 = vpop.permute.xlu0 %1982
      %1984 = vrot.lane.b32.xlu0 %v1918, 8
      %v1985 = vpop.permute.xlu0 %1984
      %1986 = vrot.lane.b32.xlu0 %v1922, 8
      %v1987 = vpop.permute.xlu0 %1986
      %1988 = vrot.lane.b32.xlu0 %v1925, 8
      %v1989 = vpop.permute.xlu0 %1988
      %vm2022 = vcmask 93248
      %2023 = vst.msk [vmem:[#allocation3] sm:$0xf] %vm2022, %v1927
      %2024 = vst.msk [vmem:[#allocation3 + $0x4] sm:$0xf] %vm2022, %v1929
      %2025 = vst.msk [vmem:[#allocation3 + $0x8] sm:$0xf] %vm2022, %v1931
      %2026 = vst.msk [vmem:[#allocation3 + $0xc] sm:$0xf] %vm2022, %v1933
      %2027 = vst.msk [vmem:[#allocation3 + $0x10] sm:$0xf] %vm2022, %v1935
      %2028 = vst.msk [vmem:[#allocation3 + $0x14] sm:$0xf] %vm2022, %v1937
      %2029 = vst.msk [vmem:[#allocation3 + $0x18] sm:$0xf] %vm2022, %v1939
      %2030 = vst.msk [vmem:[#allocation3 + $0x1c] sm:$0xf] %vm2022, %v1941
      %2031 = vst.msk [vmem:[#allocation3 + $0x20] sm:$0xf] %vm2022, %v1943
      %2032 = vst.msk [vmem:[#allocation3 + $0x24] sm:$0xf] %vm2022, %v1945
      %2033 = vst.msk [vmem:[#allocation3 + $0x28] sm:$0xf] %vm2022, %v1947
      %2034 = vst.msk [vmem:[#allocation3 + $0x2c] sm:$0xf] %vm2022, %v1949
      %2035 = vst.msk [vmem:[#allocation3 + $0x30] sm:$0xf] %vm2022, %v1951
      %2036 = vst.msk [vmem:[#allocation3 + $0x34] sm:$0xf] %vm2022, %v1953
      %2037 = vst.msk [vmem:[#allocation3 + $0x38] sm:$0xf] %vm2022, %v1955
      %2038 = vst.msk [vmem:[#allocation3 + $0x3c] sm:$0xf] %vm2022, %v1957
      %2039 = vst.msk [vmem:[#allocation3 + $0x40] sm:$0xf] %vm2022, %v1959
      %2040 = vst.msk [vmem:[#allocation3 + $0x44] sm:$0xf] %vm2022, %v1961
      %2041 = vst.msk [vmem:[#allocation3 + $0x48] sm:$0xf] %vm2022, %v1963
      %2042 = vst.msk [vmem:[#allocation3 + $0x4c] sm:$0xf] %vm2022, %v1965
      %2043 = vst.msk [vmem:[#allocation3 + $0x50] sm:$0xf] %vm2022, %v1967
      %2044 = vst.msk [vmem:[#allocation3 + $0x54] sm:$0xf] %vm2022, %v1969
      %2045 = vst.msk [vmem:[#allocation3 + $0x58] sm:$0xf] %vm2022, %v1971
      %2046 = vst.msk [vmem:[#allocation3 + $0x5c] sm:$0xf] %vm2022, %v1973
      %2047 = vst.msk [vmem:[#allocation3 + $0x60] sm:$0xf] %vm2022, %v1975
      %2048 = vst.msk [vmem:[#allocation3 + $0x64] sm:$0xf] %vm2022, %v1977
      %2049 = vst.msk [vmem:[#allocation3 + $0x68] sm:$0xf] %vm2022, %v1979
      %2050 = vst.msk [vmem:[#allocation3 + $0x6c] sm:$0xf] %vm2022, %v1981
      %2051 = vst.msk [vmem:[#allocation3 + $0x70] sm:$0xf] %vm2022, %v1983
      %2052 = vst.msk [vmem:[#allocation3 + $0x74] sm:$0xf] %vm2022, %v1985
      %2053 = vst.msk [vmem:[#allocation3 + $0x78] sm:$0xf] %vm2022, %v1987
      %2054 = vst.msk [vmem:[#allocation3 + $0x7c] sm:$0xf] %vm2022, %v1989
      %v2055 = vld [vmem:[%s469] sm:$0xf]
      %v2056 = vld [vmem:[%s469 + $0x4] sm:$0xf]
      %v2057 = vld [vmem:[%s469 + $0xc] sm:$0xf]
      %v2058 = vld [vmem:[%s469 + $0x10] sm:$0xf]
      %v2059 = vld [vmem:[%s469 + $0x18] sm:$0xf]
      %v2060 = vld [vmem:[%s469 + $0x1c] sm:$0xf]
      %v2061 = vld [vmem:[%s469 + $0x24] sm:$0xf]
      %v2062 = vld [vmem:[%s469 + $0x28] sm:$0xf]
      %v2063 = vld [vmem:[%s469 + $0x30] sm:$0xf]
      %v2064 = vld [vmem:[%s469 + $0x34] sm:$0xf]
      %v2065 = vld [vmem:[%s469 + $0x3c] sm:$0xf]
      %v2066 = vld [vmem:[%s469 + $0x40] sm:$0xf]
      %v2067 = vld [vmem:[%s469 + $0x48] sm:$0xf]
      %v2068 = vld [vmem:[%s469 + $0x4c] sm:$0xf]
      %v2069 = vld [vmem:[%s469 + $0x54] sm:$0xf]
      %v2070 = vld [vmem:[%s469 + $0x58] sm:$0xf]
      %v2071 = vld [vmem:[%s469 + $0x60] sm:$0xf]
      %v2072 = vld [vmem:[%s469 + $0x64] sm:$0xf]
      %v2073 = vld [vmem:[%s469 + $0x6c] sm:$0xf]
      %v2074 = vld [vmem:[%s469 + $0x70] sm:$0xf]
      %v2075 = vld [vmem:[%s469 + $0x78] sm:$0xf]
      %v2076 = vld [vmem:[%s469 + $0x7c] sm:$0xf]
      %v2077 = vld [vmem:[%s469 + $0x84] sm:$0xf]
      %v2078 = vld [vmem:[%s469 + $0x88] sm:$0xf]
      %v2079 = vld [vmem:[%s469 + $0x90] sm:$0xf]
      %v2080 = vld [vmem:[%s469 + $0x94] sm:$0xf]
      %v2081 = vld [vmem:[%s469 + $0x9c] sm:$0xf]
      %v2082 = vld [vmem:[%s469 + $0xa0] sm:$0xf]
      %v2083 = vld [vmem:[%s469 + $0xa8] sm:$0xf]
      %v2084 = vld [vmem:[%s469 + $0xac] sm:$0xf]
      %v2085 = vld [vmem:[%s469 + $0xb4] sm:$0xf]
      %v2086 = vld [vmem:[%s469 + $0xb8] sm:$0xf]
      %2119 = vrot.lane.b32.xlu0 %v2055, 12
      %v2120 = vpop.permute.xlu0 %2119
      %2121 = vrot.lane.b32.xlu0 %v2056, 12
      %v2122 = vpop.permute.xlu0 %2121
      %2123 = vrot.lane.b32.xlu0 %v2057, 12
      %v2124 = vpop.permute.xlu0 %2123
      %2125 = vrot.lane.b32.xlu0 %v2058, 12
      %v2126 = vpop.permute.xlu0 %2125
      %2127 = vrot.lane.b32.xlu0 %v2059, 12
      %v2128 = vpop.permute.xlu0 %2127
      %2129 = vrot.lane.b32.xlu0 %v2060, 12
      %v2130 = vpop.permute.xlu0 %2129
      %2131 = vrot.lane.b32.xlu0 %v2061, 12
      %v2132 = vpop.permute.xlu0 %2131
      %2133 = vrot.lane.b32.xlu0 %v2062, 12
      %v2134 = vpop.permute.xlu0 %2133
      %2135 = vrot.lane.b32.xlu0 %v2063, 12
      %v2136 = vpop.permute.xlu0 %2135
      %2137 = vrot.lane.b32.xlu0 %v2064, 12
      %v2138 = vpop.permute.xlu0 %2137
      %2139 = vrot.lane.b32.xlu0 %v2065, 12
      %v2140 = vpop.permute.xlu0 %2139
      %2141 = vrot.lane.b32.xlu0 %v2066, 12
      %v2142 = vpop.permute.xlu0 %2141
      %2143 = vrot.lane.b32.xlu0 %v2067, 12
      %v2144 = vpop.permute.xlu0 %2143
      %2145 = vrot.lane.b32.xlu0 %v2068, 12
      %v2146 = vpop.permute.xlu0 %2145
      %2147 = vrot.lane.b32.xlu0 %v2069, 12
      %v2148 = vpop.permute.xlu0 %2147
      %2149 = vrot.lane.b32.xlu0 %v2070, 12
      %v2150 = vpop.permute.xlu0 %2149
      %2151 = vrot.lane.b32.xlu0 %v2071, 12
      %v2152 = vpop.permute.xlu0 %2151
      %2153 = vrot.lane.b32.xlu0 %v2072, 12
      %v2154 = vpop.permute.xlu0 %2153
      %2155 = vrot.lane.b32.xlu0 %v2073, 12
      %v2156 = vpop.permute.xlu0 %2155
      %2157 = vrot.lane.b32.xlu0 %v2074, 12
      %v2158 = vpop.permute.xlu0 %2157
      %2159 = vrot.lane.b32.xlu0 %v2075, 12
      %v2160 = vpop.permute.xlu0 %2159
      %2161 = vrot.lane.b32.xlu0 %v2076, 12
      %v2162 = vpop.permute.xlu0 %2161
      %2163 = vrot.lane.b32.xlu0 %v2077, 12
      %v2164 = vpop.permute.xlu0 %2163
      %2165 = vrot.lane.b32.xlu0 %v2078, 12
      %v2166 = vpop.permute.xlu0 %2165
      %2167 = vrot.lane.b32.xlu0 %v2079, 12
      %v2168 = vpop.permute.xlu0 %2167
      %2169 = vrot.lane.b32.xlu0 %v2080, 12
      %v2170 = vpop.permute.xlu0 %2169
      %2171 = vrot.lane.b32.xlu0 %v2081, 12
      %v2172 = vpop.permute.xlu0 %2171
      %2173 = vrot.lane.b32.xlu0 %v2082, 12
      %v2174 = vpop.permute.xlu0 %2173
      %2175 = vrot.lane.b32.xlu0 %v2083, 12
      %v2176 = vpop.permute.xlu0 %2175
      %2177 = vrot.lane.b32.xlu0 %v2084, 12
      %v2178 = vpop.permute.xlu0 %2177
      %2179 = vrot.lane.b32.xlu0 %v2085, 12
      %v2180 = vpop.permute.xlu0 %2179
      %2181 = vrot.lane.b32.xlu0 %v2086, 12
      %v2182 = vpop.permute.xlu0 %2181
      %vm2215 = vcmask 126048
      %2216 = vst.msk [vmem:[#allocation3] sm:$0xf] %vm2215, %v2120
      %2217 = vst.msk [vmem:[#allocation3 + $0x4] sm:$0xf] %vm2215, %v2122
      %2218 = vst.msk [vmem:[#allocation3 + $0x8] sm:$0xf] %vm2215, %v2124
      %2219 = vst.msk [vmem:[#allocation3 + $0xc] sm:$0xf] %vm2215, %v2126
      %2220 = vst.msk [vmem:[#allocation3 + $0x10] sm:$0xf] %vm2215, %v2128
      %2221 = vst.msk [vmem:[#allocation3 + $0x14] sm:$0xf] %vm2215, %v2130
      %2222 = vst.msk [vmem:[#allocation3 + $0x18] sm:$0xf] %vm2215, %v2132
      %2223 = vst.msk [vmem:[#allocation3 + $0x1c] sm:$0xf] %vm2215, %v2134
      %2224 = vst.msk [vmem:[#allocation3 + $0x20] sm:$0xf] %vm2215, %v2136
      %2225 = vst.msk [vmem:[#allocation3 + $0x24] sm:$0xf] %vm2215, %v2138
      %2226 = vst.msk [vmem:[#allocation3 + $0x28] sm:$0xf] %vm2215, %v2140
      %2227 = vst.msk [vmem:[#allocation3 + $0x2c] sm:$0xf] %vm2215, %v2142
      %2228 = vst.msk [vmem:[#allocation3 + $0x30] sm:$0xf] %vm2215, %v2144
      %2229 = vst.msk [vmem:[#allocation3 + $0x34] sm:$0xf] %vm2215, %v2146
      %2230 = vst.msk [vmem:[#allocation3 + $0x38] sm:$0xf] %vm2215, %v2148
      %2231 = vst.msk [vmem:[#allocation3 + $0x3c] sm:$0xf] %vm2215, %v2150
      %2232 = vst.msk [vmem:[#allocation3 + $0x40] sm:$0xf] %vm2215, %v2152
      %2233 = vst.msk [vmem:[#allocation3 + $0x44] sm:$0xf] %vm2215, %v2154
      %2234 = vst.msk [vmem:[#allocation3 + $0x48] sm:$0xf] %vm2215, %v2156
      %2235 = vst.msk [vmem:[#allocation3 + $0x4c] sm:$0xf] %vm2215, %v2158
      %2236 = vst.msk [vmem:[#allocation3 + $0x50] sm:$0xf] %vm2215, %v2160
      %2237 = vst.msk [vmem:[#allocation3 + $0x54] sm:$0xf] %vm2215, %v2162
      %2238 = vst.msk [vmem:[#allocation3 + $0x58] sm:$0xf] %vm2215, %v2164
      %2239 = vst.msk [vmem:[#allocation3 + $0x5c] sm:$0xf] %vm2215, %v2166
      %2240 = vst.msk [vmem:[#allocation3 + $0x60] sm:$0xf] %vm2215, %v2168
      %2241 = vst.msk [vmem:[#allocation3 + $0x64] sm:$0xf] %vm2215, %v2170
      %2242 = vst.msk [vmem:[#allocation3 + $0x68] sm:$0xf] %vm2215, %v2172
      %2243 = vst.msk [vmem:[#allocation3 + $0x6c] sm:$0xf] %vm2215, %v2174
      %2244 = vst.msk [vmem:[#allocation3 + $0x70] sm:$0xf] %vm2215, %v2176
      %2245 = vst.msk [vmem:[#allocation3 + $0x74] sm:$0xf] %vm2215, %v2178
      %2246 = vst.msk [vmem:[#allocation3 + $0x78] sm:$0xf] %vm2215, %v2180
      %2247 = vst.msk [vmem:[#allocation3 + $0x7c] sm:$0xf] %vm2215, %v2182
      %v2248 = vld [vmem:[%s469] sm:$0xf]
      %v2249 = vld [vmem:[%s469 + $0x4] sm:$0xf]
      %v2250 = vld [vmem:[%s469 + $0x8] sm:$0x1]
      %v2251 = vld [vmem:[%s469 + $0xc] sm:$0xf]
      %v2252 = vld [vmem:[%s469 + $0x10] sm:$0xf]
      %v2253 = vld [vmem:[%s469 + $0x14] sm:$0x1]
      %v2254 = vld [vmem:[%s469 + $0x18] sm:$0xf]
      %v2255 = vld [vmem:[%s469 + $0x1c] sm:$0xf]
      %v2256 = vld [vmem:[%s469 + $0x20] sm:$0x1]
      %v2257 = vld [vmem:[%s469 + $0x24] sm:$0xf]
      %v2258 = vld [vmem:[%s469 + $0x28] sm:$0xf]
      %v2259 = vld [vmem:[%s469 + $0x2c] sm:$0x1]
      %v2260 = vld [vmem:[%s469 + $0x30] sm:$0xf]
      %v2261 = vld [vmem:[%s469 + $0x34] sm:$0xf]
      %v2262 = vld [vmem:[%s469 + $0x38] sm:$0x1]
      %v2263 = vld [vmem:[%s469 + $0x3c] sm:$0xf]
      %v2264 = vld [vmem:[%s469 + $0x40] sm:$0xf]
      %v2265 = vld [vmem:[%s469 + $0x44] sm:$0x1]
      %v2266 = vld [vmem:[%s469 + $0x48] sm:$0xf]
      %v2267 = vld [vmem:[%s469 + $0x4c] sm:$0xf]
      %v2268 = vld [vmem:[%s469 + $0x50] sm:$0x1]
      %v2269 = vld [vmem:[%s469 + $0x54] sm:$0xf]
      %v2270 = vld [vmem:[%s469 + $0x58] sm:$0xf]
      %v2271 = vld [vmem:[%s469 + $0x5c] sm:$0x1]
      %v2272 = vld [vmem:[%s469 + $0x60] sm:$0xf]
      %v2273 = vld [vmem:[%s469 + $0x64] sm:$0xf]
      %v2274 = vld [vmem:[%s469 + $0x68] sm:$0x1]
      %v2275 = vld [vmem:[%s469 + $0x6c] sm:$0xf]
      %v2276 = vld [vmem:[%s469 + $0x70] sm:$0xf]
      %v2277 = vld [vmem:[%s469 + $0x74] sm:$0x1]
      %v2278 = vld [vmem:[%s469 + $0x78] sm:$0xf]
      %v2279 = vld [vmem:[%s469 + $0x7c] sm:$0xf]
      %v2280 = vld [vmem:[%s469 + $0x80] sm:$0x1]
      %v2281 = vld [vmem:[%s469 + $0x84] sm:$0xf]
      %v2282 = vld [vmem:[%s469 + $0x88] sm:$0xf]
      %v2283 = vld [vmem:[%s469 + $0x8c] sm:$0x1]
      %v2284 = vld [vmem:[%s469 + $0x90] sm:$0xf]
      %v2285 = vld [vmem:[%s469 + $0x94] sm:$0xf]
      %v2286 = vld [vmem:[%s469 + $0x98] sm:$0x1]
      %v2287 = vld [vmem:[%s469 + $0x9c] sm:$0xf]
      %v2288 = vld [vmem:[%s469 + $0xa0] sm:$0xf]
      %v2289 = vld [vmem:[%s469 + $0xa4] sm:$0x1]
      %v2290 = vld [vmem:[%s469 + $0xa8] sm:$0xf]
      %v2291 = vld [vmem:[%s469 + $0xac] sm:$0xf]
      %v2292 = vld [vmem:[%s469 + $0xb0] sm:$0x1]
      %v2293 = vld [vmem:[%s469 + $0xb4] sm:$0xf]
      %v2294 = vld [vmem:[%s469 + $0xb8] sm:$0xf]
      %v2295 = vld [vmem:[%s469 + $0xbc] sm:$0x1]
      %v2297 = vshrl.u32 %v2248, 16
      %v2299 = vrot.slane %v2297, 4
      %v2300 = vshll.u32 %v2248, 16
      %v2302 = vrot.slane %v2300, 5
      %v2303 = vor.u32 %v2299, %v2302
      %v2304 = vrot.slane %v2303, 4
      %v2306 = vshll.u32 %v2249, 16
      %v2308 = vrot.slane %v2306, 5
      %v2309 = vsel %vm1201, %v2304, %v2308
      %v2310 = vshrl.u32 %v2249, 16
      %v2312 = vrot.slane %v2310, 4
      %v2313 = vor.u32 %v2312, %v2308
      %v2314 = vrot.slane %v2313, 4
      %v2316 = vshll.u32 %v2250, 16
      %v2318 = vrot.slane %v2316, 5
      %v2319 = vsel %vm1201, %v2314, %v2318
      %v2321 = vshrl.u32 %v2251, 16
      %v2323 = vrot.slane %v2321, 4
      %v2324 = vshll.u32 %v2251, 16
      %v2326 = vrot.slane %v2324, 5
      %v2327 = vor.u32 %v2323, %v2326
      %v2328 = vrot.slane %v2327, 4
      %v2330 = vshll.u32 %v2252, 16
      %v2332 = vrot.slane %v2330, 5
      %v2333 = vsel %vm1201, %v2328, %v2332
      %v2334 = vshrl.u32 %v2252, 16
      %v2336 = vrot.slane %v2334, 4
      %v2337 = vor.u32 %v2336, %v2332
      %v2338 = vrot.slane %v2337, 4
      %v2340 = vshll.u32 %v2253, 16
      %v2342 = vrot.slane %v2340, 5
      %v2343 = vsel %vm1201, %v2338, %v2342
      %v2345 = vshrl.u32 %v2254, 16
      %v2347 = vrot.slane %v2345, 4
      %v2348 = vshll.u32 %v2254, 16
      %v2350 = vrot.slane %v2348, 5
      %v2351 = vor.u32 %v2347, %v2350
      %v2352 = vrot.slane %v2351, 4
      %v2354 = vshll.u32 %v2255, 16
      %v2356 = vrot.slane %v2354, 5
      %v2357 = vsel %vm1201, %v2352, %v2356
      %v2358 = vshrl.u32 %v2255, 16
      %v2360 = vrot.slane %v2358, 4
      %v2361 = vor.u32 %v2360, %v2356
      %v2362 = vrot.slane %v2361, 4
      %v2364 = vshll.u32 %v2256, 16
      %v2366 = vrot.slane %v2364, 5
      %v2367 = vsel %vm1201, %v2362, %v2366
      %v2369 = vshrl.u32 %v2257, 16
      %v2371 = vrot.slane %v2369, 4
      %v2372 = vshll.u32 %v2257, 16
      %v2374 = vrot.slane %v2372, 5
      %v2375 = vor.u32 %v2371, %v2374
      %v2376 = vrot.slane %v2375, 4
      %v2378 = vshll.u32 %v2258, 16
      %v2380 = vrot.slane %v2378, 5
      %v2381 = vsel %vm1201, %v2376, %v2380
      %v2382 = vshrl.u32 %v2258, 16
      %v2384 = vrot.slane %v2382, 4
      %v2385 = vor.u32 %v2384, %v2380
      %v2386 = vrot.slane %v2385, 4
      %v2388 = vshll.u32 %v2259, 16
      %v2390 = vrot.slane %v2388, 5
      %v2391 = vsel %vm1201, %v2386, %v2390
      %v2393 = vshrl.u32 %v2260, 16
      %v2395 = vrot.slane %v2393, 4
      %v2396 = vshll.u32 %v2260, 16
      %v2398 = vrot.slane %v2396, 5
      %v2399 = vor.u32 %v2395, %v2398
      %v2400 = vrot.slane %v2399, 4
      %v2402 = vshll.u32 %v2261, 16
      %v2404 = vrot.slane %v2402, 5
      %v2405 = vsel %vm1201, %v2400, %v2404
      %v2406 = vshrl.u32 %v2261, 16
      %v2408 = vrot.slane %v2406, 4
      %v2409 = vor.u32 %v2408, %v2404
      %v2410 = vrot.slane %v2409, 4
      %v2412 = vshll.u32 %v2262, 16
      %v2414 = vrot.slane %v2412, 5
      %v2415 = vsel %vm1201, %v2410, %v2414
      %v2417 = vshrl.u32 %v2263, 16
      %v2419 = vrot.slane %v2417, 4
      %v2420 = vshll.u32 %v2263, 16
      %v2422 = vrot.slane %v2420, 5
      %v2423 = vor.u32 %v2419, %v2422
      %v2424 = vrot.slane %v2423, 4
      %v2426 = vshll.u32 %v2264, 16
      %v2428 = vrot.slane %v2426, 5
      %v2429 = vsel %vm1201, %v2424, %v2428
      %v2430 = vshrl.u32 %v2264, 16
      %v2432 = vrot.slane %v2430, 4
      %v2433 = vor.u32 %v2432, %v2428
      %v2434 = vrot.slane %v2433, 4
      %v2436 = vshll.u32 %v2265, 16
      %v2438 = vrot.slane %v2436, 5
      %v2439 = vsel %vm1201, %v2434, %v2438
      %v2441 = vshrl.u32 %v2266, 16
      %v2443 = vrot.slane %v2441, 4
      %v2444 = vshll.u32 %v2266, 16
      %v2446 = vrot.slane %v2444, 5
      %v2447 = vor.u32 %v2443, %v2446
      %v2448 = vrot.slane %v2447, 4
      %v2450 = vshll.u32 %v2267, 16
      %v2452 = vrot.slane %v2450, 5
      %v2453 = vsel %vm1201, %v2448, %v2452
      %v2454 = vshrl.u32 %v2267, 16
      %v2456 = vrot.slane %v2454, 4
      %v2457 = vor.u32 %v2456, %v2452
      %v2458 = vrot.slane %v2457, 4
      %v2460 = vshll.u32 %v2268, 16
      %v2462 = vrot.slane %v2460, 5
      %v2463 = vsel %vm1201, %v2458, %v2462
      %v2465 = vshrl.u32 %v2269, 16
      %v2467 = vrot.slane %v2465, 4
      %v2468 = vshll.u32 %v2269, 16
      %v2470 = vrot.slane %v2468, 5
      %v2471 = vor.u32 %v2467, %v2470
      %v2472 = vrot.slane %v2471, 4
      %v2474 = vshll.u32 %v2270, 16
      %v2476 = vrot.slane %v2474, 5
      %v2477 = vsel %vm1201, %v2472, %v2476
      %v2478 = vshrl.u32 %v2270, 16
      %v2480 = vrot.slane %v2478, 4
      %v2481 = vor.u32 %v2480, %v2476
      %v2482 = vrot.slane %v2481, 4
      %v2484 = vshll.u32 %v2271, 16
      %v2486 = vrot.slane %v2484, 5
      %v2487 = vsel %vm1201, %v2482, %v2486
      %v2489 = vshrl.u32 %v2272, 16
      %v2491 = vrot.slane %v2489, 4
      %v2492 = vshll.u32 %v2272, 16
      %v2494 = vrot.slane %v2492, 5
      %v2495 = vor.u32 %v2491, %v2494
      %v2496 = vrot.slane %v2495, 4
      %v2498 = vshll.u32 %v2273, 16
      %v2500 = vrot.slane %v2498, 5
      %v2501 = vsel %vm1201, %v2496, %v2500
      %v2502 = vshrl.u32 %v2273, 16
      %v2504 = vrot.slane %v2502, 4
      %v2505 = vor.u32 %v2504, %v2500
      %v2506 = vrot.slane %v2505, 4
      %v2508 = vshll.u32 %v2274, 16
      %v2510 = vrot.slane %v2508, 5
      %v2511 = vsel %vm1201, %v2506, %v2510
      %v2513 = vshrl.u32 %v2275, 16
      %v2515 = vrot.slane %v2513, 4
      %v2516 = vshll.u32 %v2275, 16
      %v2518 = vrot.slane %v2516, 5
      %v2519 = vor.u32 %v2515, %v2518
      %v2520 = vrot.slane %v2519, 4
      %v2522 = vshll.u32 %v2276, 16
      %v2524 = vrot.slane %v2522, 5
      %v2525 = vsel %vm1201, %v2520, %v2524
      %v2526 = vshrl.u32 %v2276, 16
      %v2528 = vrot.slane %v2526, 4
      %v2529 = vor.u32 %v2528, %v2524
      %v2530 = vrot.slane %v2529, 4
      %v2532 = vshll.u32 %v2277, 16
      %v2534 = vrot.slane %v2532, 5
      %v2535 = vsel %vm1201, %v2530, %v2534
      %v2537 = vshrl.u32 %v2278, 16
      %v2539 = vrot.slane %v2537, 4
      %v2540 = vshll.u32 %v2278, 16
      %v2542 = vrot.slane %v2540, 5
      %v2543 = vor.u32 %v2539, %v2542
      %v2544 = vrot.slane %v2543, 4
      %v2546 = vshll.u32 %v2279, 16
      %v2548 = vrot.slane %v2546, 5
      %v2549 = vsel %vm1201, %v2544, %v2548
      %v2550 = vshrl.u32 %v2279, 16
      %v2552 = vrot.slane %v2550, 4
      %v2553 = vor.u32 %v2552, %v2548
      %v2554 = vrot.slane %v2553, 4
      %v2556 = vshll.u32 %v2280, 16
      %v2558 = vrot.slane %v2556, 5
      %v2559 = vsel %vm1201, %v2554, %v2558
      %v2561 = vshrl.u32 %v2281, 16
      %v2563 = vrot.slane %v2561, 4
      %v2564 = vshll.u32 %v2281, 16
      %v2566 = vrot.slane %v2564, 5
      %v2567 = vor.u32 %v2563, %v2566
      %v2568 = vrot.slane %v2567, 4
      %v2570 = vshll.u32 %v2282, 16
      %v2572 = vrot.slane %v2570, 5
      %v2573 = vsel %vm1201, %v2568, %v2572
      %v2574 = vshrl.u32 %v2282, 16
      %v2576 = vrot.slane %v2574, 4
      %v2577 = vor.u32 %v2576, %v2572
      %v2578 = vrot.slane %v2577, 4
      %v2580 = vshll.u32 %v2283, 16
      %v2582 = vrot.slane %v2580, 5
      %v2583 = vsel %vm1201, %v2578, %v2582
      %v2585 = vshrl.u32 %v2284, 16
      %v2587 = vrot.slane %v2585, 4
      %v2588 = vshll.u32 %v2284, 16
      %v2590 = vrot.slane %v2588, 5
      %v2591 = vor.u32 %v2587, %v2590
      %v2592 = vrot.slane %v2591, 4
      %v2594 = vshll.u32 %v2285, 16
      %v2596 = vrot.slane %v2594, 5
      %v2597 = vsel %vm1201, %v2592, %v2596
      %v2598 = vshrl.u32 %v2285, 16
      %v2600 = vrot.slane %v2598, 4
      %v2601 = vor.u32 %v2600, %v2596
      %v2602 = vrot.slane %v2601, 4
      %v2604 = vshll.u32 %v2286, 16
      %v2606 = vrot.slane %v2604, 5
      %v2607 = vsel %vm1201, %v2602, %v2606
      %v2609 = vshrl.u32 %v2287, 16
      %v2611 = vrot.slane %v2609, 4
      %v2612 = vshll.u32 %v2287, 16
      %v2614 = vrot.slane %v2612, 5
      %v2615 = vor.u32 %v2611, %v2614
      %v2616 = vrot.slane %v2615, 4
      %v2618 = vshll.u32 %v2288, 16
      %v2620 = vrot.slane %v2618, 5
      %v2621 = vsel %vm1201, %v2616, %v2620
      %v2622 = vshrl.u32 %v2288, 16
      %v2624 = vrot.slane %v2622, 4
      %v2625 = vor.u32 %v2624, %v2620
      %v2626 = vrot.slane %v2625, 4
      %v2628 = vshll.u32 %v2289, 16
      %v2630 = vrot.slane %v2628, 5
      %v2631 = vsel %vm1201, %v2626, %v2630
      %v2633 = vshrl.u32 %v2290, 16
      %v2635 = vrot.slane %v2633, 4
      %v2636 = vshll.u32 %v2290, 16
      %v2638 = vrot.slane %v2636, 5
      %v2639 = vor.u32 %v2635, %v2638
      %v2640 = vrot.slane %v2639, 4
      %v2642 = vshll.u32 %v2291, 16
      %v2644 = vrot.slane %v2642, 5
      %v2645 = vsel %vm1201, %v2640, %v2644
      %v2646 = vshrl.u32 %v2291, 16
      %v2648 = vrot.slane %v2646, 4
      %v2649 = vor.u32 %v2648, %v2644
      %v2650 = vrot.slane %v2649, 4
      %v2652 = vshll.u32 %v2292, 16
      %v2654 = vrot.slane %v2652, 5
      %v2655 = vsel %vm1201, %v2650, %v2654
      %v2657 = vshrl.u32 %v2293, 16
      %v2659 = vrot.slane %v2657, 4
      %v2660 = vshll.u32 %v2293, 16
      %v2662 = vrot.slane %v2660, 5
      %v2663 = vor.u32 %v2659, %v2662
      %v2664 = vrot.slane %v2663, 4
      %v2666 = vshll.u32 %v2294, 16
      %v2668 = vrot.slane %v2666, 5
      %v2669 = vsel %vm1201, %v2664, %v2668
      %v2670 = vshrl.u32 %v2294, 16
      %v2672 = vrot.slane %v2670, 4
      %v2673 = vor.u32 %v2672, %v2668
      %v2674 = vrot.slane %v2673, 4
      %v2676 = vshll.u32 %v2295, 16
      %v2678 = vrot.slane %v2676, 5
      %v2679 = vsel %vm1201, %v2674, %v2678
      %2680 = vrot.lane.b32.xlu0 %v2309, 16
      %v2681 = vpop.permute.xlu0 %2680
      %2682 = vrot.lane.b32.xlu0 %v2319, 16
      %v2683 = vpop.permute.xlu0 %2682
      %2684 = vrot.lane.b32.xlu0 %v2333, 16
      %v2685 = vpop.permute.xlu0 %2684
      %2686 = vrot.lane.b32.xlu0 %v2343, 16
      %v2687 = vpop.permute.xlu0 %2686
      %2688 = vrot.lane.b32.xlu0 %v2357, 16
      %v2689 = vpop.permute.xlu0 %2688
      %2690 = vrot.lane.b32.xlu0 %v2367, 16
      %v2691 = vpop.permute.xlu0 %2690
      %2692 = vrot.lane.b32.xlu0 %v2381, 16
      %v2693 = vpop.permute.xlu0 %2692
      %2694 = vrot.lane.b32.xlu0 %v2391, 16
      %v2695 = vpop.permute.xlu0 %2694
      %2696 = vrot.lane.b32.xlu0 %v2405, 16
      %v2697 = vpop.permute.xlu0 %2696
      %2698 = vrot.lane.b32.xlu0 %v2415, 16
      %v2699 = vpop.permute.xlu0 %2698
      %2700 = vrot.lane.b32.xlu0 %v2429, 16
      %v2701 = vpop.permute.xlu0 %2700
      %2702 = vrot.lane.b32.xlu0 %v2439, 16
      %v2703 = vpop.permute.xlu0 %2702
      %2704 = vrot.lane.b32.xlu0 %v2453, 16
      %v2705 = vpop.permute.xlu0 %2704
      %2706 = vrot.lane.b32.xlu0 %v2463, 16
      %v2707 = vpop.permute.xlu0 %2706
      %2708 = vrot.lane.b32.xlu0 %v2477, 16
      %v2709 = vpop.permute.xlu0 %2708
      %2710 = vrot.lane.b32.xlu0 %v2487, 16
      %v2711 = vpop.permute.xlu0 %2710
      %2712 = vrot.lane.b32.xlu0 %v2501, 16
      %v2713 = vpop.permute.xlu0 %2712
      %2714 = vrot.lane.b32.xlu0 %v2511, 16
      %v2715 = vpop.permute.xlu0 %2714
      %2716 = vrot.lane.b32.xlu0 %v2525, 16
      %v2717 = vpop.permute.xlu0 %2716
      %2718 = vrot.lane.b32.xlu0 %v2535, 16
      %v2719 = vpop.permute.xlu0 %2718
      %2720 = vrot.lane.b32.xlu0 %v2549, 16
      %v2721 = vpop.permute.xlu0 %2720
      %2722 = vrot.lane.b32.xlu0 %v2559, 16
      %v2723 = vpop.permute.xlu0 %2722
      %2724 = vrot.lane.b32.xlu0 %v2573, 16
      %v2725 = vpop.permute.xlu0 %2724
      %2726 = vrot.lane.b32.xlu0 %v2583, 16
      %v2727 = vpop.permute.xlu0 %2726
      %2728 = vrot.lane.b32.xlu0 %v2597, 16
      %v2729 = vpop.permute.xlu0 %2728
      %2730 = vrot.lane.b32.xlu0 %v2607, 16
      %v2731 = vpop.permute.xlu0 %2730
      %2732 = vrot.lane.b32.xlu0 %v2621, 16
      %v2733 = vpop.permute.xlu0 %2732
      %2734 = vrot.lane.b32.xlu0 %v2631, 16
      %v2735 = vpop.permute.xlu0 %2734
      %2736 = vrot.lane.b32.xlu0 %v2645, 16
      %v2737 = vpop.permute.xlu0 %2736
      %2738 = vrot.lane.b32.xlu0 %v2655, 16
      %v2739 = vpop.permute.xlu0 %2738
      %2740 = vrot.lane.b32.xlu0 %v2669, 16
      %v2741 = vpop.permute.xlu0 %2740
      %2742 = vrot.lane.b32.xlu0 %v2679, 16
      %v2743 = vpop.permute.xlu0 %2742
      %vm2776 = vcmask 158848
      %2777 = vst.msk [vmem:[#allocation3] sm:$0xf] %vm2776, %v2681
      %2778 = vst.msk [vmem:[#allocation3 + $0x4] sm:$0xf] %vm2776, %v2683
      %2779 = vst.msk [vmem:[#allocation3 + $0x8] sm:$0xf] %vm2776, %v2685
      %2780 = vst.msk [vmem:[#allocation3 + $0xc] sm:$0xf] %vm2776, %v2687
      %2781 = vst.msk [vmem:[#allocation3 + $0x10] sm:$0xf] %vm2776, %v2689
      %2782 = vst.msk [vmem:[#allocation3 + $0x14] sm:$0xf] %vm2776, %v2691
      %2783 = vst.msk [vmem:[#allocation3 + $0x18] sm:$0xf] %vm2776, %v2693
      %2784 = vst.msk [vmem:[#allocation3 + $0x1c] sm:$0xf] %vm2776, %v2695
      %2785 = vst.msk [vmem:[#allocation3 + $0x20] sm:$0xf] %vm2776, %v2697
      %2786 = vst.msk [vmem:[#allocation3 + $0x24] sm:$0xf] %vm2776, %v2699
      %2787 = vst.msk [vmem:[#allocation3 + $0x28] sm:$0xf] %vm2776, %v2701
      %2788 = vst.msk [vmem:[#allocation3 + $0x2c] sm:$0xf] %vm2776, %v2703
      %2789 = vst.msk [vmem:[#allocation3 + $0x30] sm:$0xf] %vm2776, %v2705
      %2790 = vst.msk [vmem:[#allocation3 + $0x34] sm:$0xf] %vm2776, %v2707
      %2791 = vst.msk [vmem:[#allocation3 + $0x38] sm:$0xf] %vm2776, %v2709
      %2792 = vst.msk [vmem:[#allocation3 + $0x3c] sm:$0xf] %vm2776, %v2711
      %2793 = vst.msk [vmem:[#allocation3 + $0x40] sm:$0xf] %vm2776, %v2713
      %2794 = vst.msk [vmem:[#allocation3 + $0x44] sm:$0xf] %vm2776, %v2715
      %2795 = vst.msk [vmem:[#allocation3 + $0x48] sm:$0xf] %vm2776, %v2717
      %2796 = vst.msk [vmem:[#allocation3 + $0x4c] sm:$0xf] %vm2776, %v2719
      %2797 = vst.msk [vmem:[#allocation3 + $0x50] sm:$0xf] %vm2776, %v2721
      %2798 = vst.msk [vmem:[#allocation3 + $0x54] sm:$0xf] %vm2776, %v2723
      %2799 = vst.msk [vmem:[#allocation3 + $0x58] sm:$0xf] %vm2776, %v2725
      %2800 = vst.msk [vmem:[#allocation3 + $0x5c] sm:$0xf] %vm2776, %v2727
      %2801 = vst.msk [vmem:[#allocation3 + $0x60] sm:$0xf] %vm2776, %v2729
      %2802 = vst.msk [vmem:[#allocation3 + $0x64] sm:$0xf] %vm2776, %v2731
      %2803 = vst.msk [vmem:[#allocation3 + $0x68] sm:$0xf] %vm2776, %v2733
      %2804 = vst.msk [vmem:[#allocation3 + $0x6c] sm:$0xf] %vm2776, %v2735
      %2805 = vst.msk [vmem:[#allocation3 + $0x70] sm:$0xf] %vm2776, %v2737
      %2806 = vst.msk [vmem:[#allocation3 + $0x74] sm:$0xf] %vm2776, %v2739
      %2807 = vst.msk [vmem:[#allocation3 + $0x78] sm:$0xf] %vm2776, %v2741
      %2808 = vst.msk [vmem:[#allocation3 + $0x7c] sm:$0xf] %vm2776, %v2743
      %v2809 = vld [vmem:[%s469] sm:$0xe]
      %v2810 = vld [vmem:[%s469 + $0x4] sm:$0xf]
      %v2811 = vld [vmem:[%s469 + $0x8] sm:$0x1]
      %v2812 = vld [vmem:[%s469 + $0xc] sm:$0xe]
      %v2813 = vld [vmem:[%s469 + $0x10] sm:$0xf]
      %v2814 = vld [vmem:[%s469 + $0x14] sm:$0x1]
      %v2815 = vld [vmem:[%s469 + $0x18] sm:$0xe]
      %v2816 = vld [vmem:[%s469 + $0x1c] sm:$0xf]
      %v2817 = vld [vmem:[%s469 + $0x20] sm:$0x1]
      %v2818 = vld [vmem:[%s469 + $0x24] sm:$0xe]
      %v2819 = vld [vmem:[%s469 + $0x28] sm:$0xf]
      %v2820 = vld [vmem:[%s469 + $0x2c] sm:$0x1]
      %v2821 = vld [vmem:[%s469 + $0x30] sm:$0xe]
      %v2822 = vld [vmem:[%s469 + $0x34] sm:$0xf]
      %v2823 = vld [vmem:[%s469 + $0x38] sm:$0x1]
      %v2824 = vld [vmem:[%s469 + $0x3c] sm:$0xe]
      %v2825 = vld [vmem:[%s469 + $0x40] sm:$0xf]
      %v2826 = vld [vmem:[%s469 + $0x44] sm:$0x1]
      %v2827 = vld [vmem:[%s469 + $0x48] sm:$0xe]
      %v2828 = vld [vmem:[%s469 + $0x4c] sm:$0xf]
      %v2829 = vld [vmem:[%s469 + $0x50] sm:$0x1]
      %v2830 = vld [vmem:[%s469 + $0x54] sm:$0xe]
      %v2831 = vld [vmem:[%s469 + $0x58] sm:$0xf]
      %v2832 = vld [vmem:[%s469 + $0x5c] sm:$0x1]
      %v2833 = vld [vmem:[%s469 + $0x60] sm:$0xe]
      %v2834 = vld [vmem:[%s469 + $0x64] sm:$0xf]
      %v2835 = vld [vmem:[%s469 + $0x68] sm:$0x1]
      %v2836 = vld [vmem:[%s469 + $0x6c] sm:$0xe]
      %v2837 = vld [vmem:[%s469 + $0x70] sm:$0xf]
      %v2838 = vld [vmem:[%s469 + $0x74] sm:$0x1]
      %v2839 = vld [vmem:[%s469 + $0x78] sm:$0xe]
      %v2840 = vld [vmem:[%s469 + $0x7c] sm:$0xf]
      %v2841 = vld [vmem:[%s469 + $0x80] sm:$0x1]
      %v2842 = vld [vmem:[%s469 + $0x84] sm:$0xe]
      %v2843 = vld [vmem:[%s469 + $0x88] sm:$0xf]
      %v2844 = vld [vmem:[%s469 + $0x8c] sm:$0x1]
      %v2845 = vld [vmem:[%s469 + $0x90] sm:$0xe]
      %v2846 = vld [vmem:[%s469 + $0x94] sm:$0xf]
      %v2847 = vld [vmem:[%s469 + $0x98] sm:$0x1]
      %v2848 = vld [vmem:[%s469 + $0x9c] sm:$0xe]
      %v2849 = vld [vmem:[%s469 + $0xa0] sm:$0xf]
      %v2850 = vld [vmem:[%s469 + $0xa4] sm:$0x1]
      %v2851 = vld [vmem:[%s469 + $0xa8] sm:$0xe]
      %v2852 = vld [vmem:[%s469 + $0xac] sm:$0xf]
      %v2853 = vld [vmem:[%s469 + $0xb0] sm:$0x1]
      %v2854 = vld [vmem:[%s469 + $0xb4] sm:$0xe]
      %v2855 = vld [vmem:[%s469 + $0xb8] sm:$0xf]
      %v2856 = vld [vmem:[%s469 + $0xbc] sm:$0x1]
      %v2905 = vrot.slane %v2809, 5
      %v2906 = vrot.slane %v2905, 4
      %v2907 = vrot.slane %v2810, 5
      %v2908 = vsel %vm1813, %v2906, %v2907
      %v2909 = vrot.slane %v2907, 4
      %v2910 = vrot.slane %v2811, 5
      %v2911 = vsel %vm1813, %v2909, %v2910
      %v2912 = vrot.slane %v2812, 5
      %v2913 = vrot.slane %v2912, 4
      %v2914 = vrot.slane %v2813, 5
      %v2915 = vsel %vm1813, %v2913, %v2914
      %v2916 = vrot.slane %v2914, 4
      %v2917 = vrot.slane %v2814, 5
      %v2918 = vsel %vm1813, %v2916, %v2917
      %v2919 = vrot.slane %v2815, 5
      %v2920 = vrot.slane %v2919, 4
      %v2921 = vrot.slane %v2816, 5
      %v2922 = vsel %vm1813, %v2920, %v2921
      %v2923 = vrot.slane %v2921, 4
      %v2924 = vrot.slane %v2817, 5
      %v2925 = vsel %vm1813, %v2923, %v2924
      %v2926 = vrot.slane %v2818, 5
      %v2927 = vrot.slane %v2926, 4
      %v2928 = vrot.slane %v2819, 5
      %v2929 = vsel %vm1813, %v2927, %v2928
      %v2930 = vrot.slane %v2928, 4
      %v2931 = vrot.slane %v2820, 5
      %v2932 = vsel %vm1813, %v2930, %v2931
      %v2933 = vrot.slane %v2821, 5
      %v2934 = vrot.slane %v2933, 4
      %v2935 = vrot.slane %v2822, 5
      %v2936 = vsel %vm1813, %v2934, %v2935
      %v2937 = vrot.slane %v2935, 4
      %v2938 = vrot.slane %v2823, 5
      %v2939 = vsel %vm1813, %v2937, %v2938
      %v2940 = vrot.slane %v2824, 5
      %v2941 = vrot.slane %v2940, 4
      %v2942 = vrot.slane %v2825, 5
      %v2943 = vsel %vm1813, %v2941, %v2942
      %v2944 = vrot.slane %v2942, 4
      %v2945 = vrot.slane %v2826, 5
      %v2946 = vsel %vm1813, %v2944, %v2945
      %v2947 = vrot.slane %v2827, 5
      %v2948 = vrot.slane %v2947, 4
      %v2949 = vrot.slane %v2828, 5
      %v2950 = vsel %vm1813, %v2948, %v2949
      %v2951 = vrot.slane %v2949, 4
      %v2952 = vrot.slane %v2829, 5
      %v2953 = vsel %vm1813, %v2951, %v2952
      %v2954 = vrot.slane %v2830, 5
      %v2955 = vrot.slane %v2954, 4
      %v2956 = vrot.slane %v2831, 5
      %v2957 = vsel %vm1813, %v2955, %v2956
      %v2958 = vrot.slane %v2956, 4
      %v2959 = vrot.slane %v2832, 5
      %v2960 = vsel %vm1813, %v2958, %v2959
      %v2961 = vrot.slane %v2833, 5
      %v2962 = vrot.slane %v2961, 4
      %v2963 = vrot.slane %v2834, 5
      %v2964 = vsel %vm1813, %v2962, %v2963
      %v2965 = vrot.slane %v2963, 4
      %v2966 = vrot.slane %v2835, 5
      %v2967 = vsel %vm1813, %v2965, %v2966
      %v2968 = vrot.slane %v2836, 5
      %v2969 = vrot.slane %v2968, 4
      %v2970 = vrot.slane %v2837, 5
      %v2971 = vsel %vm1813, %v2969, %v2970
      %v2972 = vrot.slane %v2970, 4
      %v2973 = vrot.slane %v2838, 5
      %v2974 = vsel %vm1813, %v2972, %v2973
      %v2975 = vrot.slane %v2839, 5
      %v2976 = vrot.slane %v2975, 4
      %v2977 = vrot.slane %v2840, 5
      %v2978 = vsel %vm1813, %v2976, %v2977
      %v2979 = vrot.slane %v2977, 4
      %v2980 = vrot.slane %v2841, 5
      %v2981 = vsel %vm1813, %v2979, %v2980
      %v2982 = vrot.slane %v2842, 5
      %v2983 = vrot.slane %v2982, 4
      %v2984 = vrot.slane %v2843, 5
      %v2985 = vsel %vm1813, %v2983, %v2984
      %v2986 = vrot.slane %v2984, 4
      %v2987 = vrot.slane %v2844, 5
      %v2988 = vsel %vm1813, %v2986, %v2987
      %v2989 = vrot.slane %v2845, 5
      %v2990 = vrot.slane %v2989, 4
      %v2991 = vrot.slane %v2846, 5
      %v2992 = vsel %vm1813, %v2990, %v2991
      %v2993 = vrot.slane %v2991, 4
      %v2994 = vrot.slane %v2847, 5
      %v2995 = vsel %vm1813, %v2993, %v2994
      %v2996 = vrot.slane %v2848, 5
      %v2997 = vrot.slane %v2996, 4
      %v2998 = vrot.slane %v2849, 5
      %v2999 = vsel %vm1813, %v2997, %v2998
      %v3000 = vrot.slane %v2998, 4
      %v3001 = vrot.slane %v2850, 5
      %v3002 = vsel %vm1813, %v3000, %v3001
      %v3003 = vrot.slane %v2851, 5
      %v3004 = vrot.slane %v3003, 4
      %v3005 = vrot.slane %v2852, 5
      %v3006 = vsel %vm1813, %v3004, %v3005
      %v3007 = vrot.slane %v3005, 4
      %v3008 = vrot.slane %v2853, 5
      %v3009 = vsel %vm1813, %v3007, %v3008
      %v3010 = vrot.slane %v2854, 5
      %v3011 = vrot.slane %v3010, 4
      %v3012 = vrot.slane %v2855, 5
      %v3013 = vsel %vm1813, %v3011, %v3012
      %v3014 = vrot.slane %v3012, 4
      %v3015 = vrot.slane %v2856, 5
      %v3016 = vsel %vm1813, %v3014, %v3015
      %3017 = vrot.lane.b32.xlu0 %v2908, 20
      %v3018 = vpop.permute.xlu0 %3017
      %3019 = vrot.lane.b32.xlu0 %v2911, 20
      %v3020 = vpop.permute.xlu0 %3019
      %3021 = vrot.lane.b32.xlu0 %v2915, 20
      %v3022 = vpop.permute.xlu0 %3021
      %3023 = vrot.lane.b32.xlu0 %v2918, 20
      %v3024 = vpop.permute.xlu0 %3023
      %3025 = vrot.lane.b32.xlu0 %v2922, 20
      %v3026 = vpop.permute.xlu0 %3025
      %3027 = vrot.lane.b32.xlu0 %v2925, 20
      %v3028 = vpop.permute.xlu0 %3027
      %3029 = vrot.lane.b32.xlu0 %v2929, 20
      %v3030 = vpop.permute.xlu0 %3029
      %3031 = vrot.lane.b32.xlu0 %v2932, 20
      %v3032 = vpop.permute.xlu0 %3031
      %3033 = vrot.lane.b32.xlu0 %v2936, 20
      %v3034 = vpop.permute.xlu0 %3033
      %3035 = vrot.lane.b32.xlu0 %v2939, 20
      %v3036 = vpop.permute.xlu0 %3035
      %3037 = vrot.lane.b32.xlu0 %v2943, 20
      %v3038 = vpop.permute.xlu0 %3037
      %3039 = vrot.lane.b32.xlu0 %v2946, 20
      %v3040 = vpop.permute.xlu0 %3039
      %3041 = vrot.lane.b32.xlu0 %v2950, 20
      %v3042 = vpop.permute.xlu0 %3041
      %3043 = vrot.lane.b32.xlu0 %v2953, 20
      %v3044 = vpop.permute.xlu0 %3043
      %3045 = vrot.lane.b32.xlu0 %v2957, 20
      %v3046 = vpop.permute.xlu0 %3045
      %3047 = vrot.lane.b32.xlu0 %v2960, 20
      %v3048 = vpop.permute.xlu0 %3047
      %3049 = vrot.lane.b32.xlu0 %v2964, 20
      %v3050 = vpop.permute.xlu0 %3049
      %3051 = vrot.lane.b32.xlu0 %v2967, 20
      %v3052 = vpop.permute.xlu0 %3051
      %3053 = vrot.lane.b32.xlu0 %v2971, 20
      %v3054 = vpop.permute.xlu0 %3053
      %3055 = vrot.lane.b32.xlu0 %v2974, 20
      %v3056 = vpop.permute.xlu0 %3055
      %3057 = vrot.lane.b32.xlu0 %v2978, 20
      %v3058 = vpop.permute.xlu0 %3057
      %3059 = vrot.lane.b32.xlu0 %v2981, 20
      %v3060 = vpop.permute.xlu0 %3059
      %3061 = vrot.lane.b32.xlu0 %v2985, 20
      %v3062 = vpop.permute.xlu0 %3061
      %3063 = vrot.lane.b32.xlu0 %v2988, 20
      %v3064 = vpop.permute.xlu0 %3063
      %3065 = vrot.lane.b32.xlu0 %v2992, 20
      %v3066 = vpop.permute.xlu0 %3065
      %3067 = vrot.lane.b32.xlu0 %v2995, 20
      %v3068 = vpop.permute.xlu0 %3067
      %3069 = vrot.lane.b32.xlu0 %v2999, 20
      %v3070 = vpop.permute.xlu0 %3069
      %3071 = vrot.lane.b32.xlu0 %v3002, 20
      %v3072 = vpop.permute.xlu0 %3071
      %3073 = vrot.lane.b32.xlu0 %v3006, 20
      %v3074 = vpop.permute.xlu0 %3073
      %3075 = vrot.lane.b32.xlu0 %v3009, 20
      %v3076 = vpop.permute.xlu0 %3075
      %3077 = vrot.lane.b32.xlu0 %v3013, 20
      %v3078 = vpop.permute.xlu0 %3077
      %3079 = vrot.lane.b32.xlu0 %v3016, 20
      %v3080 = vpop.permute.xlu0 %3079
      %vm3113 = vcmask 191648
      %3114 = vst.msk [vmem:[#allocation3] sm:$0xf] %vm3113, %v3018
      %3115 = vst.msk [vmem:[#allocation3 + $0x4] sm:$0xf] %vm3113, %v3020
      %3116 = vst.msk [vmem:[#allocation3 + $0x8] sm:$0xf] %vm3113, %v3022
      %3117 = vst.msk [vmem:[#allocation3 + $0xc] sm:$0xf] %vm3113, %v3024
      %3118 = vst.msk [vmem:[#allocation3 + $0x10] sm:$0xf] %vm3113, %v3026
      %3119 = vst.msk [vmem:[#allocation3 + $0x14] sm:$0xf] %vm3113, %v3028
      %3120 = vst.msk [vmem:[#allocation3 + $0x18] sm:$0xf] %vm3113, %v3030
      %3121 = vst.msk [vmem:[#allocation3 + $0x1c] sm:$0xf] %vm3113, %v3032
      %3122 = vst.msk [vmem:[#allocation3 + $0x20] sm:$0xf] %vm3113, %v3034
      %3123 = vst.msk [vmem:[#allocation3 + $0x24] sm:$0xf] %vm3113, %v3036
      %3124 = vst.msk [vmem:[#allocation3 + $0x28] sm:$0xf] %vm3113, %v3038
      %3125 = vst.msk [vmem:[#allocation3 + $0x2c] sm:$0xf] %vm3113, %v3040
      %3126 = vst.msk [vmem:[#allocation3 + $0x30] sm:$0xf] %vm3113, %v3042
      %3127 = vst.msk [vmem:[#allocation3 + $0x34] sm:$0xf] %vm3113, %v3044
      %3128 = vst.msk [vmem:[#allocation3 + $0x38] sm:$0xf] %vm3113, %v3046
      %3129 = vst.msk [vmem:[#allocation3 + $0x3c] sm:$0xf] %vm3113, %v3048
      %3130 = vst.msk [vmem:[#allocation3 + $0x40] sm:$0xf] %vm3113, %v3050
      %3131 = vst.msk [vmem:[#allocation3 + $0x44] sm:$0xf] %vm3113, %v3052
      %3132 = vst.msk [vmem:[#allocation3 + $0x48] sm:$0xf] %vm3113, %v3054
      %3133 = vst.msk [vmem:[#allocation3 + $0x4c] sm:$0xf] %vm3113, %v3056
      %3134 = vst.msk [vmem:[#allocation3 + $0x50] sm:$0xf] %vm3113, %v3058
      %3135 = vst.msk [vmem:[#allocation3 + $0x54] sm:$0xf] %vm3113, %v3060
      %3136 = vst.msk [vmem:[#allocation3 + $0x58] sm:$0xf] %vm3113, %v3062
      %3137 = vst.msk [vmem:[#allocation3 + $0x5c] sm:$0xf] %vm3113, %v3064
      %3138 = vst.msk [vmem:[#allocation3 + $0x60] sm:$0xf] %vm3113, %v3066
      %3139 = vst.msk [vmem:[#allocation3 + $0x64] sm:$0xf] %vm3113, %v3068
      %3140 = vst.msk [vmem:[#allocation3 + $0x68] sm:$0xf] %vm3113, %v3070
      %3141 = vst.msk [vmem:[#allocation3 + $0x6c] sm:$0xf] %vm3113, %v3072
      %3142 = vst.msk [vmem:[#allocation3 + $0x70] sm:$0xf] %vm3113, %v3074
      %3143 = vst.msk [vmem:[#allocation3 + $0x74] sm:$0xf] %vm3113, %v3076
      %3144 = vst.msk [vmem:[#allocation3 + $0x78] sm:$0xf] %vm3113, %v3078
      %3145 = vst.msk [vmem:[#allocation3 + $0x7c] sm:$0xf] %vm3113, %v3080
      %s3146 = scalar_lea.vmem [#allocation2], 24
      %v3147 = vld [vmem:[%s3146] sm:$0xf]
      %v3148 = vld [vmem:[%s3146 + $0x4] sm:$0xf]
      %v3149 = vld [vmem:[%s3146 + $0xc] sm:$0xf]
      %v3150 = vld [vmem:[%s3146 + $0x10] sm:$0xf]
      %v3151 = vld [vmem:[%s3146 + $0x18] sm:$0xf]
      %v3152 = vld [vmem:[%s3146 + $0x1c] sm:$0xf]
      %v3153 = vld [vmem:[%s3146 + $0x24] sm:$0xf]
      %v3154 = vld [vmem:[%s3146 + $0x28] sm:$0xf]
      %v3155 = vld [vmem:[%s3146 + $0x30] sm:$0xf]
      %v3156 = vld [vmem:[%s3146 + $0x34] sm:$0xf]
      %v3157 = vld [vmem:[%s3146 + $0x3c] sm:$0xf]
      %v3158 = vld [vmem:[%s3146 + $0x40] sm:$0xf]
      %v3159 = vld [vmem:[%s3146 + $0x48] sm:$0xf]
      %v3160 = vld [vmem:[%s3146 + $0x4c] sm:$0xf]
      %v3161 = vld [vmem:[%s3146 + $0x54] sm:$0xf]
      %v3162 = vld [vmem:[%s3146 + $0x58] sm:$0xf]
      %v3163 = vld [vmem:[%s3146 + $0x60] sm:$0xf]
      %v3164 = vld [vmem:[%s3146 + $0x64] sm:$0xf]
      %v3165 = vld [vmem:[%s3146 + $0x6c] sm:$0xf]
      %v3166 = vld [vmem:[%s3146 + $0x70] sm:$0xf]
      %v3167 = vld [vmem:[%s3146 + $0x78] sm:$0xf]
      %v3168 = vld [vmem:[%s3146 + $0x7c] sm:$0xf]
      %v3169 = vld [vmem:[%s3146 + $0x84] sm:$0xf]
      %v3170 = vld [vmem:[%s3146 + $0x88] sm:$0xf]
      %v3171 = vld [vmem:[%s3146 + $0x90] sm:$0xf]
      %v3172 = vld [vmem:[%s3146 + $0x94] sm:$0xf]
      %v3173 = vld [vmem:[%s3146 + $0x9c] sm:$0xf]
      %v3174 = vld [vmem:[%s3146 + $0xa0] sm:$0xf]
      %v3175 = vld [vmem:[%s3146 + $0xa8] sm:$0xf]
      %v3176 = vld [vmem:[%s3146 + $0xac] sm:$0xf]
      %v3177 = vld [vmem:[%s3146 + $0xb4] sm:$0xf]
      %v3178 = vld [vmem:[%s3146 + $0xb8] sm:$0xf]
      %3211 = vrot.lane.b32.xlu0 %v3147, 24
      %v3212 = vpop.permute.xlu0 %3211
      %3213 = vrot.lane.b32.xlu0 %v3148, 24
      %v3214 = vpop.permute.xlu0 %3213
      %3215 = vrot.lane.b32.xlu0 %v3149, 24
      %v3216 = vpop.permute.xlu0 %3215
      %3217 = vrot.lane.b32.xlu0 %v3150, 24
      %v3218 = vpop.permute.xlu0 %3217
      %3219 = vrot.lane.b32.xlu0 %v3151, 24
      %v3220 = vpop.permute.xlu0 %3219
      %3221 = vrot.lane.b32.xlu0 %v3152, 24
      %v3222 = vpop.permute.xlu0 %3221
      %3223 = vrot.lane.b32.xlu0 %v3153, 24
      %v3224 = vpop.permute.xlu0 %3223
      %3225 = vrot.lane.b32.xlu0 %v3154, 24
      %v3226 = vpop.permute.xlu0 %3225
      %3227 = vrot.lane.b32.xlu0 %v3155, 24
      %v3228 = vpop.permute.xlu0 %3227
      %3229 = vrot.lane.b32.xlu0 %v3156, 24
      %v3230 = vpop.permute.xlu0 %3229
      %3231 = vrot.lane.b32.xlu0 %v3157, 24
      %v3232 = vpop.permute.xlu0 %3231
      %3233 = vrot.lane.b32.xlu0 %v3158, 24
      %v3234 = vpop.permute.xlu0 %3233
      %3235 = vrot.lane.b32.xlu0 %v3159, 24
      %v3236 = vpop.permute.xlu0 %3235
      %3237 = vrot.lane.b32.xlu0 %v3160, 24
      %v3238 = vpop.permute.xlu0 %3237
      %3239 = vrot.lane.b32.xlu0 %v3161, 24
      %v3240 = vpop.permute.xlu0 %3239
      %3241 = vrot.lane.b32.xlu0 %v3162, 24
      %v3242 = vpop.permute.xlu0 %3241
      %3243 = vrot.lane.b32.xlu0 %v3163, 24
      %v3244 = vpop.permute.xlu0 %3243
      %3245 = vrot.lane.b32.xlu0 %v3164, 24
      %v3246 = vpop.permute.xlu0 %3245
      %3247 = vrot.lane.b32.xlu0 %v3165, 24
      %v3248 = vpop.permute.xlu0 %3247
      %3249 = vrot.lane.b32.xlu0 %v3166, 24
      %v3250 = vpop.permute.xlu0 %3249
      %3251 = vrot.lane.b32.xlu0 %v3167, 24
      %v3252 = vpop.permute.xlu0 %3251
      %3253 = vrot.lane.b32.xlu0 %v3168, 24
      %v3254 = vpop.permute.xlu0 %3253
      %3255 = vrot.lane.b32.xlu0 %v3169, 24
      %v3256 = vpop.permute.xlu0 %3255
      %3257 = vrot.lane.b32.xlu0 %v3170, 24
      %v3258 = vpop.permute.xlu0 %3257
      %3259 = vrot.lane.b32.xlu0 %v3171, 24
      %v3260 = vpop.permute.xlu0 %3259
      %3261 = vrot.lane.b32.xlu0 %v3172, 24
      %v3262 = vpop.permute.xlu0 %3261
      %3263 = vrot.lane.b32.xlu0 %v3173, 24
      %v3264 = vpop.permute.xlu0 %3263
      %3265 = vrot.lane.b32.xlu0 %v3174, 24
      %v3266 = vpop.permute.xlu0 %3265
      %3267 = vrot.lane.b32.xlu0 %v3175, 24
      %v3268 = vpop.permute.xlu0 %3267
      %3269 = vrot.lane.b32.xlu0 %v3176, 24
      %v3270 = vpop.permute.xlu0 %3269
      %3271 = vrot.lane.b32.xlu0 %v3177, 24
      %v3272 = vpop.permute.xlu0 %3271
      %3273 = vrot.lane.b32.xlu0 %v3178, 24
      %v3274 = vpop.permute.xlu0 %3273
      %vm3307 = vcmask 224448
      %3308 = vst.msk [vmem:[#allocation3] sm:$0xf] %vm3307, %v3212
      %3309 = vst.msk [vmem:[#allocation3 + $0x4] sm:$0xf] %vm3307, %v3214
      %3310 = vst.msk [vmem:[#allocation3 + $0x8] sm:$0xf] %vm3307, %v3216
      %3311 = vst.msk [vmem:[#allocation3 + $0xc] sm:$0xf] %vm3307, %v3218
      %3312 = vst.msk [vmem:[#allocation3 + $0x10] sm:$0xf] %vm3307, %v3220
      %3313 = vst.msk [vmem:[#allocation3 + $0x14] sm:$0xf] %vm3307, %v3222
      %3314 = vst.msk [vmem:[#allocation3 + $0x18] sm:$0xf] %vm3307, %v3224
      %3315 = vst.msk [vmem:[#allocation3 + $0x1c] sm:$0xf] %vm3307, %v3226
      %3316 = vst.msk [vmem:[#allocation3 + $0x20] sm:$0xf] %vm3307, %v3228
      %3317 = vst.msk [vmem:[#allocation3 + $0x24] sm:$0xf] %vm3307, %v3230
      %3318 = vst.msk [vmem:[#allocation3 + $0x28] sm:$0xf] %vm3307, %v3232
      %3319 = vst.msk [vmem:[#allocation3 + $0x2c] sm:$0xf] %vm3307, %v3234
      %3320 = vst.msk [vmem:[#allocation3 + $0x30] sm:$0xf] %vm3307, %v3236
      %3321 = vst.msk [vmem:[#allocation3 + $0x34] sm:$0xf] %vm3307, %v3238
      %3322 = vst.msk [vmem:[#allocation3 + $0x38] sm:$0xf] %vm3307, %v3240
      %3323 = vst.msk [vmem:[#allocation3 + $0x3c] sm:$0xf] %vm3307, %v3242
      %3324 = vst.msk [vmem:[#allocation3 + $0x40] sm:$0xf] %vm3307, %v3244
      %3325 = vst.msk [vmem:[#allocation3 + $0x44] sm:$0xf] %vm3307, %v3246
      %3326 = vst.msk [vmem:[#allocation3 + $0x48] sm:$0xf] %vm3307, %v3248
      %3327 = vst.msk [vmem:[#allocation3 + $0x4c] sm:$0xf] %vm3307, %v3250
      %3328 = vst.msk [vmem:[#allocation3 + $0x50] sm:$0xf] %vm3307, %v3252
      %3329 = vst.msk [vmem:[#allocation3 + $0x54] sm:$0xf] %vm3307, %v3254
      %3330 = vst.msk [vmem:[#allocation3 + $0x58] sm:$0xf] %vm3307, %v3256
      %3331 = vst.msk [vmem:[#allocation3 + $0x5c] sm:$0xf] %vm3307, %v3258
      %3332 = vst.msk [vmem:[#allocation3 + $0x60] sm:$0xf] %vm3307, %v3260
      %3333 = vst.msk [vmem:[#allocation3 + $0x64] sm:$0xf] %vm3307, %v3262
      %3334 = vst.msk [vmem:[#allocation3 + $0x68] sm:$0xf] %vm3307, %v3264
      %3335 = vst.msk [vmem:[#allocation3 + $0x6c] sm:$0xf] %vm3307, %v3266
      %3336 = vst.msk [vmem:[#allocation3 + $0x70] sm:$0xf] %vm3307, %v3268
      %3337 = vst.msk [vmem:[#allocation3 + $0x74] sm:$0xf] %vm3307, %v3270
      %3338 = vst.msk [vmem:[#allocation3 + $0x78] sm:$0xf] %vm3307, %v3272
      %3339 = vst.msk [vmem:[#allocation3 + $0x7c] sm:$0xf] %vm3307, %v3274
      %v3340 = vld [vmem:[%s3146] sm:$0xf]
      %v3341 = vld [vmem:[%s3146 + $0x4] sm:$0xf]
      %v3342 = vld [vmem:[%s3146 + $0x8] sm:$0x1]
      %v3343 = vld [vmem:[%s3146 + $0xc] sm:$0xf]
      %v3344 = vld [vmem:[%s3146 + $0x10] sm:$0xf]
      %v3345 = vld [vmem:[%s3146 + $0x14] sm:$0x1]
      %v3346 = vld [vmem:[%s3146 + $0x18] sm:$0xf]
      %v3347 = vld [vmem:[%s3146 + $0x1c] sm:$0xf]
      %v3348 = vld [vmem:[%s3146 + $0x20] sm:$0x1]
      %v3349 = vld [vmem:[%s3146 + $0x24] sm:$0xf]
      %v3350 = vld [vmem:[%s3146 + $0x28] sm:$0xf]
      %v3351 = vld [vmem:[%s3146 + $0x2c] sm:$0x1]
      %v3352 = vld [vmem:[%s3146 + $0x30] sm:$0xf]
      %v3353 = vld [vmem:[%s3146 + $0x34] sm:$0xf]
      %v3354 = vld [vmem:[%s3146 + $0x38] sm:$0x1]
      %v3355 = vld [vmem:[%s3146 + $0x3c] sm:$0xf]
      %v3356 = vld [vmem:[%s3146 + $0x40] sm:$0xf]
      %v3357 = vld [vmem:[%s3146 + $0x44] sm:$0x1]
      %v3358 = vld [vmem:[%s3146 + $0x48] sm:$0xf]
      %v3359 = vld [vmem:[%s3146 + $0x4c] sm:$0xf]
      %v3360 = vld [vmem:[%s3146 + $0x50] sm:$0x1]
      %v3361 = vld [vmem:[%s3146 + $0x54] sm:$0xf]
      %v3362 = vld [vmem:[%s3146 + $0x58] sm:$0xf]
      %v3363 = vld [vmem:[%s3146 + $0x5c] sm:$0x1]
      %v3364 = vld [vmem:[%s3146 + $0x60] sm:$0xf]
      %v3365 = vld [vmem:[%s3146 + $0x64] sm:$0xf]
      %v3366 = vld [vmem:[%s3146 + $0x68] sm:$0x1]
      %v3367 = vld [vmem:[%s3146 + $0x6c] sm:$0xf]
      %v3368 = vld [vmem:[%s3146 + $0x70] sm:$0xf]
      %v3369 = vld [vmem:[%s3146 + $0x74] sm:$0x1]
      %v3370 = vld [vmem:[%s3146 + $0x78] sm:$0xf]
      %v3371 = vld [vmem:[%s3146 + $0x7c] sm:$0xf]
      %v3372 = vld [vmem:[%s3146 + $0x80] sm:$0x1]
      %v3373 = vld [vmem:[%s3146 + $0x84] sm:$0xf]
      %v3374 = vld [vmem:[%s3146 + $0x88] sm:$0xf]
      %v3375 = vld [vmem:[%s3146 + $0x8c] sm:$0x1]
      %v3376 = vld [vmem:[%s3146 + $0x90] sm:$0xf]
      %v3377 = vld [vmem:[%s3146 + $0x94] sm:$0xf]
      %v3378 = vld [vmem:[%s3146 + $0x98] sm:$0x1]
      %v3379 = vld [vmem:[%s3146 + $0x9c] sm:$0xf]
      %v3380 = vld [vmem:[%s3146 + $0xa0] sm:$0xf]
      %v3381 = vld [vmem:[%s3146 + $0xa4] sm:$0x1]
      %v3382 = vld [vmem:[%s3146 + $0xa8] sm:$0xf]
      %v3383 = vld [vmem:[%s3146 + $0xac] sm:$0xf]
      %v3384 = vld [vmem:[%s3146 + $0xb0] sm:$0x1]
      %v3385 = vld [vmem:[%s3146 + $0xb4] sm:$0xf]
      %v3386 = vld [vmem:[%s3146 + $0xb8] sm:$0xf]
      %v3387 = vld [vmem:[%s3146 + $0xbc] sm:$0x1]
      %v3389 = vshrl.u32 %v3340, 16
      %v3391 = vrot.slane %v3389, 4
      %v3392 = vshll.u32 %v3340, 16
      %v3394 = vrot.slane %v3392, 5
      %v3395 = vor.u32 %v3391, %v3394
      %v3396 = vrot.slane %v3395, 4
      %v3398 = vshll.u32 %v3341, 16
      %v3400 = vrot.slane %v3398, 5
      %v3401 = vsel %vm1201, %v3396, %v3400
      %v3402 = vshrl.u32 %v3341, 16
      %v3404 = vrot.slane %v3402, 4
      %v3405 = vor.u32 %v3404, %v3400
      %v3406 = vrot.slane %v3405, 4
      %v3408 = vshll.u32 %v3342, 16
      %v3410 = vrot.slane %v3408, 5
      %v3411 = vsel %vm1201, %v3406, %v3410
      %v3413 = vshrl.u32 %v3343, 16
      %v3415 = vrot.slane %v3413, 4
      %v3416 = vshll.u32 %v3343, 16
      %v3418 = vrot.slane %v3416, 5
      %v3419 = vor.u32 %v3415, %v3418
      %v3420 = vrot.slane %v3419, 4
      %v3422 = vshll.u32 %v3344, 16
      %v3424 = vrot.slane %v3422, 5
      %v3425 = vsel %vm1201, %v3420, %v3424
      %v3426 = vshrl.u32 %v3344, 16
      %v3428 = vrot.slane %v3426, 4
      %v3429 = vor.u32 %v3428, %v3424
      %v3430 = vrot.slane %v3429, 4
      %v3432 = vshll.u32 %v3345, 16
      %v3434 = vrot.slane %v3432, 5
      %v3435 = vsel %vm1201, %v3430, %v3434
      %v3437 = vshrl.u32 %v3346, 16
      %v3439 = vrot.slane %v3437, 4
      %v3440 = vshll.u32 %v3346, 16
      %v3442 = vrot.slane %v3440, 5
      %v3443 = vor.u32 %v3439, %v3442
      %v3444 = vrot.slane %v3443, 4
      %v3446 = vshll.u32 %v3347, 16
      %v3448 = vrot.slane %v3446, 5
      %v3449 = vsel %vm1201, %v3444, %v3448
      %v3450 = vshrl.u32 %v3347, 16
      %v3452 = vrot.slane %v3450, 4
      %v3453 = vor.u32 %v3452, %v3448
      %v3454 = vrot.slane %v3453, 4
      %v3456 = vshll.u32 %v3348, 16
      %v3458 = vrot.slane %v3456, 5
      %v3459 = vsel %vm1201, %v3454, %v3458
      %v3461 = vshrl.u32 %v3349, 16
      %v3463 = vrot.slane %v3461, 4
      %v3464 = vshll.u32 %v3349, 16
      %v3466 = vrot.slane %v3464, 5
      %v3467 = vor.u32 %v3463, %v3466
      %v3468 = vrot.slane %v3467, 4
      %v3470 = vshll.u32 %v3350, 16
      %v3472 = vrot.slane %v3470, 5
      %v3473 = vsel %vm1201, %v3468, %v3472
      %v3474 = vshrl.u32 %v3350, 16
      %v3476 = vrot.slane %v3474, 4
      %v3477 = vor.u32 %v3476, %v3472
      %v3478 = vrot.slane %v3477, 4
      %v3480 = vshll.u32 %v3351, 16
      %v3482 = vrot.slane %v3480, 5
      %v3483 = vsel %vm1201, %v3478, %v3482
      %v3485 = vshrl.u32 %v3352, 16
      %v3487 = vrot.slane %v3485, 4
      %v3488 = vshll.u32 %v3352, 16
      %v3490 = vrot.slane %v3488, 5
      %v3491 = vor.u32 %v3487, %v3490
      %v3492 = vrot.slane %v3491, 4
      %v3494 = vshll.u32 %v3353, 16
      %v3496 = vrot.slane %v3494, 5
      %v3497 = vsel %vm1201, %v3492, %v3496
      %v3498 = vshrl.u32 %v3353, 16
      %v3500 = vrot.slane %v3498, 4
      %v3501 = vor.u32 %v3500, %v3496
      %v3502 = vrot.slane %v3501, 4
      %v3504 = vshll.u32 %v3354, 16
      %v3506 = vrot.slane %v3504, 5
      %v3507 = vsel %vm1201, %v3502, %v3506
      %v3509 = vshrl.u32 %v3355, 16
      %v3511 = vrot.slane %v3509, 4
      %v3512 = vshll.u32 %v3355, 16
      %v3514 = vrot.slane %v3512, 5
      %v3515 = vor.u32 %v3511, %v3514
      %v3516 = vrot.slane %v3515, 4
      %v3518 = vshll.u32 %v3356, 16
      %v3520 = vrot.slane %v3518, 5
      %v3521 = vsel %vm1201, %v3516, %v3520
      %v3522 = vshrl.u32 %v3356, 16
      %v3524 = vrot.slane %v3522, 4
      %v3525 = vor.u32 %v3524, %v3520
      %v3526 = vrot.slane %v3525, 4
      %v3528 = vshll.u32 %v3357, 16
      %v3530 = vrot.slane %v3528, 5
      %v3531 = vsel %vm1201, %v3526, %v3530
      %v3533 = vshrl.u32 %v3358, 16
      %v3535 = vrot.slane %v3533, 4
      %v3536 = vshll.u32 %v3358, 16
      %v3538 = vrot.slane %v3536, 5
      %v3539 = vor.u32 %v3535, %v3538
      %v3540 = vrot.slane %v3539, 4
      %v3542 = vshll.u32 %v3359, 16
      %v3544 = vrot.slane %v3542, 5
      %v3545 = vsel %vm1201, %v3540, %v3544
      %v3546 = vshrl.u32 %v3359, 16
      %v3548 = vrot.slane %v3546, 4
      %v3549 = vor.u32 %v3548, %v3544
      %v3550 = vrot.slane %v3549, 4
      %v3552 = vshll.u32 %v3360, 16
      %v3554 = vrot.slane %v3552, 5
      %v3555 = vsel %vm1201, %v3550, %v3554
      %v3557 = vshrl.u32 %v3361, 16
      %v3559 = vrot.slane %v3557, 4
      %v3560 = vshll.u32 %v3361, 16
      %v3562 = vrot.slane %v3560, 5
      %v3563 = vor.u32 %v3559, %v3562
      %v3564 = vrot.slane %v3563, 4
      %v3566 = vshll.u32 %v3362, 16
      %v3568 = vrot.slane %v3566, 5
      %v3569 = vsel %vm1201, %v3564, %v3568
      %v3570 = vshrl.u32 %v3362, 16
      %v3572 = vrot.slane %v3570, 4
      %v3573 = vor.u32 %v3572, %v3568
      %v3574 = vrot.slane %v3573, 4
      %v3576 = vshll.u32 %v3363, 16
      %v3578 = vrot.slane %v3576, 5
      %v3579 = vsel %vm1201, %v3574, %v3578
      %v3581 = vshrl.u32 %v3364, 16
      %v3583 = vrot.slane %v3581, 4
      %v3584 = vshll.u32 %v3364, 16
      %v3586 = vrot.slane %v3584, 5
      %v3587 = vor.u32 %v3583, %v3586
      %v3588 = vrot.slane %v3587, 4
      %v3590 = vshll.u32 %v3365, 16
      %v3592 = vrot.slane %v3590, 5
      %v3593 = vsel %vm1201, %v3588, %v3592
      %v3594 = vshrl.u32 %v3365, 16
      %v3596 = vrot.slane %v3594, 4
      %v3597 = vor.u32 %v3596, %v3592
      %v3598 = vrot.slane %v3597, 4
      %v3600 = vshll.u32 %v3366, 16
      %v3602 = vrot.slane %v3600, 5
      %v3603 = vsel %vm1201, %v3598, %v3602
      %v3605 = vshrl.u32 %v3367, 16
      %v3607 = vrot.slane %v3605, 4
      %v3608 = vshll.u32 %v3367, 16
      %v3610 = vrot.slane %v3608, 5
      %v3611 = vor.u32 %v3607, %v3610
      %v3612 = vrot.slane %v3611, 4
      %v3614 = vshll.u32 %v3368, 16
      %v3616 = vrot.slane %v3614, 5
      %v3617 = vsel %vm1201, %v3612, %v3616
      %v3618 = vshrl.u32 %v3368, 16
      %v3620 = vrot.slane %v3618, 4
      %v3621 = vor.u32 %v3620, %v3616
      %v3622 = vrot.slane %v3621, 4
      %v3624 = vshll.u32 %v3369, 16
      %v3626 = vrot.slane %v3624, 5
      %v3627 = vsel %vm1201, %v3622, %v3626
      %v3629 = vshrl.u32 %v3370, 16
      %v3631 = vrot.slane %v3629, 4
      %v3632 = vshll.u32 %v3370, 16
      %v3634 = vrot.slane %v3632, 5
      %v3635 = vor.u32 %v3631, %v3634
      %v3636 = vrot.slane %v3635, 4
      %v3638 = vshll.u32 %v3371, 16
      %v3640 = vrot.slane %v3638, 5
      %v3641 = vsel %vm1201, %v3636, %v3640
      %v3642 = vshrl.u32 %v3371, 16
      %v3644 = vrot.slane %v3642, 4
      %v3645 = vor.u32 %v3644, %v3640
      %v3646 = vrot.slane %v3645, 4
      %v3648 = vshll.u32 %v3372, 16
      %v3650 = vrot.slane %v3648, 5
      %v3651 = vsel %vm1201, %v3646, %v3650
      %v3653 = vshrl.u32 %v3373, 16
      %v3655 = vrot.slane %v3653, 4
      %v3656 = vshll.u32 %v3373, 16
      %v3658 = vrot.slane %v3656, 5
      %v3659 = vor.u32 %v3655, %v3658
      %v3660 = vrot.slane %v3659, 4
      %v3662 = vshll.u32 %v3374, 16
      %v3664 = vrot.slane %v3662, 5
      %v3665 = vsel %vm1201, %v3660, %v3664
      %v3666 = vshrl.u32 %v3374, 16
      %v3668 = vrot.slane %v3666, 4
      %v3669 = vor.u32 %v3668, %v3664
      %v3670 = vrot.slane %v3669, 4
      %v3672 = vshll.u32 %v3375, 16
      %v3674 = vrot.slane %v3672, 5
      %v3675 = vsel %vm1201, %v3670, %v3674
      %v3677 = vshrl.u32 %v3376, 16
      %v3679 = vrot.slane %v3677, 4
      %v3680 = vshll.u32 %v3376, 16
      %v3682 = vrot.slane %v3680, 5
      %v3683 = vor.u32 %v3679, %v3682
      %v3684 = vrot.slane %v3683, 4
      %v3686 = vshll.u32 %v3377, 16
      %v3688 = vrot.slane %v3686, 5
      %v3689 = vsel %vm1201, %v3684, %v3688
      %v3690 = vshrl.u32 %v3377, 16
      %v3692 = vrot.slane %v3690, 4
      %v3693 = vor.u32 %v3692, %v3688
      %v3694 = vrot.slane %v3693, 4
      %v3696 = vshll.u32 %v3378, 16
      %v3698 = vrot.slane %v3696, 5
      %v3699 = vsel %vm1201, %v3694, %v3698
      %v3701 = vshrl.u32 %v3379, 16
      %v3703 = vrot.slane %v3701, 4
      %v3704 = vshll.u32 %v3379, 16
      %v3706 = vrot.slane %v3704, 5
      %v3707 = vor.u32 %v3703, %v3706
      %v3708 = vrot.slane %v3707, 4
      %v3710 = vshll.u32 %v3380, 16
      %v3712 = vrot.slane %v3710, 5
      %v3713 = vsel %vm1201, %v3708, %v3712
      %v3714 = vshrl.u32 %v3380, 16
      %v3716 = vrot.slane %v3714, 4
      %v3717 = vor.u32 %v3716, %v3712
      %v3718 = vrot.slane %v3717, 4
      %v3720 = vshll.u32 %v3381, 16
      %v3722 = vrot.slane %v3720, 5
      %v3723 = vsel %vm1201, %v3718, %v3722
      %v3725 = vshrl.u32 %v3382, 16
      %v3727 = vrot.slane %v3725, 4
      %v3728 = vshll.u32 %v3382, 16
      %v3730 = vrot.slane %v3728, 5
      %v3731 = vor.u32 %v3727, %v3730
      %v3732 = vrot.slane %v3731, 4
      %v3734 = vshll.u32 %v3383, 16
      %v3736 = vrot.slane %v3734, 5
      %v3737 = vsel %vm1201, %v3732, %v3736
      %v3738 = vshrl.u32 %v3383, 16
      %v3740 = vrot.slane %v3738, 4
      %v3741 = vor.u32 %v3740, %v3736
      %v3742 = vrot.slane %v3741, 4
      %v3744 = vshll.u32 %v3384, 16
      %v3746 = vrot.slane %v3744, 5
      %v3747 = vsel %vm1201, %v3742, %v3746
      %v3749 = vshrl.u32 %v3385, 16
      %v3751 = vrot.slane %v3749, 4
      %v3752 = vshll.u32 %v3385, 16
      %v3754 = vrot.slane %v3752, 5
      %v3755 = vor.u32 %v3751, %v3754
      %v3756 = vrot.slane %v3755, 4
      %v3758 = vshll.u32 %v3386, 16
      %v3760 = vrot.slane %v3758, 5
      %v3761 = vsel %vm1201, %v3756, %v3760
      %v3762 = vshrl.u32 %v3386, 16
      %v3764 = vrot.slane %v3762, 4
      %v3765 = vor.u32 %v3764, %v3760
      %v3766 = vrot.slane %v3765, 4
      %v3768 = vshll.u32 %v3387, 16
      %v3770 = vrot.slane %v3768, 5
      %v3771 = vsel %vm1201, %v3766, %v3770
      %3772 = vrot.lane.b32.xlu0 %v3401, 28
      %v3773 = vpop.permute.xlu0 %3772
      %3774 = vrot.lane.b32.xlu0 %v3411, 28
      %v3775 = vpop.permute.xlu0 %3774
      %3776 = vrot.lane.b32.xlu0 %v3425, 28
      %v3777 = vpop.permute.xlu0 %3776
      %3778 = vrot.lane.b32.xlu0 %v3435, 28
      %v3779 = vpop.permute.xlu0 %3778
      %3780 = vrot.lane.b32.xlu0 %v3449, 28
      %v3781 = vpop.permute.xlu0 %3780
      %3782 = vrot.lane.b32.xlu0 %v3459, 28
      %v3783 = vpop.permute.xlu0 %3782
      %3784 = vrot.lane.b32.xlu0 %v3473, 28
      %v3785 = vpop.permute.xlu0 %3784
      %3786 = vrot.lane.b32.xlu0 %v3483, 28
      %v3787 = vpop.permute.xlu0 %3786
      %3788 = vrot.lane.b32.xlu0 %v3497, 28
      %v3789 = vpop.permute.xlu0 %3788
      %3790 = vrot.lane.b32.xlu0 %v3507, 28
      %v3791 = vpop.permute.xlu0 %3790
      %3792 = vrot.lane.b32.xlu0 %v3521, 28
      %v3793 = vpop.permute.xlu0 %3792
      %3794 = vrot.lane.b32.xlu0 %v3531, 28
      %v3795 = vpop.permute.xlu0 %3794
      %3796 = vrot.lane.b32.xlu0 %v3545, 28
      %v3797 = vpop.permute.xlu0 %3796
      %3798 = vrot.lane.b32.xlu0 %v3555, 28
      %v3799 = vpop.permute.xlu0 %3798
      %3800 = vrot.lane.b32.xlu0 %v3569, 28
      %v3801 = vpop.permute.xlu0 %3800
      %3802 = vrot.lane.b32.xlu0 %v3579, 28
      %v3803 = vpop.permute.xlu0 %3802
      %3804 = vrot.lane.b32.xlu0 %v3593, 28
      %v3805 = vpop.permute.xlu0 %3804
      %3806 = vrot.lane.b32.xlu0 %v3603, 28
      %v3807 = vpop.permute.xlu0 %3806
      %3808 = vrot.lane.b32.xlu0 %v3617, 28
      %v3809 = vpop.permute.xlu0 %3808
      %3810 = vrot.lane.b32.xlu0 %v3627, 28
      %v3811 = vpop.permute.xlu0 %3810
      %3812 = vrot.lane.b32.xlu0 %v3641, 28
      %v3813 = vpop.permute.xlu0 %3812
      %3814 = vrot.lane.b32.xlu0 %v3651, 28
      %v3815 = vpop.permute.xlu0 %3814
      %3816 = vrot.lane.b32.xlu0 %v3665, 28
      %v3817 = vpop.permute.xlu0 %3816
      %3818 = vrot.lane.b32.xlu0 %v3675, 28
      %v3819 = vpop.permute.xlu0 %3818
      %3820 = vrot.lane.b32.xlu0 %v3689, 28
      %v3821 = vpop.permute.xlu0 %3820
      %3822 = vrot.lane.b32.xlu0 %v3699, 28
      %v3823 = vpop.permute.xlu0 %3822
      %3824 = vrot.lane.b32.xlu0 %v3713, 28
      %v3825 = vpop.permute.xlu0 %3824
      %3826 = vrot.lane.b32.xlu0 %v3723, 28
      %v3827 = vpop.permute.xlu0 %3826
      %3828 = vrot.lane.b32.xlu0 %v3737, 28
      %v3829 = vpop.permute.xlu0 %3828
      %3830 = vrot.lane.b32.xlu0 %v3747, 28
      %v3831 = vpop.permute.xlu0 %3830
      %3832 = vrot.lane.b32.xlu0 %v3761, 28
      %v3833 = vpop.permute.xlu0 %3832
      %3834 = vrot.lane.b32.xlu0 %v3771, 28
      %v3835 = vpop.permute.xlu0 %3834
      %vm3868 = vcmask 257248
      %3869 = vst.msk [vmem:[#allocation3] sm:$0xf] %vm3868, %v3773
      %3870 = vst.msk [vmem:[#allocation3 + $0x4] sm:$0xf] %vm3868, %v3775
      %3871 = vst.msk [vmem:[#allocation3 + $0x8] sm:$0xf] %vm3868, %v3777
      %3872 = vst.msk [vmem:[#allocation3 + $0xc] sm:$0xf] %vm3868, %v3779
      %3873 = vst.msk [vmem:[#allocation3 + $0x10] sm:$0xf] %vm3868, %v3781
      %3874 = vst.msk [vmem:[#allocation3 + $0x14] sm:$0xf] %vm3868, %v3783
      %3875 = vst.msk [vmem:[#allocation3 + $0x18] sm:$0xf] %vm3868, %v3785
      %3876 = vst.msk [vmem:[#allocation3 + $0x1c] sm:$0xf] %vm3868, %v3787
      %3877 = vst.msk [vmem:[#allocation3 + $0x20] sm:$0xf] %vm3868, %v3789
      %3878 = vst.msk [vmem:[#allocation3 + $0x24] sm:$0xf] %vm3868, %v3791
      %3879 = vst.msk [vmem:[#allocation3 + $0x28] sm:$0xf] %vm3868, %v3793
      %3880 = vst.msk [vmem:[#allocation3 + $0x2c] sm:$0xf] %vm3868, %v3795
      %3881 = vst.msk [vmem:[#allocation3 + $0x30] sm:$0xf] %vm3868, %v3797
      %3882 = vst.msk [vmem:[#allocation3 + $0x34] sm:$0xf] %vm3868, %v3799
      %3883 = vst.msk [vmem:[#allocation3 + $0x38] sm:$0xf] %vm3868, %v3801
      %3884 = vst.msk [vmem:[#allocation3 + $0x3c] sm:$0xf] %vm3868, %v3803
      %3885 = vst.msk [vmem:[#allocation3 + $0x40] sm:$0xf] %vm3868, %v3805
      %3886 = vst.msk [vmem:[#allocation3 + $0x44] sm:$0xf] %vm3868, %v3807
      %3887 = vst.msk [vmem:[#allocation3 + $0x48] sm:$0xf] %vm3868, %v3809
      %3888 = vst.msk [vmem:[#allocation3 + $0x4c] sm:$0xf] %vm3868, %v3811
      %3889 = vst.msk [vmem:[#allocation3 + $0x50] sm:$0xf] %vm3868, %v3813
      %3890 = vst.msk [vmem:[#allocation3 + $0x54] sm:$0xf] %vm3868, %v3815
      %3891 = vst.msk [vmem:[#allocation3 + $0x58] sm:$0xf] %vm3868, %v3817
      %3892 = vst.msk [vmem:[#allocation3 + $0x5c] sm:$0xf] %vm3868, %v3819
      %3893 = vst.msk [vmem:[#allocation3 + $0x60] sm:$0xf] %vm3868, %v3821
      %3894 = vst.msk [vmem:[#allocation3 + $0x64] sm:$0xf] %vm3868, %v3823
      %3895 = vst.msk [vmem:[#allocation3 + $0x68] sm:$0xf] %vm3868, %v3825
      %3896 = vst.msk [vmem:[#allocation3 + $0x6c] sm:$0xf] %vm3868, %v3827
      %3897 = vst.msk [vmem:[#allocation3 + $0x70] sm:$0xf] %vm3868, %v3829
      %3898 = vst.msk [vmem:[#allocation3 + $0x74] sm:$0xf] %vm3868, %v3831
      %3899 = vst.msk [vmem:[#allocation3 + $0x78] sm:$0xf] %vm3868, %v3833
      %3900 = vst.msk [vmem:[#allocation3 + $0x7c] sm:$0xf] %vm3868, %v3835
      %v3901 = vld [vmem:[%s3146] sm:$0xe]
      %v3902 = vld [vmem:[%s3146 + $0x4] sm:$0xf]
      %v3903 = vld [vmem:[%s3146 + $0x8] sm:$0x1]
      %v3904 = vld [vmem:[%s3146 + $0xc] sm:$0xe]
      %v3905 = vld [vmem:[%s3146 + $0x10] sm:$0xf]
      %v3906 = vld [vmem:[%s3146 + $0x14] sm:$0x1]
      %v3907 = vld [vmem:[%s3146 + $0x18] sm:$0xe]
      %v3908 = vld [vmem:[%s3146 + $0x1c] sm:$0xf]
      %v3909 = vld [vmem:[%s3146 + $0x20] sm:$0x1]
      %v3910 = vld [vmem:[%s3146 + $0x24] sm:$0xe]
      %v3911 = vld [vmem:[%s3146 + $0x28] sm:$0xf]
      %v3912 = vld [vmem:[%s3146 + $0x2c] sm:$0x1]
      %v3913 = vld [vmem:[%s3146 + $0x30] sm:$0xe]
      %v3914 = vld [vmem:[%s3146 + $0x34] sm:$0xf]
      %v3915 = vld [vmem:[%s3146 + $0x38] sm:$0x1]
      %v3916 = vld [vmem:[%s3146 + $0x3c] sm:$0xe]
      %v3917 = vld [vmem:[%s3146 + $0x40] sm:$0xf]
      %v3918 = vld [vmem:[%s3146 + $0x44] sm:$0x1]
      %v3919 = vld [vmem:[%s3146 + $0x48] sm:$0xe]
      %v3920 = vld [vmem:[%s3146 + $0x4c] sm:$0xf]
      %v3921 = vld [vmem:[%s3146 + $0x50] sm:$0x1]
      %v3922 = vld [vmem:[%s3146 + $0x54] sm:$0xe]
      %v3923 = vld [vmem:[%s3146 + $0x58] sm:$0xf]
      %v3924 = vld [vmem:[%s3146 + $0x5c] sm:$0x1]
      %v3925 = vld [vmem:[%s3146 + $0x60] sm:$0xe]
      %v3926 = vld [vmem:[%s3146 + $0x64] sm:$0xf]
      %v3927 = vld [vmem:[%s3146 + $0x68] sm:$0x1]
      %v3928 = vld [vmem:[%s3146 + $0x6c] sm:$0xe]
      %v3929 = vld [vmem:[%s3146 + $0x70] sm:$0xf]
      %v3930 = vld [vmem:[%s3146 + $0x74] sm:$0x1]
      %v3931 = vld [vmem:[%s3146 + $0x78] sm:$0xe]
      %v3932 = vld [vmem:[%s3146 + $0x7c] sm:$0xf]
      %v3933 = vld [vmem:[%s3146 + $0x80] sm:$0x1]
      %v3934 = vld [vmem:[%s3146 + $0x84] sm:$0xe]
      %v3935 = vld [vmem:[%s3146 + $0x88] sm:$0xf]
      %v3936 = vld [vmem:[%s3146 + $0x8c] sm:$0x1]
      %v3937 = vld [vmem:[%s3146 + $0x90] sm:$0xe]
      %v3938 = vld [vmem:[%s3146 + $0x94] sm:$0xf]
      %v3939 = vld [vmem:[%s3146 + $0x98] sm:$0x1]
      %v3940 = vld [vmem:[%s3146 + $0x9c] sm:$0xe]
      %v3941 = vld [vmem:[%s3146 + $0xa0] sm:$0xf]
      %v3942 = vld [vmem:[%s3146 + $0xa4] sm:$0x1]
      %v3943 = vld [vmem:[%s3146 + $0xa8] sm:$0xe]
      %v3944 = vld [vmem:[%s3146 + $0xac] sm:$0xf]
      %v3945 = vld [vmem:[%s3146 + $0xb0] sm:$0x1]
      %v3946 = vld [vmem:[%s3146 + $0xb4] sm:$0xe]
      %v3947 = vld [vmem:[%s3146 + $0xb8] sm:$0xf]
      %v3948 = vld [vmem:[%s3146 + $0xbc] sm:$0x1]
      %v3997 = vrot.slane %v3901, 5
      %v3998 = vrot.slane %v3997, 4
      %v3999 = vrot.slane %v3902, 5
      %v4000 = vsel %vm1813, %v3998, %v3999
      %v4001 = vrot.slane %v3999, 4
      %v4002 = vrot.slane %v3903, 5
      %v4003 = vsel %vm1813, %v4001, %v4002
      %v4004 = vrot.slane %v3904, 5
      %v4005 = vrot.slane %v4004, 4
      %v4006 = vrot.slane %v3905, 5
      %v4007 = vsel %vm1813, %v4005, %v4006
      %v4008 = vrot.slane %v4006, 4
      %v4009 = vrot.slane %v3906, 5
      %v4010 = vsel %vm1813, %v4008, %v4009
      %v4011 = vrot.slane %v3907, 5
      %v4012 = vrot.slane %v4011, 4
      %v4013 = vrot.slane %v3908, 5
      %v4014 = vsel %vm1813, %v4012, %v4013
      %v4015 = vrot.slane %v4013, 4
      %v4016 = vrot.slane %v3909, 5
      %v4017 = vsel %vm1813, %v4015, %v4016
      %v4018 = vrot.slane %v3910, 5
      %v4019 = vrot.slane %v4018, 4
      %v4020 = vrot.slane %v3911, 5
      %v4021 = vsel %vm1813, %v4019, %v4020
      %v4022 = vrot.slane %v4020, 4
      %v4023 = vrot.slane %v3912, 5
      %v4024 = vsel %vm1813, %v4022, %v4023
      %v4025 = vrot.slane %v3913, 5
      %v4026 = vrot.slane %v4025, 4
      %v4027 = vrot.slane %v3914, 5
      %v4028 = vsel %vm1813, %v4026, %v4027
      %v4029 = vrot.slane %v4027, 4
      %v4030 = vrot.slane %v3915, 5
      %v4031 = vsel %vm1813, %v4029, %v4030
      %v4032 = vrot.slane %v3916, 5
      %v4033 = vrot.slane %v4032, 4
      %v4034 = vrot.slane %v3917, 5
      %v4035 = vsel %vm1813, %v4033, %v4034
      %v4036 = vrot.slane %v4034, 4
      %v4037 = vrot.slane %v3918, 5
      %v4038 = vsel %vm1813, %v4036, %v4037
      %v4039 = vrot.slane %v3919, 5
      %v4040 = vrot.slane %v4039, 4
      %v4041 = vrot.slane %v3920, 5
      %v4042 = vsel %vm1813, %v4040, %v4041
      %v4043 = vrot.slane %v4041, 4
      %v4044 = vrot.slane %v3921, 5
      %v4045 = vsel %vm1813, %v4043, %v4044
      %v4046 = vrot.slane %v3922, 5
      %v4047 = vrot.slane %v4046, 4
      %v4048 = vrot.slane %v3923, 5
      %v4049 = vsel %vm1813, %v4047, %v4048
      %v4050 = vrot.slane %v4048, 4
      %v4051 = vrot.slane %v3924, 5
      %v4052 = vsel %vm1813, %v4050, %v4051
      %v4053 = vrot.slane %v3925, 5
      %v4054 = vrot.slane %v4053, 4
      %v4055 = vrot.slane %v3926, 5
      %v4056 = vsel %vm1813, %v4054, %v4055
      %v4057 = vrot.slane %v4055, 4
      %v4058 = vrot.slane %v3927, 5
      %v4059 = vsel %vm1813, %v4057, %v4058
      %v4060 = vrot.slane %v3928, 5
      %v4061 = vrot.slane %v4060, 4
      %v4062 = vrot.slane %v3929, 5
      %v4063 = vsel %vm1813, %v4061, %v4062
      %v4064 = vrot.slane %v4062, 4
      %v4065 = vrot.slane %v3930, 5
      %v4066 = vsel %vm1813, %v4064, %v4065
      %v4067 = vrot.slane %v3931, 5
      %v4068 = vrot.slane %v4067, 4
      %v4069 = vrot.slane %v3932, 5
      %v4070 = vsel %vm1813, %v4068, %v4069
      %v4071 = vrot.slane %v4069, 4
      %v4072 = vrot.slane %v3933, 5
      %v4073 = vsel %vm1813, %v4071, %v4072
      %v4074 = vrot.slane %v3934, 5
      %v4075 = vrot.slane %v4074, 4
      %v4076 = vrot.slane %v3935, 5
      %v4077 = vsel %vm1813, %v4075, %v4076
      %v4078 = vrot.slane %v4076, 4
      %v4079 = vrot.slane %v3936, 5
      %v4080 = vsel %vm1813, %v4078, %v4079
      %v4081 = vrot.slane %v3937, 5
      %v4082 = vrot.slane %v4081, 4
      %v4083 = vrot.slane %v3938, 5
      %v4084 = vsel %vm1813, %v4082, %v4083
      %v4085 = vrot.slane %v4083, 4
      %v4086 = vrot.slane %v3939, 5
      %v4087 = vsel %vm1813, %v4085, %v4086
      %v4088 = vrot.slane %v3940, 5
      %v4089 = vrot.slane %v4088, 4
      %v4090 = vrot.slane %v3941, 5
      %v4091 = vsel %vm1813, %v4089, %v4090
      %v4092 = vrot.slane %v4090, 4
      %v4093 = vrot.slane %v3942, 5
      %v4094 = vsel %vm1813, %v4092, %v4093
      %v4095 = vrot.slane %v3943, 5
      %v4096 = vrot.slane %v4095, 4
      %v4097 = vrot.slane %v3944, 5
      %v4098 = vsel %vm1813, %v4096, %v4097
      %v4099 = vrot.slane %v4097, 4
      %v4100 = vrot.slane %v3945, 5
      %v4101 = vsel %vm1813, %v4099, %v4100
      %v4102 = vrot.slane %v3946, 5
      %v4103 = vrot.slane %v4102, 4
      %v4104 = vrot.slane %v3947, 5
      %v4105 = vsel %vm1813, %v4103, %v4104
      %v4106 = vrot.slane %v4104, 4
      %v4107 = vrot.slane %v3948, 5
      %v4108 = vsel %vm1813, %v4106, %v4107
      %4109 = vrot.lane.b32.xlu0 %v4000, 32
      %v4110 = vpop.permute.xlu0 %4109
      %4111 = vrot.lane.b32.xlu0 %v4003, 32
      %v4112 = vpop.permute.xlu0 %4111
      %4113 = vrot.lane.b32.xlu0 %v4007, 32
      %v4114 = vpop.permute.xlu0 %4113
      %4115 = vrot.lane.b32.xlu0 %v4010, 32
      %v4116 = vpop.permute.xlu0 %4115
      %4117 = vrot.lane.b32.xlu0 %v4014, 32
      %v4118 = vpop.permute.xlu0 %4117
      %4119 = vrot.lane.b32.xlu0 %v4017, 32
      %v4120 = vpop.permute.xlu0 %4119
      %4121 = vrot.lane.b32.xlu0 %v4021, 32
      %v4122 = vpop.permute.xlu0 %4121
      %4123 = vrot.lane.b32.xlu0 %v4024, 32
      %v4124 = vpop.permute.xlu0 %4123
      %4125 = vrot.lane.b32.xlu0 %v4028, 32
      %v4126 = vpop.permute.xlu0 %4125
      %4127 = vrot.lane.b32.xlu0 %v4031, 32
      %v4128 = vpop.permute.xlu0 %4127
      %4129 = vrot.lane.b32.xlu0 %v4035, 32
      %v4130 = vpop.permute.xlu0 %4129
      %4131 = vrot.lane.b32.xlu0 %v4038, 32
      %v4132 = vpop.permute.xlu0 %4131
      %4133 = vrot.lane.b32.xlu0 %v4042, 32
      %v4134 = vpop.permute.xlu0 %4133
      %4135 = vrot.lane.b32.xlu0 %v4045, 32
      %v4136 = vpop.permute.xlu0 %4135
      %4137 = vrot.lane.b32.xlu0 %v4049, 32
      %v4138 = vpop.permute.xlu0 %4137
      %4139 = vrot.lane.b32.xlu0 %v4052, 32
      %v4140 = vpop.permute.xlu0 %4139
      %4141 = vrot.lane.b32.xlu0 %v4056, 32
      %v4142 = vpop.permute.xlu0 %4141
      %4143 = vrot.lane.b32.xlu0 %v4059, 32
      %v4144 = vpop.permute.xlu0 %4143
      %4145 = vrot.lane.b32.xlu0 %v4063, 32
      %v4146 = vpop.permute.xlu0 %4145
      %4147 = vrot.lane.b32.xlu0 %v4066, 32
      %v4148 = vpop.permute.xlu0 %4147
      %4149 = vrot.lane.b32.xlu0 %v4070, 32
      %v4150 = vpop.permute.xlu0 %4149
      %4151 = vrot.lane.b32.xlu0 %v4073, 32
      %v4152 = vpop.permute.xlu0 %4151
      %4153 = vrot.lane.b32.xlu0 %v4077, 32
      %v4154 = vpop.permute.xlu0 %4153
      %4155 = vrot.lane.b32.xlu0 %v4080, 32
      %v4156 = vpop.permute.xlu0 %4155
      %4157 = vrot.lane.b32.xlu0 %v4084, 32
      %v4158 = vpop.permute.xlu0 %4157
      %4159 = vrot.lane.b32.xlu0 %v4087, 32
      %v4160 = vpop.permute.xlu0 %4159
      %4161 = vrot.lane.b32.xlu0 %v4091, 32
      %v4162 = vpop.permute.xlu0 %4161
      %4163 = vrot.lane.b32.xlu0 %v4094, 32
      %v4164 = vpop.permute.xlu0 %4163
      %4165 = vrot.lane.b32.xlu0 %v4098, 32
      %v4166 = vpop.permute.xlu0 %4165
      %4167 = vrot.lane.b32.xlu0 %v4101, 32
      %v4168 = vpop.permute.xlu0 %4167
      %4169 = vrot.lane.b32.xlu0 %v4105, 32
      %v4170 = vpop.permute.xlu0 %4169
      %4171 = vrot.lane.b32.xlu0 %v4108, 32
      %v4172 = vpop.permute.xlu0 %4171
      %vm4205 = vcmask 290048
      %4206 = vst.msk [vmem:[#allocation3] sm:$0xf] %vm4205, %v4110
      %4207 = vst.msk [vmem:[#allocation3 + $0x4] sm:$0xf] %vm4205, %v4112
      %4208 = vst.msk [vmem:[#allocation3 + $0x8] sm:$0xf] %vm4205, %v4114
      %4209 = vst.msk [vmem:[#allocation3 + $0xc] sm:$0xf] %vm4205, %v4116
      %4210 = vst.msk [vmem:[#allocation3 + $0x10] sm:$0xf] %vm4205, %v4118
      %4211 = vst.msk [vmem:[#allocation3 + $0x14] sm:$0xf] %vm4205, %v4120
      %4212 = vst.msk [vmem:[#allocation3 + $0x18] sm:$0xf] %vm4205, %v4122
      %4213 = vst.msk [vmem:[#allocation3 + $0x1c] sm:$0xf] %vm4205, %v4124
      %4214 = vst.msk [vmem:[#allocation3 + $0x20] sm:$0xf] %vm4205, %v4126
      %4215 = vst.msk [vmem:[#allocation3 + $0x24] sm:$0xf] %vm4205, %v4128
      %4216 = vst.msk [vmem:[#allocation3 + $0x28] sm:$0xf] %vm4205, %v4130
      %4217 = vst.msk [vmem:[#allocation3 + $0x2c] sm:$0xf] %vm4205, %v4132
      %4218 = vst.msk [vmem:[#allocation3 + $0x30] sm:$0xf] %vm4205, %v4134
      %4219 = vst.msk [vmem:[#allocation3 + $0x34] sm:$0xf] %vm4205, %v4136
      %4220 = vst.msk [vmem:[#allocation3 + $0x38] sm:$0xf] %vm4205, %v4138
      %4221 = vst.msk [vmem:[#allocation3 + $0x3c] sm:$0xf] %vm4205, %v4140
      %4222 = vst.msk [vmem:[#allocation3 + $0x40] sm:$0xf] %vm4205, %v4142
      %4223 = vst.msk [vmem:[#allocation3 + $0x44] sm:$0xf] %vm4205, %v4144
      %4224 = vst.msk [vmem:[#allocation3 + $0x48] sm:$0xf] %vm4205, %v4146
      %4225 = vst.msk [vmem:[#allocation3 + $0x4c] sm:$0xf] %vm4205, %v4148
      %4226 = vst.msk [vmem:[#allocation3 + $0x50] sm:$0xf] %vm4205, %v4150
      %4227 = vst.msk [vmem:[#allocation3 + $0x54] sm:$0xf] %vm4205, %v4152
      %4228 = vst.msk [vmem:[#allocation3 + $0x58] sm:$0xf] %vm4205, %v4154
      %4229 = vst.msk [vmem:[#allocation3 + $0x5c] sm:$0xf] %vm4205, %v4156
      %4230 = vst.msk [vmem:[#allocation3 + $0x60] sm:$0xf] %vm4205, %v4158
      %4231 = vst.msk [vmem:[#allocation3 + $0x64] sm:$0xf] %vm4205, %v4160
      %4232 = vst.msk [vmem:[#allocation3 + $0x68] sm:$0xf] %vm4205, %v4162
      %4233 = vst.msk [vmem:[#allocation3 + $0x6c] sm:$0xf] %vm4205, %v4164
      %4234 = vst.msk [vmem:[#allocation3 + $0x70] sm:$0xf] %vm4205, %v4166
      %4235 = vst.msk [vmem:[#allocation3 + $0x74] sm:$0xf] %vm4205, %v4168
      %4236 = vst.msk [vmem:[#allocation3 + $0x78] sm:$0xf] %vm4205, %v4170
      %4237 = vst.msk [vmem:[#allocation3 + $0x7c] sm:$0xf] %vm4205, %v4172
      %v4238 = vld [vmem:[#allocation3] sm:$0xf]
      %v4239 = vld [vmem:[#allocation3 + $0x4] sm:$0xf]
      %v4240 = vld [vmem:[#allocation3 + $0x8] sm:$0xf]
      %v4241 = vld [vmem:[#allocation3 + $0xc] sm:$0xf]
      %v4242 = vld [vmem:[#allocation3 + $0x10] sm:$0xf]
      %v4243 = vld [vmem:[#allocation3 + $0x14] sm:$0xf]
      %v4244 = vld [vmem:[#allocation3 + $0x18] sm:$0xf]
      %v4245 = vld [vmem:[#allocation3 + $0x1c] sm:$0xf]
      %v4246 = vld [vmem:[#allocation3 + $0x20] sm:$0xf]
      %v4247 = vld [vmem:[#allocation3 + $0x24] sm:$0xf]
      %v4248 = vld [vmem:[#allocation3 + $0x28] sm:$0xf]
      %v4249 = vld [vmem:[#allocation3 + $0x2c] sm:$0xf]
      %v4250 = vld [vmem:[#allocation3 + $0x30] sm:$0xf]
      %v4251 = vld [vmem:[#allocation3 + $0x34] sm:$0xf]
      %v4252 = vld [vmem:[#allocation3 + $0x38] sm:$0xf]
      %v4253 = vld [vmem:[#allocation3 + $0x3c] sm:$0xf]
      %v4254 = vld [vmem:[#allocation3 + $0x40] sm:$0xf]
      %v4255 = vld [vmem:[#allocation3 + $0x44] sm:$0xf]
      %v4256 = vld [vmem:[#allocation3 + $0x48] sm:$0xf]
      %v4257 = vld [vmem:[#allocation3 + $0x4c] sm:$0xf]
      %v4258 = vld [vmem:[#allocation3 + $0x50] sm:$0xf]
      %v4259 = vld [vmem:[#allocation3 + $0x54] sm:$0xf]
      %v4260 = vld [vmem:[#allocation3 + $0x58] sm:$0xf]
      %v4261 = vld [vmem:[#allocation3 + $0x5c] sm:$0xf]
      %v4262 = vld [vmem:[#allocation3 + $0x60] sm:$0xf]
      %v4263 = vld [vmem:[#allocation3 + $0x64] sm:$0xf]
      %v4264 = vld [vmem:[#allocation3 + $0x68] sm:$0xf]
      %v4265 = vld [vmem:[#allocation3 + $0x6c] sm:$0xf]
      %v4266 = vld [vmem:[#allocation3 + $0x70] sm:$0xf]
      %v4267 = vld [vmem:[#allocation3 + $0x74] sm:$0xf]
      %v4268 = vld [vmem:[#allocation3 + $0x78] sm:$0xf]
      %v4269 = vld [vmem:[#allocation3 + $0x7c] sm:$0xf]
      %v4270 = vld [vmem:[%s3] sm:$0xf]
      %v4271 = vld [vmem:[%s3 + $0x4] sm:$0xf]
      %v4272 = vld [vmem:[%s3 + $0x8] sm:$0xf]
      %v4273 = vld [vmem:[%s3 + $0xc] sm:$0xf]
      %v4274 = vld [vmem:[%s3 + $0x10] sm:$0x3]
      %v4307 = vunpack.c.l.b16 %v4238
      %v4308 = vunpack.c.l.b16 %v4239
      %v4309 = vunpack.c.l.b16 %v4240
      %v4310 = vunpack.c.l.b16 %v4241
      %v4311 = vunpack.c.l.b16 %v4242
      %v4312 = vunpack.c.l.b16 %v4243
      %v4313 = vunpack.c.l.b16 %v4244
      %v4314 = vunpack.c.l.b16 %v4245
      %v4315 = vunpack.c.l.b16 %v4246
      %v4316 = vunpack.c.l.b16 %v4247
      %v4317 = vunpack.c.l.b16 %v4248
      %v4318 = vunpack.c.l.b16 %v4249
      %v4319 = vunpack.c.l.b16 %v4250
      %v4320 = vunpack.c.l.b16 %v4251
      %v4321 = vunpack.c.l.b16 %v4252
      %v4322 = vunpack.c.l.b16 %v4253
      %v4323 = vunpack.c.l.b16 %v4254
      %v4324 = vunpack.c.l.b16 %v4255
      %v4325 = vunpack.c.l.b16 %v4256
      %v4326 = vunpack.c.l.b16 %v4257
      %v4327 = vunpack.c.l.b16 %v4258
      %v4328 = vunpack.c.l.b16 %v4259
      %v4329 = vunpack.c.l.b16 %v4260
      %v4330 = vunpack.c.l.b16 %v4261
      %v4331 = vunpack.c.l.b16 %v4262
      %v4332 = vunpack.c.l.b16 %v4263
      %v4333 = vunpack.c.l.b16 %v4264
      %v4334 = vunpack.c.l.b16 %v4265
      %v4335 = vunpack.c.l.b16 %v4266
      %v4336 = vunpack.c.l.b16 %v4267
      %v4337 = vunpack.c.l.b16 %v4268
      %v4338 = vunpack.c.l.b16 %v4269
      %v4339 = vpack.c.b16 %v4308, %v4307
      %v4340 = vpack.c.b16 %v4310, %v4309
      %v4341 = vpack.c.b16 %v4312, %v4311
      %v4342 = vpack.c.b16 %v4314, %v4313
      %v4343 = vpack.c.b16 %v4316, %v4315
      %v4344 = vpack.c.b16 %v4318, %v4317
      %v4345 = vpack.c.b16 %v4320, %v4319
      %v4346 = vpack.c.b16 %v4322, %v4321
      %v4347 = vpack.c.b16 %v4324, %v4323
      %v4348 = vpack.c.b16 %v4326, %v4325
      %v4349 = vpack.c.b16 %v4328, %v4327
      %v4350 = vpack.c.b16 %v4330, %v4329
      %v4351 = vpack.c.b16 %v4332, %v4331
      %v4352 = vpack.c.b16 %v4334, %v4333
      %v4353 = vpack.c.b16 %v4336, %v4335
      %v4354 = vpack.c.b16 %v4338, %v4337
      %v4360 = vunpack.c.l.b16 %v4270
      %v4361 = vunpack.c.l.b16 %v4271
      %v4362 = vunpack.c.l.b16 %v4272
      %v4363 = vunpack.c.l.b16 %v4273
      %v4364 = vunpack.c.l.b16 %v4274
      %v4365 = vpack.c.b16 %v4361, %v4360
      %v4366 = vpack.c.b16 %v4363, %v4362
      %v4367 = vpack.c.b16 %v4364, %v4364
      %vm4370 = vcmask 293888
      %v4372 = vsel %vm4370, %v4339, 0
      %v4375 = vsel %vm4370, %v4340, 0
      %v4378 = vsel %vm4370, %v4341, 0
      %v4381 = vsel %vm4370, %v4342, 0
      %v4384 = vsel %vm4370, %v4343, 0
      %v4387 = vsel %vm4370, %v4344, 0
      %v4390 = vsel %vm4370, %v4345, 0
      %v4393 = vsel %vm4370, %v4346, 0
      %v4396 = vsel %vm4370, %v4347, 0
      %v4399 = vsel %vm4370, %v4348, 0
      %v4402 = vsel %vm4370, %v4349, 0
      %v4405 = vsel %vm4370, %v4350, 0
      %v4408 = vsel %vm4370, %v4351, 0
      %v4411 = vsel %vm4370, %v4352, 0
      %v4414 = vsel %vm4370, %v4353, 0
      %v4417 = vsel %vm4370, %v4354, 0
      %vm4419 = vcmask 1041408
      %v4421 = vsel %vm4419, %v4367, 0
      %4423 = vmatprep.subr.bf16.mxu0 0
      %4424 = vmatpush1.bf16.msra.mxu0 0
      %4425 = vmatprep.subr.bf16.mxu0 0
      %4426 = vmatpush1.bf16.msra.mxu0 0
      %4427 = vmatprep.subr.bf16.mxu0 0
      %4428 = vmatpush1.bf16.msra.mxu0 0
      %4429 = vmatprep.subr.bf16.mxu0 0
      %4430 = vmatpush1.bf16.msra.mxu0 0
      %4431 = vmatprep.subr.bf16.mxu0 0
      %4432 = vmatpush1.bf16.msra.mxu0 0
      %4433 = vmatprep.subr.bf16.mxu0 0
      %4434 = vmatpush1.bf16.msra.mxu0 %v4421
      %4435 = vmatprep.subr.bf16.mxu0 0
      %4436 = vmatpush1.bf16.msra.mxu0 %v4366
      %4437 = vmatprep.subr.bf16.mxu0 0
      %4438 = vmatpush1.bf16.msra.mxu0 %v4365
      %4439 = vmatprep.subr.bf16.mxu0 0
      %4440 = vmatpush2.bf16.msra.mxu0 0
      %4441 = vmatprep.subr.bf16.mxu0 0
      %4442 = vmatpush2.bf16.msra.mxu0 0
      %4443 = vmatprep.subr.bf16.mxu0 0
      %4444 = vmatpush2.bf16.msra.mxu0 0
      %4445 = vmatprep.subr.bf16.mxu0 0
      %4446 = vmatpush2.bf16.msra.mxu0 0
      %4447 = vmatprep.subr.bf16.mxu0 0
      %4448 = vmatpush2.bf16.msra.mxu0 0
      %4449 = vmatprep.subr.bf16.mxu0 0
      %4450 = vmatpush2.bf16.msra.mxu0 0
      %4451 = vmatprep.subr.bf16.mxu0 0
      %4452 = vmatpush2.bf16.msra.mxu0 0
      %4453 = vmatprep.subr.bf16.mxu0 0
      %4454 = vmatpush2.bf16.msra.mxu0 0
      %4455 = vmatprep.mubr.bf16.mxu0 0
      %4456 = vmatmul.mubr.bf16.gmra.mxu0 %v4372
      %v4457 = vpop.f32.mrf.mxu0
      %v4458 = vadd.f32 0.0, %v4457
      %v4459 = vpop.f32.mrf.mxu0
      %v4460 = vpop.f32.mrf.mxu0
      %v4461 = vadd.f32 0.0, %v4460
      %v4462 = vpop.f32.mrf.mxu0
      %4463 = vmatprep.mubr.bf16.mxu0 0
      %4464 = vmatmul.mubr.bf16.gmra.mxu0 %v4375
      %v4465 = vpop.f32.mrf.mxu0
      %v4466 = vadd.f32 0.0, %v4465
      %v4467 = vpop.f32.mrf.mxu0
      %v4468 = vpop.f32.mrf.mxu0
      %v4469 = vadd.f32 0.0, %v4468
      %v4470 = vpop.f32.mrf.mxu0
      %4471 = vmatprep.mubr.bf16.mxu0 0
      %4472 = vmatmul.mubr.bf16.gmra.mxu0 %v4378
      %v4473 = vpop.f32.mrf.mxu0
      %v4474 = vadd.f32 0.0, %v4473
      %v4475 = vpop.f32.mrf.mxu0
      %v4476 = vpop.f32.mrf.mxu0
      %v4477 = vadd.f32 0.0, %v4476
      %v4478 = vpop.f32.mrf.mxu0
      %4479 = vmatprep.mubr.bf16.mxu0 0
      %4480 = vmatmul.mubr.bf16.gmra.mxu0 %v4381
      %v4481 = vpop.f32.mrf.mxu0
      %v4482 = vadd.f32 0.0, %v4481
      %v4483 = vpop.f32.mrf.mxu0
      %v4484 = vpop.f32.mrf.mxu0
      %v4485 = vadd.f32 0.0, %v4484
      %v4486 = vpop.f32.mrf.mxu0
      %4487 = vmatprep.mubr.bf16.mxu0 0
      %4488 = vmatmul.mubr.bf16.gmra.mxu0 %v4384
      %v4489 = vpop.f32.mrf.mxu0
      %v4490 = vadd.f32 0.0, %v4489
      %v4491 = vpop.f32.mrf.mxu0
      %v4492 = vpop.f32.mrf.mxu0
      %v4493 = vadd.f32 0.0, %v4492
      %v4494 = vpop.f32.mrf.mxu0
      %4495 = vmatprep.mubr.bf16.mxu0 0
      %4496 = vmatmul.mubr.bf16.gmra.mxu0 %v4387
      %v4497 = vpop.f32.mrf.mxu0
      %v4498 = vadd.f32 0.0, %v4497
      %v4499 = vpop.f32.mrf.mxu0
      %v4500 = vpop.f32.mrf.mxu0
      %v4501 = vadd.f32 0.0, %v4500
      %v4502 = vpop.f32.mrf.mxu0
      %4503 = vmatprep.mubr.bf16.mxu0 0
      %4504 = vmatmul.mubr.bf16.gmra.mxu0 %v4390
      %v4505 = vpop.f32.mrf.mxu0
      %v4506 = vadd.f32 0.0, %v4505
      %v4507 = vpop.f32.mrf.mxu0
      %v4508 = vpop.f32.mrf.mxu0
      %v4509 = vadd.f32 0.0, %v4508
      %v4510 = vpop.f32.mrf.mxu0
      %4511 = vmatprep.mubr.bf16.mxu0 0
      %4512 = vmatmul.mubr.bf16.gmra.mxu0 %v4393
      %v4513 = vpop.f32.mrf.mxu0
      %v4514 = vadd.f32 0.0, %v4513
      %v4515 = vpop.f32.mrf.mxu0
      %v4516 = vpop.f32.mrf.mxu0
      %v4517 = vadd.f32 0.0, %v4516
      %v4518 = vpop.f32.mrf.mxu0
      %4519 = vmatprep.mubr.bf16.mxu0 0
      %4520 = vmatmul.mubr.bf16.gmra.mxu0 %v4396
      %v4521 = vpop.f32.mrf.mxu0
      %v4522 = vadd.f32 0.0, %v4521
      %v4523 = vpop.f32.mrf.mxu0
      %v4524 = vpop.f32.mrf.mxu0
      %v4525 = vadd.f32 0.0, %v4524
      %v4526 = vpop.f32.mrf.mxu0
      %4527 = vmatprep.mubr.bf16.mxu0 0
      %4528 = vmatmul.mubr.bf16.gmra.mxu0 %v4399
      %v4529 = vpop.f32.mrf.mxu0
      %v4530 = vadd.f32 0.0, %v4529
      %v4531 = vpop.f32.mrf.mxu0
      %v4532 = vpop.f32.mrf.mxu0
      %v4533 = vadd.f32 0.0, %v4532
      %v4534 = vpop.f32.mrf.mxu0
      %4535 = vmatprep.mubr.bf16.mxu0 0
      %4536 = vmatmul.mubr.bf16.gmra.mxu0 %v4402
      %v4537 = vpop.f32.mrf.mxu0
      %v4538 = vadd.f32 0.0, %v4537
      %v4539 = vpop.f32.mrf.mxu0
      %v4540 = vpop.f32.mrf.mxu0
      %v4541 = vadd.f32 0.0, %v4540
      %v4542 = vpop.f32.mrf.mxu0
      %4543 = vmatprep.mubr.bf16.mxu0 0
      %4544 = vmatmul.mubr.bf16.gmra.mxu0 %v4405
      %v4545 = vpop.f32.mrf.mxu0
      %v4546 = vadd.f32 0.0, %v4545
      %v4547 = vpop.f32.mrf.mxu0
      %v4548 = vpop.f32.mrf.mxu0
      %v4549 = vadd.f32 0.0, %v4548
      %v4550 = vpop.f32.mrf.mxu0
      %4551 = vmatprep.mubr.bf16.mxu0 0
      %4552 = vmatmul.mubr.bf16.gmra.mxu0 %v4408
      %v4553 = vpop.f32.mrf.mxu0
      %v4554 = vadd.f32 0.0, %v4553
      %v4555 = vpop.f32.mrf.mxu0
      %v4556 = vpop.f32.mrf.mxu0
      %v4557 = vadd.f32 0.0, %v4556
      %v4558 = vpop.f32.mrf.mxu0
      %4559 = vmatprep.mubr.bf16.mxu0 0
      %4560 = vmatmul.mubr.bf16.gmra.mxu0 %v4411
      %v4561 = vpop.f32.mrf.mxu0
      %v4562 = vadd.f32 0.0, %v4561
      %v4563 = vpop.f32.mrf.mxu0
      %v4564 = vpop.f32.mrf.mxu0
      %v4565 = vadd.f32 0.0, %v4564
      %v4566 = vpop.f32.mrf.mxu0
      %4567 = vmatprep.mubr.bf16.mxu0 0
      %4568 = vmatmul.mubr.bf16.gmra.mxu0 %v4414
      %v4569 = vpop.f32.mrf.mxu0
      %v4570 = vadd.f32 0.0, %v4569
      %v4571 = vpop.f32.mrf.mxu0
      %v4572 = vpop.f32.mrf.mxu0
      %v4573 = vadd.f32 0.0, %v4572
      %v4574 = vpop.f32.mrf.mxu0
      %4575 = vmatprep.mubr.bf16.mxu0 0
      %4576 = vmatmul.mubr.bf16.gmra.mxu0 %v4417
      %v4577 = vpop.f32.mrf.mxu0
      %v4578 = vadd.f32 0.0, %v4577
      %v4579 = vpop.f32.mrf.mxu0
      %v4580 = vpop.f32.mrf.mxu0
      %v4581 = vadd.f32 0.0, %v4580
      %v4582 = vpop.f32.mrf.mxu0
      %4583 = vdwg.mxu0
      %v4584 = vpack.c.bf16 %v4461, %v4458
      %v4585 = vpack.c.bf16 %v4469, %v4466
      %v4586 = vpack.c.bf16 %v4477, %v4474
      %v4587 = vpack.c.bf16 %v4485, %v4482
      %v4588 = vpack.c.bf16 %v4493, %v4490
      %v4589 = vpack.c.bf16 %v4501, %v4498
      %v4590 = vpack.c.bf16 %v4509, %v4506
      %v4591 = vpack.c.bf16 %v4517, %v4514
      %v4592 = vpack.c.bf16 %v4525, %v4522
      %v4593 = vpack.c.bf16 %v4533, %v4530
      %v4594 = vpack.c.bf16 %v4541, %v4538
      %v4595 = vpack.c.bf16 %v4549, %v4546
      %v4596 = vpack.c.bf16 %v4557, %v4554
      %v4597 = vpack.c.bf16 %v4565, %v4562
      %v4598 = vpack.c.bf16 %v4573, %v4570
      %v4599 = vpack.c.bf16 %v4581, %v4578
      %v4616 = vunpack.c.l.b16 %v4584
      %v4617 = vunpack.c.h.b16 %v4584
      %v4618 = vunpack.c.l.b16 %v4585
      %v4619 = vunpack.c.h.b16 %v4585
      %v4620 = vunpack.c.l.b16 %v4586
      %v4621 = vunpack.c.h.b16 %v4586
      %v4622 = vunpack.c.l.b16 %v4587
      %v4623 = vunpack.c.h.b16 %v4587
      %v4624 = vunpack.c.l.b16 %v4588
      %v4625 = vunpack.c.h.b16 %v4588
      %v4626 = vunpack.c.l.b16 %v4589
      %v4627 = vunpack.c.h.b16 %v4589
      %v4628 = vunpack.c.l.b16 %v4590
      %v4629 = vunpack.c.h.b16 %v4590
      %v4630 = vunpack.c.l.b16 %v4591
      %v4631 = vunpack.c.h.b16 %v4591
      %v4632 = vunpack.c.l.b16 %v4592
      %v4633 = vunpack.c.h.b16 %v4592
      %v4634 = vunpack.c.l.b16 %v4593
      %v4635 = vunpack.c.h.b16 %v4593
      %v4636 = vunpack.c.l.b16 %v4594
      %v4637 = vunpack.c.h.b16 %v4594
      %v4638 = vunpack.c.l.b16 %v4595
      %v4639 = vunpack.c.h.b16 %v4595
      %v4640 = vunpack.c.l.b16 %v4596
      %v4641 = vunpack.c.h.b16 %v4596
      %v4642 = vunpack.c.l.b16 %v4597
      %v4643 = vunpack.c.h.b16 %v4597
      %v4644 = vunpack.c.l.b16 %v4598
      %v4645 = vunpack.c.h.b16 %v4598
      %v4646 = vunpack.c.l.b16 %v4599
      %v4647 = vunpack.c.h.b16 %v4599
      %v4648 = vpack.c.b16 %v4616, %v4616
      %v4649 = vpack.c.b16 %v4617, %v4617
      %v4650 = vpack.c.b16 %v4618, %v4618
      %v4651 = vpack.c.b16 %v4619, %v4619
      %v4652 = vpack.c.b16 %v4620, %v4620
      %v4653 = vpack.c.b16 %v4621, %v4621
      %v4654 = vpack.c.b16 %v4622, %v4622
      %v4655 = vpack.c.b16 %v4623, %v4623
      %v4656 = vpack.c.b16 %v4624, %v4624
      %v4657 = vpack.c.b16 %v4625, %v4625
      %v4658 = vpack.c.b16 %v4626, %v4626
      %v4659 = vpack.c.b16 %v4627, %v4627
      %v4660 = vpack.c.b16 %v4628, %v4628
      %v4661 = vpack.c.b16 %v4629, %v4629
      %v4662 = vpack.c.b16 %v4630, %v4630
      %v4663 = vpack.c.b16 %v4631, %v4631
      %v4664 = vpack.c.b16 %v4632, %v4632
      %v4665 = vpack.c.b16 %v4633, %v4633
      %v4666 = vpack.c.b16 %v4634, %v4634
      %v4667 = vpack.c.b16 %v4635, %v4635
      %v4668 = vpack.c.b16 %v4636, %v4636
      %v4669 = vpack.c.b16 %v4637, %v4637
      %v4670 = vpack.c.b16 %v4638, %v4638
      %v4671 = vpack.c.b16 %v4639, %v4639
      %v4672 = vpack.c.b16 %v4640, %v4640
      %v4673 = vpack.c.b16 %v4641, %v4641
      %v4674 = vpack.c.b16 %v4642, %v4642
      %v4675 = vpack.c.b16 %v4643, %v4643
      %v4676 = vpack.c.b16 %v4644, %v4644
      %v4677 = vpack.c.b16 %v4645, %v4645
      %v4678 = vpack.c.b16 %v4646, %v4646
      %v4679 = vpack.c.b16 %v4647, %v4647
      %4712 = vst.msk [vmem:[%s262] sm:$0xf] %vm460, %v4648
      %4713 = vst.msk [vmem:[%s262 + $0x4] sm:$0xf] %vm460, %v4649
      %4714 = vst.msk [vmem:[%s262 + $0x8] sm:$0xf] %vm460, %v4650
      %4715 = vst.msk [vmem:[%s262 + $0xc] sm:$0xf] %vm460, %v4651
      %4716 = vst.msk [vmem:[%s262 + $0x10] sm:$0xf] %vm460, %v4652
      %4717 = vst.msk [vmem:[%s262 + $0x14] sm:$0xf] %vm460, %v4653
      %4718 = vst.msk [vmem:[%s262 + $0x18] sm:$0xf] %vm460, %v4654
      %4719 = vst.msk [vmem:[%s262 + $0x1c] sm:$0xf] %vm460, %v4655
      %4720 = vst.msk [vmem:[%s262 + $0x20] sm:$0xf] %vm460, %v4656
      %4721 = vst.msk [vmem:[%s262 + $0x24] sm:$0xf] %vm460, %v4657
      %4722 = vst.msk [vmem:[%s262 + $0x28] sm:$0xf] %vm460, %v4658
      %4723 = vst.msk [vmem:[%s262 + $0x2c] sm:$0xf] %vm460, %v4659
      %4724 = vst.msk [vmem:[%s262 + $0x30] sm:$0xf] %vm460, %v4660
      %4725 = vst.msk [vmem:[%s262 + $0x34] sm:$0xf] %vm460, %v4661
      %4726 = vst.msk [vmem:[%s262 + $0x38] sm:$0xf] %vm460, %v4662
      %4727 = vst.msk [vmem:[%s262 + $0x3c] sm:$0xf] %vm460, %v4663
      %4728 = vst.msk [vmem:[%s262 + $0x40] sm:$0xf] %vm460, %v4664
      %4729 = vst.msk [vmem:[%s262 + $0x44] sm:$0xf] %vm460, %v4665
      %4730 = vst.msk [vmem:[%s262 + $0x48] sm:$0xf] %vm460, %v4666
      %4731 = vst.msk [vmem:[%s262 + $0x4c] sm:$0xf] %vm460, %v4667
      %4732 = vst.msk [vmem:[%s262 + $0x50] sm:$0xf] %vm460, %v4668
      %4733 = vst.msk [vmem:[%s262 + $0x54] sm:$0xf] %vm460, %v4669
      %4734 = vst.msk [vmem:[%s262 + $0x58] sm:$0xf] %vm460, %v4670
      %4735 = vst.msk [vmem:[%s262 + $0x5c] sm:$0xf] %vm460, %v4671
      %4736 = vst.msk [vmem:[%s262 + $0x60] sm:$0xf] %vm460, %v4672
      %4737 = vst.msk [vmem:[%s262 + $0x64] sm:$0xf] %vm460, %v4673
      %4738 = vst.msk [vmem:[%s262 + $0x68] sm:$0xf] %vm460, %v4674
      %4739 = vst.msk [vmem:[%s262 + $0x6c] sm:$0xf] %vm460, %v4675
      %4740 = vst.msk [vmem:[%s262 + $0x70] sm:$0xf] %vm460, %v4676
      %4741 = vst.msk [vmem:[%s262 + $0x74] sm:$0xf] %vm460, %v4677
      %4742 = vst.msk [vmem:[%s262 + $0x78] sm:$0xf] %vm460, %v4678
      %4743 = vst.msk [vmem:[%s262 + $0x7c] sm:$0xf] %vm460, %v4679
      %vm4744 = vcmask 31744
      %v4745 = vsel %vm4744, %v4458, 0.0
      %v4746 = vsel %vm4744, %v4461, 0.0
      %v4747 = vadd.f32 %v4745, %v4746
      %v4748 = vsel %vm4744, %v4466, 0.0
      %v4749 = vadd.f32 %v4747, %v4748
      %v4750 = vsel %vm4744, %v4469, 0.0
      %v4751 = vadd.f32 %v4749, %v4750
      %v4752 = vsel %vm4744, %v4474, 0.0
      %v4753 = vadd.f32 %v4751, %v4752
      %v4754 = vsel %vm4744, %v4477, 0.0
      %v4755 = vadd.f32 %v4753, %v4754
      %v4756 = vsel %vm4744, %v4482, 0.0
      %v4757 = vadd.f32 %v4755, %v4756
      %v4758 = vsel %vm4744, %v4485, 0.0
      %v4759 = vadd.f32 %v4757, %v4758
      %v4760 = vsel %vm4744, %v4490, 0.0
      %v4761 = vadd.f32 %v4759, %v4760
      %v4762 = vsel %vm4744, %v4493, 0.0
      %v4763 = vadd.f32 %v4761, %v4762
      %v4764 = vsel %vm4744, %v4498, 0.0
      %v4765 = vadd.f32 %v4763, %v4764
      %v4766 = vsel %vm4744, %v4501, 0.0
      %v4767 = vadd.f32 %v4765, %v4766
      %v4768 = vsel %vm4744, %v4506, 0.0
      %v4769 = vadd.f32 %v4767, %v4768
      %v4770 = vsel %vm4744, %v4509, 0.0
      %v4771 = vadd.f32 %v4769, %v4770
      %v4772 = vsel %vm4744, %v4514, 0.0
      %v4773 = vadd.f32 %v4771, %v4772
      %v4774 = vsel %vm4744, %v4517, 0.0
      %v4775 = vadd.f32 %v4773, %v4774
      %v4776 = vsel %vm4744, %v4522, 0.0
      %v4777 = vadd.f32 %v4775, %v4776
      %v4778 = vsel %vm4744, %v4525, 0.0
      %v4779 = vadd.f32 %v4777, %v4778
      %v4780 = vsel %vm4744, %v4530, 0.0
      %v4781 = vadd.f32 %v4779, %v4780
      %v4782 = vsel %vm4744, %v4533, 0.0
      %v4783 = vadd.f32 %v4781, %v4782
      %v4784 = vsel %vm4744, %v4538, 0.0
      %v4785 = vadd.f32 %v4783, %v4784
      %v4786 = vsel %vm4744, %v4541, 0.0
      %v4787 = vadd.f32 %v4785, %v4786
      %v4788 = vsel %vm4744, %v4546, 0.0
      %v4789 = vadd.f32 %v4787, %v4788
      %v4790 = vsel %vm4744, %v4549, 0.0
      %v4791 = vadd.f32 %v4789, %v4790
      %v4792 = vsel %vm4744, %v4554, 0.0
      %v4793 = vadd.f32 %v4791, %v4792
      %v4794 = vsel %vm4744, %v4557, 0.0
      %v4795 = vadd.f32 %v4793, %v4794
      %v4796 = vsel %vm4744, %v4562, 0.0
      %v4797 = vadd.f32 %v4795, %v4796
      %v4798 = vsel %vm4744, %v4565, 0.0
      %v4799 = vadd.f32 %v4797, %v4798
      %v4800 = vsel %vm4744, %v4570, 0.0
      %v4801 = vadd.f32 %v4799, %v4800
      %v4802 = vsel %vm4744, %v4573, 0.0
      %v4803 = vadd.f32 %v4801, %v4802
      %v4804 = vsel %vm4744, %v4578, 0.0
      %v4805 = vadd.f32 %v4803, %v4804
      %v4806 = vsel %vm4744, %v4581, 0.0
      %v4807 = vadd.f32 %v4805, %v4806
      %v4808 = vrot.slane %v4807, 4
      %v4809 = vadd.f32 %v4807, %v4808
      %v4810 = vrot.slane %v4809, 2
      %v4811 = vadd.f32 %v4809, %v4810
      %v4812 = vrot.slane %v4811, 1
      %v4813 = vadd.f32 %v4811, %v4812
      %4814 = vst.msk [vmem:[%s265] sm:$0x1] %vm463, %v4813
      %v4815 = vmul.f32 %v4458, %v4458
      %v4816 = vmul.f32 %v4461, %v4461
      %v4817 = vmul.f32 %v4466, %v4466
      %v4818 = vmul.f32 %v4469, %v4469
      %v4819 = vmul.f32 %v4474, %v4474
      %v4820 = vmul.f32 %v4477, %v4477
      %v4821 = vmul.f32 %v4482, %v4482
      %v4822 = vmul.f32 %v4485, %v4485
      %v4823 = vmul.f32 %v4490, %v4490
      %v4824 = vmul.f32 %v4493, %v4493
      %v4825 = vmul.f32 %v4498, %v4498
      %v4826 = vmul.f32 %v4501, %v4501
      %v4827 = vmul.f32 %v4506, %v4506
      %v4828 = vmul.f32 %v4509, %v4509
      %v4829 = vmul.f32 %v4514, %v4514
      %v4830 = vmul.f32 %v4517, %v4517
      %v4831 = vmul.f32 %v4522, %v4522
      %v4832 = vmul.f32 %v4525, %v4525
      %v4833 = vmul.f32 %v4530, %v4530
      %v4834 = vmul.f32 %v4533, %v4533
      %v4835 = vmul.f32 %v4538, %v4538
      %v4836 = vmul.f32 %v4541, %v4541
      %v4837 = vmul.f32 %v4546, %v4546
      %v4838 = vmul.f32 %v4549, %v4549
      %v4839 = vmul.f32 %v4554, %v4554
      %v4840 = vmul.f32 %v4557, %v4557
      %v4841 = vmul.f32 %v4562, %v4562
      %v4842 = vmul.f32 %v4565, %v4565
      %v4843 = vmul.f32 %v4570, %v4570
      %v4844 = vmul.f32 %v4573, %v4573
      %v4845 = vmul.f32 %v4578, %v4578
      %v4846 = vmul.f32 %v4581, %v4581
      %v4847 = vsel %vm4744, %v4815, 0.0
      %v4848 = vsel %vm4744, %v4816, 0.0
      %v4849 = vadd.f32 %v4847, %v4848
      %v4850 = vsel %vm4744, %v4817, 0.0
      %v4851 = vadd.f32 %v4849, %v4850
      %v4852 = vsel %vm4744, %v4818, 0.0
      %v4853 = vadd.f32 %v4851, %v4852
      %v4854 = vsel %vm4744, %v4819, 0.0
      %v4855 = vadd.f32 %v4853, %v4854
      %v4856 = vsel %vm4744, %v4820, 0.0
      %v4857 = vadd.f32 %v4855, %v4856
      %v4858 = vsel %vm4744, %v4821, 0.0
      %v4859 = vadd.f32 %v4857, %v4858
      %v4860 = vsel %vm4744, %v4822, 0.0
      %v4861 = vadd.f32 %v4859, %v4860
      %v4862 = vsel %vm4744, %v4823, 0.0
      %v4863 = vadd.f32 %v4861, %v4862
      %v4864 = vsel %vm4744, %v4824, 0.0
      %v4865 = vadd.f32 %v4863, %v4864
      %v4866 = vsel %vm4744, %v4825, 0.0
      %v4867 = vadd.f32 %v4865, %v4866
      %v4868 = vsel %vm4744, %v4826, 0.0
      %v4869 = vadd.f32 %v4867, %v4868
      %v4870 = vsel %vm4744, %v4827, 0.0
      %v4871 = vadd.f32 %v4869, %v4870
      %v4872 = vsel %vm4744, %v4828, 0.0
      %v4873 = vadd.f32 %v4871, %v4872
      %v4874 = vsel %vm4744, %v4829, 0.0
      %v4875 = vadd.f32 %v4873, %v4874
      %v4876 = vsel %vm4744, %v4830, 0.0
      %v4877 = vadd.f32 %v4875, %v4876
      %v4878 = vsel %vm4744, %v4831, 0.0
      %v4879 = vadd.f32 %v4877, %v4878
      %v4880 = vsel %vm4744, %v4832, 0.0
      %v4881 = vadd.f32 %v4879, %v4880
      %v4882 = vsel %vm4744, %v4833, 0.0
      %v4883 = vadd.f32 %v4881, %v4882
      %v4884 = vsel %vm4744, %v4834, 0.0
      %v4885 = vadd.f32 %v4883, %v4884
      %v4886 = vsel %vm4744, %v4835, 0.0
      %v4887 = vadd.f32 %v4885, %v4886
      %v4888 = vsel %vm4744, %v4836, 0.0
      %v4889 = vadd.f32 %v4887, %v4888
      %v4890 = vsel %vm4744, %v4837, 0.0
      %v4891 = vadd.f32 %v4889, %v4890
      %v4892 = vsel %vm4744, %v4838, 0.0
      %v4893 = vadd.f32 %v4891, %v4892
      %v4894 = vsel %vm4744, %v4839, 0.0
      %v4895 = vadd.f32 %v4893, %v4894
      %v4896 = vsel %vm4744, %v4840, 0.0
      %v4897 = vadd.f32 %v4895, %v4896
      %v4898 = vsel %vm4744, %v4841, 0.0
      %v4899 = vadd.f32 %v4897, %v4898
      %v4900 = vsel %vm4744, %v4842, 0.0
      %v4901 = vadd.f32 %v4899, %v4900
      %v4902 = vsel %vm4744, %v4843, 0.0
      %v4903 = vadd.f32 %v4901, %v4902
      %v4904 = vsel %vm4744, %v4844, 0.0
      %v4905 = vadd.f32 %v4903, %v4904
      %v4906 = vsel %vm4744, %v4845, 0.0
      %v4907 = vadd.f32 %v4905, %v4906
      %v4908 = vsel %vm4744, %v4846, 0.0
      %v4909 = vadd.f32 %v4907, %v4908
      %v4910 = vrot.slane %v4909, 4
      %v4911 = vadd.f32 %v4909, %v4910
      %v4912 = vrot.slane %v4911, 2
      %v4913 = vadd.f32 %v4911, %v4912
      %v4914 = vrot.slane %v4913, 1
      %v4915 = vadd.f32 %v4913, %v4914
      %4916 = vst.msk [vmem:[%s268] sm:$0x1] %vm463, %v4915
      %p4917 = scmp.lt.s32.totalorder %s18, 1
      %s4918 = scalar_select %p4917, %s18, 1
      %s4919 = smul.addr %s4918, 32
      %s4920 = smul.addr %s4919, 4
      %s4921 = scalar_lea.vmem %s4, %s4920
      %p4922 = scmp.lt.s32.totalorder %s18, 1
      %s4923 = scalar_select %p4922, %s18, 1
      %s4924 = scalar_lea.vmem %s5, %s4923
      %p4925 = scmp.lt.s32.totalorder %s18, 1
      %s4926 = scalar_select %p4925, %s18, 1
      %s4927 = scalar_lea.vmem %s6, %s4926
      // Predicated region
      $region37: #{_lambda_.6} parent=35 // pred_check
        %p4928 = pneg %p125
      $region38: #{_lambda_.6} parent=35 // pred_check_branch
        %4930 = sbr.rel (%p4928) target = $region40
      $region39: #{_lambda_.6} parent=35 // pred_region
        _
      $region40: #{_lambda_.6} parent=35 // pred_fallthru
        _
      // Predicated region
      $region41: #{_lambda_.6} parent=35 // pred_check
        %p4931 = pneg %p151
      $region42: #{_lambda_.6} parent=35 // pred_check_branch
        %4933 = sbr.rel (%p4931) target = $region44
      $region43: #{_lambda_.6} parent=35 // pred_region
        _
      $region44: #{_lambda_.6} parent=35 // pred_fallthru
        _
      // Predicated region
      $region45: #{_lambda_.6} parent=35 // pred_check
        %p4934 = pneg %p177
      $region46: #{_lambda_.6} parent=35 // pred_check_branch
        %4936 = sbr.rel (%p4934) target = $region48
      $region47: #{_lambda_.6} parent=35 // pred_region
        _
      $region48: #{_lambda_.6} parent=35 // pred_fallthru
        _
    $region36: #{_lambda_.6} parent=5 // pred_fallthru
      _
    %p4937 = scmp.le.s32.totalorder 2, %s13
    // Predicated region
    $region49: #{_lambda_.6} parent=5 // pred_check
      %p4938 = pneg %p4937
    $region50: #{_lambda_.6} parent=5 // pred_check_branch
      %4940 = sbr.rel (%p4938) target = $region52
    $region51: #{_lambda_.6} parent=5 // pred_region
      %s4941 = ssub.s32 %s13, 2
      // Predicated region
      $region53: #{_lambda_.6} parent=51 // pred_check
        %p4942 = pneg %p131
      $region54: #{_lambda_.6} parent=51 // pred_check_branch
        %4944 = sbr.rel (%p4942) target = $region56
      $region55: #{_lambda_.6} parent=51 // pred_region
        %p4945 = scmp.lt.s32.totalorder %s19, 1
        %s4946 = scalar_select %p4945, %s19, 1
        %s4947 = smul.addr %s4946, 32
        %s4948 = smul.addr %s4947, 4
        %s4949 = scalar_lea.vmem %s4, %s4948
      $region56: #{_lambda_.6} parent=51 // pred_fallthru
        _
      // Predicated region
      $region57: #{_lambda_.6} parent=51 // pred_check
        %p4950 = pneg %p157
      $region58: #{_lambda_.6} parent=51 // pred_check_branch
        %4952 = sbr.rel (%p4950) target = $region60
      $region59: #{_lambda_.6} parent=51 // pred_region
        %p4953 = scmp.lt.s32.totalorder %s19, 1
        %s4954 = scalar_select %p4953, %s19, 1
        %s4955 = scalar_lea.vmem %s5, %s4954
      $region60: #{_lambda_.6} parent=51 // pred_fallthru
        _
      // Predicated region
      $region61: #{_lambda_.6} parent=51 // pred_check
        %p4956 = pneg %p183
      $region62: #{_lambda_.6} parent=51 // pred_check_branch
        %4958 = sbr.rel (%p4956) target = $region64
      $region63: #{_lambda_.6} parent=51 // pred_region
        %p4959 = scmp.lt.s32.totalorder %s19, 1
        %s4960 = scalar_select %p4959, %s19, 1
        %s4961 = scalar_lea.vmem %s6, %s4960
      $region64: #{_lambda_.6} parent=51 // pred_fallthru
        _
    $region52: #{_lambda_.6} parent=5 // pred_fallthru
      _
  $region6: #{_lambda_.6} parent=0 // loop_footer
    %s17 = sadd.s32 1, %s13
  $region7: #{_lambda_.6} parent=0 // loop_footer_branch
    %12 = sbr.rel target = $region3
  $region8: #{_lambda_.6} parent=0 // loop_exit
    _

</llo_original>
